<compile_context>
chip_gen: v6e
topology: v6e:2x2x1
jax: 0.10.0
libtpu: 0.0.40
codegen_flags: <defaults>
</compile_context>

<pallas_src>
import jax
import jax.numpy as jnp
from jax.experimental import pallas as pl
from jax.experimental.pallas import tpu as pltpu

IN_FEATURES = 196608
OUT_FEATURES = 10


def _round_up(a: int, m: int) -> int:
    return (a + m - 1) // m * m


def _linear_kernel(x_ref, w_ref, o_ref, acc_ref):
    """VPU multiply-accumulate for o[b, n] = sum_k x[b, k] * w[n, k].

    x_ref:   (B, tk)    f32  activation tile
    w_ref:   (N, tk)    f32  weight tile (PyTorch layout, lane-dense along K)
    o_ref:   (B, N, 1)  f32  per-split output block (written once, last k step)
    acc_ref: (B, N, 1)  f32  VMEM scratch accumulator (true f32 accumulation)
    """
    k = pl.program_id(1)

    @pl.when(k == 0)
    def _():
        acc_ref[...] = jnp.zeros_like(acc_ref)

    w = w_ref[...]                                   # (N, tk), lane-dense
    n_batch = x_ref.shape[0]                         # tiny, static
    for b in range(n_batch):
        xb = x_ref[pl.ds(b, 1), :]                   # (1, tk) row, sublane-bcast
        prod = xb * w                                # (N, tk) on the VPU
        col = jnp.sum(prod, axis=-1, keepdims=True)  # (N, 1) lane reduction
        acc_ref[b, :, :] += col                      # tiny VMEM RMW

    @pl.when(k == pl.num_programs(1) - 1)
    def _():
        o_ref[...] = acc_ref[...]                    # single write per split


def liyong_forward(x, weight, bias, *, tk=49152, n_splits=2):
    """x: (B, K) f32, weight: (N, K) f32, bias: (N,) f32 -> (B, N) f32."""
    B, K = x.shape
    N, K2 = weight.shape
    assert K == K2, "in_features mismatch"

    # Tile selection: K = 196608 = 2 splits * 2 steps * 49152 for this module.
    # For other sizes, shrink and/or zero-pad K (zero padding keeps x @ W.T
    # exact), so no shape ever assert-fails.
    tk = min(tk, _round_up(K, 128))
    if K < n_splits * tk:
        n_splits = 1
        tk = _round_up(K, 128)
    chunk = n_splits * tk
    K_pad = _round_up(K, chunk)
    if K_pad != K:
        x = jnp.pad(x, ((0, 0), (0, K_pad - K)))
        weight = jnp.pad(weight, ((0, 0), (0, K_pad - K)))
    kpc = K_pad // chunk                             # reduction steps per split

    cost = pl.CostEstimate(
        flops=2 * B * N * K_pad,
        transcendentals=0,
        bytes_accessed=4 * (B * K_pad + N * K_pad + n_splits * B * N),
    )

    partial = pl.pallas_call(
        _linear_kernel,
        out_shape=jax.ShapeDtypeStruct((n_splits, B, N, 1), jnp.float32),
        grid_spec=pltpu.PrefetchScalarGridSpec(
            num_scalar_prefetch=0,
            grid=(n_splits, kpc),
            in_specs=[
                # Activation tile: full (small) batch x tk feature slice; split
                # c owns blocks [c*kpc, (c+1)*kpc) along K.
                pl.BlockSpec((B, tk), lambda c, k: (0, c * kpc + k)),
                # Weight tile in PyTorch layout: (N, tk), lane-dense along K.
                pl.BlockSpec((N, tk), lambda c, k: (0, c * kpc + k)),
            ],
            # One (B, N, 1) partial per split; constant across the reduction
            # axis, written only at the final k step.
            out_specs=pl.BlockSpec((None, B, N, 1), lambda c, k: (c, 0, 0, 0)),
            scratch_shapes=[pltpu.VMEM((B, N, 1), jnp.float32)],
        ),
        compiler_params=pltpu.CompilerParams(
            # On v7x the "parallel" split axis is sharded across the two
            # TensorCores (disjoint K halves); sequential no-op on v5e/v6e.
            dimension_semantics=("parallel", "arbitrary"),
            vmem_limit_bytes=32 * 1024 * 1024,
        ),
        cost_estimate=cost,
    )(x, weight)

    # Tiny (n_splits, B, N, 1) reduction + bias add; XLA fuses this.
    out = partial.sum(axis=0)[:, :, 0] + bias
    return out.astype(x.dtype)


if __name__ == "__main__":
    key = jax.random.PRNGKey(0)
    kx, kw, kb = jax.random.split(key, 3)

    B = 2
    # PyTorch nn.Linear init scale: uniform(-1/sqrt(fan_in), 1/sqrt(fan_in)).
    bound = 1.0 / (IN_FEATURES ** 0.5)
    weight = jax.random.uniform(
        kw, (OUT_FEATURES, IN_FEATURES), jnp.float32, -bound, bound
    )
    bias = jax.random.uniform(kb, (OUT_FEATURES,), jnp.float32, -bound, bound)
    x = jax.random.normal(kx, (B, IN_FEATURES), jnp.float32)

    out = jax.block_until_ready(liyong_forward(x, weight, bias))

    # Reference check (force full-f32 passes so the comparison is meaningful).
    ref = jnp.dot(x, weight.T, precision=jax.lax.Precision.HIGHEST) + bias
    assert out.shape == (B, OUT_FEATURES)
    assert jnp.allclose(out, ref, atol=1e-3, rtol=1e-3), "mismatch vs reference"

    print("KERNEL_OK")
</pallas_src>

<mosaic_0001>
module attributes {stable_mosaic.version = 11 : i64} {
  func.func @_linear_kernel(%arg0: i32, %arg1: i32, %arg2: memref<2x49152xf32, #tpu.memory_space<vmem>>, %arg3: memref<10x49152xf32, #tpu.memory_space<vmem>>, %arg4: memref<1x2x10x1xf32, #tpu.memory_space<vmem>>, %arg5: memref<2x10x1xf32, #tpu.memory_space<vmem>>) attributes {dimension_semantics = [#tpu.dimension_semantics<parallel>, #tpu.dimension_semantics<arbitrary>], iteration_bounds = array<i64: 2, 2>, scalar_prefetch = 0 : i64, scratch_operands = 1 : i64, tpu.core_type = #tpu.core_type<tc>, window_params = [{transform_indices = @transform_0, window_bounds = array<i64: 2, 49152>}, {transform_indices = @transform_1, window_bounds = array<i64: 10, 49152>}, {transform_indices = @transform_2, window_bounds = array<i64: 1, 2, 10, 1>}]} {
    %c0_i32 = arith.constant 0 : i32
    %0 = arith.cmpi eq, %arg1, %c0_i32 : i32
    %1 = arith.extui %0 : i1 to i32
    %c0_i32_0 = arith.constant 0 : i32
    %2 = arith.cmpi ne, %1, %c0_i32_0 : i32
    scf.if %2 {
      %cst_19 = arith.constant 0.000000e+00 : f32
      %29 = vector.broadcast %cst_19 : f32 to vector<2x10x1xf32>
      %c0_20 = arith.constant 0 : index
      %c0_21 = arith.constant 0 : index
      %c0_22 = arith.constant 0 : index
      %30 = vector.load %arg5[%c0_20, %c0_21, %c0_22] : memref<2x10x1xf32, #tpu.memory_space<vmem>>, vector<2x10x1xf32>
      tpu.vector_store %arg5[%c0_20, %c0_21, %c0_22], %29 {strides = array<i32>} : memref<2x10x1xf32, #tpu.memory_space<vmem>>, vector<2x10x1xf32>,
    } else {
    }
    %c0 = arith.constant 0 : index
    %c0_1 = arith.constant 0 : index
    %3 = vector.load %arg3[%c0, %c0_1] : memref<10x49152xf32, #tpu.memory_space<vmem>>, vector<10x49152xf32>
    %c0_2 = arith.constant 0 : index
    %c0_3 = arith.constant 0 : index
    %4 = vector.load %arg2[%c0_2, %c0_3] : memref<2x49152xf32, #tpu.memory_space<vmem>>, vector<1x49152xf32>
    %5 = vector.broadcast %4 : vector<1x49152xf32> to vector<10x49152xf32>
    %6 = arith.mulf %5, %3 : vector<10x49152xf32>
    %cst = arith.constant dense<0.000000e+00> : vector<10xf32>
    %7 = vector.multi_reduction <add>, %6, %cst [1] : vector<10x49152xf32> to vector<10xf32>
    %8 = vector.shape_cast %7 : vector<10xf32> to vector<10x1xf32>
    %c0_4 = arith.constant 0 : index
    %c0_5 = arith.constant 0 : index
    %c0_6 = arith.constant 0 : index
    %9 = vector.load %arg5[%c0_4, %c0_5, %c0_6] : memref<2x10x1xf32, #tpu.memory_space<vmem>>, vector<1x10x1xf32>
    %10 = vector.shape_cast %9 : vector<1x10x1xf32> to vector<10x1xf32>
    %11 = arith.addf %10, %8 : vector<10x1xf32>
    %c0_7 = arith.constant 0 : index
    %c0_8 = arith.constant 0 : index
    %c0_9 = arith.constant 0 : index
    %12 = vector.load %arg5[%c0_7, %c0_8, %c0_9] : memref<2x10x1xf32, #tpu.memory_space<vmem>>, vector<1x10x1xf32>
    %13 = vector.shape_cast %12 : vector<1x10x1xf32> to vector<10x1xf32>
    %14 = vector.shape_cast %11 : vector<10x1xf32> to vector<1x10x1xf32>
    tpu.vector_store %arg5[%c0_7, %c0_8, %c0_9], %14 {strides = array<i32>} : memref<2x10x1xf32, #tpu.memory_space<vmem>>, vector<1x10x1xf32>,
    %c1 = arith.constant 1 : index
    %c0_10 = arith.constant 0 : index
    %15 = vector.load %arg2[%c1, %c0_10] : memref<2x49152xf32, #tpu.memory_space<vmem>>, vector<1x49152xf32>
    %16 = vector.broadcast %15 : vector<1x49152xf32> to vector<10x49152xf32>
    %17 = arith.mulf %16, %3 : vector<10x49152xf32>
    %cst_11 = arith.constant dense<0.000000e+00> : vector<10xf32>
    %18 = vector.multi_reduction <add>, %17, %cst_11 [1] : vector<10x49152xf32> to vector<10xf32>
    %19 = vector.shape_cast %18 : vector<10xf32> to vector<10x1xf32>
    %c1_12 = arith.constant 1 : index
    %c0_13 = arith.constant 0 : index
    %c0_14 = arith.constant 0 : index
    %20 = vector.load %arg5[%c1_12, %c0_13, %c0_14] : memref<2x10x1xf32, #tpu.memory_space<vmem>>, vector<1x10x1xf32>
    %21 = vector.shape_cast %20 : vector<1x10x1xf32> to vector<10x1xf32>
    %22 = arith.addf %21, %19 : vector<10x1xf32>
    %c1_15 = arith.constant 1 : index
    %c0_16 = arith.constant 0 : index
    %c0_17 = arith.constant 0 : index
    %23 = vector.load %arg5[%c1_15, %c0_16, %c0_17] : memref<2x10x1xf32, #tpu.memory_space<vmem>>, vector<1x10x1xf32>
    %24 = vector.shape_cast %23 : vector<1x10x1xf32> to vector<10x1xf32>
    %25 = vector.shape_cast %22 : vector<10x1xf32> to vector<1x10x1xf32>
    tpu.vector_store %arg5[%c1_15, %c0_16, %c0_17], %25 {strides = array<i32>} : memref<2x10x1xf32, #tpu.memory_space<vmem>>, vector<1x10x1xf32>,
    %c1_i32 = arith.constant 1 : i32
    %26 = arith.cmpi eq, %arg1, %c1_i32 : i32
    %27 = arith.extui %26 : i1 to i32
    %c0_i32_18 = arith.constant 0 : i32
    %28 = arith.cmpi ne, %27, %c0_i32_18 : i32
    scf.if %28 {
      %c0_19 = arith.constant 0 : index
      %c0_20 = arith.constant 0 : index
      %c0_21 = arith.constant 0 : index
      %29 = vector.load %arg5[%c0_19, %c0_20, %c0_21] : memref<2x10x1xf32, #tpu.memory_space<vmem>>, vector<2x10x1xf32>
      %c0_22 = arith.constant 0 : index
      %c0_23 = arith.constant 0 : index
      %c0_24 = arith.constant 0 : index
      %c0_25 = arith.constant 0 : index
      %30 = vector.load %arg4[%c0_22, %c0_23, %c0_24, %c0_25] : memref<1x2x10x1xf32, #tpu.memory_space<vmem>>, vector<1x2x10x1xf32>
      %31 = vector.shape_cast %30 : vector<1x2x10x1xf32> to vector<2x10x1xf32>
      %32 = vector.shape_cast %29 : vector<2x10x1xf32> to vector<1x2x10x1xf32>
      tpu.vector_store %arg4[%c0_22, %c0_23, %c0_24, %c0_25], %32 {strides = array<i32>} : memref<1x2x10x1xf32, #tpu.memory_space<vmem>>, vector<1x2x10x1xf32>,
    } else {
    }
    return
  }
  func.func @transform_0(%arg0: i32, %arg1: i32) -> (i32, i32) {
    %c2_i32 = arith.constant 2 : i32
    %0 = arith.muli %arg0, %c2_i32 : i32
    %1 = arith.addi %0, %arg1 : i32
    %c0_i32 = arith.constant 0 : i32
    %c0_i32_0 = arith.constant 0 : i32
    return %c0_i32, %1 : i32, i32
  }
  func.func @transform_1(%arg0: i32, %arg1: i32) -> (i32, i32) {
    %c2_i32 = arith.constant 2 : i32
    %0 = arith.muli %arg0, %c2_i32 : i32
    %1 = arith.addi %0, %arg1 : i32
    %c0_i32 = arith.constant 0 : i32
    %c0_i32_0 = arith.constant 0 : i32
    return %c0_i32, %1 : i32, i32
  }
  func.func @transform_2(%arg0: i32, %arg1: i32) -> (i32, i32, i32, i32) {
    %c0_i32 = arith.constant 0 : i32
    %c0_i32_0 = arith.constant 0 : i32
    %c0_i32_1 = arith.constant 0 : i32
    %c0_i32_2 = arith.constant 0 : i32
    return %arg0, %c0_i32, %c0_i32_0, %c0_i32_1 : i32, i32, i32, i32
  }
}

</mosaic_0001>

<llo_original>
// kernel: tpu_custom_call.1
$region0: #{tpu_custom_call.1}
  #allocation0 [shape = 'u32[]', space=smem, size = 0x4, offset = 0x4, fixed_abs, tag = 'smem constant byte address 0x4 - core index']
  #allocation1 [shape = 'u32[144,128]{1,0:T(1,128)}', space=vmem, size = 0x12000, scoped, tag = 'internal scratch']
  #allocation2 [shape = 'f32[2,10,1]{2,1,0:T(8,128)}', space=vmem, size = 0x4000, scoped, tag = 'scratch operand']
  %s0 = inlined_call_operand.hbm [shape: f32[2,196608], index: 0, kind: input, shape index: {}]
  %s1 = inlined_call_operand.hbm [shape: f32[10,196608], index: 1, kind: input, shape index: {}]
  %s2 = inlined_call_operand.vmem [shape: f32[2,2,10,1], index: 2, kind: output, shape index: {}]
  %s3 = sld [smem:[#allocation0]]
  $region57: #{tpu_custom_call.1} parent=0
    _
  %s5 = ssub.s32 1, %s3
  %s6 = scalar_select 0, %s5, %s3
  $region1: #{tpu_custom_call.1} parent=0
    #allocation3 [shape = 'u8[786432]{0}', space=vmem, size = 0xc0000, scoped, tag = 'input window, operand 0']
    #allocation4 [shape = 's32[2]{0}', space=sflag, size = 0x8, scoped, tag = 'scoped memory for tpu_custom_call.1']
    #allocation5 [shape = 'u8[6291456]{0}', space=vmem, size = 0x600000, scoped, tag = 'input window, operand 1']
    #allocation6 [shape = 's32[2]{0}', space=sflag, size = 0x8, scoped, tag = 'scoped memory for tpu_custom_call.1']
    %7 = vsyncpa [#allocation4], 0
    %s8 = scalar_lea.sflag [#allocation4], 1
    %9 = vsyncpa %s8, 0
    %10 = vsyncpa [#allocation6], 0
    %s11 = scalar_lea.sflag [#allocation6], 1
    %12 = vsyncpa %s11, 0
    loop: start=0, step=1, limit=6
    $region2: #{tpu_custom_call.1} parent=1 // loop_pre_header
      _
    $region3: #{tpu_custom_call.1} parent=1 // loop_header
      %s14 = sphi 0, %s18
      %p15 = scmp.ge.s32.totalorder %s14, 6
      %s21 = sphi 0, %s33
      %s22 = sphi 0, %s29
      %s23 = sphi 0, %s21
      %s24 = sphi 0, %s22
      %s25 = sphi 0, %s23
      %s26 = sphi 0, %s24
      %s40 = sphi 0, %s42
      %s43 = sphi 0, %s40
      %s44 = sphi 0, %s43
      %s60 = sphi 0, %s44
      %s70 = sphi 0, %s72
      %s73 = sphi 0, %s70
      %s74 = sphi 0, %s73
      %s90 = sphi 0, %s74
      %s96 = sphi 0, %s98
      %s99 = sphi 0, %s96
      %s100 = sphi 0, %s99
      %s116 = sphi 0, %s100
    $region4: #{tpu_custom_call.1} parent=1 // loop_header_branch
      %17 = sbr.rel (%p15) target = $region8
    $region5: #{tpu_custom_call.1} parent=1 // loop_body
      %s19 = ssub.s32 %s14, 1
      %s20 = ssub.s32 %s14, 2
      %s27 = sadd.s32 1, %s22
      %p28 = scmp.ge.s32.totalorder %s27, 2
      %s29 = scalar_select %p28, 0, %s27
      %s30 = sadd.s32 1, %s21
      %s31 = scalar_select %p28, %s30, %s21
      %p32 = scmp.ge.s32.totalorder %s31, 2
      %s33 = scalar_select %p32, 0, %s31
      %s34 = smul.u32 %s21, 2
      %s35 = sadd.s32 %s34, %s22
      %s36 = smul.u32 %s33, 2
      %s37 = sadd.s32 %s36, %s29
      %s38 = ssub.s32 %s35, %s37
      %p39 = scmp.eq.s32.totalorder %s38, 0
      %s41 = sadd.s32 %s40, 1
      %s42 = scalar_select %p39, %s40, %s41
      %p45 = pneg %p39
      %p46 = scmp.eq.s32.totalorder %s14, 3
      %p47 = por %p45, %p46
      %p48 = scmp.ne.s32.totalorder %s40, %s43
      %p49 = scmp.eq.s32.totalorder %s14, 0
      %p50 = por %p48, %p49
      %p51 = scmp.ne.s32.totalorder %s40, %s43
      %p52 = scmp.eq.s32.totalorder %s19, 3
      %p53 = por %p51, %p52
      %p54 = scmp.ne.s32.totalorder %s43, %s44
      %p55 = scmp.eq.s32.totalorder %s19, 0
      %p56 = por %p54, %p55
      %p57 = scmp.ne.s32.totalorder %s43, %s44
      %p58 = scmp.eq.s32.totalorder %s20, 3
      %p59 = por %p57, %p58
      %p61 = scmp.ne.s32.totalorder %s44, %s60
      %p62 = scmp.eq.s32.totalorder %s20, 0
      %p63 = por %p61, %p62
      %s64 = smul.u32 %s21, 2
      %s65 = sadd.s32 %s64, %s22
      %s66 = smul.u32 %s33, 2
      %s67 = sadd.s32 %s66, %s29
      %s68 = ssub.s32 %s65, %s67
      %p69 = scmp.eq.s32.totalorder %s68, 0
      %s71 = sadd.s32 %s70, 1
      %s72 = scalar_select %p69, %s70, %s71
      %p75 = pneg %p69
      %p76 = scmp.eq.s32.totalorder %s14, 3
      %p77 = por %p75, %p76
      %p78 = scmp.ne.s32.totalorder %s70, %s73
      %p79 = scmp.eq.s32.totalorder %s14, 0
      %p80 = por %p78, %p79
      %p81 = scmp.ne.s32.totalorder %s70, %s73
      %p82 = scmp.eq.s32.totalorder %s19, 3
      %p83 = por %p81, %p82
      %p84 = scmp.ne.s32.totalorder %s73, %s74
      %p85 = scmp.eq.s32.totalorder %s19, 0
      %p86 = por %p84, %p85
      %p87 = scmp.ne.s32.totalorder %s73, %s74
      %p88 = scmp.eq.s32.totalorder %s20, 3
      %p89 = por %p87, %p88
      %p91 = scmp.ne.s32.totalorder %s74, %s90
      %p92 = scmp.eq.s32.totalorder %s20, 0
      %p93 = por %p91, %p92
      %s94 = ssub.s32 %s21, %s33
      %p95 = scmp.eq.s32.totalorder %s94, 0
      %s97 = sadd.s32 %s96, 1
      %s98 = scalar_select %p95, %s96, %s97
      %p101 = pneg %p95
      %p102 = scmp.eq.s32.totalorder %s14, 3
      %p103 = por %p101, %p102
      %p104 = scmp.ne.s32.totalorder %s96, %s99
      %p105 = scmp.eq.s32.totalorder %s14, 0
      %p106 = por %p104, %p105
      %p107 = scmp.ne.s32.totalorder %s96, %s99
      %p108 = scmp.eq.s32.totalorder %s19, 3
      %p109 = por %p107, %p108
      %p110 = scmp.ne.s32.totalorder %s99, %s100
      %p111 = scmp.eq.s32.totalorder %s19, 0
      %p112 = por %p110, %p111
      %p113 = scmp.ne.s32.totalorder %s99, %s100
      %p114 = scmp.eq.s32.totalorder %s20, 3
      %p115 = por %p113, %p114
      %p117 = scmp.ne.s32.totalorder %s100, %s116
      %p118 = scmp.eq.s32.totalorder %s20, 0
      %p119 = por %p117, %p118
      %p120 = scmp.le.s32.totalorder 1, %s14
      %p121 = scmp.lt.s32.totalorder %s14, 5
      %p122 = pnand %p120, %p121
      %p123 = pneg %p122
      // Predicated region
      $region9: #{tpu_custom_call.1} parent=5 // pred_check
        _
      $region10: #{tpu_custom_call.1} parent=5 // pred_check_branch
        %125 = sbr.rel (%p122) target = $region12
      $region11: #{tpu_custom_call.1} parent=5 // pred_region
        %s126 = ssub.s32 %s14, 1
      $region12: #{tpu_custom_call.1} parent=5 // pred_fallthru
        _
      %p127 = scmp.lt.s32.totalorder %s14, 4
      // Predicated region
      $region13: #{tpu_custom_call.1} parent=5 // pred_check
        %p128 = pneg %p127
      $region14: #{tpu_custom_call.1} parent=5 // pred_check_branch
        %130 = sbr.rel (%p128) target = $region16
      $region15: #{tpu_custom_call.1} parent=5 // pred_region
        // Predicated region
        $region17: #{tpu_custom_call.1} parent=15 // pred_check
          %p131 = pneg %p50
        $region18: #{tpu_custom_call.1} parent=15 // pred_check_branch
          %133 = sbr.rel (%p131) target = $region20
        $region19: #{tpu_custom_call.1} parent=15 // pred_region
          %s134 = sand.u32 %s40, 1
          %s135 = scalar_lea.sflag [#allocation4], %s134
          %s136 = sand.u32 %s40, 1
          %s137 = smul.addr %s136, 768
          %s138 = scalar_lea.vmem [#allocation3], %s137
          %s139 = smul.u32 %s21, 2
          %s140 = sadd.s32 %s139, %s22
          %s141 = smul.u32 384, %s140
          %s143 = ssub.s32 12288, 12288
          %144 = vsyncadd %s135, %s143
          %s145 = smul.addr %s141, 32
          %s146 = scalar_lea.hbm %s0, %s145
          %s148 = sshll.u32 %s138, 4
          %s149 = int_to_ptr.vmem [resolvable:$true] %s148
          %151 = dma.hbm_to_vmem [thread:$0]  %s146, 12288, %s149, %s135
        $region20: #{tpu_custom_call.1} parent=15 // pred_fallthru
          _
        // Predicated region
        $region21: #{tpu_custom_call.1} parent=15 // pred_check
          %p152 = pneg %p80
        $region22: #{tpu_custom_call.1} parent=15 // pred_check_branch
          %154 = sbr.rel (%p152) target = $region24
        $region23: #{tpu_custom_call.1} parent=15 // pred_region
          %s155 = sand.u32 %s70, 1
          %s156 = scalar_lea.sflag [#allocation6], %s155
          %s157 = sand.u32 %s70, 1
          %s158 = smul.addr %s157, 6144
          %s159 = scalar_lea.vmem [#allocation5], %s158
          %s160 = smul.u32 %s21, 2
          %s161 = sadd.s32 %s160, %s22
          %s162 = smul.u32 384, %s161
          %s164 = ssub.s32 98304, 98304
          %165 = vsyncadd %s156, %s164
          %s166 = smul.addr %s162, 128
          %s167 = scalar_lea.hbm %s1, %s166
          %s168 = sshll.u32 %s159, 4
          %s169 = int_to_ptr.vmem [resolvable:$true] %s168
          %174 = dma.hbm_to_vmem [thread:$0]  %s167, 98304, %s169, %s156, 196608, 49152, 3072
        $region24: #{tpu_custom_call.1} parent=15 // pred_fallthru
          _
      $region16: #{tpu_custom_call.1} parent=5 // pred_fallthru
        _
      %p175 = scmp.le.s32.totalorder 1, %s14
      %p176 = scmp.lt.s32.totalorder %s14, 5
      %p177 = pnand %p175, %p176
      %p178 = pneg %p177
      // Predicated region
      $region25: #{tpu_custom_call.1} parent=5 // pred_check
        _
      $region26: #{tpu_custom_call.1} parent=5 // pred_check_branch
        %180 = sbr.rel (%p177) target = $region28
      $region27: #{tpu_custom_call.1} parent=5 // pred_region
        %s181 = ssub.s32 %s14, 1
        %s182 = sand.u32 %s43, 1
        %s183 = scalar_lea.sflag [#allocation4], %s182
        %s184 = sand.u32 %s43, 1
        %s185 = smul.addr %s184, 768
        %s186 = scalar_lea.vmem [#allocation3], %s185
        // Predicated region
        $region29: #{tpu_custom_call.1} parent=27 // pred_check
          %p187 = pneg %p56
        $region30: #{tpu_custom_call.1} parent=27 // pred_check_branch
          %189 = sbr.rel (%p187) target = $region32
        $region31: #{tpu_custom_call.1} parent=27 // pred_region
          %190 = dma.done %s183, 12288
        $region32: #{tpu_custom_call.1} parent=27 // pred_fallthru
          _
        %s191 = sand.u32 %s73, 1
        %s192 = scalar_lea.sflag [#allocation6], %s191
        %s193 = sand.u32 %s73, 1
        %s194 = smul.addr %s193, 6144
        %s195 = scalar_lea.vmem [#allocation5], %s194
        // Predicated region
        $region33: #{tpu_custom_call.1} parent=27 // pred_check
          %p196 = pneg %p86
        $region34: #{tpu_custom_call.1} parent=27 // pred_check_branch
          %198 = sbr.rel (%p196) target = $region36
        $region35: #{tpu_custom_call.1} parent=27 // pred_region
          %199 = dma.done %s192, 98304
        $region36: #{tpu_custom_call.1} parent=27 // pred_fallthru
          _
        %s200 = sand.u32 %s43, 1
        %s201 = scalar_lea.sflag [#allocation4], %s200
        %s202 = sand.u32 %s43, 1
        %s203 = smul.addr %s202, 768
        %s204 = scalar_lea.vmem [#allocation3], %s203
        %p205 = pneg %p56
        %p206 = pneg %p53
        %s207 = sand.u32 %s73, 1
        %s208 = scalar_lea.sflag [#allocation6], %s207
        %s209 = sand.u32 %s73, 1
        %s210 = smul.addr %s209, 6144
        %s211 = scalar_lea.vmem [#allocation5], %s210
        %p212 = pneg %p86
        %p213 = pneg %p83
        %p214 = pneg %p112
        %p215 = pneg %p109
        %p216 = scmp.lt.s32.totalorder %s23, 1
        %s217 = scalar_select %p216, %s23, 1
        %s218 = smul.addr %s217, 4
        %s219 = smul.addr %s218, 8
        %s220 = scalar_lea.vmem %s2, %s219
        %s221 = smul.u32 %s23, 2
        %s222 = sadd.s32 %s221, %s24
        %s223 = smul.u32 384, %s222
        %s224 = smul.u32 %s23, 2
        %s225 = sadd.s32 %s224, %s24
        %s226 = smul.u32 384, %s225
        %p227 = scmp.lt.s32.totalorder %s23, 1
        %s228 = scalar_select %p227, %s23, 1
        %s229 = smul.addr %s228, 4
        %s230 = smul.addr %s229, 8
        %s231 = scalar_lea.vmem %s2, %s230
        %p232 = scmp.eq.s32.totalorder %s24, 0
        // Predicated region
        $region37: #{tpu_custom_call.1} parent=27 // pred_check
          %p233 = pneg %p232
        $region38: #{tpu_custom_call.1} parent=27 // pred_check_branch
          %235 = sbr.rel (%p233) target = $region40
        $region39: #{tpu_custom_call.1} parent=27 // pred_region
          %vm236 = vcmask 7168
          %237 = vst.msk [vmem:[#allocation2] sm:$0xff] %vm236, 0.0
          %vm238 = vcmask 1024
          %239 = vst.msk [vmem:[#allocation2 + $0x8] sm:$0x3] %vm238, 0.0
          %240 = vst.msk [vmem:[#allocation2 + $0x10] sm:$0xff] %vm236, 0.0
          %241 = vst.msk [vmem:[#allocation2 + $0x18] sm:$0x3] %vm238, 0.0
        $region40: #{tpu_custom_call.1} parent=27 // pred_fallthru
          _
        %v242 = vld [vmem:[%s195] sm:$0xff]
        %v243 = vld [vmem:[%s195 + $0x8] sm:$0xff]
        %v244 = vld [vmem:[%s195 + $0x10] sm:$0xff]
        %v245 = vld [vmem:[%s195 + $0x18] sm:$0xff]
        %v246 = vld [vmem:[%s195 + $0x20] sm:$0xff]
        %v247 = vld [vmem:[%s195 + $0x28] sm:$0xff]
        %v248 = vld [vmem:[%s195 + $0x30] sm:$0xff]
        %v249 = vld [vmem:[%s195 + $0x38] sm:$0xff]
        %v250 = vld [vmem:[%s195 + $0x40] sm:$0xff]
        %v251 = vld [vmem:[%s195 + $0x48] sm:$0xff]
        %v252 = vld [vmem:[%s195 + $0x50] sm:$0xff]
        %v253 = vld [vmem:[%s195 + $0x58] sm:$0xff]
        %v254 = vld [vmem:[%s195 + $0x60] sm:$0xff]
        %v255 = vld [vmem:[%s195 + $0x68] sm:$0xff]
        %v256 = vld [vmem:[%s195 + $0x70] sm:$0xff]
        %v257 = vld [vmem:[%s195 + $0x78] sm:$0xff]
        %v258 = vld [vmem:[%s195 + $0x80] sm:$0xff]
        %v259 = vld [vmem:[%s195 + $0x88] sm:$0xff]
        %v260 = vld [vmem:[%s195 + $0x90] sm:$0xff]
        %v261 = vld [vmem:[%s195 + $0x98] sm:$0xff]
        %v262 = vld [vmem:[%s195 + $0xa0] sm:$0xff]
        %v263 = vld [vmem:[%s195 + $0xa8] sm:$0xff]
        %v264 = vld [vmem:[%s195 + $0xb0] sm:$0xff]
        %v265 = vld [vmem:[%s195 + $0xb8] sm:$0xff]
        %v266 = vld [vmem:[%s195 + $0xc0] sm:$0xff]
        %v267 = vld [vmem:[%s195 + $0xc8] sm:$0xff]
        %v268 = vld [vmem:[%s195 + $0xd0] sm:$0xff]
        %v269 = vld [vmem:[%s195 + $0xd8] sm:$0xff]
        %v270 = vld [vmem:[%s195 + $0xe0] sm:$0xff]
        %v271 = vld [vmem:[%s195 + $0xe8] sm:$0xff]
        %v272 = vld [vmem:[%s195 + $0xf0] sm:$0xff]
        %v273 = vld [vmem:[%s195 + $0xf8] sm:$0xff]
        %v274 = vld [vmem:[%s195 + $0x100] sm:$0xff]
        %v275 = vld [vmem:[%s195 + $0x108] sm:$0xff]
        %v276 = vld [vmem:[%s195 + $0x110] sm:$0xff]
        %v277 = vld [vmem:[%s195 + $0x118] sm:$0xff]
        %v278 = vld [vmem:[%s195 + $0x120] sm:$0xff]
        %v279 = vld [vmem:[%s195 + $0x128] sm:$0xff]
        %v280 = vld [vmem:[%s195 + $0x130] sm:$0xff]
        %v281 = vld [vmem:[%s195 + $0x138] sm:$0xff]
        %v282 = vld [vmem:[%s195 + $0x140] sm:$0xff]
        %v283 = vld [vmem:[%s195 + $0x148] sm:$0xff]
        %v284 = vld [vmem:[%s195 + $0x150] sm:$0xff]
        %v285 = vld [vmem:[%s195 + $0x158] sm:$0xff]
        %v286 = vld [vmem:[%s195 + $0x160] sm:$0xff]
        %v287 = vld [vmem:[%s195 + $0x168] sm:$0xff]
        %v288 = vld [vmem:[%s195 + $0x170] sm:$0xff]
        %v289 = vld [vmem:[%s195 + $0x178] sm:$0xff]
        %v290 = vld [vmem:[%s195 + $0x180] sm:$0xff]
        %v291 = vld [vmem:[%s195 + $0x188] sm:$0xff]
        %v292 = vld [vmem:[%s195 + $0x190] sm:$0xff]
        %v293 = vld [vmem:[%s195 + $0x198] sm:$0xff]
        %v294 = vld [vmem:[%s195 + $0x1a0] sm:$0xff]
        %v295 = vld [vmem:[%s195 + $0x1a8] sm:$0xff]
        %v296 = vld [vmem:[%s195 + $0x1b0] sm:$0xff]
        %v297 = vld [vmem:[%s195 + $0x1b8] sm:$0xff]
        %v298 = vld [vmem:[%s195 + $0x1c0] sm:$0xff]
        %v299 = vld [vmem:[%s195 + $0x1c8] sm:$0xff]
        %v300 = vld [vmem:[%s195 + $0x1d0] sm:$0xff]
        %v301 = vld [vmem:[%s195 + $0x1d8] sm:$0xff]
        %v302 = vld [vmem:[%s195 + $0x1e0] sm:$0xff]
        %v303 = vld [vmem:[%s195 + $0x1e8] sm:$0xff]
        %v304 = vld [vmem:[%s195 + $0x1f0] sm:$0xff]
        %v305 = vld [vmem:[%s195 + $0x1f8] sm:$0xff]
        %v306 = vld [vmem:[%s195 + $0x200] sm:$0xff]
        %v307 = vld [vmem:[%s195 + $0x208] sm:$0xff]
        %v308 = vld [vmem:[%s195 + $0x210] sm:$0xff]
        %v309 = vld [vmem:[%s195 + $0x218] sm:$0xff]
        %v310 = vld [vmem:[%s195 + $0x220] sm:$0xff]
        %v311 = vld [vmem:[%s195 + $0x228] sm:$0xff]
        %v312 = vld [vmem:[%s195 + $0x230] sm:$0xff]
        %v313 = vld [vmem:[%s195 + $0x238] sm:$0xff]
        %v314 = vld [vmem:[%s195 + $0x240] sm:$0xff]
        %v315 = vld [vmem:[%s195 + $0x248] sm:$0xff]
        %v316 = vld [vmem:[%s195 + $0x250] sm:$0xff]
        %v317 = vld [vmem:[%s195 + $0x258] sm:$0xff]
        %v318 = vld [vmem:[%s195 + $0x260] sm:$0xff]
        %v319 = vld [vmem:[%s195 + $0x268] sm:$0xff]
        %v320 = vld [vmem:[%s195 + $0x270] sm:$0xff]
        %v321 = vld [vmem:[%s195 + $0x278] sm:$0xff]
        %v322 = vld [vmem:[%s195 + $0x280] sm:$0xff]
        %v323 = vld [vmem:[%s195 + $0x288] sm:$0xff]
        %v324 = vld [vmem:[%s195 + $0x290] sm:$0xff]
        %v325 = vld [vmem:[%s195 + $0x298] sm:$0xff]
        %v326 = vld [vmem:[%s195 + $0x2a0] sm:$0xff]
        %v327 = vld [vmem:[%s195 + $0x2a8] sm:$0xff]
        %v328 = vld [vmem:[%s195 + $0x2b0] sm:$0xff]
        %v329 = vld [vmem:[%s195 + $0x2b8] sm:$0xff]
        %v330 = vld [vmem:[%s195 + $0x2c0] sm:$0xff]
        %v331 = vld [vmem:[%s195 + $0x2c8] sm:$0xff]
        %v332 = vld [vmem:[%s195 + $0x2d0] sm:$0xff]
        %v333 = vld [vmem:[%s195 + $0x2d8] sm:$0xff]
        %v334 = vld [vmem:[%s195 + $0x2e0] sm:$0xff]
        %v335 = vld [vmem:[%s195 + $0x2e8] sm:$0xff]
        %v336 = vld [vmem:[%s195 + $0x2f0] sm:$0xff]
        %v337 = vld [vmem:[%s195 + $0x2f8] sm:$0xff]
        %v338 = vld [vmem:[%s195 + $0x300] sm:$0xff]
        %v339 = vld [vmem:[%s195 + $0x308] sm:$0xff]
        %v340 = vld [vmem:[%s195 + $0x310] sm:$0xff]
        %v341 = vld [vmem:[%s195 + $0x318] sm:$0xff]
        %v342 = vld [vmem:[%s195 + $0x320] sm:$0xff]
        %v343 = vld [vmem:[%s195 + $0x328] sm:$0xff]
        %v344 = vld [vmem:[%s195 + $0x330] sm:$0xff]
        %v345 = vld [vmem:[%s195 + $0x338] sm:$0xff]
        %v346 = vld [vmem:[%s195 + $0x340] sm:$0xff]
        %v347 = vld [vmem:[%s195 + $0x348] sm:$0xff]
        %v348 = vld [vmem:[%s195 + $0x350] sm:$0xff]
        %v349 = vld [vmem:[%s195 + $0x358] sm:$0xff]
        %v350 = vld [vmem:[%s195 + $0x360] sm:$0xff]
        %v351 = vld [vmem:[%s195 + $0x368] sm:$0xff]
        %v352 = vld [vmem:[%s195 + $0x370] sm:$0xff]
        %v353 = vld [vmem:[%s195 + $0x378] sm:$0xff]
        %v354 = vld [vmem:[%s195 + $0x380] sm:$0xff]
        %v355 = vld [vmem:[%s195 + $0x388] sm:$0xff]
        %v356 = vld [vmem:[%s195 + $0x390] sm:$0xff]
        %v357 = vld [vmem:[%s195 + $0x398] sm:$0xff]
        %v358 = vld [vmem:[%s195 + $0x3a0] sm:$0xff]
        %v359 = vld [vmem:[%s195 + $0x3a8] sm:$0xff]
        %v360 = vld [vmem:[%s195 + $0x3b0] sm:$0xff]
        %v361 = vld [vmem:[%s195 + $0x3b8] sm:$0xff]
        %v362 = vld [vmem:[%s195 + $0x3c0] sm:$0xff]
        %v363 = vld [vmem:[%s195 + $0x3c8] sm:$0xff]
        %v364 = vld [vmem:[%s195 + $0x3d0] sm:$0xff]
        %v365 = vld [vmem:[%s195 + $0x3d8] sm:$0xff]
        %v366 = vld [vmem:[%s195 + $0x3e0] sm:$0xff]
        %v367 = vld [vmem:[%s195 + $0x3e8] sm:$0xff]
        %v368 = vld [vmem:[%s195 + $0x3f0] sm:$0xff]
        %v369 = vld [vmem:[%s195 + $0x3f8] sm:$0xff]
        %v370 = vld [vmem:[%s195 + $0x400] sm:$0xff]
        %v371 = vld [vmem:[%s195 + $0x408] sm:$0xff]
        %v372 = vld [vmem:[%s195 + $0x410] sm:$0xff]
        %v373 = vld [vmem:[%s195 + $0x418] sm:$0xff]
        %v374 = vld [vmem:[%s195 + $0x420] sm:$0xff]
        %v375 = vld [vmem:[%s195 + $0x428] sm:$0xff]
        %v376 = vld [vmem:[%s195 + $0x430] sm:$0xff]
        %v377 = vld [vmem:[%s195 + $0x438] sm:$0xff]
        %v378 = vld [vmem:[%s195 + $0x440] sm:$0xff]
        %v379 = vld [vmem:[%s195 + $0x448] sm:$0xff]
        %v380 = vld [vmem:[%s195 + $0x450] sm:$0xff]
        %v381 = vld [vmem:[%s195 + $0x458] sm:$0xff]
        %v382 = vld [vmem:[%s195 + $0x460] sm:$0xff]
        %v383 = vld [vmem:[%s195 + $0x468] sm:$0xff]
        %v384 = vld [vmem:[%s195 + $0x470] sm:$0xff]
        %v385 = vld [vmem:[%s195 + $0x478] sm:$0xff]
        %v386 = vld [vmem:[%s195 + $0x480] sm:$0xff]
        %v387 = vld [vmem:[%s195 + $0x488] sm:$0xff]
        %v388 = vld [vmem:[%s195 + $0x490] sm:$0xff]
        %v389 = vld [vmem:[%s195 + $0x498] sm:$0xff]
        %v390 = vld [vmem:[%s195 + $0x4a0] sm:$0xff]
        %v391 = vld [vmem:[%s195 + $0x4a8] sm:$0xff]
        %v392 = vld [vmem:[%s195 + $0x4b0] sm:$0xff]
        %v393 = vld [vmem:[%s195 + $0x4b8] sm:$0xff]
        %v394 = vld [vmem:[%s195 + $0x4c0] sm:$0xff]
        %v395 = vld [vmem:[%s195 + $0x4c8] sm:$0xff]
        %v396 = vld [vmem:[%s195 + $0x4d0] sm:$0xff]
        %v397 = vld [vmem:[%s195 + $0x4d8] sm:$0xff]
        %v398 = vld [vmem:[%s195 + $0x4e0] sm:$0xff]
        %v399 = vld [vmem:[%s195 + $0x4e8] sm:$0xff]
        %v400 = vld [vmem:[%s195 + $0x4f0] sm:$0xff]
        %v401 = vld [vmem:[%s195 + $0x4f8] sm:$0xff]
        %v402 = vld [vmem:[%s195 + $0x500] sm:$0xff]
        %v403 = vld [vmem:[%s195 + $0x508] sm:$0xff]
        %v404 = vld [vmem:[%s195 + $0x510] sm:$0xff]
        %v405 = vld [vmem:[%s195 + $0x518] sm:$0xff]
        %v406 = vld [vmem:[%s195 + $0x520] sm:$0xff]
        %v407 = vld [vmem:[%s195 + $0x528] sm:$0xff]
        %v408 = vld [vmem:[%s195 + $0x530] sm:$0xff]
        %v409 = vld [vmem:[%s195 + $0x538] sm:$0xff]
        %v410 = vld [vmem:[%s195 + $0x540] sm:$0xff]
        %v411 = vld [vmem:[%s195 + $0x548] sm:$0xff]
        %v412 = vld [vmem:[%s195 + $0x550] sm:$0xff]
        %v413 = vld [vmem:[%s195 + $0x558] sm:$0xff]
        %v414 = vld [vmem:[%s195 + $0x560] sm:$0xff]
        %v415 = vld [vmem:[%s195 + $0x568] sm:$0xff]
        %v416 = vld [vmem:[%s195 + $0x570] sm:$0xff]
        %v417 = vld [vmem:[%s195 + $0x578] sm:$0xff]
        %v418 = vld [vmem:[%s195 + $0x580] sm:$0xff]
        %v419 = vld [vmem:[%s195 + $0x588] sm:$0xff]
        %v420 = vld [vmem:[%s195 + $0x590] sm:$0xff]
        %v421 = vld [vmem:[%s195 + $0x598] sm:$0xff]
        %v422 = vld [vmem:[%s195 + $0x5a0] sm:$0xff]
        %v423 = vld [vmem:[%s195 + $0x5a8] sm:$0xff]
        %v424 = vld [vmem:[%s195 + $0x5b0] sm:$0xff]
        %v425 = vld [vmem:[%s195 + $0x5b8] sm:$0xff]
        %v426 = vld [vmem:[%s195 + $0x5c0] sm:$0xff]
        %v427 = vld [vmem:[%s195 + $0x5c8] sm:$0xff]
        %v428 = vld [vmem:[%s195 + $0x5d0] sm:$0xff]
        %v429 = vld [vmem:[%s195 + $0x5d8] sm:$0xff]
        %v430 = vld [vmem:[%s195 + $0x5e0] sm:$0xff]
        %v431 = vld [vmem:[%s195 + $0x5e8] sm:$0xff]
        %v432 = vld [vmem:[%s195 + $0x5f0] sm:$0xff]
        %v433 = vld [vmem:[%s195 + $0x5f8] sm:$0xff]
        %v434 = vld [vmem:[%s195 + $0x600] sm:$0xff]
        %v435 = vld [vmem:[%s195 + $0x608] sm:$0xff]
        %v436 = vld [vmem:[%s195 + $0x610] sm:$0xff]
        %v437 = vld [vmem:[%s195 + $0x618] sm:$0xff]
        %v438 = vld [vmem:[%s195 + $0x620] sm:$0xff]
        %v439 = vld [vmem:[%s195 + $0x628] sm:$0xff]
        %v440 = vld [vmem:[%s195 + $0x630] sm:$0xff]
        %v441 = vld [vmem:[%s195 + $0x638] sm:$0xff]
        %v442 = vld [vmem:[%s195 + $0x640] sm:$0xff]
        %v443 = vld [vmem:[%s195 + $0x648] sm:$0xff]
        %v444 = vld [vmem:[%s195 + $0x650] sm:$0xff]
        %v445 = vld [vmem:[%s195 + $0x658] sm:$0xff]
        %v446 = vld [vmem:[%s195 + $0x660] sm:$0xff]
        %v447 = vld [vmem:[%s195 + $0x668] sm:$0xff]
        %v448 = vld [vmem:[%s195 + $0x670] sm:$0xff]
        %v449 = vld [vmem:[%s195 + $0x678] sm:$0xff]
        %v450 = vld [vmem:[%s195 + $0x680] sm:$0xff]
        %v451 = vld [vmem:[%s195 + $0x688] sm:$0xff]
        %v452 = vld [vmem:[%s195 + $0x690] sm:$0xff]
        %v453 = vld [vmem:[%s195 + $0x698] sm:$0xff]
        %v454 = vld [vmem:[%s195 + $0x6a0] sm:$0xff]
        %v455 = vld [vmem:[%s195 + $0x6a8] sm:$0xff]
        %v456 = vld [vmem:[%s195 + $0x6b0] sm:$0xff]
        %v457 = vld [vmem:[%s195 + $0x6b8] sm:$0xff]
        %v458 = vld [vmem:[%s195 + $0x6c0] sm:$0xff]
        %v459 = vld [vmem:[%s195 + $0x6c8] sm:$0xff]
        %v460 = vld [vmem:[%s195 + $0x6d0] sm:$0xff]
        %v461 = vld [vmem:[%s195 + $0x6d8] sm:$0xff]
        %v462 = vld [vmem:[%s195 + $0x6e0] sm:$0xff]
        %v463 = vld [vmem:[%s195 + $0x6e8] sm:$0xff]
        %v464 = vld [vmem:[%s195 + $0x6f0] sm:$0xff]
        %v465 = vld [vmem:[%s195 + $0x6f8] sm:$0xff]
        %v466 = vld [vmem:[%s195 + $0x700] sm:$0xff]
        %v467 = vld [vmem:[%s195 + $0x708] sm:$0xff]
        %v468 = vld [vmem:[%s195 + $0x710] sm:$0xff]
        %v469 = vld [vmem:[%s195 + $0x718] sm:$0xff]
        %v470 = vld [vmem:[%s195 + $0x720] sm:$0xff]
        %v471 = vld [vmem:[%s195 + $0x728] sm:$0xff]
        %v472 = vld [vmem:[%s195 + $0x730] sm:$0xff]
        %v473 = vld [vmem:[%s195 + $0x738] sm:$0xff]
        %v474 = vld [vmem:[%s195 + $0x740] sm:$0xff]
        %v475 = vld [vmem:[%s195 + $0x748] sm:$0xff]
        %v476 = vld [vmem:[%s195 + $0x750] sm:$0xff]
        %v477 = vld [vmem:[%s195 + $0x758] sm:$0xff]
        %v478 = vld [vmem:[%s195 + $0x760] sm:$0xff]
        %v479 = vld [vmem:[%s195 + $0x768] sm:$0xff]
        %v480 = vld [vmem:[%s195 + $0x770] sm:$0xff]
        %v481 = vld [vmem:[%s195 + $0x778] sm:$0xff]
        %v482 = vld [vmem:[%s195 + $0x780] sm:$0xff]
        %v483 = vld [vmem:[%s195 + $0x788] sm:$0xff]
        %v484 = vld [vmem:[%s195 + $0x790] sm:$0xff]
        %v485 = vld [vmem:[%s195 + $0x798] sm:$0xff]
        %v486 = vld [vmem:[%s195 + $0x7a0] sm:$0xff]
        %v487 = vld [vmem:[%s195 + $0x7a8] sm:$0xff]
        %v488 = vld [vmem:[%s195 + $0x7b0] sm:$0xff]
        %v489 = vld [vmem:[%s195 + $0x7b8] sm:$0xff]
        %v490 = vld [vmem:[%s195 + $0x7c0] sm:$0xff]
        %v491 = vld [vmem:[%s195 + $0x7c8] sm:$0xff]
        %v492 = vld [vmem:[%s195 + $0x7d0] sm:$0xff]
        %v493 = vld [vmem:[%s195 + $0x7d8] sm:$0xff]
        %v494 = vld [vmem:[%s195 + $0x7e0] sm:$0xff]
        %v495 = vld [vmem:[%s195 + $0x7e8] sm:$0xff]
        %v496 = vld [vmem:[%s195 + $0x7f0] sm:$0xff]
        %v497 = vld [vmem:[%s195 + $0x7f8] sm:$0xff]
        %v498 = vld [vmem:[%s195 + $0x800] sm:$0xff]
        %v499 = vld [vmem:[%s195 + $0x808] sm:$0xff]
        %v500 = vld [vmem:[%s195 + $0x810] sm:$0xff]
        %v501 = vld [vmem:[%s195 + $0x818] sm:$0xff]
        %v502 = vld [vmem:[%s195 + $0x820] sm:$0xff]
        %v503 = vld [vmem:[%s195 + $0x828] sm:$0xff]
        %v504 = vld [vmem:[%s195 + $0x830] sm:$0xff]
        %v505 = vld [vmem:[%s195 + $0x838] sm:$0xff]
        %v506 = vld [vmem:[%s195 + $0x840] sm:$0xff]
        %v507 = vld [vmem:[%s195 + $0x848] sm:$0xff]
        %v508 = vld [vmem:[%s195 + $0x850] sm:$0xff]
        %v509 = vld [vmem:[%s195 + $0x858] sm:$0xff]
        %v510 = vld [vmem:[%s195 + $0x860] sm:$0xff]
        %v511 = vld [vmem:[%s195 + $0x868] sm:$0xff]
        %v512 = vld [vmem:[%s195 + $0x870] sm:$0xff]
        %v513 = vld [vmem:[%s195 + $0x878] sm:$0xff]
        %v514 = vld [vmem:[%s195 + $0x880] sm:$0xff]
        %v515 = vld [vmem:[%s195 + $0x888] sm:$0xff]
        %v516 = vld [vmem:[%s195 + $0x890] sm:$0xff]
        %v517 = vld [vmem:[%s195 + $0x898] sm:$0xff]
        %v518 = vld [vmem:[%s195 + $0x8a0] sm:$0xff]
        %v519 = vld [vmem:[%s195 + $0x8a8] sm:$0xff]
        %v520 = vld [vmem:[%s195 + $0x8b0] sm:$0xff]
        %v521 = vld [vmem:[%s195 + $0x8b8] sm:$0xff]
        %v522 = vld [vmem:[%s195 + $0x8c0] sm:$0xff]
        %v523 = vld [vmem:[%s195 + $0x8c8] sm:$0xff]
        %v524 = vld [vmem:[%s195 + $0x8d0] sm:$0xff]
        %v525 = vld [vmem:[%s195 + $0x8d8] sm:$0xff]
        %v526 = vld [vmem:[%s195 + $0x8e0] sm:$0xff]
        %v527 = vld [vmem:[%s195 + $0x8e8] sm:$0xff]
        %v528 = vld [vmem:[%s195 + $0x8f0] sm:$0xff]
        %v529 = vld [vmem:[%s195 + $0x8f8] sm:$0xff]
        %v530 = vld [vmem:[%s195 + $0x900] sm:$0xff]
        %v531 = vld [vmem:[%s195 + $0x908] sm:$0xff]
        %v532 = vld [vmem:[%s195 + $0x910] sm:$0xff]
        %v533 = vld [vmem:[%s195 + $0x918] sm:$0xff]
        %v534 = vld [vmem:[%s195 + $0x920] sm:$0xff]
        %v535 = vld [vmem:[%s195 + $0x928] sm:$0xff]
        %v536 = vld [vmem:[%s195 + $0x930] sm:$0xff]
        %v537 = vld [vmem:[%s195 + $0x938] sm:$0xff]
        %v538 = vld [vmem:[%s195 + $0x940] sm:$0xff]
        %v539 = vld [vmem:[%s195 + $0x948] sm:$0xff]
        %v540 = vld [vmem:[%s195 + $0x950] sm:$0xff]
        %v541 = vld [vmem:[%s195 + $0x958] sm:$0xff]
        %v542 = vld [vmem:[%s195 + $0x960] sm:$0xff]
        %v543 = vld [vmem:[%s195 + $0x968] sm:$0xff]
        %v544 = vld [vmem:[%s195 + $0x970] sm:$0xff]
        %v545 = vld [vmem:[%s195 + $0x978] sm:$0xff]
        %v546 = vld [vmem:[%s195 + $0x980] sm:$0xff]
        %v547 = vld [vmem:[%s195 + $0x988] sm:$0xff]
        %v548 = vld [vmem:[%s195 + $0x990] sm:$0xff]
        %v549 = vld [vmem:[%s195 + $0x998] sm:$0xff]
        %v550 = vld [vmem:[%s195 + $0x9a0] sm:$0xff]
        %v551 = vld [vmem:[%s195 + $0x9a8] sm:$0xff]
        %v552 = vld [vmem:[%s195 + $0x9b0] sm:$0xff]
        %v553 = vld [vmem:[%s195 + $0x9b8] sm:$0xff]
        %v554 = vld [vmem:[%s195 + $0x9c0] sm:$0xff]
        %v555 = vld [vmem:[%s195 + $0x9c8] sm:$0xff]
        %v556 = vld [vmem:[%s195 + $0x9d0] sm:$0xff]
        %v557 = vld [vmem:[%s195 + $0x9d8] sm:$0xff]
        %v558 = vld [vmem:[%s195 + $0x9e0] sm:$0xff]
        %v559 = vld [vmem:[%s195 + $0x9e8] sm:$0xff]
        %v560 = vld [vmem:[%s195 + $0x9f0] sm:$0xff]
        %v561 = vld [vmem:[%s195 + $0x9f8] sm:$0xff]
        %v562 = vld [vmem:[%s195 + $0xa00] sm:$0xff]
        %v563 = vld [vmem:[%s195 + $0xa08] sm:$0xff]
        %v564 = vld [vmem:[%s195 + $0xa10] sm:$0xff]
        %v565 = vld [vmem:[%s195 + $0xa18] sm:$0xff]
        %v566 = vld [vmem:[%s195 + $0xa20] sm:$0xff]
        %v567 = vld [vmem:[%s195 + $0xa28] sm:$0xff]
        %v568 = vld [vmem:[%s195 + $0xa30] sm:$0xff]
        %v569 = vld [vmem:[%s195 + $0xa38] sm:$0xff]
        %v570 = vld [vmem:[%s195 + $0xa40] sm:$0xff]
        %v571 = vld [vmem:[%s195 + $0xa48] sm:$0xff]
        %v572 = vld [vmem:[%s195 + $0xa50] sm:$0xff]
        %v573 = vld [vmem:[%s195 + $0xa58] sm:$0xff]
        %v574 = vld [vmem:[%s195 + $0xa60] sm:$0xff]
        %v575 = vld [vmem:[%s195 + $0xa68] sm:$0xff]
        %v576 = vld [vmem:[%s195 + $0xa70] sm:$0xff]
        %v577 = vld [vmem:[%s195 + $0xa78] sm:$0xff]
        %v578 = vld [vmem:[%s195 + $0xa80] sm:$0xff]
        %v579 = vld [vmem:[%s195 + $0xa88] sm:$0xff]
        %v580 = vld [vmem:[%s195 + $0xa90] sm:$0xff]
        %v581 = vld [vmem:[%s195 + $0xa98] sm:$0xff]
        %v582 = vld [vmem:[%s195 + $0xaa0] sm:$0xff]
        %v583 = vld [vmem:[%s195 + $0xaa8] sm:$0xff]
        %v584 = vld [vmem:[%s195 + $0xab0] sm:$0xff]
        %v585 = vld [vmem:[%s195 + $0xab8] sm:$0xff]
        %v586 = vld [vmem:[%s195 + $0xac0] sm:$0xff]
        %v587 = vld [vmem:[%s195 + $0xac8] sm:$0xff]
        %v588 = vld [vmem:[%s195 + $0xad0] sm:$0xff]
        %v589 = vld [vmem:[%s195 + $0xad8] sm:$0xff]
        %v590 = vld [vmem:[%s195 + $0xae0] sm:$0xff]
        %v591 = vld [vmem:[%s195 + $0xae8] sm:$0xff]
        %v592 = vld [vmem:[%s195 + $0xaf0] sm:$0xff]
        %v593 = vld [vmem:[%s195 + $0xaf8] sm:$0xff]
        %v594 = vld [vmem:[%s195 + $0xb00] sm:$0xff]
        %v595 = vld [vmem:[%s195 + $0xb08] sm:$0xff]
        %v596 = vld [vmem:[%s195 + $0xb10] sm:$0xff]
        %v597 = vld [vmem:[%s195 + $0xb18] sm:$0xff]
        %v598 = vld [vmem:[%s195 + $0xb20] sm:$0xff]
        %v599 = vld [vmem:[%s195 + $0xb28] sm:$0xff]
        %v600 = vld [vmem:[%s195 + $0xb30] sm:$0xff]
        %v601 = vld [vmem:[%s195 + $0xb38] sm:$0xff]
        %v602 = vld [vmem:[%s195 + $0xb40] sm:$0xff]
        %v603 = vld [vmem:[%s195 + $0xb48] sm:$0xff]
        %v604 = vld [vmem:[%s195 + $0xb50] sm:$0xff]
        %v605 = vld [vmem:[%s195 + $0xb58] sm:$0xff]
        %v606 = vld [vmem:[%s195 + $0xb60] sm:$0xff]
        %v607 = vld [vmem:[%s195 + $0xb68] sm:$0xff]
        %v608 = vld [vmem:[%s195 + $0xb70] sm:$0xff]
        %v609 = vld [vmem:[%s195 + $0xb78] sm:$0xff]
        %v610 = vld [vmem:[%s195 + $0xb80] sm:$0xff]
        %v611 = vld [vmem:[%s195 + $0xb88] sm:$0xff]
        %v612 = vld [vmem:[%s195 + $0xb90] sm:$0xff]
        %v613 = vld [vmem:[%s195 + $0xb98] sm:$0xff]
        %v614 = vld [vmem:[%s195 + $0xba0] sm:$0xff]
        %v615 = vld [vmem:[%s195 + $0xba8] sm:$0xff]
        %v616 = vld [vmem:[%s195 + $0xbb0] sm:$0xff]
        %v617 = vld [vmem:[%s195 + $0xbb8] sm:$0xff]
        %v618 = vld [vmem:[%s195 + $0xbc0] sm:$0xff]
        %v619 = vld [vmem:[%s195 + $0xbc8] sm:$0xff]
        %v620 = vld [vmem:[%s195 + $0xbd0] sm:$0xff]
        %v621 = vld [vmem:[%s195 + $0xbd8] sm:$0xff]
        %v622 = vld [vmem:[%s195 + $0xbe0] sm:$0xff]
        %v623 = vld [vmem:[%s195 + $0xbe8] sm:$0xff]
        %v624 = vld [vmem:[%s195 + $0xbf0] sm:$0xff]
        %v625 = vld [vmem:[%s195 + $0xbf8] sm:$0xff]
        %v626 = vld [vmem:[%s195 + $0xc00] sm:$0x3]
        %v627 = vld [vmem:[%s195 + $0xc08] sm:$0x3]
        %v628 = vld [vmem:[%s195 + $0xc10] sm:$0x3]
        %v629 = vld [vmem:[%s195 + $0xc18] sm:$0x3]
        %v630 = vld [vmem:[%s195 + $0xc20] sm:$0x3]
        %v631 = vld [vmem:[%s195 + $0xc28] sm:$0x3]
        %v632 = vld [vmem:[%s195 + $0xc30] sm:$0x3]
        %v633 = vld [vmem:[%s195 + $0xc38] sm:$0x3]
        %v634 = vld [vmem:[%s195 + $0xc40] sm:$0x3]
        %v635 = vld [vmem:[%s195 + $0xc48] sm:$0x3]
        %v636 = vld [vmem:[%s195 + $0xc50] sm:$0x3]
        %v637 = vld [vmem:[%s195 + $0xc58] sm:$0x3]
        %v638 = vld [vmem:[%s195 + $0xc60] sm:$0x3]
        %v639 = vld [vmem:[%s195 + $0xc68] sm:$0x3]
        %v640 = vld [vmem:[%s195 + $0xc70] sm:$0x3]
        %v641 = vld [vmem:[%s195 + $0xc78] sm:$0x3]
        %v642 = vld [vmem:[%s195 + $0xc80] sm:$0x3]
        %v643 = vld [vmem:[%s195 + $0xc88] sm:$0x3]
        %v644 = vld [vmem:[%s195 + $0xc90] sm:$0x3]
        %v645 = vld [vmem:[%s195 + $0xc98] sm:$0x3]
        %v646 = vld [vmem:[%s195 + $0xca0] sm:$0x3]
        %v647 = vld [vmem:[%s195 + $0xca8] sm:$0x3]
        %v648 = vld [vmem:[%s195 + $0xcb0] sm:$0x3]
        %v649 = vld [vmem:[%s195 + $0xcb8] sm:$0x3]
        %v650 = vld [vmem:[%s195 + $0xcc0] sm:$0x3]
        %v651 = vld [vmem:[%s195 + $0xcc8] sm:$0x3]
        %v652 = vld [vmem:[%s195 + $0xcd0] sm:$0x3]
        %v653 = vld [vmem:[%s195 + $0xcd8] sm:$0x3]
        %v654 = vld [vmem:[%s195 + $0xce0] sm:$0x3]
        %v655 = vld [vmem:[%s195 + $0xce8] sm:$0x3]
        %v656 = vld [vmem:[%s195 + $0xcf0] sm:$0x3]
        %v657 = vld [vmem:[%s195 + $0xcf8] sm:$0x3]
        %v658 = vld [vmem:[%s195 + $0xd00] sm:$0x3]
        %v659 = vld [vmem:[%s195 + $0xd08] sm:$0x3]
        %v660 = vld [vmem:[%s195 + $0xd10] sm:$0x3]
        %v661 = vld [vmem:[%s195 + $0xd18] sm:$0x3]
        %v662 = vld [vmem:[%s195 + $0xd20] sm:$0x3]
        %v663 = vld [vmem:[%s195 + $0xd28] sm:$0x3]
        %v664 = vld [vmem:[%s195 + $0xd30] sm:$0x3]
        %v665 = vld [vmem:[%s195 + $0xd38] sm:$0x3]
        %v666 = vld [vmem:[%s195 + $0xd40] sm:$0x3]
        %v667 = vld [vmem:[%s195 + $0xd48] sm:$0x3]
        %v668 = vld [vmem:[%s195 + $0xd50] sm:$0x3]
        %v669 = vld [vmem:[%s195 + $0xd58] sm:$0x3]
        %v670 = vld [vmem:[%s195 + $0xd60] sm:$0x3]
        %v671 = vld [vmem:[%s195 + $0xd68] sm:$0x3]
        %v672 = vld [vmem:[%s195 + $0xd70] sm:$0x3]
        %v673 = vld [vmem:[%s195 + $0xd78] sm:$0x3]
        %v674 = vld [vmem:[%s195 + $0xd80] sm:$0x3]
        %v675 = vld [vmem:[%s195 + $0xd88] sm:$0x3]
        %v676 = vld [vmem:[%s195 + $0xd90] sm:$0x3]
        %v677 = vld [vmem:[%s195 + $0xd98] sm:$0x3]
        %v678 = vld [vmem:[%s195 + $0xda0] sm:$0x3]
        %v679 = vld [vmem:[%s195 + $0xda8] sm:$0x3]
        %v680 = vld [vmem:[%s195 + $0xdb0] sm:$0x3]
        %v681 = vld [vmem:[%s195 + $0xdb8] sm:$0x3]
        %v682 = vld [vmem:[%s195 + $0xdc0] sm:$0x3]
        %v683 = vld [vmem:[%s195 + $0xdc8] sm:$0x3]
        %v684 = vld [vmem:[%s195 + $0xdd0] sm:$0x3]
        %v685 = vld [vmem:[%s195 + $0xdd8] sm:$0x3]
        %v686 = vld [vmem:[%s195 + $0xde0] sm:$0x3]
        %v687 = vld [vmem:[%s195 + $0xde8] sm:$0x3]
        %v688 = vld [vmem:[%s195 + $0xdf0] sm:$0x3]
        %v689 = vld [vmem:[%s195 + $0xdf8] sm:$0x3]
        %v690 = vld [vmem:[%s195 + $0xe00] sm:$0x3]
        %v691 = vld [vmem:[%s195 + $0xe08] sm:$0x3]
        %v692 = vld [vmem:[%s195 + $0xe10] sm:$0x3]
        %v693 = vld [vmem:[%s195 + $0xe18] sm:$0x3]
        %v694 = vld [vmem:[%s195 + $0xe20] sm:$0x3]
        %v695 = vld [vmem:[%s195 + $0xe28] sm:$0x3]
        %v696 = vld [vmem:[%s195 + $0xe30] sm:$0x3]
        %v697 = vld [vmem:[%s195 + $0xe38] sm:$0x3]
        %v698 = vld [vmem:[%s195 + $0xe40] sm:$0x3]
        %v699 = vld [vmem:[%s195 + $0xe48] sm:$0x3]
        %v700 = vld [vmem:[%s195 + $0xe50] sm:$0x3]
        %v701 = vld [vmem:[%s195 + $0xe58] sm:$0x3]
        %v702 = vld [vmem:[%s195 + $0xe60] sm:$0x3]
        %v703 = vld [vmem:[%s195 + $0xe68] sm:$0x3]
        %v704 = vld [vmem:[%s195 + $0xe70] sm:$0x3]
        %v705 = vld [vmem:[%s195 + $0xe78] sm:$0x3]
        %v706 = vld [vmem:[%s195 + $0xe80] sm:$0x3]
        %v707 = vld [vmem:[%s195 + $0xe88] sm:$0x3]
        %v708 = vld [vmem:[%s195 + $0xe90] sm:$0x3]
        %v709 = vld [vmem:[%s195 + $0xe98] sm:$0x3]
        %v710 = vld [vmem:[%s195 + $0xea0] sm:$0x3]
        %v711 = vld [vmem:[%s195 + $0xea8] sm:$0x3]
        %v712 = vld [vmem:[%s195 + $0xeb0] sm:$0x3]
        %v713 = vld [vmem:[%s195 + $0xeb8] sm:$0x3]
        %v714 = vld [vmem:[%s195 + $0xec0] sm:$0x3]
        %v715 = vld [vmem:[%s195 + $0xec8] sm:$0x3]
        %v716 = vld [vmem:[%s195 + $0xed0] sm:$0x3]
        %v717 = vld [vmem:[%s195 + $0xed8] sm:$0x3]
        %v718 = vld [vmem:[%s195 + $0xee0] sm:$0x3]
        %v719 = vld [vmem:[%s195 + $0xee8] sm:$0x3]
        %v720 = vld [vmem:[%s195 + $0xef0] sm:$0x3]
        %v721 = vld [vmem:[%s195 + $0xef8] sm:$0x3]
        %v722 = vld [vmem:[%s195 + $0xf00] sm:$0x3]
        %v723 = vld [vmem:[%s195 + $0xf08] sm:$0x3]
        %v724 = vld [vmem:[%s195 + $0xf10] sm:$0x3]
        %v725 = vld [vmem:[%s195 + $0xf18] sm:$0x3]
        %v726 = vld [vmem:[%s195 + $0xf20] sm:$0x3]
        %v727 = vld [vmem:[%s195 + $0xf28] sm:$0x3]
        %v728 = vld [vmem:[%s195 + $0xf30] sm:$0x3]
        %v729 = vld [vmem:[%s195 + $0xf38] sm:$0x3]
        %v730 = vld [vmem:[%s195 + $0xf40] sm:$0x3]
        %v731 = vld [vmem:[%s195 + $0xf48] sm:$0x3]
        %v732 = vld [vmem:[%s195 + $0xf50] sm:$0x3]
        %v733 = vld [vmem:[%s195 + $0xf58] sm:$0x3]
        %v734 = vld [vmem:[%s195 + $0xf60] sm:$0x3]
        %v735 = vld [vmem:[%s195 + $0xf68] sm:$0x3]
        %v736 = vld [vmem:[%s195 + $0xf70] sm:$0x3]
        %v737 = vld [vmem:[%s195 + $0xf78] sm:$0x3]
        %v738 = vld [vmem:[%s195 + $0xf80] sm:$0x3]
        %v739 = vld [vmem:[%s195 + $0xf88] sm:$0x3]
        %v740 = vld [vmem:[%s195 + $0xf90] sm:$0x3]
        %v741 = vld [vmem:[%s195 + $0xf98] sm:$0x3]
        %v742 = vld [vmem:[%s195 + $0xfa0] sm:$0x3]
        %v743 = vld [vmem:[%s195 + $0xfa8] sm:$0x3]
        %v744 = vld [vmem:[%s195 + $0xfb0] sm:$0x3]
        %v745 = vld [vmem:[%s195 + $0xfb8] sm:$0x3]
        %v746 = vld [vmem:[%s195 + $0xfc0] sm:$0x3]
        %v747 = vld [vmem:[%s195 + $0xfc8] sm:$0x3]
        %v748 = vld [vmem:[%s195 + $0xfd0] sm:$0x3]
        %v749 = vld [vmem:[%s195 + $0xfd8] sm:$0x3]
        %v750 = vld [vmem:[%s195 + $0xfe0] sm:$0x3]
        %v751 = vld [vmem:[%s195 + $0xfe8] sm:$0x3]
        %v752 = vld [vmem:[%s195 + $0xff0] sm:$0x3]
        %v753 = vld [vmem:[%s195 + $0xff8] sm:$0x3]
        %v754 = vld [vmem:[%s195 + $0x1000] sm:$0x3]
        %v755 = vld [vmem:[%s195 + $0x1008] sm:$0x3]
        %v756 = vld [vmem:[%s195 + $0x1010] sm:$0x3]
        %v757 = vld [vmem:[%s195 + $0x1018] sm:$0x3]
        %v758 = vld [vmem:[%s195 + $0x1020] sm:$0x3]
        %v759 = vld [vmem:[%s195 + $0x1028] sm:$0x3]
        %v760 = vld [vmem:[%s195 + $0x1030] sm:$0x3]
        %v761 = vld [vmem:[%s195 + $0x1038] sm:$0x3]
        %v762 = vld [vmem:[%s195 + $0x1040] sm:$0x3]
        %v763 = vld [vmem:[%s195 + $0x1048] sm:$0x3]
        %v764 = vld [vmem:[%s195 + $0x1050] sm:$0x3]
        %v765 = vld [vmem:[%s195 + $0x1058] sm:$0x3]
        %v766 = vld [vmem:[%s195 + $0x1060] sm:$0x3]
        %v767 = vld [vmem:[%s195 + $0x1068] sm:$0x3]
        %v768 = vld [vmem:[%s195 + $0x1070] sm:$0x3]
        %v769 = vld [vmem:[%s195 + $0x1078] sm:$0x3]
        %v770 = vld [vmem:[%s195 + $0x1080] sm:$0x3]
        %v771 = vld [vmem:[%s195 + $0x1088] sm:$0x3]
        %v772 = vld [vmem:[%s195 + $0x1090] sm:$0x3]
        %v773 = vld [vmem:[%s195 + $0x1098] sm:$0x3]
        %v774 = vld [vmem:[%s195 + $0x10a0] sm:$0x3]
        %v775 = vld [vmem:[%s195 + $0x10a8] sm:$0x3]
        %v776 = vld [vmem:[%s195 + $0x10b0] sm:$0x3]
        %v777 = vld [vmem:[%s195 + $0x10b8] sm:$0x3]
        %v778 = vld [vmem:[%s195 + $0x10c0] sm:$0x3]
        %v779 = vld [vmem:[%s195 + $0x10c8] sm:$0x3]
        %v780 = vld [vmem:[%s195 + $0x10d0] sm:$0x3]
        %v781 = vld [vmem:[%s195 + $0x10d8] sm:$0x3]
        %v782 = vld [vmem:[%s195 + $0x10e0] sm:$0x3]
        %v783 = vld [vmem:[%s195 + $0x10e8] sm:$0x3]
        %v784 = vld [vmem:[%s195 + $0x10f0] sm:$0x3]
        %v785 = vld [vmem:[%s195 + $0x10f8] sm:$0x3]
        %v786 = vld [vmem:[%s195 + $0x1100] sm:$0x3]
        %v787 = vld [vmem:[%s195 + $0x1108] sm:$0x3]
        %v788 = vld [vmem:[%s195 + $0x1110] sm:$0x3]
        %v789 = vld [vmem:[%s195 + $0x1118] sm:$0x3]
        %v790 = vld [vmem:[%s195 + $0x1120] sm:$0x3]
        %v791 = vld [vmem:[%s195 + $0x1128] sm:$0x3]
        %v792 = vld [vmem:[%s195 + $0x1130] sm:$0x3]
        %v793 = vld [vmem:[%s195 + $0x1138] sm:$0x3]
        %v794 = vld [vmem:[%s195 + $0x1140] sm:$0x3]
        %v795 = vld [vmem:[%s195 + $0x1148] sm:$0x3]
        %v796 = vld [vmem:[%s195 + $0x1150] sm:$0x3]
        %v797 = vld [vmem:[%s195 + $0x1158] sm:$0x3]
        %v798 = vld [vmem:[%s195 + $0x1160] sm:$0x3]
        %v799 = vld [vmem:[%s195 + $0x1168] sm:$0x3]
        %v800 = vld [vmem:[%s195 + $0x1170] sm:$0x3]
        %v801 = vld [vmem:[%s195 + $0x1178] sm:$0x3]
        %v802 = vld [vmem:[%s195 + $0x1180] sm:$0x3]
        %v803 = vld [vmem:[%s195 + $0x1188] sm:$0x3]
        %v804 = vld [vmem:[%s195 + $0x1190] sm:$0x3]
        %v805 = vld [vmem:[%s195 + $0x1198] sm:$0x3]
        %v806 = vld [vmem:[%s195 + $0x11a0] sm:$0x3]
        %v807 = vld [vmem:[%s195 + $0x11a8] sm:$0x3]
        %v808 = vld [vmem:[%s195 + $0x11b0] sm:$0x3]
        %v809 = vld [vmem:[%s195 + $0x11b8] sm:$0x3]
        %v810 = vld [vmem:[%s195 + $0x11c0] sm:$0x3]
        %v811 = vld [vmem:[%s195 + $0x11c8] sm:$0x3]
        %v812 = vld [vmem:[%s195 + $0x11d0] sm:$0x3]
        %v813 = vld [vmem:[%s195 + $0x11d8] sm:$0x3]
        %v814 = vld [vmem:[%s195 + $0x11e0] sm:$0x3]
        %v815 = vld [vmem:[%s195 + $0x11e8] sm:$0x3]
        %v816 = vld [vmem:[%s195 + $0x11f0] sm:$0x3]
        %v817 = vld [vmem:[%s195 + $0x11f8] sm:$0x3]
        %v818 = vld [vmem:[%s195 + $0x1200] sm:$0x3]
        %v819 = vld [vmem:[%s195 + $0x1208] sm:$0x3]
        %v820 = vld [vmem:[%s195 + $0x1210] sm:$0x3]
        %v821 = vld [vmem:[%s195 + $0x1218] sm:$0x3]
        %v822 = vld [vmem:[%s195 + $0x1220] sm:$0x3]
        %v823 = vld [vmem:[%s195 + $0x1228] sm:$0x3]
        %v824 = vld [vmem:[%s195 + $0x1230] sm:$0x3]
        %v825 = vld [vmem:[%s195 + $0x1238] sm:$0x3]
        %v826 = vld [vmem:[%s195 + $0x1240] sm:$0x3]
        %v827 = vld [vmem:[%s195 + $0x1248] sm:$0x3]
        %v828 = vld [vmem:[%s195 + $0x1250] sm:$0x3]
        %v829 = vld [vmem:[%s195 + $0x1258] sm:$0x3]
        %v830 = vld [vmem:[%s195 + $0x1260] sm:$0x3]
        %v831 = vld [vmem:[%s195 + $0x1268] sm:$0x3]
        %v832 = vld [vmem:[%s195 + $0x1270] sm:$0x3]
        %v833 = vld [vmem:[%s195 + $0x1278] sm:$0x3]
        %v834 = vld [vmem:[%s195 + $0x1280] sm:$0x3]
        %v835 = vld [vmem:[%s195 + $0x1288] sm:$0x3]
        %v836 = vld [vmem:[%s195 + $0x1290] sm:$0x3]
        %v837 = vld [vmem:[%s195 + $0x1298] sm:$0x3]
        %v838 = vld [vmem:[%s195 + $0x12a0] sm:$0x3]
        %v839 = vld [vmem:[%s195 + $0x12a8] sm:$0x3]
        %v840 = vld [vmem:[%s195 + $0x12b0] sm:$0x3]
        %v841 = vld [vmem:[%s195 + $0x12b8] sm:$0x3]
        %v842 = vld [vmem:[%s195 + $0x12c0] sm:$0x3]
        %v843 = vld [vmem:[%s195 + $0x12c8] sm:$0x3]
        %v844 = vld [vmem:[%s195 + $0x12d0] sm:$0x3]
        %v845 = vld [vmem:[%s195 + $0x12d8] sm:$0x3]
        %v846 = vld [vmem:[%s195 + $0x12e0] sm:$0x3]
        %v847 = vld [vmem:[%s195 + $0x12e8] sm:$0x3]
        %v848 = vld [vmem:[%s195 + $0x12f0] sm:$0x3]
        %v849 = vld [vmem:[%s195 + $0x12f8] sm:$0x3]
        %v850 = vld [vmem:[%s195 + $0x1300] sm:$0x3]
        %v851 = vld [vmem:[%s195 + $0x1308] sm:$0x3]
        %v852 = vld [vmem:[%s195 + $0x1310] sm:$0x3]
        %v853 = vld [vmem:[%s195 + $0x1318] sm:$0x3]
        %v854 = vld [vmem:[%s195 + $0x1320] sm:$0x3]
        %v855 = vld [vmem:[%s195 + $0x1328] sm:$0x3]
        %v856 = vld [vmem:[%s195 + $0x1330] sm:$0x3]
        %v857 = vld [vmem:[%s195 + $0x1338] sm:$0x3]
        %v858 = vld [vmem:[%s195 + $0x1340] sm:$0x3]
        %v859 = vld [vmem:[%s195 + $0x1348] sm:$0x3]
        %v860 = vld [vmem:[%s195 + $0x1350] sm:$0x3]
        %v861 = vld [vmem:[%s195 + $0x1358] sm:$0x3]
        %v862 = vld [vmem:[%s195 + $0x1360] sm:$0x3]
        %v863 = vld [vmem:[%s195 + $0x1368] sm:$0x3]
        %v864 = vld [vmem:[%s195 + $0x1370] sm:$0x3]
        %v865 = vld [vmem:[%s195 + $0x1378] sm:$0x3]
        %v866 = vld [vmem:[%s195 + $0x1380] sm:$0x3]
        %v867 = vld [vmem:[%s195 + $0x1388] sm:$0x3]
        %v868 = vld [vmem:[%s195 + $0x1390] sm:$0x3]
        %v869 = vld [vmem:[%s195 + $0x1398] sm:$0x3]
        %v870 = vld [vmem:[%s195 + $0x13a0] sm:$0x3]
        %v871 = vld [vmem:[%s195 + $0x13a8] sm:$0x3]
        %v872 = vld [vmem:[%s195 + $0x13b0] sm:$0x3]
        %v873 = vld [vmem:[%s195 + $0x13b8] sm:$0x3]
        %v874 = vld [vmem:[%s195 + $0x13c0] sm:$0x3]
        %v875 = vld [vmem:[%s195 + $0x13c8] sm:$0x3]
        %v876 = vld [vmem:[%s195 + $0x13d0] sm:$0x3]
        %v877 = vld [vmem:[%s195 + $0x13d8] sm:$0x3]
        %v878 = vld [vmem:[%s195 + $0x13e0] sm:$0x3]
        %v879 = vld [vmem:[%s195 + $0x13e8] sm:$0x3]
        %v880 = vld [vmem:[%s195 + $0x13f0] sm:$0x3]
        %v881 = vld [vmem:[%s195 + $0x13f8] sm:$0x3]
        %v882 = vld [vmem:[%s195 + $0x1400] sm:$0x3]
        %v883 = vld [vmem:[%s195 + $0x1408] sm:$0x3]
        %v884 = vld [vmem:[%s195 + $0x1410] sm:$0x3]
        %v885 = vld [vmem:[%s195 + $0x1418] sm:$0x3]
        %v886 = vld [vmem:[%s195 + $0x1420] sm:$0x3]
        %v887 = vld [vmem:[%s195 + $0x1428] sm:$0x3]
        %v888 = vld [vmem:[%s195 + $0x1430] sm:$0x3]
        %v889 = vld [vmem:[%s195 + $0x1438] sm:$0x3]
        %v890 = vld [vmem:[%s195 + $0x1440] sm:$0x3]
        %v891 = vld [vmem:[%s195 + $0x1448] sm:$0x3]
        %v892 = vld [vmem:[%s195 + $0x1450] sm:$0x3]
        %v893 = vld [vmem:[%s195 + $0x1458] sm:$0x3]
        %v894 = vld [vmem:[%s195 + $0x1460] sm:$0x3]
        %v895 = vld [vmem:[%s195 + $0x1468] sm:$0x3]
        %v896 = vld [vmem:[%s195 + $0x1470] sm:$0x3]
        %v897 = vld [vmem:[%s195 + $0x1478] sm:$0x3]
        %v898 = vld [vmem:[%s195 + $0x1480] sm:$0x3]
        %v899 = vld [vmem:[%s195 + $0x1488] sm:$0x3]
        %v900 = vld [vmem:[%s195 + $0x1490] sm:$0x3]
        %v901 = vld [vmem:[%s195 + $0x1498] sm:$0x3]
        %v902 = vld [vmem:[%s195 + $0x14a0] sm:$0x3]
        %v903 = vld [vmem:[%s195 + $0x14a8] sm:$0x3]
        %v904 = vld [vmem:[%s195 + $0x14b0] sm:$0x3]
        %v905 = vld [vmem:[%s195 + $0x14b8] sm:$0x3]
        %v906 = vld [vmem:[%s195 + $0x14c0] sm:$0x3]
        %v907 = vld [vmem:[%s195 + $0x14c8] sm:$0x3]
        %v908 = vld [vmem:[%s195 + $0x14d0] sm:$0x3]
        %v909 = vld [vmem:[%s195 + $0x14d8] sm:$0x3]
        %v910 = vld [vmem:[%s195 + $0x14e0] sm:$0x3]
        %v911 = vld [vmem:[%s195 + $0x14e8] sm:$0x3]
        %v912 = vld [vmem:[%s195 + $0x14f0] sm:$0x3]
        %v913 = vld [vmem:[%s195 + $0x14f8] sm:$0x3]
        %v914 = vld [vmem:[%s195 + $0x1500] sm:$0x3]
        %v915 = vld [vmem:[%s195 + $0x1508] sm:$0x3]
        %v916 = vld [vmem:[%s195 + $0x1510] sm:$0x3]
        %v917 = vld [vmem:[%s195 + $0x1518] sm:$0x3]
        %v918 = vld [vmem:[%s195 + $0x1520] sm:$0x3]
        %v919 = vld [vmem:[%s195 + $0x1528] sm:$0x3]
        %v920 = vld [vmem:[%s195 + $0x1530] sm:$0x3]
        %v921 = vld [vmem:[%s195 + $0x1538] sm:$0x3]
        %v922 = vld [vmem:[%s195 + $0x1540] sm:$0x3]
        %v923 = vld [vmem:[%s195 + $0x1548] sm:$0x3]
        %v924 = vld [vmem:[%s195 + $0x1550] sm:$0x3]
        %v925 = vld [vmem:[%s195 + $0x1558] sm:$0x3]
        %v926 = vld [vmem:[%s195 + $0x1560] sm:$0x3]
        %v927 = vld [vmem:[%s195 + $0x1568] sm:$0x3]
        %v928 = vld [vmem:[%s195 + $0x1570] sm:$0x3]
        %v929 = vld [vmem:[%s195 + $0x1578] sm:$0x3]
        %v930 = vld [vmem:[%s195 + $0x1580] sm:$0x3]
        %v931 = vld [vmem:[%s195 + $0x1588] sm:$0x3]
        %v932 = vld [vmem:[%s195 + $0x1590] sm:$0x3]
        %v933 = vld [vmem:[%s195 + $0x1598] sm:$0x3]
        %v934 = vld [vmem:[%s195 + $0x15a0] sm:$0x3]
        %v935 = vld [vmem:[%s195 + $0x15a8] sm:$0x3]
        %v936 = vld [vmem:[%s195 + $0x15b0] sm:$0x3]
        %v937 = vld [vmem:[%s195 + $0x15b8] sm:$0x3]
        %v938 = vld [vmem:[%s195 + $0x15c0] sm:$0x3]
        %v939 = vld [vmem:[%s195 + $0x15c8] sm:$0x3]
        %v940 = vld [vmem:[%s195 + $0x15d0] sm:$0x3]
        %v941 = vld [vmem:[%s195 + $0x15d8] sm:$0x3]
        %v942 = vld [vmem:[%s195 + $0x15e0] sm:$0x3]
        %v943 = vld [vmem:[%s195 + $0x15e8] sm:$0x3]
        %v944 = vld [vmem:[%s195 + $0x15f0] sm:$0x3]
        %v945 = vld [vmem:[%s195 + $0x15f8] sm:$0x3]
        %v946 = vld [vmem:[%s195 + $0x1600] sm:$0x3]
        %v947 = vld [vmem:[%s195 + $0x1608] sm:$0x3]
        %v948 = vld [vmem:[%s195 + $0x1610] sm:$0x3]
        %v949 = vld [vmem:[%s195 + $0x1618] sm:$0x3]
        %v950 = vld [vmem:[%s195 + $0x1620] sm:$0x3]
        %v951 = vld [vmem:[%s195 + $0x1628] sm:$0x3]
        %v952 = vld [vmem:[%s195 + $0x1630] sm:$0x3]
        %v953 = vld [vmem:[%s195 + $0x1638] sm:$0x3]
        %v954 = vld [vmem:[%s195 + $0x1640] sm:$0x3]
        %v955 = vld [vmem:[%s195 + $0x1648] sm:$0x3]
        %v956 = vld [vmem:[%s195 + $0x1650] sm:$0x3]
        %v957 = vld [vmem:[%s195 + $0x1658] sm:$0x3]
        %v958 = vld [vmem:[%s195 + $0x1660] sm:$0x3]
        %v959 = vld [vmem:[%s195 + $0x1668] sm:$0x3]
        %v960 = vld [vmem:[%s195 + $0x1670] sm:$0x3]
        %v961 = vld [vmem:[%s195 + $0x1678] sm:$0x3]
        %v962 = vld [vmem:[%s195 + $0x1680] sm:$0x3]
        %v963 = vld [vmem:[%s195 + $0x1688] sm:$0x3]
        %v964 = vld [vmem:[%s195 + $0x1690] sm:$0x3]
        %v965 = vld [vmem:[%s195 + $0x1698] sm:$0x3]
        %v966 = vld [vmem:[%s195 + $0x16a0] sm:$0x3]
        %v967 = vld [vmem:[%s195 + $0x16a8] sm:$0x3]
        %v968 = vld [vmem:[%s195 + $0x16b0] sm:$0x3]
        %v969 = vld [vmem:[%s195 + $0x16b8] sm:$0x3]
        %v970 = vld [vmem:[%s195 + $0x16c0] sm:$0x3]
        %v971 = vld [vmem:[%s195 + $0x16c8] sm:$0x3]
        %v972 = vld [vmem:[%s195 + $0x16d0] sm:$0x3]
        %v973 = vld [vmem:[%s195 + $0x16d8] sm:$0x3]
        %v974 = vld [vmem:[%s195 + $0x16e0] sm:$0x3]
        %v975 = vld [vmem:[%s195 + $0x16e8] sm:$0x3]
        %v976 = vld [vmem:[%s195 + $0x16f0] sm:$0x3]
        %v977 = vld [vmem:[%s195 + $0x16f8] sm:$0x3]
        %v978 = vld [vmem:[%s195 + $0x1700] sm:$0x3]
        %v979 = vld [vmem:[%s195 + $0x1708] sm:$0x3]
        %v980 = vld [vmem:[%s195 + $0x1710] sm:$0x3]
        %v981 = vld [vmem:[%s195 + $0x1718] sm:$0x3]
        %v982 = vld [vmem:[%s195 + $0x1720] sm:$0x3]
        %v983 = vld [vmem:[%s195 + $0x1728] sm:$0x3]
        %v984 = vld [vmem:[%s195 + $0x1730] sm:$0x3]
        %v985 = vld [vmem:[%s195 + $0x1738] sm:$0x3]
        %v986 = vld [vmem:[%s195 + $0x1740] sm:$0x3]
        %v987 = vld [vmem:[%s195 + $0x1748] sm:$0x3]
        %v988 = vld [vmem:[%s195 + $0x1750] sm:$0x3]
        %v989 = vld [vmem:[%s195 + $0x1758] sm:$0x3]
        %v990 = vld [vmem:[%s195 + $0x1760] sm:$0x3]
        %v991 = vld [vmem:[%s195 + $0x1768] sm:$0x3]
        %v992 = vld [vmem:[%s195 + $0x1770] sm:$0x3]
        %v993 = vld [vmem:[%s195 + $0x1778] sm:$0x3]
        %v994 = vld [vmem:[%s195 + $0x1780] sm:$0x3]
        %v995 = vld [vmem:[%s195 + $0x1788] sm:$0x3]
        %v996 = vld [vmem:[%s195 + $0x1790] sm:$0x3]
        %v997 = vld [vmem:[%s195 + $0x1798] sm:$0x3]
        %v998 = vld [vmem:[%s195 + $0x17a0] sm:$0x3]
        %v999 = vld [vmem:[%s195 + $0x17a8] sm:$0x3]
        %v1000 = vld [vmem:[%s195 + $0x17b0] sm:$0x3]
        %v1001 = vld [vmem:[%s195 + $0x17b8] sm:$0x3]
        %v1002 = vld [vmem:[%s195 + $0x17c0] sm:$0x3]
        %v1003 = vld [vmem:[%s195 + $0x17c8] sm:$0x3]
        %v1004 = vld [vmem:[%s195 + $0x17d0] sm:$0x3]
        %v1005 = vld [vmem:[%s195 + $0x17d8] sm:$0x3]
        %v1006 = vld [vmem:[%s195 + $0x17e0] sm:$0x3]
        %v1007 = vld [vmem:[%s195 + $0x17e8] sm:$0x3]
        %v1008 = vld [vmem:[%s195 + $0x17f0] sm:$0x3]
        %v1009 = vld [vmem:[%s195 + $0x17f8] sm:$0x3]
        %v1010 = vld [vmem:[%s186] ss:$2 sm:$0xff]
        %s1011 = scalar_lea.vmem %s186, 16 [#allocation3]
        %v1012 = vld [vmem:[%s1011] ss:$2 sm:$0xff]
        %s1013 = scalar_lea.vmem %s186, 32 [#allocation3]
        %v1014 = vld [vmem:[%s1013] ss:$2 sm:$0xff]
        %s1015 = scalar_lea.vmem %s186, 48 [#allocation3]
        %v1016 = vld [vmem:[%s1015] ss:$2 sm:$0xff]
        %s1017 = scalar_lea.vmem %s186, 64 [#allocation3]
        %v1018 = vld [vmem:[%s1017] ss:$2 sm:$0xff]
        %s1019 = scalar_lea.vmem %s186, 80 [#allocation3]
        %v1020 = vld [vmem:[%s1019] ss:$2 sm:$0xff]
        %s1021 = scalar_lea.vmem %s186, 96 [#allocation3]
        %v1022 = vld [vmem:[%s1021] ss:$2 sm:$0xff]
        %s1023 = scalar_lea.vmem %s186, 112 [#allocation3]
        %v1024 = vld [vmem:[%s1023] ss:$2 sm:$0xff]
        %s1025 = scalar_lea.vmem %s186, 128 [#allocation3]
        %v1026 = vld [vmem:[%s1025] ss:$2 sm:$0xff]
        %s1027 = scalar_lea.vmem %s186, 144 [#allocation3]
        %v1028 = vld [vmem:[%s1027] ss:$2 sm:$0xff]
        %s1029 = scalar_lea.vmem %s186, 160 [#allocation3]
        %v1030 = vld [vmem:[%s1029] ss:$2 sm:$0xff]
        %s1031 = scalar_lea.vmem %s186, 176 [#allocation3]
        %v1032 = vld [vmem:[%s1031] ss:$2 sm:$0xff]
        %s1033 = scalar_lea.vmem %s186, 192 [#allocation3]
        %v1034 = vld [vmem:[%s1033] ss:$2 sm:$0xff]
        %s1035 = scalar_lea.vmem %s186, 208 [#allocation3]
        %v1036 = vld [vmem:[%s1035] ss:$2 sm:$0xff]
        %s1037 = scalar_lea.vmem %s186, 224 [#allocation3]
        %v1038 = vld [vmem:[%s1037] ss:$2 sm:$0xff]
        %s1039 = scalar_lea.vmem %s186, 240 [#allocation3]
        %v1040 = vld [vmem:[%s1039] ss:$2 sm:$0xff]
        %s1041 = scalar_lea.vmem %s186, 256 [#allocation3]
        %v1042 = vld [vmem:[%s1041] ss:$2 sm:$0xff]
        %s1043 = scalar_lea.vmem %s186, 272 [#allocation3]
        %v1044 = vld [vmem:[%s1043] ss:$2 sm:$0xff]
        %s1045 = scalar_lea.vmem %s186, 288 [#allocation3]
        %v1046 = vld [vmem:[%s1045] ss:$2 sm:$0xff]
        %s1047 = scalar_lea.vmem %s186, 304 [#allocation3]
        %v1048 = vld [vmem:[%s1047] ss:$2 sm:$0xff]
        %s1049 = scalar_lea.vmem %s186, 320 [#allocation3]
        %v1050 = vld [vmem:[%s1049] ss:$2 sm:$0xff]
        %s1051 = scalar_lea.vmem %s186, 336 [#allocation3]
        %v1052 = vld [vmem:[%s1051] ss:$2 sm:$0xff]
        %s1053 = scalar_lea.vmem %s186, 352 [#allocation3]
        %v1054 = vld [vmem:[%s1053] ss:$2 sm:$0xff]
        %s1055 = scalar_lea.vmem %s186, 368 [#allocation3]
        %v1056 = vld [vmem:[%s1055] ss:$2 sm:$0xff]
        %s1057 = scalar_lea.vmem %s186, 384 [#allocation3]
        %v1058 = vld [vmem:[%s1057] ss:$2 sm:$0xff]
        %s1059 = scalar_lea.vmem %s186, 400 [#allocation3]
        %v1060 = vld [vmem:[%s1059] ss:$2 sm:$0xff]
        %s1061 = scalar_lea.vmem %s186, 416 [#allocation3]
        %v1062 = vld [vmem:[%s1061] ss:$2 sm:$0xff]
        %s1063 = scalar_lea.vmem %s186, 432 [#allocation3]
        %v1064 = vld [vmem:[%s1063] ss:$2 sm:$0xff]
        %s1065 = scalar_lea.vmem %s186, 448 [#allocation3]
        %v1066 = vld [vmem:[%s1065] ss:$2 sm:$0xff]
        %s1067 = scalar_lea.vmem %s186, 464 [#allocation3]
        %v1068 = vld [vmem:[%s1067] ss:$2 sm:$0xff]
        %s1069 = scalar_lea.vmem %s186, 480 [#allocation3]
        %v1070 = vld [vmem:[%s1069] ss:$2 sm:$0xff]
        %s1071 = scalar_lea.vmem %s186, 496 [#allocation3]
        %v1072 = vld [vmem:[%s1071] ss:$2 sm:$0xff]
        %s1073 = scalar_lea.vmem %s186, 512 [#allocation3]
        %v1074 = vld [vmem:[%s1073] ss:$2 sm:$0xff]
        %s1075 = scalar_lea.vmem %s186, 528 [#allocation3]
        %v1076 = vld [vmem:[%s1075] ss:$2 sm:$0xff]
        %s1077 = scalar_lea.vmem %s186, 544 [#allocation3]
        %v1078 = vld [vmem:[%s1077] ss:$2 sm:$0xff]
        %s1079 = scalar_lea.vmem %s186, 560 [#allocation3]
        %v1080 = vld [vmem:[%s1079] ss:$2 sm:$0xff]
        %s1081 = scalar_lea.vmem %s186, 576 [#allocation3]
        %v1082 = vld [vmem:[%s1081] ss:$2 sm:$0xff]
        %s1083 = scalar_lea.vmem %s186, 592 [#allocation3]
        %v1084 = vld [vmem:[%s1083] ss:$2 sm:$0xff]
        %s1085 = scalar_lea.vmem %s186, 608 [#allocation3]
        %v1086 = vld [vmem:[%s1085] ss:$2 sm:$0xff]
        %s1087 = scalar_lea.vmem %s186, 624 [#allocation3]
        %v1088 = vld [vmem:[%s1087] ss:$2 sm:$0xff]
        %s1089 = scalar_lea.vmem %s186, 640 [#allocation3]
        %v1090 = vld [vmem:[%s1089] ss:$2 sm:$0xff]
        %s1091 = scalar_lea.vmem %s186, 656 [#allocation3]
        %v1092 = vld [vmem:[%s1091] ss:$2 sm:$0xff]
        %s1093 = scalar_lea.vmem %s186, 672 [#allocation3]
        %v1094 = vld [vmem:[%s1093] ss:$2 sm:$0xff]
        %s1095 = scalar_lea.vmem %s186, 688 [#allocation3]
        %v1096 = vld [vmem:[%s1095] ss:$2 sm:$0xff]
        %s1097 = scalar_lea.vmem %s186, 704 [#allocation3]
        %v1098 = vld [vmem:[%s1097] ss:$2 sm:$0xff]
        %s1099 = scalar_lea.vmem %s186, 720 [#allocation3]
        %v1100 = vld [vmem:[%s1099] ss:$2 sm:$0xff]
        %s1101 = scalar_lea.vmem %s186, 736 [#allocation3]
        %v1102 = vld [vmem:[%s1101] ss:$2 sm:$0xff]
        %s1103 = scalar_lea.vmem %s186, 752 [#allocation3]
        %v1104 = vld [vmem:[%s1103] ss:$2 sm:$0xff]
        %v1153 = vlaneseq
        %v1154 = vshrl.u32 %v1153, 7
        %v1155 = vsub.s32 0, %v1154
        %v1156 = vrot.slane %v1010, %v1155
        %v1157 = vlaneseq
        %v1158 = vshrl.u32 %v1157, 7
        %v1159 = vsub.s32 1, %v1158
        %v1160 = vrot.slane %v1010, %v1159
        %v1161 = vlaneseq
        %v1162 = vshrl.u32 %v1161, 7
        %v1163 = vsub.s32 2, %v1162
        %v1164 = vrot.slane %v1010, %v1163
        %v1165 = vlaneseq
        %v1166 = vshrl.u32 %v1165, 7
        %v1167 = vsub.s32 3, %v1166
        %v1168 = vrot.slane %v1010, %v1167
        %v1169 = vlaneseq
        %v1170 = vshrl.u32 %v1169, 7
        %v1171 = vsub.s32 4, %v1170
        %v1172 = vrot.slane %v1010, %v1171
        %v1173 = vlaneseq
        %v1174 = vshrl.u32 %v1173, 7
        %v1175 = vsub.s32 5, %v1174
        %v1176 = vrot.slane %v1010, %v1175
        %v1177 = vlaneseq
        %v1178 = vshrl.u32 %v1177, 7
        %v1179 = vsub.s32 6, %v1178
        %v1180 = vrot.slane %v1010, %v1179
        %v1181 = vlaneseq
        %v1182 = vshrl.u32 %v1181, 7
        %v1183 = vsub.s32 7, %v1182
        %v1184 = vrot.slane %v1010, %v1183
        %v1185 = vlaneseq
        %v1186 = vshrl.u32 %v1185, 7
        %v1187 = vsub.s32 0, %v1186
        %v1188 = vrot.slane %v1012, %v1187
        %v1189 = vlaneseq
        %v1190 = vshrl.u32 %v1189, 7
        %v1191 = vsub.s32 1, %v1190
        %v1192 = vrot.slane %v1012, %v1191
        %v1193 = vlaneseq
        %v1194 = vshrl.u32 %v1193, 7
        %v1195 = vsub.s32 2, %v1194
        %v1196 = vrot.slane %v1012, %v1195
        %v1197 = vlaneseq
        %v1198 = vshrl.u32 %v1197, 7
        %v1199 = vsub.s32 3, %v1198
        %v1200 = vrot.slane %v1012, %v1199
        %v1201 = vlaneseq
        %v1202 = vshrl.u32 %v1201, 7
        %v1203 = vsub.s32 4, %v1202
        %v1204 = vrot.slane %v1012, %v1203
        %v1205 = vlaneseq
        %v1206 = vshrl.u32 %v1205, 7
        %v1207 = vsub.s32 5, %v1206
        %v1208 = vrot.slane %v1012, %v1207
        %v1209 = vlaneseq
        %v1210 = vshrl.u32 %v1209, 7
        %v1211 = vsub.s32 6, %v1210
        %v1212 = vrot.slane %v1012, %v1211
        %v1213 = vlaneseq
        %v1214 = vshrl.u32 %v1213, 7
        %v1215 = vsub.s32 7, %v1214
        %v1216 = vrot.slane %v1012, %v1215
        %v1217 = vlaneseq
        %v1218 = vshrl.u32 %v1217, 7
        %v1219 = vsub.s32 0, %v1218
        %v1220 = vrot.slane %v1014, %v1219
        %v1221 = vlaneseq
        %v1222 = vshrl.u32 %v1221, 7
        %v1223 = vsub.s32 1, %v1222
        %v1224 = vrot.slane %v1014, %v1223
        %v1225 = vlaneseq
        %v1226 = vshrl.u32 %v1225, 7
        %v1227 = vsub.s32 2, %v1226
        %v1228 = vrot.slane %v1014, %v1227
        %v1229 = vlaneseq
        %v1230 = vshrl.u32 %v1229, 7
        %v1231 = vsub.s32 3, %v1230
        %v1232 = vrot.slane %v1014, %v1231
        %v1233 = vlaneseq
        %v1234 = vshrl.u32 %v1233, 7
        %v1235 = vsub.s32 4, %v1234
        %v1236 = vrot.slane %v1014, %v1235
        %v1237 = vlaneseq
        %v1238 = vshrl.u32 %v1237, 7
        %v1239 = vsub.s32 5, %v1238
        %v1240 = vrot.slane %v1014, %v1239
        %v1241 = vlaneseq
        %v1242 = vshrl.u32 %v1241, 7
        %v1243 = vsub.s32 6, %v1242
        %v1244 = vrot.slane %v1014, %v1243
        %v1245 = vlaneseq
        %v1246 = vshrl.u32 %v1245, 7
        %v1247 = vsub.s32 7, %v1246
        %v1248 = vrot.slane %v1014, %v1247
        %v1249 = vlaneseq
        %v1250 = vshrl.u32 %v1249, 7
        %v1251 = vsub.s32 0, %v1250
        %v1252 = vrot.slane %v1016, %v1251
        %v1253 = vlaneseq
        %v1254 = vshrl.u32 %v1253, 7
        %v1255 = vsub.s32 1, %v1254
        %v1256 = vrot.slane %v1016, %v1255
        %v1257 = vlaneseq
        %v1258 = vshrl.u32 %v1257, 7
        %v1259 = vsub.s32 2, %v1258
        %v1260 = vrot.slane %v1016, %v1259
        %v1261 = vlaneseq
        %v1262 = vshrl.u32 %v1261, 7
        %v1263 = vsub.s32 3, %v1262
        %v1264 = vrot.slane %v1016, %v1263
        %v1265 = vlaneseq
        %v1266 = vshrl.u32 %v1265, 7
        %v1267 = vsub.s32 4, %v1266
        %v1268 = vrot.slane %v1016, %v1267
        %v1269 = vlaneseq
        %v1270 = vshrl.u32 %v1269, 7
        %v1271 = vsub.s32 5, %v1270
        %v1272 = vrot.slane %v1016, %v1271
        %v1273 = vlaneseq
        %v1274 = vshrl.u32 %v1273, 7
        %v1275 = vsub.s32 6, %v1274
        %v1276 = vrot.slane %v1016, %v1275
        %v1277 = vlaneseq
        %v1278 = vshrl.u32 %v1277, 7
        %v1279 = vsub.s32 7, %v1278
        %v1280 = vrot.slane %v1016, %v1279
        %v1281 = vlaneseq
        %v1282 = vshrl.u32 %v1281, 7
        %v1283 = vsub.s32 0, %v1282
        %v1284 = vrot.slane %v1018, %v1283
        %v1285 = vlaneseq
        %v1286 = vshrl.u32 %v1285, 7
        %v1287 = vsub.s32 1, %v1286
        %v1288 = vrot.slane %v1018, %v1287
        %v1289 = vlaneseq
        %v1290 = vshrl.u32 %v1289, 7
        %v1291 = vsub.s32 2, %v1290
        %v1292 = vrot.slane %v1018, %v1291
        %v1293 = vlaneseq
        %v1294 = vshrl.u32 %v1293, 7
        %v1295 = vsub.s32 3, %v1294
        %v1296 = vrot.slane %v1018, %v1295
        %v1297 = vlaneseq
        %v1298 = vshrl.u32 %v1297, 7
        %v1299 = vsub.s32 4, %v1298
        %v1300 = vrot.slane %v1018, %v1299
        %v1301 = vlaneseq
        %v1302 = vshrl.u32 %v1301, 7
        %v1303 = vsub.s32 5, %v1302
        %v1304 = vrot.slane %v1018, %v1303
        %v1305 = vlaneseq
        %v1306 = vshrl.u32 %v1305, 7
        %v1307 = vsub.s32 6, %v1306
        %v1308 = vrot.slane %v1018, %v1307
        %v1309 = vlaneseq
        %v1310 = vshrl.u32 %v1309, 7
        %v1311 = vsub.s32 7, %v1310
        %v1312 = vrot.slane %v1018, %v1311
        %v1313 = vlaneseq
        %v1314 = vshrl.u32 %v1313, 7
        %v1315 = vsub.s32 0, %v1314
        %v1316 = vrot.slane %v1020, %v1315
        %v1317 = vlaneseq
        %v1318 = vshrl.u32 %v1317, 7
        %v1319 = vsub.s32 1, %v1318
        %v1320 = vrot.slane %v1020, %v1319
        %v1321 = vlaneseq
        %v1322 = vshrl.u32 %v1321, 7
        %v1323 = vsub.s32 2, %v1322
        %v1324 = vrot.slane %v1020, %v1323
        %v1325 = vlaneseq
        %v1326 = vshrl.u32 %v1325, 7
        %v1327 = vsub.s32 3, %v1326
        %v1328 = vrot.slane %v1020, %v1327
        %v1329 = vlaneseq
        %v1330 = vshrl.u32 %v1329, 7
        %v1331 = vsub.s32 4, %v1330
        %v1332 = vrot.slane %v1020, %v1331
        %v1333 = vlaneseq
        %v1334 = vshrl.u32 %v1333, 7
        %v1335 = vsub.s32 5, %v1334
        %v1336 = vrot.slane %v1020, %v1335
        %v1337 = vlaneseq
        %v1338 = vshrl.u32 %v1337, 7
        %v1339 = vsub.s32 6, %v1338
        %v1340 = vrot.slane %v1020, %v1339
        %v1341 = vlaneseq
        %v1342 = vshrl.u32 %v1341, 7
        %v1343 = vsub.s32 7, %v1342
        %v1344 = vrot.slane %v1020, %v1343
        %v1345 = vlaneseq
        %v1346 = vshrl.u32 %v1345, 7
        %v1347 = vsub.s32 0, %v1346
        %v1348 = vrot.slane %v1022, %v1347
        %v1349 = vlaneseq
        %v1350 = vshrl.u32 %v1349, 7
        %v1351 = vsub.s32 1, %v1350
        %v1352 = vrot.slane %v1022, %v1351
        %v1353 = vlaneseq
        %v1354 = vshrl.u32 %v1353, 7
        %v1355 = vsub.s32 2, %v1354
        %v1356 = vrot.slane %v1022, %v1355
        %v1357 = vlaneseq
        %v1358 = vshrl.u32 %v1357, 7
        %v1359 = vsub.s32 3, %v1358
        %v1360 = vrot.slane %v1022, %v1359
        %v1361 = vlaneseq
        %v1362 = vshrl.u32 %v1361, 7
        %v1363 = vsub.s32 4, %v1362
        %v1364 = vrot.slane %v1022, %v1363
        %v1365 = vlaneseq
        %v1366 = vshrl.u32 %v1365, 7
        %v1367 = vsub.s32 5, %v1366
        %v1368 = vrot.slane %v1022, %v1367
        %v1369 = vlaneseq
        %v1370 = vshrl.u32 %v1369, 7
        %v1371 = vsub.s32 6, %v1370
        %v1372 = vrot.slane %v1022, %v1371
        %v1373 = vlaneseq
        %v1374 = vshrl.u32 %v1373, 7
        %v1375 = vsub.s32 7, %v1374
        %v1376 = vrot.slane %v1022, %v1375
        %v1377 = vlaneseq
        %v1378 = vshrl.u32 %v1377, 7
        %v1379 = vsub.s32 0, %v1378
        %v1380 = vrot.slane %v1024, %v1379
        %v1381 = vlaneseq
        %v1382 = vshrl.u32 %v1381, 7
        %v1383 = vsub.s32 1, %v1382
        %v1384 = vrot.slane %v1024, %v1383
        %v1385 = vlaneseq
        %v1386 = vshrl.u32 %v1385, 7
        %v1387 = vsub.s32 2, %v1386
        %v1388 = vrot.slane %v1024, %v1387
        %v1389 = vlaneseq
        %v1390 = vshrl.u32 %v1389, 7
        %v1391 = vsub.s32 3, %v1390
        %v1392 = vrot.slane %v1024, %v1391
        %v1393 = vlaneseq
        %v1394 = vshrl.u32 %v1393, 7
        %v1395 = vsub.s32 4, %v1394
        %v1396 = vrot.slane %v1024, %v1395
        %v1397 = vlaneseq
        %v1398 = vshrl.u32 %v1397, 7
        %v1399 = vsub.s32 5, %v1398
        %v1400 = vrot.slane %v1024, %v1399
        %v1401 = vlaneseq
        %v1402 = vshrl.u32 %v1401, 7
        %v1403 = vsub.s32 6, %v1402
        %v1404 = vrot.slane %v1024, %v1403
        %v1405 = vlaneseq
        %v1406 = vshrl.u32 %v1405, 7
        %v1407 = vsub.s32 7, %v1406
        %v1408 = vrot.slane %v1024, %v1407
        %v1409 = vlaneseq
        %v1410 = vshrl.u32 %v1409, 7
        %v1411 = vsub.s32 0, %v1410
        %v1412 = vrot.slane %v1026, %v1411
        %v1413 = vlaneseq
        %v1414 = vshrl.u32 %v1413, 7
        %v1415 = vsub.s32 1, %v1414
        %v1416 = vrot.slane %v1026, %v1415
        %v1417 = vlaneseq
        %v1418 = vshrl.u32 %v1417, 7
        %v1419 = vsub.s32 2, %v1418
        %v1420 = vrot.slane %v1026, %v1419
        %v1421 = vlaneseq
        %v1422 = vshrl.u32 %v1421, 7
        %v1423 = vsub.s32 3, %v1422
        %v1424 = vrot.slane %v1026, %v1423
        %v1425 = vlaneseq
        %v1426 = vshrl.u32 %v1425, 7
        %v1427 = vsub.s32 4, %v1426
        %v1428 = vrot.slane %v1026, %v1427
        %v1429 = vlaneseq
        %v1430 = vshrl.u32 %v1429, 7
        %v1431 = vsub.s32 5, %v1430
        %v1432 = vrot.slane %v1026, %v1431
        %v1433 = vlaneseq
        %v1434 = vshrl.u32 %v1433, 7
        %v1435 = vsub.s32 6, %v1434
        %v1436 = vrot.slane %v1026, %v1435
        %v1437 = vlaneseq
        %v1438 = vshrl.u32 %v1437, 7
        %v1439 = vsub.s32 7, %v1438
        %v1440 = vrot.slane %v1026, %v1439
        %v1441 = vlaneseq
        %v1442 = vshrl.u32 %v1441, 7
        %v1443 = vsub.s32 0, %v1442
        %v1444 = vrot.slane %v1028, %v1443
        %v1445 = vlaneseq
        %v1446 = vshrl.u32 %v1445, 7
        %v1447 = vsub.s32 1, %v1446
        %v1448 = vrot.slane %v1028, %v1447
        %v1449 = vlaneseq
        %v1450 = vshrl.u32 %v1449, 7
        %v1451 = vsub.s32 2, %v1450
        %v1452 = vrot.slane %v1028, %v1451
        %v1453 = vlaneseq
        %v1454 = vshrl.u32 %v1453, 7
        %v1455 = vsub.s32 3, %v1454
        %v1456 = vrot.slane %v1028, %v1455
        %v1457 = vlaneseq
        %v1458 = vshrl.u32 %v1457, 7
        %v1459 = vsub.s32 4, %v1458
        %v1460 = vrot.slane %v1028, %v1459
        %v1461 = vlaneseq
        %v1462 = vshrl.u32 %v1461, 7
        %v1463 = vsub.s32 5, %v1462
        %v1464 = vrot.slane %v1028, %v1463
        %v1465 = vlaneseq
        %v1466 = vshrl.u32 %v1465, 7
        %v1467 = vsub.s32 6, %v1466
        %v1468 = vrot.slane %v1028, %v1467
        %v1469 = vlaneseq
        %v1470 = vshrl.u32 %v1469, 7
        %v1471 = vsub.s32 7, %v1470
        %v1472 = vrot.slane %v1028, %v1471
        %v1473 = vlaneseq
        %v1474 = vshrl.u32 %v1473, 7
        %v1475 = vsub.s32 0, %v1474
        %v1476 = vrot.slane %v1030, %v1475
        %v1477 = vlaneseq
        %v1478 = vshrl.u32 %v1477, 7
        %v1479 = vsub.s32 1, %v1478
        %v1480 = vrot.slane %v1030, %v1479
        %v1481 = vlaneseq
        %v1482 = vshrl.u32 %v1481, 7
        %v1483 = vsub.s32 2, %v1482
        %v1484 = vrot.slane %v1030, %v1483
        %v1485 = vlaneseq
        %v1486 = vshrl.u32 %v1485, 7
        %v1487 = vsub.s32 3, %v1486
        %v1488 = vrot.slane %v1030, %v1487
        %v1489 = vlaneseq
        %v1490 = vshrl.u32 %v1489, 7
        %v1491 = vsub.s32 4, %v1490
        %v1492 = vrot.slane %v1030, %v1491
        %v1493 = vlaneseq
        %v1494 = vshrl.u32 %v1493, 7
        %v1495 = vsub.s32 5, %v1494
        %v1496 = vrot.slane %v1030, %v1495
        %v1497 = vlaneseq
        %v1498 = vshrl.u32 %v1497, 7
        %v1499 = vsub.s32 6, %v1498
        %v1500 = vrot.slane %v1030, %v1499
        %v1501 = vlaneseq
        %v1502 = vshrl.u32 %v1501, 7
        %v1503 = vsub.s32 7, %v1502
        %v1504 = vrot.slane %v1030, %v1503
        %v1505 = vlaneseq
        %v1506 = vshrl.u32 %v1505, 7
        %v1507 = vsub.s32 0, %v1506
        %v1508 = vrot.slane %v1032, %v1507
        %v1509 = vlaneseq
        %v1510 = vshrl.u32 %v1509, 7
        %v1511 = vsub.s32 1, %v1510
        %v1512 = vrot.slane %v1032, %v1511
        %v1513 = vlaneseq
        %v1514 = vshrl.u32 %v1513, 7
        %v1515 = vsub.s32 2, %v1514
        %v1516 = vrot.slane %v1032, %v1515
        %v1517 = vlaneseq
        %v1518 = vshrl.u32 %v1517, 7
        %v1519 = vsub.s32 3, %v1518
        %v1520 = vrot.slane %v1032, %v1519
        %v1521 = vlaneseq
        %v1522 = vshrl.u32 %v1521, 7
        %v1523 = vsub.s32 4, %v1522
        %v1524 = vrot.slane %v1032, %v1523
        %v1525 = vlaneseq
        %v1526 = vshrl.u32 %v1525, 7
        %v1527 = vsub.s32 5, %v1526
        %v1528 = vrot.slane %v1032, %v1527
        %v1529 = vlaneseq
        %v1530 = vshrl.u32 %v1529, 7
        %v1531 = vsub.s32 6, %v1530
        %v1532 = vrot.slane %v1032, %v1531
        %v1533 = vlaneseq
        %v1534 = vshrl.u32 %v1533, 7
        %v1535 = vsub.s32 7, %v1534
        %v1536 = vrot.slane %v1032, %v1535
        %v1537 = vlaneseq
        %v1538 = vshrl.u32 %v1537, 7
        %v1539 = vsub.s32 0, %v1538
        %v1540 = vrot.slane %v1034, %v1539
        %v1541 = vlaneseq
        %v1542 = vshrl.u32 %v1541, 7
        %v1543 = vsub.s32 1, %v1542
        %v1544 = vrot.slane %v1034, %v1543
        %v1545 = vlaneseq
        %v1546 = vshrl.u32 %v1545, 7
        %v1547 = vsub.s32 2, %v1546
        %v1548 = vrot.slane %v1034, %v1547
        %v1549 = vlaneseq
        %v1550 = vshrl.u32 %v1549, 7
        %v1551 = vsub.s32 3, %v1550
        %v1552 = vrot.slane %v1034, %v1551
        %v1553 = vlaneseq
        %v1554 = vshrl.u32 %v1553, 7
        %v1555 = vsub.s32 4, %v1554
        %v1556 = vrot.slane %v1034, %v1555
        %v1557 = vlaneseq
        %v1558 = vshrl.u32 %v1557, 7
        %v1559 = vsub.s32 5, %v1558
        %v1560 = vrot.slane %v1034, %v1559
        %v1561 = vlaneseq
        %v1562 = vshrl.u32 %v1561, 7
        %v1563 = vsub.s32 6, %v1562
        %v1564 = vrot.slane %v1034, %v1563
        %v1565 = vlaneseq
        %v1566 = vshrl.u32 %v1565, 7
        %v1567 = vsub.s32 7, %v1566
        %v1568 = vrot.slane %v1034, %v1567
        %v1569 = vlaneseq
        %v1570 = vshrl.u32 %v1569, 7
        %v1571 = vsub.s32 0, %v1570
        %v1572 = vrot.slane %v1036, %v1571
        %v1573 = vlaneseq
        %v1574 = vshrl.u32 %v1573, 7
        %v1575 = vsub.s32 1, %v1574
        %v1576 = vrot.slane %v1036, %v1575
        %v1577 = vlaneseq
        %v1578 = vshrl.u32 %v1577, 7
        %v1579 = vsub.s32 2, %v1578
        %v1580 = vrot.slane %v1036, %v1579
        %v1581 = vlaneseq
        %v1582 = vshrl.u32 %v1581, 7
        %v1583 = vsub.s32 3, %v1582
        %v1584 = vrot.slane %v1036, %v1583
        %v1585 = vlaneseq
        %v1586 = vshrl.u32 %v1585, 7
        %v1587 = vsub.s32 4, %v1586
        %v1588 = vrot.slane %v1036, %v1587
        %v1589 = vlaneseq
        %v1590 = vshrl.u32 %v1589, 7
        %v1591 = vsub.s32 5, %v1590
        %v1592 = vrot.slane %v1036, %v1591
        %v1593 = vlaneseq
        %v1594 = vshrl.u32 %v1593, 7
        %v1595 = vsub.s32 6, %v1594
        %v1596 = vrot.slane %v1036, %v1595
        %v1597 = vlaneseq
        %v1598 = vshrl.u32 %v1597, 7
        %v1599 = vsub.s32 7, %v1598
        %v1600 = vrot.slane %v1036, %v1599
        %v1601 = vlaneseq
        %v1602 = vshrl.u32 %v1601, 7
        %v1603 = vsub.s32 0, %v1602
        %v1604 = vrot.slane %v1038, %v1603
        %v1605 = vlaneseq
        %v1606 = vshrl.u32 %v1605, 7
        %v1607 = vsub.s32 1, %v1606
        %v1608 = vrot.slane %v1038, %v1607
        %v1609 = vlaneseq
        %v1610 = vshrl.u32 %v1609, 7
        %v1611 = vsub.s32 2, %v1610
        %v1612 = vrot.slane %v1038, %v1611
        %v1613 = vlaneseq
        %v1614 = vshrl.u32 %v1613, 7
        %v1615 = vsub.s32 3, %v1614
        %v1616 = vrot.slane %v1038, %v1615
        %v1617 = vlaneseq
        %v1618 = vshrl.u32 %v1617, 7
        %v1619 = vsub.s32 4, %v1618
        %v1620 = vrot.slane %v1038, %v1619
        %v1621 = vlaneseq
        %v1622 = vshrl.u32 %v1621, 7
        %v1623 = vsub.s32 5, %v1622
        %v1624 = vrot.slane %v1038, %v1623
        %v1625 = vlaneseq
        %v1626 = vshrl.u32 %v1625, 7
        %v1627 = vsub.s32 6, %v1626
        %v1628 = vrot.slane %v1038, %v1627
        %v1629 = vlaneseq
        %v1630 = vshrl.u32 %v1629, 7
        %v1631 = vsub.s32 7, %v1630
        %v1632 = vrot.slane %v1038, %v1631
        %v1633 = vlaneseq
        %v1634 = vshrl.u32 %v1633, 7
        %v1635 = vsub.s32 0, %v1634
        %v1636 = vrot.slane %v1040, %v1635
        %v1637 = vlaneseq
        %v1638 = vshrl.u32 %v1637, 7
        %v1639 = vsub.s32 1, %v1638
        %v1640 = vrot.slane %v1040, %v1639
        %v1641 = vlaneseq
        %v1642 = vshrl.u32 %v1641, 7
        %v1643 = vsub.s32 2, %v1642
        %v1644 = vrot.slane %v1040, %v1643
        %v1645 = vlaneseq
        %v1646 = vshrl.u32 %v1645, 7
        %v1647 = vsub.s32 3, %v1646
        %v1648 = vrot.slane %v1040, %v1647
        %v1649 = vlaneseq
        %v1650 = vshrl.u32 %v1649, 7
        %v1651 = vsub.s32 4, %v1650
        %v1652 = vrot.slane %v1040, %v1651
        %v1653 = vlaneseq
        %v1654 = vshrl.u32 %v1653, 7
        %v1655 = vsub.s32 5, %v1654
        %v1656 = vrot.slane %v1040, %v1655
        %v1657 = vlaneseq
        %v1658 = vshrl.u32 %v1657, 7
        %v1659 = vsub.s32 6, %v1658
        %v1660 = vrot.slane %v1040, %v1659
        %v1661 = vlaneseq
        %v1662 = vshrl.u32 %v1661, 7
        %v1663 = vsub.s32 7, %v1662
        %v1664 = vrot.slane %v1040, %v1663
        %v1665 = vlaneseq
        %v1666 = vshrl.u32 %v1665, 7
        %v1667 = vsub.s32 0, %v1666
        %v1668 = vrot.slane %v1042, %v1667
        %v1669 = vlaneseq
        %v1670 = vshrl.u32 %v1669, 7
        %v1671 = vsub.s32 1, %v1670
        %v1672 = vrot.slane %v1042, %v1671
        %v1673 = vlaneseq
        %v1674 = vshrl.u32 %v1673, 7
        %v1675 = vsub.s32 2, %v1674
        %v1676 = vrot.slane %v1042, %v1675
        %v1677 = vlaneseq
        %v1678 = vshrl.u32 %v1677, 7
        %v1679 = vsub.s32 3, %v1678
        %v1680 = vrot.slane %v1042, %v1679
        %v1681 = vlaneseq
        %v1682 = vshrl.u32 %v1681, 7
        %v1683 = vsub.s32 4, %v1682
        %v1684 = vrot.slane %v1042, %v1683
        %v1685 = vlaneseq
        %v1686 = vshrl.u32 %v1685, 7
        %v1687 = vsub.s32 5, %v1686
        %v1688 = vrot.slane %v1042, %v1687
        %v1689 = vlaneseq
        %v1690 = vshrl.u32 %v1689, 7
        %v1691 = vsub.s32 6, %v1690
        %v1692 = vrot.slane %v1042, %v1691
        %v1693 = vlaneseq
        %v1694 = vshrl.u32 %v1693, 7
        %v1695 = vsub.s32 7, %v1694
        %v1696 = vrot.slane %v1042, %v1695
        %v1697 = vlaneseq
        %v1698 = vshrl.u32 %v1697, 7
        %v1699 = vsub.s32 0, %v1698
        %v1700 = vrot.slane %v1044, %v1699
        %v1701 = vlaneseq
        %v1702 = vshrl.u32 %v1701, 7
        %v1703 = vsub.s32 1, %v1702
        %v1704 = vrot.slane %v1044, %v1703
        %v1705 = vlaneseq
        %v1706 = vshrl.u32 %v1705, 7
        %v1707 = vsub.s32 2, %v1706
        %v1708 = vrot.slane %v1044, %v1707
        %v1709 = vlaneseq
        %v1710 = vshrl.u32 %v1709, 7
        %v1711 = vsub.s32 3, %v1710
        %v1712 = vrot.slane %v1044, %v1711
        %v1713 = vlaneseq
        %v1714 = vshrl.u32 %v1713, 7
        %v1715 = vsub.s32 4, %v1714
        %v1716 = vrot.slane %v1044, %v1715
        %v1717 = vlaneseq
        %v1718 = vshrl.u32 %v1717, 7
        %v1719 = vsub.s32 5, %v1718
        %v1720 = vrot.slane %v1044, %v1719
        %v1721 = vlaneseq
        %v1722 = vshrl.u32 %v1721, 7
        %v1723 = vsub.s32 6, %v1722
        %v1724 = vrot.slane %v1044, %v1723
        %v1725 = vlaneseq
        %v1726 = vshrl.u32 %v1725, 7
        %v1727 = vsub.s32 7, %v1726
        %v1728 = vrot.slane %v1044, %v1727
        %v1729 = vlaneseq
        %v1730 = vshrl.u32 %v1729, 7
        %v1731 = vsub.s32 0, %v1730
        %v1732 = vrot.slane %v1046, %v1731
        %v1733 = vlaneseq
        %v1734 = vshrl.u32 %v1733, 7
        %v1735 = vsub.s32 1, %v1734
        %v1736 = vrot.slane %v1046, %v1735
        %v1737 = vlaneseq
        %v1738 = vshrl.u32 %v1737, 7
        %v1739 = vsub.s32 2, %v1738
        %v1740 = vrot.slane %v1046, %v1739
        %v1741 = vlaneseq
        %v1742 = vshrl.u32 %v1741, 7
        %v1743 = vsub.s32 3, %v1742
        %v1744 = vrot.slane %v1046, %v1743
        %v1745 = vlaneseq
        %v1746 = vshrl.u32 %v1745, 7
        %v1747 = vsub.s32 4, %v1746
        %v1748 = vrot.slane %v1046, %v1747
        %v1749 = vlaneseq
        %v1750 = vshrl.u32 %v1749, 7
        %v1751 = vsub.s32 5, %v1750
        %v1752 = vrot.slane %v1046, %v1751
        %v1753 = vlaneseq
        %v1754 = vshrl.u32 %v1753, 7
        %v1755 = vsub.s32 6, %v1754
        %v1756 = vrot.slane %v1046, %v1755
        %v1757 = vlaneseq
        %v1758 = vshrl.u32 %v1757, 7
        %v1759 = vsub.s32 7, %v1758
        %v1760 = vrot.slane %v1046, %v1759
        %v1761 = vlaneseq
        %v1762 = vshrl.u32 %v1761, 7
        %v1763 = vsub.s32 0, %v1762
        %v1764 = vrot.slane %v1048, %v1763
        %v1765 = vlaneseq
        %v1766 = vshrl.u32 %v1765, 7
        %v1767 = vsub.s32 1, %v1766
        %v1768 = vrot.slane %v1048, %v1767
        %v1769 = vlaneseq
        %v1770 = vshrl.u32 %v1769, 7
        %v1771 = vsub.s32 2, %v1770
        %v1772 = vrot.slane %v1048, %v1771
        %v1773 = vlaneseq
        %v1774 = vshrl.u32 %v1773, 7
        %v1775 = vsub.s32 3, %v1774
        %v1776 = vrot.slane %v1048, %v1775
        %v1777 = vlaneseq
        %v1778 = vshrl.u32 %v1777, 7
        %v1779 = vsub.s32 4, %v1778
        %v1780 = vrot.slane %v1048, %v1779
        %v1781 = vlaneseq
        %v1782 = vshrl.u32 %v1781, 7
        %v1783 = vsub.s32 5, %v1782
        %v1784 = vrot.slane %v1048, %v1783
        %v1785 = vlaneseq
        %v1786 = vshrl.u32 %v1785, 7
        %v1787 = vsub.s32 6, %v1786
        %v1788 = vrot.slane %v1048, %v1787
        %v1789 = vlaneseq
        %v1790 = vshrl.u32 %v1789, 7
        %v1791 = vsub.s32 7, %v1790
        %v1792 = vrot.slane %v1048, %v1791
        %v1793 = vlaneseq
        %v1794 = vshrl.u32 %v1793, 7
        %v1795 = vsub.s32 0, %v1794
        %v1796 = vrot.slane %v1050, %v1795
        %v1797 = vlaneseq
        %v1798 = vshrl.u32 %v1797, 7
        %v1799 = vsub.s32 1, %v1798
        %v1800 = vrot.slane %v1050, %v1799
        %v1801 = vlaneseq
        %v1802 = vshrl.u32 %v1801, 7
        %v1803 = vsub.s32 2, %v1802
        %v1804 = vrot.slane %v1050, %v1803
        %v1805 = vlaneseq
        %v1806 = vshrl.u32 %v1805, 7
        %v1807 = vsub.s32 3, %v1806
        %v1808 = vrot.slane %v1050, %v1807
        %v1809 = vlaneseq
        %v1810 = vshrl.u32 %v1809, 7
        %v1811 = vsub.s32 4, %v1810
        %v1812 = vrot.slane %v1050, %v1811
        %v1813 = vlaneseq
        %v1814 = vshrl.u32 %v1813, 7
        %v1815 = vsub.s32 5, %v1814
        %v1816 = vrot.slane %v1050, %v1815
        %v1817 = vlaneseq
        %v1818 = vshrl.u32 %v1817, 7
        %v1819 = vsub.s32 6, %v1818
        %v1820 = vrot.slane %v1050, %v1819
        %v1821 = vlaneseq
        %v1822 = vshrl.u32 %v1821, 7
        %v1823 = vsub.s32 7, %v1822
        %v1824 = vrot.slane %v1050, %v1823
        %v1825 = vlaneseq
        %v1826 = vshrl.u32 %v1825, 7
        %v1827 = vsub.s32 0, %v1826
        %v1828 = vrot.slane %v1052, %v1827
        %v1829 = vlaneseq
        %v1830 = vshrl.u32 %v1829, 7
        %v1831 = vsub.s32 1, %v1830
        %v1832 = vrot.slane %v1052, %v1831
        %v1833 = vlaneseq
        %v1834 = vshrl.u32 %v1833, 7
        %v1835 = vsub.s32 2, %v1834
        %v1836 = vrot.slane %v1052, %v1835
        %v1837 = vlaneseq
        %v1838 = vshrl.u32 %v1837, 7
        %v1839 = vsub.s32 3, %v1838
        %v1840 = vrot.slane %v1052, %v1839
        %v1841 = vlaneseq
        %v1842 = vshrl.u32 %v1841, 7
        %v1843 = vsub.s32 4, %v1842
        %v1844 = vrot.slane %v1052, %v1843
        %v1845 = vlaneseq
        %v1846 = vshrl.u32 %v1845, 7
        %v1847 = vsub.s32 5, %v1846
        %v1848 = vrot.slane %v1052, %v1847
        %v1849 = vlaneseq
        %v1850 = vshrl.u32 %v1849, 7
        %v1851 = vsub.s32 6, %v1850
        %v1852 = vrot.slane %v1052, %v1851
        %v1853 = vlaneseq
        %v1854 = vshrl.u32 %v1853, 7
        %v1855 = vsub.s32 7, %v1854
        %v1856 = vrot.slane %v1052, %v1855
        %v1857 = vlaneseq
        %v1858 = vshrl.u32 %v1857, 7
        %v1859 = vsub.s32 0, %v1858
        %v1860 = vrot.slane %v1054, %v1859
        %v1861 = vlaneseq
        %v1862 = vshrl.u32 %v1861, 7
        %v1863 = vsub.s32 1, %v1862
        %v1864 = vrot.slane %v1054, %v1863
        %v1865 = vlaneseq
        %v1866 = vshrl.u32 %v1865, 7
        %v1867 = vsub.s32 2, %v1866
        %v1868 = vrot.slane %v1054, %v1867
        %v1869 = vlaneseq
        %v1870 = vshrl.u32 %v1869, 7
        %v1871 = vsub.s32 3, %v1870
        %v1872 = vrot.slane %v1054, %v1871
        %v1873 = vlaneseq
        %v1874 = vshrl.u32 %v1873, 7
        %v1875 = vsub.s32 4, %v1874
        %v1876 = vrot.slane %v1054, %v1875
        %v1877 = vlaneseq
        %v1878 = vshrl.u32 %v1877, 7
        %v1879 = vsub.s32 5, %v1878
        %v1880 = vrot.slane %v1054, %v1879
        %v1881 = vlaneseq
        %v1882 = vshrl.u32 %v1881, 7
        %v1883 = vsub.s32 6, %v1882
        %v1884 = vrot.slane %v1054, %v1883
        %v1885 = vlaneseq
        %v1886 = vshrl.u32 %v1885, 7
        %v1887 = vsub.s32 7, %v1886
        %v1888 = vrot.slane %v1054, %v1887
        %v1889 = vlaneseq
        %v1890 = vshrl.u32 %v1889, 7
        %v1891 = vsub.s32 0, %v1890
        %v1892 = vrot.slane %v1056, %v1891
        %v1893 = vlaneseq
        %v1894 = vshrl.u32 %v1893, 7
        %v1895 = vsub.s32 1, %v1894
        %v1896 = vrot.slane %v1056, %v1895
        %v1897 = vlaneseq
        %v1898 = vshrl.u32 %v1897, 7
        %v1899 = vsub.s32 2, %v1898
        %v1900 = vrot.slane %v1056, %v1899
        %v1901 = vlaneseq
        %v1902 = vshrl.u32 %v1901, 7
        %v1903 = vsub.s32 3, %v1902
        %v1904 = vrot.slane %v1056, %v1903
        %v1905 = vlaneseq
        %v1906 = vshrl.u32 %v1905, 7
        %v1907 = vsub.s32 4, %v1906
        %v1908 = vrot.slane %v1056, %v1907
        %v1909 = vlaneseq
        %v1910 = vshrl.u32 %v1909, 7
        %v1911 = vsub.s32 5, %v1910
        %v1912 = vrot.slane %v1056, %v1911
        %v1913 = vlaneseq
        %v1914 = vshrl.u32 %v1913, 7
        %v1915 = vsub.s32 6, %v1914
        %v1916 = vrot.slane %v1056, %v1915
        %v1917 = vlaneseq
        %v1918 = vshrl.u32 %v1917, 7
        %v1919 = vsub.s32 7, %v1918
        %v1920 = vrot.slane %v1056, %v1919
        %v1921 = vlaneseq
        %v1922 = vshrl.u32 %v1921, 7
        %v1923 = vsub.s32 0, %v1922
        %v1924 = vrot.slane %v1058, %v1923
        %v1925 = vlaneseq
        %v1926 = vshrl.u32 %v1925, 7
        %v1927 = vsub.s32 1, %v1926
        %v1928 = vrot.slane %v1058, %v1927
        %v1929 = vlaneseq
        %v1930 = vshrl.u32 %v1929, 7
        %v1931 = vsub.s32 2, %v1930
        %v1932 = vrot.slane %v1058, %v1931
        %v1933 = vlaneseq
        %v1934 = vshrl.u32 %v1933, 7
        %v1935 = vsub.s32 3, %v1934
        %v1936 = vrot.slane %v1058, %v1935
        %v1937 = vlaneseq
        %v1938 = vshrl.u32 %v1937, 7
        %v1939 = vsub.s32 4, %v1938
        %v1940 = vrot.slane %v1058, %v1939
        %v1941 = vlaneseq
        %v1942 = vshrl.u32 %v1941, 7
        %v1943 = vsub.s32 5, %v1942
        %v1944 = vrot.slane %v1058, %v1943
        %v1945 = vlaneseq
        %v1946 = vshrl.u32 %v1945, 7
        %v1947 = vsub.s32 6, %v1946
        %v1948 = vrot.slane %v1058, %v1947
        %v1949 = vlaneseq
        %v1950 = vshrl.u32 %v1949, 7
        %v1951 = vsub.s32 7, %v1950
        %v1952 = vrot.slane %v1058, %v1951
        %v1953 = vlaneseq
        %v1954 = vshrl.u32 %v1953, 7
        %v1955 = vsub.s32 0, %v1954
        %v1956 = vrot.slane %v1060, %v1955
        %v1957 = vlaneseq
        %v1958 = vshrl.u32 %v1957, 7
        %v1959 = vsub.s32 1, %v1958
        %v1960 = vrot.slane %v1060, %v1959
        %v1961 = vlaneseq
        %v1962 = vshrl.u32 %v1961, 7
        %v1963 = vsub.s32 2, %v1962
        %v1964 = vrot.slane %v1060, %v1963
        %v1965 = vlaneseq
        %v1966 = vshrl.u32 %v1965, 7
        %v1967 = vsub.s32 3, %v1966
        %v1968 = vrot.slane %v1060, %v1967
        %v1969 = vlaneseq
        %v1970 = vshrl.u32 %v1969, 7
        %v1971 = vsub.s32 4, %v1970
        %v1972 = vrot.slane %v1060, %v1971
        %v1973 = vlaneseq
        %v1974 = vshrl.u32 %v1973, 7
        %v1975 = vsub.s32 5, %v1974
        %v1976 = vrot.slane %v1060, %v1975
        %v1977 = vlaneseq
        %v1978 = vshrl.u32 %v1977, 7
        %v1979 = vsub.s32 6, %v1978
        %v1980 = vrot.slane %v1060, %v1979
        %v1981 = vlaneseq
        %v1982 = vshrl.u32 %v1981, 7
        %v1983 = vsub.s32 7, %v1982
        %v1984 = vrot.slane %v1060, %v1983
        %v1985 = vlaneseq
        %v1986 = vshrl.u32 %v1985, 7
        %v1987 = vsub.s32 0, %v1986
        %v1988 = vrot.slane %v1062, %v1987
        %v1989 = vlaneseq
        %v1990 = vshrl.u32 %v1989, 7
        %v1991 = vsub.s32 1, %v1990
        %v1992 = vrot.slane %v1062, %v1991
        %v1993 = vlaneseq
        %v1994 = vshrl.u32 %v1993, 7
        %v1995 = vsub.s32 2, %v1994
        %v1996 = vrot.slane %v1062, %v1995
        %v1997 = vlaneseq
        %v1998 = vshrl.u32 %v1997, 7
        %v1999 = vsub.s32 3, %v1998
        %v2000 = vrot.slane %v1062, %v1999
        %v2001 = vlaneseq
        %v2002 = vshrl.u32 %v2001, 7
        %v2003 = vsub.s32 4, %v2002
        %v2004 = vrot.slane %v1062, %v2003
        %v2005 = vlaneseq
        %v2006 = vshrl.u32 %v2005, 7
        %v2007 = vsub.s32 5, %v2006
        %v2008 = vrot.slane %v1062, %v2007
        %v2009 = vlaneseq
        %v2010 = vshrl.u32 %v2009, 7
        %v2011 = vsub.s32 6, %v2010
        %v2012 = vrot.slane %v1062, %v2011
        %v2013 = vlaneseq
        %v2014 = vshrl.u32 %v2013, 7
        %v2015 = vsub.s32 7, %v2014
        %v2016 = vrot.slane %v1062, %v2015
        %v2017 = vlaneseq
        %v2018 = vshrl.u32 %v2017, 7
        %v2019 = vsub.s32 0, %v2018
        %v2020 = vrot.slane %v1064, %v2019
        %v2021 = vlaneseq
        %v2022 = vshrl.u32 %v2021, 7
        %v2023 = vsub.s32 1, %v2022
        %v2024 = vrot.slane %v1064, %v2023
        %v2025 = vlaneseq
        %v2026 = vshrl.u32 %v2025, 7
        %v2027 = vsub.s32 2, %v2026
        %v2028 = vrot.slane %v1064, %v2027
        %v2029 = vlaneseq
        %v2030 = vshrl.u32 %v2029, 7
        %v2031 = vsub.s32 3, %v2030
        %v2032 = vrot.slane %v1064, %v2031
        %v2033 = vlaneseq
        %v2034 = vshrl.u32 %v2033, 7
        %v2035 = vsub.s32 4, %v2034
        %v2036 = vrot.slane %v1064, %v2035
        %v2037 = vlaneseq
        %v2038 = vshrl.u32 %v2037, 7
        %v2039 = vsub.s32 5, %v2038
        %v2040 = vrot.slane %v1064, %v2039
        %v2041 = vlaneseq
        %v2042 = vshrl.u32 %v2041, 7
        %v2043 = vsub.s32 6, %v2042
        %v2044 = vrot.slane %v1064, %v2043
        %v2045 = vlaneseq
        %v2046 = vshrl.u32 %v2045, 7
        %v2047 = vsub.s32 7, %v2046
        %v2048 = vrot.slane %v1064, %v2047
        %v2049 = vlaneseq
        %v2050 = vshrl.u32 %v2049, 7
        %v2051 = vsub.s32 0, %v2050
        %v2052 = vrot.slane %v1066, %v2051
        %v2053 = vlaneseq
        %v2054 = vshrl.u32 %v2053, 7
        %v2055 = vsub.s32 1, %v2054
        %v2056 = vrot.slane %v1066, %v2055
        %v2057 = vlaneseq
        %v2058 = vshrl.u32 %v2057, 7
        %v2059 = vsub.s32 2, %v2058
        %v2060 = vrot.slane %v1066, %v2059
        %v2061 = vlaneseq
        %v2062 = vshrl.u32 %v2061, 7
        %v2063 = vsub.s32 3, %v2062
        %v2064 = vrot.slane %v1066, %v2063
        %v2065 = vlaneseq
        %v2066 = vshrl.u32 %v2065, 7
        %v2067 = vsub.s32 4, %v2066
        %v2068 = vrot.slane %v1066, %v2067
        %v2069 = vlaneseq
        %v2070 = vshrl.u32 %v2069, 7
        %v2071 = vsub.s32 5, %v2070
        %v2072 = vrot.slane %v1066, %v2071
        %v2073 = vlaneseq
        %v2074 = vshrl.u32 %v2073, 7
        %v2075 = vsub.s32 6, %v2074
        %v2076 = vrot.slane %v1066, %v2075
        %v2077 = vlaneseq
        %v2078 = vshrl.u32 %v2077, 7
        %v2079 = vsub.s32 7, %v2078
        %v2080 = vrot.slane %v1066, %v2079
        %v2081 = vlaneseq
        %v2082 = vshrl.u32 %v2081, 7
        %v2083 = vsub.s32 0, %v2082
        %v2084 = vrot.slane %v1068, %v2083
        %v2085 = vlaneseq
        %v2086 = vshrl.u32 %v2085, 7
        %v2087 = vsub.s32 1, %v2086
        %v2088 = vrot.slane %v1068, %v2087
        %v2089 = vlaneseq
        %v2090 = vshrl.u32 %v2089, 7
        %v2091 = vsub.s32 2, %v2090
        %v2092 = vrot.slane %v1068, %v2091
        %v2093 = vlaneseq
        %v2094 = vshrl.u32 %v2093, 7
        %v2095 = vsub.s32 3, %v2094
        %v2096 = vrot.slane %v1068, %v2095
        %v2097 = vlaneseq
        %v2098 = vshrl.u32 %v2097, 7
        %v2099 = vsub.s32 4, %v2098
        %v2100 = vrot.slane %v1068, %v2099
        %v2101 = vlaneseq
        %v2102 = vshrl.u32 %v2101, 7
        %v2103 = vsub.s32 5, %v2102
        %v2104 = vrot.slane %v1068, %v2103
        %v2105 = vlaneseq
        %v2106 = vshrl.u32 %v2105, 7
        %v2107 = vsub.s32 6, %v2106
        %v2108 = vrot.slane %v1068, %v2107
        %v2109 = vlaneseq
        %v2110 = vshrl.u32 %v2109, 7
        %v2111 = vsub.s32 7, %v2110
        %v2112 = vrot.slane %v1068, %v2111
        %v2113 = vlaneseq
        %v2114 = vshrl.u32 %v2113, 7
        %v2115 = vsub.s32 0, %v2114
        %v2116 = vrot.slane %v1070, %v2115
        %v2117 = vlaneseq
        %v2118 = vshrl.u32 %v2117, 7
        %v2119 = vsub.s32 1, %v2118
        %v2120 = vrot.slane %v1070, %v2119
        %v2121 = vlaneseq
        %v2122 = vshrl.u32 %v2121, 7
        %v2123 = vsub.s32 2, %v2122
        %v2124 = vrot.slane %v1070, %v2123
        %v2125 = vlaneseq
        %v2126 = vshrl.u32 %v2125, 7
        %v2127 = vsub.s32 3, %v2126
        %v2128 = vrot.slane %v1070, %v2127
        %v2129 = vlaneseq
        %v2130 = vshrl.u32 %v2129, 7
        %v2131 = vsub.s32 4, %v2130
        %v2132 = vrot.slane %v1070, %v2131
        %v2133 = vlaneseq
        %v2134 = vshrl.u32 %v2133, 7
        %v2135 = vsub.s32 5, %v2134
        %v2136 = vrot.slane %v1070, %v2135
        %v2137 = vlaneseq
        %v2138 = vshrl.u32 %v2137, 7
        %v2139 = vsub.s32 6, %v2138
        %v2140 = vrot.slane %v1070, %v2139
        %v2141 = vlaneseq
        %v2142 = vshrl.u32 %v2141, 7
        %v2143 = vsub.s32 7, %v2142
        %v2144 = vrot.slane %v1070, %v2143
        %v2145 = vlaneseq
        %v2146 = vshrl.u32 %v2145, 7
        %v2147 = vsub.s32 0, %v2146
        %v2148 = vrot.slane %v1072, %v2147
        %v2149 = vlaneseq
        %v2150 = vshrl.u32 %v2149, 7
        %v2151 = vsub.s32 1, %v2150
        %v2152 = vrot.slane %v1072, %v2151
        %v2153 = vlaneseq
        %v2154 = vshrl.u32 %v2153, 7
        %v2155 = vsub.s32 2, %v2154
        %v2156 = vrot.slane %v1072, %v2155
        %v2157 = vlaneseq
        %v2158 = vshrl.u32 %v2157, 7
        %v2159 = vsub.s32 3, %v2158
        %v2160 = vrot.slane %v1072, %v2159
        %v2161 = vlaneseq
        %v2162 = vshrl.u32 %v2161, 7
        %v2163 = vsub.s32 4, %v2162
        %v2164 = vrot.slane %v1072, %v2163
        %v2165 = vlaneseq
        %v2166 = vshrl.u32 %v2165, 7
        %v2167 = vsub.s32 5, %v2166
        %v2168 = vrot.slane %v1072, %v2167
        %v2169 = vlaneseq
        %v2170 = vshrl.u32 %v2169, 7
        %v2171 = vsub.s32 6, %v2170
        %v2172 = vrot.slane %v1072, %v2171
        %v2173 = vlaneseq
        %v2174 = vshrl.u32 %v2173, 7
        %v2175 = vsub.s32 7, %v2174
        %v2176 = vrot.slane %v1072, %v2175
        %v2177 = vlaneseq
        %v2178 = vshrl.u32 %v2177, 7
        %v2179 = vsub.s32 0, %v2178
        %v2180 = vrot.slane %v1074, %v2179
        %v2181 = vlaneseq
        %v2182 = vshrl.u32 %v2181, 7
        %v2183 = vsub.s32 1, %v2182
        %v2184 = vrot.slane %v1074, %v2183
        %v2185 = vlaneseq
        %v2186 = vshrl.u32 %v2185, 7
        %v2187 = vsub.s32 2, %v2186
        %v2188 = vrot.slane %v1074, %v2187
        %v2189 = vlaneseq
        %v2190 = vshrl.u32 %v2189, 7
        %v2191 = vsub.s32 3, %v2190
        %v2192 = vrot.slane %v1074, %v2191
        %v2193 = vlaneseq
        %v2194 = vshrl.u32 %v2193, 7
        %v2195 = vsub.s32 4, %v2194
        %v2196 = vrot.slane %v1074, %v2195
        %v2197 = vlaneseq
        %v2198 = vshrl.u32 %v2197, 7
        %v2199 = vsub.s32 5, %v2198
        %v2200 = vrot.slane %v1074, %v2199
        %v2201 = vlaneseq
        %v2202 = vshrl.u32 %v2201, 7
        %v2203 = vsub.s32 6, %v2202
        %v2204 = vrot.slane %v1074, %v2203
        %v2205 = vlaneseq
        %v2206 = vshrl.u32 %v2205, 7
        %v2207 = vsub.s32 7, %v2206
        %v2208 = vrot.slane %v1074, %v2207
        %v2209 = vlaneseq
        %v2210 = vshrl.u32 %v2209, 7
        %v2211 = vsub.s32 0, %v2210
        %v2212 = vrot.slane %v1076, %v2211
        %v2213 = vlaneseq
        %v2214 = vshrl.u32 %v2213, 7
        %v2215 = vsub.s32 1, %v2214
        %v2216 = vrot.slane %v1076, %v2215
        %v2217 = vlaneseq
        %v2218 = vshrl.u32 %v2217, 7
        %v2219 = vsub.s32 2, %v2218
        %v2220 = vrot.slane %v1076, %v2219
        %v2221 = vlaneseq
        %v2222 = vshrl.u32 %v2221, 7
        %v2223 = vsub.s32 3, %v2222
        %v2224 = vrot.slane %v1076, %v2223
        %v2225 = vlaneseq
        %v2226 = vshrl.u32 %v2225, 7
        %v2227 = vsub.s32 4, %v2226
        %v2228 = vrot.slane %v1076, %v2227
        %v2229 = vlaneseq
        %v2230 = vshrl.u32 %v2229, 7
        %v2231 = vsub.s32 5, %v2230
        %v2232 = vrot.slane %v1076, %v2231
        %v2233 = vlaneseq
        %v2234 = vshrl.u32 %v2233, 7
        %v2235 = vsub.s32 6, %v2234
        %v2236 = vrot.slane %v1076, %v2235
        %v2237 = vlaneseq
        %v2238 = vshrl.u32 %v2237, 7
        %v2239 = vsub.s32 7, %v2238
        %v2240 = vrot.slane %v1076, %v2239
        %v2241 = vlaneseq
        %v2242 = vshrl.u32 %v2241, 7
        %v2243 = vsub.s32 0, %v2242
        %v2244 = vrot.slane %v1078, %v2243
        %v2245 = vlaneseq
        %v2246 = vshrl.u32 %v2245, 7
        %v2247 = vsub.s32 1, %v2246
        %v2248 = vrot.slane %v1078, %v2247
        %v2249 = vlaneseq
        %v2250 = vshrl.u32 %v2249, 7
        %v2251 = vsub.s32 2, %v2250
        %v2252 = vrot.slane %v1078, %v2251
        %v2253 = vlaneseq
        %v2254 = vshrl.u32 %v2253, 7
        %v2255 = vsub.s32 3, %v2254
        %v2256 = vrot.slane %v1078, %v2255
        %v2257 = vlaneseq
        %v2258 = vshrl.u32 %v2257, 7
        %v2259 = vsub.s32 4, %v2258
        %v2260 = vrot.slane %v1078, %v2259
        %v2261 = vlaneseq
        %v2262 = vshrl.u32 %v2261, 7
        %v2263 = vsub.s32 5, %v2262
        %v2264 = vrot.slane %v1078, %v2263
        %v2265 = vlaneseq
        %v2266 = vshrl.u32 %v2265, 7
        %v2267 = vsub.s32 6, %v2266
        %v2268 = vrot.slane %v1078, %v2267
        %v2269 = vlaneseq
        %v2270 = vshrl.u32 %v2269, 7
        %v2271 = vsub.s32 7, %v2270
        %v2272 = vrot.slane %v1078, %v2271
        %v2273 = vlaneseq
        %v2274 = vshrl.u32 %v2273, 7
        %v2275 = vsub.s32 0, %v2274
        %v2276 = vrot.slane %v1080, %v2275
        %v2277 = vlaneseq
        %v2278 = vshrl.u32 %v2277, 7
        %v2279 = vsub.s32 1, %v2278
        %v2280 = vrot.slane %v1080, %v2279
        %v2281 = vlaneseq
        %v2282 = vshrl.u32 %v2281, 7
        %v2283 = vsub.s32 2, %v2282
        %v2284 = vrot.slane %v1080, %v2283
        %v2285 = vlaneseq
        %v2286 = vshrl.u32 %v2285, 7
        %v2287 = vsub.s32 3, %v2286
        %v2288 = vrot.slane %v1080, %v2287
        %v2289 = vlaneseq
        %v2290 = vshrl.u32 %v2289, 7
        %v2291 = vsub.s32 4, %v2290
        %v2292 = vrot.slane %v1080, %v2291
        %v2293 = vlaneseq
        %v2294 = vshrl.u32 %v2293, 7
        %v2295 = vsub.s32 5, %v2294
        %v2296 = vrot.slane %v1080, %v2295
        %v2297 = vlaneseq
        %v2298 = vshrl.u32 %v2297, 7
        %v2299 = vsub.s32 6, %v2298
        %v2300 = vrot.slane %v1080, %v2299
        %v2301 = vlaneseq
        %v2302 = vshrl.u32 %v2301, 7
        %v2303 = vsub.s32 7, %v2302
        %v2304 = vrot.slane %v1080, %v2303
        %v2305 = vlaneseq
        %v2306 = vshrl.u32 %v2305, 7
        %v2307 = vsub.s32 0, %v2306
        %v2308 = vrot.slane %v1082, %v2307
        %v2309 = vlaneseq
        %v2310 = vshrl.u32 %v2309, 7
        %v2311 = vsub.s32 1, %v2310
        %v2312 = vrot.slane %v1082, %v2311
        %v2313 = vlaneseq
        %v2314 = vshrl.u32 %v2313, 7
        %v2315 = vsub.s32 2, %v2314
        %v2316 = vrot.slane %v1082, %v2315
        %v2317 = vlaneseq
        %v2318 = vshrl.u32 %v2317, 7
        %v2319 = vsub.s32 3, %v2318
        %v2320 = vrot.slane %v1082, %v2319
        %v2321 = vlaneseq
        %v2322 = vshrl.u32 %v2321, 7
        %v2323 = vsub.s32 4, %v2322
        %v2324 = vrot.slane %v1082, %v2323
        %v2325 = vlaneseq
        %v2326 = vshrl.u32 %v2325, 7
        %v2327 = vsub.s32 5, %v2326
        %v2328 = vrot.slane %v1082, %v2327
        %v2329 = vlaneseq
        %v2330 = vshrl.u32 %v2329, 7
        %v2331 = vsub.s32 6, %v2330
        %v2332 = vrot.slane %v1082, %v2331
        %v2333 = vlaneseq
        %v2334 = vshrl.u32 %v2333, 7
        %v2335 = vsub.s32 7, %v2334
        %v2336 = vrot.slane %v1082, %v2335
        %v2337 = vlaneseq
        %v2338 = vshrl.u32 %v2337, 7
        %v2339 = vsub.s32 0, %v2338
        %v2340 = vrot.slane %v1084, %v2339
        %v2341 = vlaneseq
        %v2342 = vshrl.u32 %v2341, 7
        %v2343 = vsub.s32 1, %v2342
        %v2344 = vrot.slane %v1084, %v2343
        %v2345 = vlaneseq
        %v2346 = vshrl.u32 %v2345, 7
        %v2347 = vsub.s32 2, %v2346
        %v2348 = vrot.slane %v1084, %v2347
        %v2349 = vlaneseq
        %v2350 = vshrl.u32 %v2349, 7
        %v2351 = vsub.s32 3, %v2350
        %v2352 = vrot.slane %v1084, %v2351
        %v2353 = vlaneseq
        %v2354 = vshrl.u32 %v2353, 7
        %v2355 = vsub.s32 4, %v2354
        %v2356 = vrot.slane %v1084, %v2355
        %v2357 = vlaneseq
        %v2358 = vshrl.u32 %v2357, 7
        %v2359 = vsub.s32 5, %v2358
        %v2360 = vrot.slane %v1084, %v2359
        %v2361 = vlaneseq
        %v2362 = vshrl.u32 %v2361, 7
        %v2363 = vsub.s32 6, %v2362
        %v2364 = vrot.slane %v1084, %v2363
        %v2365 = vlaneseq
        %v2366 = vshrl.u32 %v2365, 7
        %v2367 = vsub.s32 7, %v2366
        %v2368 = vrot.slane %v1084, %v2367
        %v2369 = vlaneseq
        %v2370 = vshrl.u32 %v2369, 7
        %v2371 = vsub.s32 0, %v2370
        %v2372 = vrot.slane %v1086, %v2371
        %v2373 = vlaneseq
        %v2374 = vshrl.u32 %v2373, 7
        %v2375 = vsub.s32 1, %v2374
        %v2376 = vrot.slane %v1086, %v2375
        %v2377 = vlaneseq
        %v2378 = vshrl.u32 %v2377, 7
        %v2379 = vsub.s32 2, %v2378
        %v2380 = vrot.slane %v1086, %v2379
        %v2381 = vlaneseq
        %v2382 = vshrl.u32 %v2381, 7
        %v2383 = vsub.s32 3, %v2382
        %v2384 = vrot.slane %v1086, %v2383
        %v2385 = vlaneseq
        %v2386 = vshrl.u32 %v2385, 7
        %v2387 = vsub.s32 4, %v2386
        %v2388 = vrot.slane %v1086, %v2387
        %v2389 = vlaneseq
        %v2390 = vshrl.u32 %v2389, 7
        %v2391 = vsub.s32 5, %v2390
        %v2392 = vrot.slane %v1086, %v2391
        %v2393 = vlaneseq
        %v2394 = vshrl.u32 %v2393, 7
        %v2395 = vsub.s32 6, %v2394
        %v2396 = vrot.slane %v1086, %v2395
        %v2397 = vlaneseq
        %v2398 = vshrl.u32 %v2397, 7
        %v2399 = vsub.s32 7, %v2398
        %v2400 = vrot.slane %v1086, %v2399
        %v2401 = vlaneseq
        %v2402 = vshrl.u32 %v2401, 7
        %v2403 = vsub.s32 0, %v2402
        %v2404 = vrot.slane %v1088, %v2403
        %v2405 = vlaneseq
        %v2406 = vshrl.u32 %v2405, 7
        %v2407 = vsub.s32 1, %v2406
        %v2408 = vrot.slane %v1088, %v2407
        %v2409 = vlaneseq
        %v2410 = vshrl.u32 %v2409, 7
        %v2411 = vsub.s32 2, %v2410
        %v2412 = vrot.slane %v1088, %v2411
        %v2413 = vlaneseq
        %v2414 = vshrl.u32 %v2413, 7
        %v2415 = vsub.s32 3, %v2414
        %v2416 = vrot.slane %v1088, %v2415
        %v2417 = vlaneseq
        %v2418 = vshrl.u32 %v2417, 7
        %v2419 = vsub.s32 4, %v2418
        %v2420 = vrot.slane %v1088, %v2419
        %v2421 = vlaneseq
        %v2422 = vshrl.u32 %v2421, 7
        %v2423 = vsub.s32 5, %v2422
        %v2424 = vrot.slane %v1088, %v2423
        %v2425 = vlaneseq
        %v2426 = vshrl.u32 %v2425, 7
        %v2427 = vsub.s32 6, %v2426
        %v2428 = vrot.slane %v1088, %v2427
        %v2429 = vlaneseq
        %v2430 = vshrl.u32 %v2429, 7
        %v2431 = vsub.s32 7, %v2430
        %v2432 = vrot.slane %v1088, %v2431
        %v2433 = vlaneseq
        %v2434 = vshrl.u32 %v2433, 7
        %v2435 = vsub.s32 0, %v2434
        %v2436 = vrot.slane %v1090, %v2435
        %v2437 = vlaneseq
        %v2438 = vshrl.u32 %v2437, 7
        %v2439 = vsub.s32 1, %v2438
        %v2440 = vrot.slane %v1090, %v2439
        %v2441 = vlaneseq
        %v2442 = vshrl.u32 %v2441, 7
        %v2443 = vsub.s32 2, %v2442
        %v2444 = vrot.slane %v1090, %v2443
        %v2445 = vlaneseq
        %v2446 = vshrl.u32 %v2445, 7
        %v2447 = vsub.s32 3, %v2446
        %v2448 = vrot.slane %v1090, %v2447
        %v2449 = vlaneseq
        %v2450 = vshrl.u32 %v2449, 7
        %v2451 = vsub.s32 4, %v2450
        %v2452 = vrot.slane %v1090, %v2451
        %v2453 = vlaneseq
        %v2454 = vshrl.u32 %v2453, 7
        %v2455 = vsub.s32 5, %v2454
        %v2456 = vrot.slane %v1090, %v2455
        %v2457 = vlaneseq
        %v2458 = vshrl.u32 %v2457, 7
        %v2459 = vsub.s32 6, %v2458
        %v2460 = vrot.slane %v1090, %v2459
        %v2461 = vlaneseq
        %v2462 = vshrl.u32 %v2461, 7
        %v2463 = vsub.s32 7, %v2462
        %v2464 = vrot.slane %v1090, %v2463
        %v2465 = vlaneseq
        %v2466 = vshrl.u32 %v2465, 7
        %v2467 = vsub.s32 0, %v2466
        %v2468 = vrot.slane %v1092, %v2467
        %v2469 = vlaneseq
        %v2470 = vshrl.u32 %v2469, 7
        %v2471 = vsub.s32 1, %v2470
        %v2472 = vrot.slane %v1092, %v2471
        %v2473 = vlaneseq
        %v2474 = vshrl.u32 %v2473, 7
        %v2475 = vsub.s32 2, %v2474
        %v2476 = vrot.slane %v1092, %v2475
        %v2477 = vlaneseq
        %v2478 = vshrl.u32 %v2477, 7
        %v2479 = vsub.s32 3, %v2478
        %v2480 = vrot.slane %v1092, %v2479
        %v2481 = vlaneseq
        %v2482 = vshrl.u32 %v2481, 7
        %v2483 = vsub.s32 4, %v2482
        %v2484 = vrot.slane %v1092, %v2483
        %v2485 = vlaneseq
        %v2486 = vshrl.u32 %v2485, 7
        %v2487 = vsub.s32 5, %v2486
        %v2488 = vrot.slane %v1092, %v2487
        %v2489 = vlaneseq
        %v2490 = vshrl.u32 %v2489, 7
        %v2491 = vsub.s32 6, %v2490
        %v2492 = vrot.slane %v1092, %v2491
        %v2493 = vlaneseq
        %v2494 = vshrl.u32 %v2493, 7
        %v2495 = vsub.s32 7, %v2494
        %v2496 = vrot.slane %v1092, %v2495
        %v2497 = vlaneseq
        %v2498 = vshrl.u32 %v2497, 7
        %v2499 = vsub.s32 0, %v2498
        %v2500 = vrot.slane %v1094, %v2499
        %v2501 = vlaneseq
        %v2502 = vshrl.u32 %v2501, 7
        %v2503 = vsub.s32 1, %v2502
        %v2504 = vrot.slane %v1094, %v2503
        %v2505 = vlaneseq
        %v2506 = vshrl.u32 %v2505, 7
        %v2507 = vsub.s32 2, %v2506
        %v2508 = vrot.slane %v1094, %v2507
        %v2509 = vlaneseq
        %v2510 = vshrl.u32 %v2509, 7
        %v2511 = vsub.s32 3, %v2510
        %v2512 = vrot.slane %v1094, %v2511
        %v2513 = vlaneseq
        %v2514 = vshrl.u32 %v2513, 7
        %v2515 = vsub.s32 4, %v2514
        %v2516 = vrot.slane %v1094, %v2515
        %v2517 = vlaneseq
        %v2518 = vshrl.u32 %v2517, 7
        %v2519 = vsub.s32 5, %v2518
        %v2520 = vrot.slane %v1094, %v2519
        %v2521 = vlaneseq
        %v2522 = vshrl.u32 %v2521, 7
        %v2523 = vsub.s32 6, %v2522
        %v2524 = vrot.slane %v1094, %v2523
        %v2525 = vlaneseq
        %v2526 = vshrl.u32 %v2525, 7
        %v2527 = vsub.s32 7, %v2526
        %v2528 = vrot.slane %v1094, %v2527
        %v2529 = vlaneseq
        %v2530 = vshrl.u32 %v2529, 7
        %v2531 = vsub.s32 0, %v2530
        %v2532 = vrot.slane %v1096, %v2531
        %v2533 = vlaneseq
        %v2534 = vshrl.u32 %v2533, 7
        %v2535 = vsub.s32 1, %v2534
        %v2536 = vrot.slane %v1096, %v2535
        %v2537 = vlaneseq
        %v2538 = vshrl.u32 %v2537, 7
        %v2539 = vsub.s32 2, %v2538
        %v2540 = vrot.slane %v1096, %v2539
        %v2541 = vlaneseq
        %v2542 = vshrl.u32 %v2541, 7
        %v2543 = vsub.s32 3, %v2542
        %v2544 = vrot.slane %v1096, %v2543
        %v2545 = vlaneseq
        %v2546 = vshrl.u32 %v2545, 7
        %v2547 = vsub.s32 4, %v2546
        %v2548 = vrot.slane %v1096, %v2547
        %v2549 = vlaneseq
        %v2550 = vshrl.u32 %v2549, 7
        %v2551 = vsub.s32 5, %v2550
        %v2552 = vrot.slane %v1096, %v2551
        %v2553 = vlaneseq
        %v2554 = vshrl.u32 %v2553, 7
        %v2555 = vsub.s32 6, %v2554
        %v2556 = vrot.slane %v1096, %v2555
        %v2557 = vlaneseq
        %v2558 = vshrl.u32 %v2557, 7
        %v2559 = vsub.s32 7, %v2558
        %v2560 = vrot.slane %v1096, %v2559
        %v2561 = vlaneseq
        %v2562 = vshrl.u32 %v2561, 7
        %v2563 = vsub.s32 0, %v2562
        %v2564 = vrot.slane %v1098, %v2563
        %v2565 = vlaneseq
        %v2566 = vshrl.u32 %v2565, 7
        %v2567 = vsub.s32 1, %v2566
        %v2568 = vrot.slane %v1098, %v2567
        %v2569 = vlaneseq
        %v2570 = vshrl.u32 %v2569, 7
        %v2571 = vsub.s32 2, %v2570
        %v2572 = vrot.slane %v1098, %v2571
        %v2573 = vlaneseq
        %v2574 = vshrl.u32 %v2573, 7
        %v2575 = vsub.s32 3, %v2574
        %v2576 = vrot.slane %v1098, %v2575
        %v2577 = vlaneseq
        %v2578 = vshrl.u32 %v2577, 7
        %v2579 = vsub.s32 4, %v2578
        %v2580 = vrot.slane %v1098, %v2579
        %v2581 = vlaneseq
        %v2582 = vshrl.u32 %v2581, 7
        %v2583 = vsub.s32 5, %v2582
        %v2584 = vrot.slane %v1098, %v2583
        %v2585 = vlaneseq
        %v2586 = vshrl.u32 %v2585, 7
        %v2587 = vsub.s32 6, %v2586
        %v2588 = vrot.slane %v1098, %v2587
        %v2589 = vlaneseq
        %v2590 = vshrl.u32 %v2589, 7
        %v2591 = vsub.s32 7, %v2590
        %v2592 = vrot.slane %v1098, %v2591
        %v2593 = vlaneseq
        %v2594 = vshrl.u32 %v2593, 7
        %v2595 = vsub.s32 0, %v2594
        %v2596 = vrot.slane %v1100, %v2595
        %v2597 = vlaneseq
        %v2598 = vshrl.u32 %v2597, 7
        %v2599 = vsub.s32 1, %v2598
        %v2600 = vrot.slane %v1100, %v2599
        %v2601 = vlaneseq
        %v2602 = vshrl.u32 %v2601, 7
        %v2603 = vsub.s32 2, %v2602
        %v2604 = vrot.slane %v1100, %v2603
        %v2605 = vlaneseq
        %v2606 = vshrl.u32 %v2605, 7
        %v2607 = vsub.s32 3, %v2606
        %v2608 = vrot.slane %v1100, %v2607
        %v2609 = vlaneseq
        %v2610 = vshrl.u32 %v2609, 7
        %v2611 = vsub.s32 4, %v2610
        %v2612 = vrot.slane %v1100, %v2611
        %v2613 = vlaneseq
        %v2614 = vshrl.u32 %v2613, 7
        %v2615 = vsub.s32 5, %v2614
        %v2616 = vrot.slane %v1100, %v2615
        %v2617 = vlaneseq
        %v2618 = vshrl.u32 %v2617, 7
        %v2619 = vsub.s32 6, %v2618
        %v2620 = vrot.slane %v1100, %v2619
        %v2621 = vlaneseq
        %v2622 = vshrl.u32 %v2621, 7
        %v2623 = vsub.s32 7, %v2622
        %v2624 = vrot.slane %v1100, %v2623
        %v2625 = vlaneseq
        %v2626 = vshrl.u32 %v2625, 7
        %v2627 = vsub.s32 0, %v2626
        %v2628 = vrot.slane %v1102, %v2627
        %v2629 = vlaneseq
        %v2630 = vshrl.u32 %v2629, 7
        %v2631 = vsub.s32 1, %v2630
        %v2632 = vrot.slane %v1102, %v2631
        %v2633 = vlaneseq
        %v2634 = vshrl.u32 %v2633, 7
        %v2635 = vsub.s32 2, %v2634
        %v2636 = vrot.slane %v1102, %v2635
        %v2637 = vlaneseq
        %v2638 = vshrl.u32 %v2637, 7
        %v2639 = vsub.s32 3, %v2638
        %v2640 = vrot.slane %v1102, %v2639
        %v2641 = vlaneseq
        %v2642 = vshrl.u32 %v2641, 7
        %v2643 = vsub.s32 4, %v2642
        %v2644 = vrot.slane %v1102, %v2643
        %v2645 = vlaneseq
        %v2646 = vshrl.u32 %v2645, 7
        %v2647 = vsub.s32 5, %v2646
        %v2648 = vrot.slane %v1102, %v2647
        %v2649 = vlaneseq
        %v2650 = vshrl.u32 %v2649, 7
        %v2651 = vsub.s32 6, %v2650
        %v2652 = vrot.slane %v1102, %v2651
        %v2653 = vlaneseq
        %v2654 = vshrl.u32 %v2653, 7
        %v2655 = vsub.s32 7, %v2654
        %v2656 = vrot.slane %v1102, %v2655
        %v2657 = vlaneseq
        %v2658 = vshrl.u32 %v2657, 7
        %v2659 = vsub.s32 0, %v2658
        %v2660 = vrot.slane %v1104, %v2659
        %v2661 = vlaneseq
        %v2662 = vshrl.u32 %v2661, 7
        %v2663 = vsub.s32 1, %v2662
        %v2664 = vrot.slane %v1104, %v2663
        %v2665 = vlaneseq
        %v2666 = vshrl.u32 %v2665, 7
        %v2667 = vsub.s32 2, %v2666
        %v2668 = vrot.slane %v1104, %v2667
        %v2669 = vlaneseq
        %v2670 = vshrl.u32 %v2669, 7
        %v2671 = vsub.s32 3, %v2670
        %v2672 = vrot.slane %v1104, %v2671
        %v2673 = vlaneseq
        %v2674 = vshrl.u32 %v2673, 7
        %v2675 = vsub.s32 4, %v2674
        %v2676 = vrot.slane %v1104, %v2675
        %v2677 = vlaneseq
        %v2678 = vshrl.u32 %v2677, 7
        %v2679 = vsub.s32 5, %v2678
        %v2680 = vrot.slane %v1104, %v2679
        %v2681 = vlaneseq
        %v2682 = vshrl.u32 %v2681, 7
        %v2683 = vsub.s32 6, %v2682
        %v2684 = vrot.slane %v1104, %v2683
        %v2685 = vlaneseq
        %v2686 = vshrl.u32 %v2685, 7
        %v2687 = vsub.s32 7, %v2686
        %v2688 = vrot.slane %v1104, %v2687
        %v3073 = vmul.f32 %v1156, %v242
        %v3074 = vmul.f32 %v1160, %v243
        %v3075 = vmul.f32 %v1164, %v244
        %v3076 = vmul.f32 %v1168, %v245
        %v3077 = vmul.f32 %v1172, %v246
        %v3078 = vmul.f32 %v1176, %v247
        %v3079 = vmul.f32 %v1180, %v248
        %v3080 = vmul.f32 %v1184, %v249
        %v3081 = vmul.f32 %v1188, %v250
        %v3082 = vmul.f32 %v1192, %v251
        %v3083 = vmul.f32 %v1196, %v252
        %v3084 = vmul.f32 %v1200, %v253
        %v3085 = vmul.f32 %v1204, %v254
        %v3086 = vmul.f32 %v1208, %v255
        %v3087 = vmul.f32 %v1212, %v256
        %v3088 = vmul.f32 %v1216, %v257
        %v3089 = vmul.f32 %v1220, %v258
        %v3090 = vmul.f32 %v1224, %v259
        %v3091 = vmul.f32 %v1228, %v260
        %v3092 = vmul.f32 %v1232, %v261
        %v3093 = vmul.f32 %v1236, %v262
        %v3094 = vmul.f32 %v1240, %v263
        %v3095 = vmul.f32 %v1244, %v264
        %v3096 = vmul.f32 %v1248, %v265
        %v3097 = vmul.f32 %v1252, %v266
        %v3098 = vmul.f32 %v1256, %v267
        %v3099 = vmul.f32 %v1260, %v268
        %v3100 = vmul.f32 %v1264, %v269
        %v3101 = vmul.f32 %v1268, %v270
        %v3102 = vmul.f32 %v1272, %v271
        %v3103 = vmul.f32 %v1276, %v272
        %v3104 = vmul.f32 %v1280, %v273
        %v3105 = vmul.f32 %v1284, %v274
        %v3106 = vmul.f32 %v1288, %v275
        %v3107 = vmul.f32 %v1292, %v276
        %v3108 = vmul.f32 %v1296, %v277
        %v3109 = vmul.f32 %v1300, %v278
        %v3110 = vmul.f32 %v1304, %v279
        %v3111 = vmul.f32 %v1308, %v280
        %v3112 = vmul.f32 %v1312, %v281
        %v3113 = vmul.f32 %v1316, %v282
        %v3114 = vmul.f32 %v1320, %v283
        %v3115 = vmul.f32 %v1324, %v284
        %v3116 = vmul.f32 %v1328, %v285
        %v3117 = vmul.f32 %v1332, %v286
        %v3118 = vmul.f32 %v1336, %v287
        %v3119 = vmul.f32 %v1340, %v288
        %v3120 = vmul.f32 %v1344, %v289
        %v3121 = vmul.f32 %v1348, %v290
        %v3122 = vmul.f32 %v1352, %v291
        %v3123 = vmul.f32 %v1356, %v292
        %v3124 = vmul.f32 %v1360, %v293
        %v3125 = vmul.f32 %v1364, %v294
        %v3126 = vmul.f32 %v1368, %v295
        %v3127 = vmul.f32 %v1372, %v296
        %v3128 = vmul.f32 %v1376, %v297
        %v3129 = vmul.f32 %v1380, %v298
        %v3130 = vmul.f32 %v1384, %v299
        %v3131 = vmul.f32 %v1388, %v300
        %v3132 = vmul.f32 %v1392, %v301
        %v3133 = vmul.f32 %v1396, %v302
        %v3134 = vmul.f32 %v1400, %v303
        %v3135 = vmul.f32 %v1404, %v304
        %v3136 = vmul.f32 %v1408, %v305
        %v3137 = vmul.f32 %v1412, %v306
        %v3138 = vmul.f32 %v1416, %v307
        %v3139 = vmul.f32 %v1420, %v308
        %v3140 = vmul.f32 %v1424, %v309
        %v3141 = vmul.f32 %v1428, %v310
        %v3142 = vmul.f32 %v1432, %v311
        %v3143 = vmul.f32 %v1436, %v312
        %v3144 = vmul.f32 %v1440, %v313
        %v3145 = vmul.f32 %v1444, %v314
        %v3146 = vmul.f32 %v1448, %v315
        %v3147 = vmul.f32 %v1452, %v316
        %v3148 = vmul.f32 %v1456, %v317
        %v3149 = vmul.f32 %v1460, %v318
        %v3150 = vmul.f32 %v1464, %v319
        %v3151 = vmul.f32 %v1468, %v320
        %v3152 = vmul.f32 %v1472, %v321
        %v3153 = vmul.f32 %v1476, %v322
        %v3154 = vmul.f32 %v1480, %v323
        %v3155 = vmul.f32 %v1484, %v324
        %v3156 = vmul.f32 %v1488, %v325
        %v3157 = vmul.f32 %v1492, %v326
        %v3158 = vmul.f32 %v1496, %v327
        %v3159 = vmul.f32 %v1500, %v328
        %v3160 = vmul.f32 %v1504, %v329
        %v3161 = vmul.f32 %v1508, %v330
        %v3162 = vmul.f32 %v1512, %v331
        %v3163 = vmul.f32 %v1516, %v332
        %v3164 = vmul.f32 %v1520, %v333
        %v3165 = vmul.f32 %v1524, %v334
        %v3166 = vmul.f32 %v1528, %v335
        %v3167 = vmul.f32 %v1532, %v336
        %v3168 = vmul.f32 %v1536, %v337
        %v3169 = vmul.f32 %v1540, %v338
        %v3170 = vmul.f32 %v1544, %v339
        %v3171 = vmul.f32 %v1548, %v340
        %v3172 = vmul.f32 %v1552, %v341
        %v3173 = vmul.f32 %v1556, %v342
        %v3174 = vmul.f32 %v1560, %v343
        %v3175 = vmul.f32 %v1564, %v344
        %v3176 = vmul.f32 %v1568, %v345
        %v3177 = vmul.f32 %v1572, %v346
        %v3178 = vmul.f32 %v1576, %v347
        %v3179 = vmul.f32 %v1580, %v348
        %v3180 = vmul.f32 %v1584, %v349
        %v3181 = vmul.f32 %v1588, %v350
        %v3182 = vmul.f32 %v1592, %v351
        %v3183 = vmul.f32 %v1596, %v352
        %v3184 = vmul.f32 %v1600, %v353
        %v3185 = vmul.f32 %v1604, %v354
        %v3186 = vmul.f32 %v1608, %v355
        %v3187 = vmul.f32 %v1612, %v356
        %v3188 = vmul.f32 %v1616, %v357
        %v3189 = vmul.f32 %v1620, %v358
        %v3190 = vmul.f32 %v1624, %v359
        %v3191 = vmul.f32 %v1628, %v360
        %v3192 = vmul.f32 %v1632, %v361
        %v3193 = vmul.f32 %v1636, %v362
        %v3194 = vmul.f32 %v1640, %v363
        %v3195 = vmul.f32 %v1644, %v364
        %v3196 = vmul.f32 %v1648, %v365
        %v3197 = vmul.f32 %v1652, %v366
        %v3198 = vmul.f32 %v1656, %v367
        %v3199 = vmul.f32 %v1660, %v368
        %v3200 = vmul.f32 %v1664, %v369
        %v3201 = vmul.f32 %v1668, %v370
        %v3202 = vmul.f32 %v1672, %v371
        %v3203 = vmul.f32 %v1676, %v372
        %v3204 = vmul.f32 %v1680, %v373
        %v3205 = vmul.f32 %v1684, %v374
        %v3206 = vmul.f32 %v1688, %v375
        %v3207 = vmul.f32 %v1692, %v376
        %v3208 = vmul.f32 %v1696, %v377
        %v3209 = vmul.f32 %v1700, %v378
        %v3210 = vmul.f32 %v1704, %v379
        %v3211 = vmul.f32 %v1708, %v380
        %v3212 = vmul.f32 %v1712, %v381
        %v3213 = vmul.f32 %v1716, %v382
        %v3214 = vmul.f32 %v1720, %v383
        %v3215 = vmul.f32 %v1724, %v384
        %v3216 = vmul.f32 %v1728, %v385
        %v3217 = vmul.f32 %v1732, %v386
        %v3218 = vmul.f32 %v1736, %v387
        %v3219 = vmul.f32 %v1740, %v388
        %v3220 = vmul.f32 %v1744, %v389
        %v3221 = vmul.f32 %v1748, %v390
        %v3222 = vmul.f32 %v1752, %v391
        %v3223 = vmul.f32 %v1756, %v392
        %v3224 = vmul.f32 %v1760, %v393
        %v3225 = vmul.f32 %v1764, %v394
        %v3226 = vmul.f32 %v1768, %v395
        %v3227 = vmul.f32 %v1772, %v396
        %v3228 = vmul.f32 %v1776, %v397
        %v3229 = vmul.f32 %v1780, %v398
        %v3230 = vmul.f32 %v1784, %v399
        %v3231 = vmul.f32 %v1788, %v400
        %v3232 = vmul.f32 %v1792, %v401
        %v3233 = vmul.f32 %v1796, %v402
        %v3234 = vmul.f32 %v1800, %v403
        %v3235 = vmul.f32 %v1804, %v404
        %v3236 = vmul.f32 %v1808, %v405
        %v3237 = vmul.f32 %v1812, %v406
        %v3238 = vmul.f32 %v1816, %v407
        %v3239 = vmul.f32 %v1820, %v408
        %v3240 = vmul.f32 %v1824, %v409
        %v3241 = vmul.f32 %v1828, %v410
        %v3242 = vmul.f32 %v1832, %v411
        %v3243 = vmul.f32 %v1836, %v412
        %v3244 = vmul.f32 %v1840, %v413
        %v3245 = vmul.f32 %v1844, %v414
        %v3246 = vmul.f32 %v1848, %v415
        %v3247 = vmul.f32 %v1852, %v416
        %v3248 = vmul.f32 %v1856, %v417
        %v3249 = vmul.f32 %v1860, %v418
        %v3250 = vmul.f32 %v1864, %v419
        %v3251 = vmul.f32 %v1868, %v420
        %v3252 = vmul.f32 %v1872, %v421
        %v3253 = vmul.f32 %v1876, %v422
        %v3254 = vmul.f32 %v1880, %v423
        %v3255 = vmul.f32 %v1884, %v424
        %v3256 = vmul.f32 %v1888, %v425
        %v3257 = vmul.f32 %v1892, %v426
        %v3258 = vmul.f32 %v1896, %v427
        %v3259 = vmul.f32 %v1900, %v428
        %v3260 = vmul.f32 %v1904, %v429
        %v3261 = vmul.f32 %v1908, %v430
        %v3262 = vmul.f32 %v1912, %v431
        %v3263 = vmul.f32 %v1916, %v432
        %v3264 = vmul.f32 %v1920, %v433
        %v3265 = vmul.f32 %v1924, %v434
        %v3266 = vmul.f32 %v1928, %v435
        %v3267 = vmul.f32 %v1932, %v436
        %v3268 = vmul.f32 %v1936, %v437
        %v3269 = vmul.f32 %v1940, %v438
        %v3270 = vmul.f32 %v1944, %v439
        %v3271 = vmul.f32 %v1948, %v440
        %v3272 = vmul.f32 %v1952, %v441
        %v3273 = vmul.f32 %v1956, %v442
        %v3274 = vmul.f32 %v1960, %v443
        %v3275 = vmul.f32 %v1964, %v444
        %v3276 = vmul.f32 %v1968, %v445
        %v3277 = vmul.f32 %v1972, %v446
        %v3278 = vmul.f32 %v1976, %v447
        %v3279 = vmul.f32 %v1980, %v448
        %v3280 = vmul.f32 %v1984, %v449
        %v3281 = vmul.f32 %v1988, %v450
        %v3282 = vmul.f32 %v1992, %v451
        %v3283 = vmul.f32 %v1996, %v452
        %v3284 = vmul.f32 %v2000, %v453
        %v3285 = vmul.f32 %v2004, %v454
        %v3286 = vmul.f32 %v2008, %v455
        %v3287 = vmul.f32 %v2012, %v456
        %v3288 = vmul.f32 %v2016, %v457
        %v3289 = vmul.f32 %v2020, %v458
        %v3290 = vmul.f32 %v2024, %v459
        %v3291 = vmul.f32 %v2028, %v460
        %v3292 = vmul.f32 %v2032, %v461
        %v3293 = vmul.f32 %v2036, %v462
        %v3294 = vmul.f32 %v2040, %v463
        %v3295 = vmul.f32 %v2044, %v464
        %v3296 = vmul.f32 %v2048, %v465
        %v3297 = vmul.f32 %v2052, %v466
        %v3298 = vmul.f32 %v2056, %v467
        %v3299 = vmul.f32 %v2060, %v468
        %v3300 = vmul.f32 %v2064, %v469
        %v3301 = vmul.f32 %v2068, %v470
        %v3302 = vmul.f32 %v2072, %v471
        %v3303 = vmul.f32 %v2076, %v472
        %v3304 = vmul.f32 %v2080, %v473
        %v3305 = vmul.f32 %v2084, %v474
        %v3306 = vmul.f32 %v2088, %v475
        %v3307 = vmul.f32 %v2092, %v476
        %v3308 = vmul.f32 %v2096, %v477
        %v3309 = vmul.f32 %v2100, %v478
        %v3310 = vmul.f32 %v2104, %v479
        %v3311 = vmul.f32 %v2108, %v480
        %v3312 = vmul.f32 %v2112, %v481
        %v3313 = vmul.f32 %v2116, %v482
        %v3314 = vmul.f32 %v2120, %v483
        %v3315 = vmul.f32 %v2124, %v484
        %v3316 = vmul.f32 %v2128, %v485
        %v3317 = vmul.f32 %v2132, %v486
        %v3318 = vmul.f32 %v2136, %v487
        %v3319 = vmul.f32 %v2140, %v488
        %v3320 = vmul.f32 %v2144, %v489
        %v3321 = vmul.f32 %v2148, %v490
        %v3322 = vmul.f32 %v2152, %v491
        %v3323 = vmul.f32 %v2156, %v492
        %v3324 = vmul.f32 %v2160, %v493
        %v3325 = vmul.f32 %v2164, %v494
        %v3326 = vmul.f32 %v2168, %v495
        %v3327 = vmul.f32 %v2172, %v496
        %v3328 = vmul.f32 %v2176, %v497
        %v3329 = vmul.f32 %v2180, %v498
        %v3330 = vmul.f32 %v2184, %v499
        %v3331 = vmul.f32 %v2188, %v500
        %v3332 = vmul.f32 %v2192, %v501
        %v3333 = vmul.f32 %v2196, %v502
        %v3334 = vmul.f32 %v2200, %v503
        %v3335 = vmul.f32 %v2204, %v504
        %v3336 = vmul.f32 %v2208, %v505
        %v3337 = vmul.f32 %v2212, %v506
        %v3338 = vmul.f32 %v2216, %v507
        %v3339 = vmul.f32 %v2220, %v508
        %v3340 = vmul.f32 %v2224, %v509
        %v3341 = vmul.f32 %v2228, %v510
        %v3342 = vmul.f32 %v2232, %v511
        %v3343 = vmul.f32 %v2236, %v512
        %v3344 = vmul.f32 %v2240, %v513
        %v3345 = vmul.f32 %v2244, %v514
        %v3346 = vmul.f32 %v2248, %v515
        %v3347 = vmul.f32 %v2252, %v516
        %v3348 = vmul.f32 %v2256, %v517
        %v3349 = vmul.f32 %v2260, %v518
        %v3350 = vmul.f32 %v2264, %v519
        %v3351 = vmul.f32 %v2268, %v520
        %v3352 = vmul.f32 %v2272, %v521
        %v3353 = vmul.f32 %v2276, %v522
        %v3354 = vmul.f32 %v2280, %v523
        %v3355 = vmul.f32 %v2284, %v524
        %v3356 = vmul.f32 %v2288, %v525
        %v3357 = vmul.f32 %v2292, %v526
        %v3358 = vmul.f32 %v2296, %v527
        %v3359 = vmul.f32 %v2300, %v528
        %v3360 = vmul.f32 %v2304, %v529
        %v3361 = vmul.f32 %v2308, %v530
        %v3362 = vmul.f32 %v2312, %v531
        %v3363 = vmul.f32 %v2316, %v532
        %v3364 = vmul.f32 %v2320, %v533
        %v3365 = vmul.f32 %v2324, %v534
        %v3366 = vmul.f32 %v2328, %v535
        %v3367 = vmul.f32 %v2332, %v536
        %v3368 = vmul.f32 %v2336, %v537
        %v3369 = vmul.f32 %v2340, %v538
        %v3370 = vmul.f32 %v2344, %v539
        %v3371 = vmul.f32 %v2348, %v540
        %v3372 = vmul.f32 %v2352, %v541
        %v3373 = vmul.f32 %v2356, %v542
        %v3374 = vmul.f32 %v2360, %v543
        %v3375 = vmul.f32 %v2364, %v544
        %v3376 = vmul.f32 %v2368, %v545
        %v3377 = vmul.f32 %v2372, %v546
        %v3378 = vmul.f32 %v2376, %v547
        %v3379 = vmul.f32 %v2380, %v548
        %v3380 = vmul.f32 %v2384, %v549
        %v3381 = vmul.f32 %v2388, %v550
        %v3382 = vmul.f32 %v2392, %v551
        %v3383 = vmul.f32 %v2396, %v552
        %v3384 = vmul.f32 %v2400, %v553
        %v3385 = vmul.f32 %v2404, %v554
        %v3386 = vmul.f32 %v2408, %v555
        %v3387 = vmul.f32 %v2412, %v556
        %v3388 = vmul.f32 %v2416, %v557
        %v3389 = vmul.f32 %v2420, %v558
        %v3390 = vmul.f32 %v2424, %v559
        %v3391 = vmul.f32 %v2428, %v560
        %v3392 = vmul.f32 %v2432, %v561
        %v3393 = vmul.f32 %v2436, %v562
        %v3394 = vmul.f32 %v2440, %v563
        %v3395 = vmul.f32 %v2444, %v564
        %v3396 = vmul.f32 %v2448, %v565
        %v3397 = vmul.f32 %v2452, %v566
        %v3398 = vmul.f32 %v2456, %v567
        %v3399 = vmul.f32 %v2460, %v568
        %v3400 = vmul.f32 %v2464, %v569
        %v3401 = vmul.f32 %v2468, %v570
        %v3402 = vmul.f32 %v2472, %v571
        %v3403 = vmul.f32 %v2476, %v572
        %v3404 = vmul.f32 %v2480, %v573
        %v3405 = vmul.f32 %v2484, %v574
        %v3406 = vmul.f32 %v2488, %v575
        %v3407 = vmul.f32 %v2492, %v576
        %v3408 = vmul.f32 %v2496, %v577
        %v3409 = vmul.f32 %v2500, %v578
        %v3410 = vmul.f32 %v2504, %v579
        %v3411 = vmul.f32 %v2508, %v580
        %v3412 = vmul.f32 %v2512, %v581
        %v3413 = vmul.f32 %v2516, %v582
        %v3414 = vmul.f32 %v2520, %v583
        %v3415 = vmul.f32 %v2524, %v584
        %v3416 = vmul.f32 %v2528, %v585
        %v3417 = vmul.f32 %v2532, %v586
        %v3418 = vmul.f32 %v2536, %v587
        %v3419 = vmul.f32 %v2540, %v588
        %v3420 = vmul.f32 %v2544, %v589
        %v3421 = vmul.f32 %v2548, %v590
        %v3422 = vmul.f32 %v2552, %v591
        %v3423 = vmul.f32 %v2556, %v592
        %v3424 = vmul.f32 %v2560, %v593
        %v3425 = vmul.f32 %v2564, %v594
        %v3426 = vmul.f32 %v2568, %v595
        %v3427 = vmul.f32 %v2572, %v596
        %v3428 = vmul.f32 %v2576, %v597
        %v3429 = vmul.f32 %v2580, %v598
        %v3430 = vmul.f32 %v2584, %v599
        %v3431 = vmul.f32 %v2588, %v600
        %v3432 = vmul.f32 %v2592, %v601
        %v3433 = vmul.f32 %v2596, %v602
        %v3434 = vmul.f32 %v2600, %v603
        %v3435 = vmul.f32 %v2604, %v604
        %v3436 = vmul.f32 %v2608, %v605
        %v3437 = vmul.f32 %v2612, %v606
        %v3438 = vmul.f32 %v2616, %v607
        %v3439 = vmul.f32 %v2620, %v608
        %v3440 = vmul.f32 %v2624, %v609
        %v3441 = vmul.f32 %v2628, %v610
        %v3442 = vmul.f32 %v2632, %v611
        %v3443 = vmul.f32 %v2636, %v612
        %v3444 = vmul.f32 %v2640, %v613
        %v3445 = vmul.f32 %v2644, %v614
        %v3446 = vmul.f32 %v2648, %v615
        %v3447 = vmul.f32 %v2652, %v616
        %v3448 = vmul.f32 %v2656, %v617
        %v3449 = vmul.f32 %v2660, %v618
        %v3450 = vmul.f32 %v2664, %v619
        %v3451 = vmul.f32 %v2668, %v620
        %v3452 = vmul.f32 %v2672, %v621
        %v3453 = vmul.f32 %v2676, %v622
        %v3454 = vmul.f32 %v2680, %v623
        %v3455 = vmul.f32 %v2684, %v624
        %v3456 = vmul.f32 %v2688, %v625
        %v3457 = vmul.f32 %v1156, %v626
        %v3458 = vmul.f32 %v1160, %v627
        %v3459 = vmul.f32 %v1164, %v628
        %v3460 = vmul.f32 %v1168, %v629
        %v3461 = vmul.f32 %v1172, %v630
        %v3462 = vmul.f32 %v1176, %v631
        %v3463 = vmul.f32 %v1180, %v632
        %v3464 = vmul.f32 %v1184, %v633
        %v3465 = vmul.f32 %v1188, %v634
        %v3466 = vmul.f32 %v1192, %v635
        %v3467 = vmul.f32 %v1196, %v636
        %v3468 = vmul.f32 %v1200, %v637
        %v3469 = vmul.f32 %v1204, %v638
        %v3470 = vmul.f32 %v1208, %v639
        %v3471 = vmul.f32 %v1212, %v640
        %v3472 = vmul.f32 %v1216, %v641
        %v3473 = vmul.f32 %v1220, %v642
        %v3474 = vmul.f32 %v1224, %v643
        %v3475 = vmul.f32 %v1228, %v644
        %v3476 = vmul.f32 %v1232, %v645
        %v3477 = vmul.f32 %v1236, %v646
        %v3478 = vmul.f32 %v1240, %v647
        %v3479 = vmul.f32 %v1244, %v648
        %v3480 = vmul.f32 %v1248, %v649
        %v3481 = vmul.f32 %v1252, %v650
        %v3482 = vmul.f32 %v1256, %v651
        %v3483 = vmul.f32 %v1260, %v652
        %v3484 = vmul.f32 %v1264, %v653
        %v3485 = vmul.f32 %v1268, %v654
        %v3486 = vmul.f32 %v1272, %v655
        %v3487 = vmul.f32 %v1276, %v656
        %v3488 = vmul.f32 %v1280, %v657
        %v3489 = vmul.f32 %v1284, %v658
        %v3490 = vmul.f32 %v1288, %v659
        %v3491 = vmul.f32 %v1292, %v660
        %v3492 = vmul.f32 %v1296, %v661
        %v3493 = vmul.f32 %v1300, %v662
        %v3494 = vmul.f32 %v1304, %v663
        %v3495 = vmul.f32 %v1308, %v664
        %v3496 = vmul.f32 %v1312, %v665
        %v3497 = vmul.f32 %v1316, %v666
        %v3498 = vmul.f32 %v1320, %v667
        %v3499 = vmul.f32 %v1324, %v668
        %v3500 = vmul.f32 %v1328, %v669
        %v3501 = vmul.f32 %v1332, %v670
        %v3502 = vmul.f32 %v1336, %v671
        %v3503 = vmul.f32 %v1340, %v672
        %v3504 = vmul.f32 %v1344, %v673
        %v3505 = vmul.f32 %v1348, %v674
        %v3506 = vmul.f32 %v1352, %v675
        %v3507 = vmul.f32 %v1356, %v676
        %v3508 = vmul.f32 %v1360, %v677
        %v3509 = vmul.f32 %v1364, %v678
        %v3510 = vmul.f32 %v1368, %v679
        %v3511 = vmul.f32 %v1372, %v680
        %v3512 = vmul.f32 %v1376, %v681
        %v3513 = vmul.f32 %v1380, %v682
        %v3514 = vmul.f32 %v1384, %v683
        %v3515 = vmul.f32 %v1388, %v684
        %v3516 = vmul.f32 %v1392, %v685
        %v3517 = vmul.f32 %v1396, %v686
        %v3518 = vmul.f32 %v1400, %v687
        %v3519 = vmul.f32 %v1404, %v688
        %v3520 = vmul.f32 %v1408, %v689
        %v3521 = vmul.f32 %v1412, %v690
        %v3522 = vmul.f32 %v1416, %v691
        %v3523 = vmul.f32 %v1420, %v692
        %v3524 = vmul.f32 %v1424, %v693
        %v3525 = vmul.f32 %v1428, %v694
        %v3526 = vmul.f32 %v1432, %v695
        %v3527 = vmul.f32 %v1436, %v696
        %v3528 = vmul.f32 %v1440, %v697
        %v3529 = vmul.f32 %v1444, %v698
        %v3530 = vmul.f32 %v1448, %v699
        %v3531 = vmul.f32 %v1452, %v700
        %v3532 = vmul.f32 %v1456, %v701
        %v3533 = vmul.f32 %v1460, %v702
        %v3534 = vmul.f32 %v1464, %v703
        %v3535 = vmul.f32 %v1468, %v704
        %v3536 = vmul.f32 %v1472, %v705
        %v3537 = vmul.f32 %v1476, %v706
        %v3538 = vmul.f32 %v1480, %v707
        %v3539 = vmul.f32 %v1484, %v708
        %v3540 = vmul.f32 %v1488, %v709
        %v3541 = vmul.f32 %v1492, %v710
        %v3542 = vmul.f32 %v1496, %v711
        %v3543 = vmul.f32 %v1500, %v712
        %v3544 = vmul.f32 %v1504, %v713
        %v3545 = vmul.f32 %v1508, %v714
        %v3546 = vmul.f32 %v1512, %v715
        %v3547 = vmul.f32 %v1516, %v716
        %v3548 = vmul.f32 %v1520, %v717
        %v3549 = vmul.f32 %v1524, %v718
        %v3550 = vmul.f32 %v1528, %v719
        %v3551 = vmul.f32 %v1532, %v720
        %v3552 = vmul.f32 %v1536, %v721
        %v3553 = vmul.f32 %v1540, %v722
        %v3554 = vmul.f32 %v1544, %v723
        %v3555 = vmul.f32 %v1548, %v724
        %v3556 = vmul.f32 %v1552, %v725
        %v3557 = vmul.f32 %v1556, %v726
        %v3558 = vmul.f32 %v1560, %v727
        %v3559 = vmul.f32 %v1564, %v728
        %v3560 = vmul.f32 %v1568, %v729
        %v3561 = vmul.f32 %v1572, %v730
        %v3562 = vmul.f32 %v1576, %v731
        %v3563 = vmul.f32 %v1580, %v732
        %v3564 = vmul.f32 %v1584, %v733
        %v3565 = vmul.f32 %v1588, %v734
        %v3566 = vmul.f32 %v1592, %v735
        %v3567 = vmul.f32 %v1596, %v736
        %v3568 = vmul.f32 %v1600, %v737
        %v3569 = vmul.f32 %v1604, %v738
        %v3570 = vmul.f32 %v1608, %v739
        %v3571 = vmul.f32 %v1612, %v740
        %v3572 = vmul.f32 %v1616, %v741
        %v3573 = vmul.f32 %v1620, %v742
        %v3574 = vmul.f32 %v1624, %v743
        %v3575 = vmul.f32 %v1628, %v744
        %v3576 = vmul.f32 %v1632, %v745
        %v3577 = vmul.f32 %v1636, %v746
        %v3578 = vmul.f32 %v1640, %v747
        %v3579 = vmul.f32 %v1644, %v748
        %v3580 = vmul.f32 %v1648, %v749
        %v3581 = vmul.f32 %v1652, %v750
        %v3582 = vmul.f32 %v1656, %v751
        %v3583 = vmul.f32 %v1660, %v752
        %v3584 = vmul.f32 %v1664, %v753
        %v3585 = vmul.f32 %v1668, %v754
        %v3586 = vmul.f32 %v1672, %v755
        %v3587 = vmul.f32 %v1676, %v756
        %v3588 = vmul.f32 %v1680, %v757
        %v3589 = vmul.f32 %v1684, %v758
        %v3590 = vmul.f32 %v1688, %v759
        %v3591 = vmul.f32 %v1692, %v760
        %v3592 = vmul.f32 %v1696, %v761
        %v3593 = vmul.f32 %v1700, %v762
        %v3594 = vmul.f32 %v1704, %v763
        %v3595 = vmul.f32 %v1708, %v764
        %v3596 = vmul.f32 %v1712, %v765
        %v3597 = vmul.f32 %v1716, %v766
        %v3598 = vmul.f32 %v1720, %v767
        %v3599 = vmul.f32 %v1724, %v768
        %v3600 = vmul.f32 %v1728, %v769
        %v3601 = vmul.f32 %v1732, %v770
        %v3602 = vmul.f32 %v1736, %v771
        %v3603 = vmul.f32 %v1740, %v772
        %v3604 = vmul.f32 %v1744, %v773
        %v3605 = vmul.f32 %v1748, %v774
        %v3606 = vmul.f32 %v1752, %v775
        %v3607 = vmul.f32 %v1756, %v776
        %v3608 = vmul.f32 %v1760, %v777
        %v3609 = vmul.f32 %v1764, %v778
        %v3610 = vmul.f32 %v1768, %v779
        %v3611 = vmul.f32 %v1772, %v780
        %v3612 = vmul.f32 %v1776, %v781
        %v3613 = vmul.f32 %v1780, %v782
        %v3614 = vmul.f32 %v1784, %v783
        %v3615 = vmul.f32 %v1788, %v784
        %v3616 = vmul.f32 %v1792, %v785
        %v3617 = vmul.f32 %v1796, %v786
        %v3618 = vmul.f32 %v1800, %v787
        %v3619 = vmul.f32 %v1804, %v788
        %v3620 = vmul.f32 %v1808, %v789
        %v3621 = vmul.f32 %v1812, %v790
        %v3622 = vmul.f32 %v1816, %v791
        %v3623 = vmul.f32 %v1820, %v792
        %v3624 = vmul.f32 %v1824, %v793
        %v3625 = vmul.f32 %v1828, %v794
        %v3626 = vmul.f32 %v1832, %v795
        %v3627 = vmul.f32 %v1836, %v796
        %v3628 = vmul.f32 %v1840, %v797
        %v3629 = vmul.f32 %v1844, %v798
        %v3630 = vmul.f32 %v1848, %v799
        %v3631 = vmul.f32 %v1852, %v800
        %v3632 = vmul.f32 %v1856, %v801
        %v3633 = vmul.f32 %v1860, %v802
        %v3634 = vmul.f32 %v1864, %v803
        %v3635 = vmul.f32 %v1868, %v804
        %v3636 = vmul.f32 %v1872, %v805
        %v3637 = vmul.f32 %v1876, %v806
        %v3638 = vmul.f32 %v1880, %v807
        %v3639 = vmul.f32 %v1884, %v808
        %v3640 = vmul.f32 %v1888, %v809
        %v3641 = vmul.f32 %v1892, %v810
        %v3642 = vmul.f32 %v1896, %v811
        %v3643 = vmul.f32 %v1900, %v812
        %v3644 = vmul.f32 %v1904, %v813
        %v3645 = vmul.f32 %v1908, %v814
        %v3646 = vmul.f32 %v1912, %v815
        %v3647 = vmul.f32 %v1916, %v816
        %v3648 = vmul.f32 %v1920, %v817
        %v3649 = vmul.f32 %v1924, %v818
        %v3650 = vmul.f32 %v1928, %v819
        %v3651 = vmul.f32 %v1932, %v820
        %v3652 = vmul.f32 %v1936, %v821
        %v3653 = vmul.f32 %v1940, %v822
        %v3654 = vmul.f32 %v1944, %v823
        %v3655 = vmul.f32 %v1948, %v824
        %v3656 = vmul.f32 %v1952, %v825
        %v3657 = vmul.f32 %v1956, %v826
        %v3658 = vmul.f32 %v1960, %v827
        %v3659 = vmul.f32 %v1964, %v828
        %v3660 = vmul.f32 %v1968, %v829
        %v3661 = vmul.f32 %v1972, %v830
        %v3662 = vmul.f32 %v1976, %v831
        %v3663 = vmul.f32 %v1980, %v832
        %v3664 = vmul.f32 %v1984, %v833
        %v3665 = vmul.f32 %v1988, %v834
        %v3666 = vmul.f32 %v1992, %v835
        %v3667 = vmul.f32 %v1996, %v836
        %v3668 = vmul.f32 %v2000, %v837
        %v3669 = vmul.f32 %v2004, %v838
        %v3670 = vmul.f32 %v2008, %v839
        %v3671 = vmul.f32 %v2012, %v840
        %v3672 = vmul.f32 %v2016, %v841
        %v3673 = vmul.f32 %v2020, %v842
        %v3674 = vmul.f32 %v2024, %v843
        %v3675 = vmul.f32 %v2028, %v844
        %v3676 = vmul.f32 %v2032, %v845
        %v3677 = vmul.f32 %v2036, %v846
        %v3678 = vmul.f32 %v2040, %v847
        %v3679 = vmul.f32 %v2044, %v848
        %v3680 = vmul.f32 %v2048, %v849
        %v3681 = vmul.f32 %v2052, %v850
        %v3682 = vmul.f32 %v2056, %v851
        %v3683 = vmul.f32 %v2060, %v852
        %v3684 = vmul.f32 %v2064, %v853
        %v3685 = vmul.f32 %v2068, %v854
        %v3686 = vmul.f32 %v2072, %v855
        %v3687 = vmul.f32 %v2076, %v856
        %v3688 = vmul.f32 %v2080, %v857
        %v3689 = vmul.f32 %v2084, %v858
        %v3690 = vmul.f32 %v2088, %v859
        %v3691 = vmul.f32 %v2092, %v860
        %v3692 = vmul.f32 %v2096, %v861
        %v3693 = vmul.f32 %v2100, %v862
        %v3694 = vmul.f32 %v2104, %v863
        %v3695 = vmul.f32 %v2108, %v864
        %v3696 = vmul.f32 %v2112, %v865
        %v3697 = vmul.f32 %v2116, %v866
        %v3698 = vmul.f32 %v2120, %v867
        %v3699 = vmul.f32 %v2124, %v868
        %v3700 = vmul.f32 %v2128, %v869
        %v3701 = vmul.f32 %v2132, %v870
        %v3702 = vmul.f32 %v2136, %v871
        %v3703 = vmul.f32 %v2140, %v872
        %v3704 = vmul.f32 %v2144, %v873
        %v3705 = vmul.f32 %v2148, %v874
        %v3706 = vmul.f32 %v2152, %v875
        %v3707 = vmul.f32 %v2156, %v876
        %v3708 = vmul.f32 %v2160, %v877
        %v3709 = vmul.f32 %v2164, %v878
        %v3710 = vmul.f32 %v2168, %v879
        %v3711 = vmul.f32 %v2172, %v880
        %v3712 = vmul.f32 %v2176, %v881
        %v3713 = vmul.f32 %v2180, %v882
        %v3714 = vmul.f32 %v2184, %v883
        %v3715 = vmul.f32 %v2188, %v884
        %v3716 = vmul.f32 %v2192, %v885
        %v3717 = vmul.f32 %v2196, %v886
        %v3718 = vmul.f32 %v2200, %v887
        %v3719 = vmul.f32 %v2204, %v888
        %v3720 = vmul.f32 %v2208, %v889
        %v3721 = vmul.f32 %v2212, %v890
        %v3722 = vmul.f32 %v2216, %v891
        %v3723 = vmul.f32 %v2220, %v892
        %v3724 = vmul.f32 %v2224, %v893
        %v3725 = vmul.f32 %v2228, %v894
        %v3726 = vmul.f32 %v2232, %v895
        %v3727 = vmul.f32 %v2236, %v896
        %v3728 = vmul.f32 %v2240, %v897
        %v3729 = vmul.f32 %v2244, %v898
        %v3730 = vmul.f32 %v2248, %v899
        %v3731 = vmul.f32 %v2252, %v900
        %v3732 = vmul.f32 %v2256, %v901
        %v3733 = vmul.f32 %v2260, %v902
        %v3734 = vmul.f32 %v2264, %v903
        %v3735 = vmul.f32 %v2268, %v904
        %v3736 = vmul.f32 %v2272, %v905
        %v3737 = vmul.f32 %v2276, %v906
        %v3738 = vmul.f32 %v2280, %v907
        %v3739 = vmul.f32 %v2284, %v908
        %v3740 = vmul.f32 %v2288, %v909
        %v3741 = vmul.f32 %v2292, %v910
        %v3742 = vmul.f32 %v2296, %v911
        %v3743 = vmul.f32 %v2300, %v912
        %v3744 = vmul.f32 %v2304, %v913
        %v3745 = vmul.f32 %v2308, %v914
        %v3746 = vmul.f32 %v2312, %v915
        %v3747 = vmul.f32 %v2316, %v916
        %v3748 = vmul.f32 %v2320, %v917
        %v3749 = vmul.f32 %v2324, %v918
        %v3750 = vmul.f32 %v2328, %v919
        %v3751 = vmul.f32 %v2332, %v920
        %v3752 = vmul.f32 %v2336, %v921
        %v3753 = vmul.f32 %v2340, %v922
        %v3754 = vmul.f32 %v2344, %v923
        %v3755 = vmul.f32 %v2348, %v924
        %v3756 = vmul.f32 %v2352, %v925
        %v3757 = vmul.f32 %v2356, %v926
        %v3758 = vmul.f32 %v2360, %v927
        %v3759 = vmul.f32 %v2364, %v928
        %v3760 = vmul.f32 %v2368, %v929
        %v3761 = vmul.f32 %v2372, %v930
        %v3762 = vmul.f32 %v2376, %v931
        %v3763 = vmul.f32 %v2380, %v932
        %v3764 = vmul.f32 %v2384, %v933
        %v3765 = vmul.f32 %v2388, %v934
        %v3766 = vmul.f32 %v2392, %v935
        %v3767 = vmul.f32 %v2396, %v936
        %v3768 = vmul.f32 %v2400, %v937
        %v3769 = vmul.f32 %v2404, %v938
        %v3770 = vmul.f32 %v2408, %v939
        %v3771 = vmul.f32 %v2412, %v940
        %v3772 = vmul.f32 %v2416, %v941
        %v3773 = vmul.f32 %v2420, %v942
        %v3774 = vmul.f32 %v2424, %v943
        %v3775 = vmul.f32 %v2428, %v944
        %v3776 = vmul.f32 %v2432, %v945
        %v3777 = vmul.f32 %v2436, %v946
        %v3778 = vmul.f32 %v2440, %v947
        %v3779 = vmul.f32 %v2444, %v948
        %v3780 = vmul.f32 %v2448, %v949
        %v3781 = vmul.f32 %v2452, %v950
        %v3782 = vmul.f32 %v2456, %v951
        %v3783 = vmul.f32 %v2460, %v952
        %v3784 = vmul.f32 %v2464, %v953
        %v3785 = vmul.f32 %v2468, %v954
        %v3786 = vmul.f32 %v2472, %v955
        %v3787 = vmul.f32 %v2476, %v956
        %v3788 = vmul.f32 %v2480, %v957
        %v3789 = vmul.f32 %v2484, %v958
        %v3790 = vmul.f32 %v2488, %v959
        %v3791 = vmul.f32 %v2492, %v960
        %v3792 = vmul.f32 %v2496, %v961
        %v3793 = vmul.f32 %v2500, %v962
        %v3794 = vmul.f32 %v2504, %v963
        %v3795 = vmul.f32 %v2508, %v964
        %v3796 = vmul.f32 %v2512, %v965
        %v3797 = vmul.f32 %v2516, %v966
        %v3798 = vmul.f32 %v2520, %v967
        %v3799 = vmul.f32 %v2524, %v968
        %v3800 = vmul.f32 %v2528, %v969
        %v3801 = vmul.f32 %v2532, %v970
        %v3802 = vmul.f32 %v2536, %v971
        %v3803 = vmul.f32 %v2540, %v972
        %v3804 = vmul.f32 %v2544, %v973
        %v3805 = vmul.f32 %v2548, %v974
        %v3806 = vmul.f32 %v2552, %v975
        %v3807 = vmul.f32 %v2556, %v976
        %v3808 = vmul.f32 %v2560, %v977
        %v3809 = vmul.f32 %v2564, %v978
        %v3810 = vmul.f32 %v2568, %v979
        %v3811 = vmul.f32 %v2572, %v980
        %v3812 = vmul.f32 %v2576, %v981
        %v3813 = vmul.f32 %v2580, %v982
        %v3814 = vmul.f32 %v2584, %v983
        %v3815 = vmul.f32 %v2588, %v984
        %v3816 = vmul.f32 %v2592, %v985
        %v3817 = vmul.f32 %v2596, %v986
        %v3818 = vmul.f32 %v2600, %v987
        %v3819 = vmul.f32 %v2604, %v988
        %v3820 = vmul.f32 %v2608, %v989
        %v3821 = vmul.f32 %v2612, %v990
        %v3822 = vmul.f32 %v2616, %v991
        %v3823 = vmul.f32 %v2620, %v992
        %v3824 = vmul.f32 %v2624, %v993
        %v3825 = vmul.f32 %v2628, %v994
        %v3826 = vmul.f32 %v2632, %v995
        %v3827 = vmul.f32 %v2636, %v996
        %v3828 = vmul.f32 %v2640, %v997
        %v3829 = vmul.f32 %v2644, %v998
        %v3830 = vmul.f32 %v2648, %v999
        %v3831 = vmul.f32 %v2652, %v1000
        %v3832 = vmul.f32 %v2656, %v1001
        %v3833 = vmul.f32 %v2660, %v1002
        %v3834 = vmul.f32 %v2664, %v1003
        %v3835 = vmul.f32 %v2668, %v1004
        %v3836 = vmul.f32 %v2672, %v1005
        %v3837 = vmul.f32 %v2676, %v1006
        %v3838 = vmul.f32 %v2680, %v1007
        %v3839 = vmul.f32 %v2684, %v1008
        %v3840 = vmul.f32 %v2688, %v1009
        %v3841 = vadd.f32 %v3073, %v3074
        %v3842 = vadd.f32 %v3841, %v3075
        %v3843 = vadd.f32 %v3842, %v3076
        %v3844 = vadd.f32 %v3843, %v3077
        %v3845 = vadd.f32 %v3844, %v3078
        %v3846 = vadd.f32 %v3845, %v3079
        %v3847 = vadd.f32 %v3846, %v3080
        %v3848 = vadd.f32 %v3847, %v3081
        %v3849 = vadd.f32 %v3848, %v3082
        %v3850 = vadd.f32 %v3849, %v3083
        %v3851 = vadd.f32 %v3850, %v3084
        %v3852 = vadd.f32 %v3851, %v3085
        %v3853 = vadd.f32 %v3852, %v3086
        %v3854 = vadd.f32 %v3853, %v3087
        %v3855 = vadd.f32 %v3854, %v3088
        %v3856 = vadd.f32 %v3855, %v3089
        %v3857 = vadd.f32 %v3856, %v3090
        %v3858 = vadd.f32 %v3857, %v3091
        %v3859 = vadd.f32 %v3858, %v3092
        %v3860 = vadd.f32 %v3859, %v3093
        %v3861 = vadd.f32 %v3860, %v3094
        %v3862 = vadd.f32 %v3861, %v3095
        %v3863 = vadd.f32 %v3862, %v3096
        %v3864 = vadd.f32 %v3863, %v3097
        %v3865 = vadd.f32 %v3864, %v3098
        %v3866 = vadd.f32 %v3865, %v3099
        %v3867 = vadd.f32 %v3866, %v3100
        %v3868 = vadd.f32 %v3867, %v3101
        %v3869 = vadd.f32 %v3868, %v3102
        %v3870 = vadd.f32 %v3869, %v3103
        %v3871 = vadd.f32 %v3870, %v3104
        %v3872 = vadd.f32 %v3871, %v3105
        %v3873 = vadd.f32 %v3872, %v3106
        %v3874 = vadd.f32 %v3873, %v3107
        %v3875 = vadd.f32 %v3874, %v3108
        %v3876 = vadd.f32 %v3875, %v3109
        %v3877 = vadd.f32 %v3876, %v3110
        %v3878 = vadd.f32 %v3877, %v3111
        %v3879 = vadd.f32 %v3878, %v3112
        %v3880 = vadd.f32 %v3879, %v3113
        %v3881 = vadd.f32 %v3880, %v3114
        %v3882 = vadd.f32 %v3881, %v3115
        %v3883 = vadd.f32 %v3882, %v3116
        %v3884 = vadd.f32 %v3883, %v3117
        %v3885 = vadd.f32 %v3884, %v3118
        %v3886 = vadd.f32 %v3885, %v3119
        %v3887 = vadd.f32 %v3886, %v3120
        %v3888 = vadd.f32 %v3887, %v3121
        %v3889 = vadd.f32 %v3888, %v3122
        %v3890 = vadd.f32 %v3889, %v3123
        %v3891 = vadd.f32 %v3890, %v3124
        %v3892 = vadd.f32 %v3891, %v3125
        %v3893 = vadd.f32 %v3892, %v3126
        %v3894 = vadd.f32 %v3893, %v3127
        %v3895 = vadd.f32 %v3894, %v3128
        %v3896 = vadd.f32 %v3895, %v3129
        %v3897 = vadd.f32 %v3896, %v3130
        %v3898 = vadd.f32 %v3897, %v3131
        %v3899 = vadd.f32 %v3898, %v3132
        %v3900 = vadd.f32 %v3899, %v3133
        %v3901 = vadd.f32 %v3900, %v3134
        %v3902 = vadd.f32 %v3901, %v3135
        %v3903 = vadd.f32 %v3902, %v3136
        %v3904 = vadd.f32 %v3903, %v3137
        %v3905 = vadd.f32 %v3904, %v3138
        %v3906 = vadd.f32 %v3905, %v3139
        %v3907 = vadd.f32 %v3906, %v3140
        %v3908 = vadd.f32 %v3907, %v3141
        %v3909 = vadd.f32 %v3908, %v3142
        %v3910 = vadd.f32 %v3909, %v3143
        %v3911 = vadd.f32 %v3910, %v3144
        %v3912 = vadd.f32 %v3911, %v3145
        %v3913 = vadd.f32 %v3912, %v3146
        %v3914 = vadd.f32 %v3913, %v3147
        %v3915 = vadd.f32 %v3914, %v3148
        %v3916 = vadd.f32 %v3915, %v3149
        %v3917 = vadd.f32 %v3916, %v3150
        %v3918 = vadd.f32 %v3917, %v3151
        %v3919 = vadd.f32 %v3918, %v3152
        %v3920 = vadd.f32 %v3919, %v3153
        %v3921 = vadd.f32 %v3920, %v3154
        %v3922 = vadd.f32 %v3921, %v3155
        %v3923 = vadd.f32 %v3922, %v3156
        %v3924 = vadd.f32 %v3923, %v3157
        %v3925 = vadd.f32 %v3924, %v3158
        %v3926 = vadd.f32 %v3925, %v3159
        %v3927 = vadd.f32 %v3926, %v3160
        %v3928 = vadd.f32 %v3927, %v3161
        %v3929 = vadd.f32 %v3928, %v3162
        %v3930 = vadd.f32 %v3929, %v3163
        %v3931 = vadd.f32 %v3930, %v3164
        %v3932 = vadd.f32 %v3931, %v3165
        %v3933 = vadd.f32 %v3932, %v3166
        %v3934 = vadd.f32 %v3933, %v3167
        %v3935 = vadd.f32 %v3934, %v3168
        %v3936 = vadd.f32 %v3935, %v3169
        %v3937 = vadd.f32 %v3936, %v3170
        %v3938 = vadd.f32 %v3937, %v3171
        %v3939 = vadd.f32 %v3938, %v3172
        %v3940 = vadd.f32 %v3939, %v3173
        %v3941 = vadd.f32 %v3940, %v3174
        %v3942 = vadd.f32 %v3941, %v3175
        %v3943 = vadd.f32 %v3942, %v3176
        %v3944 = vadd.f32 %v3943, %v3177
        %v3945 = vadd.f32 %v3944, %v3178
        %v3946 = vadd.f32 %v3945, %v3179
        %v3947 = vadd.f32 %v3946, %v3180
        %v3948 = vadd.f32 %v3947, %v3181
        %v3949 = vadd.f32 %v3948, %v3182
        %v3950 = vadd.f32 %v3949, %v3183
        %v3951 = vadd.f32 %v3950, %v3184
        %v3952 = vadd.f32 %v3951, %v3185
        %v3953 = vadd.f32 %v3952, %v3186
        %v3954 = vadd.f32 %v3953, %v3187
        %v3955 = vadd.f32 %v3954, %v3188
        %v3956 = vadd.f32 %v3955, %v3189
        %v3957 = vadd.f32 %v3956, %v3190
        %v3958 = vadd.f32 %v3957, %v3191
        %v3959 = vadd.f32 %v3958, %v3192
        %v3960 = vadd.f32 %v3959, %v3193
        %v3961 = vadd.f32 %v3960, %v3194
        %v3962 = vadd.f32 %v3961, %v3195
        %v3963 = vadd.f32 %v3962, %v3196
        %v3964 = vadd.f32 %v3963, %v3197
        %v3965 = vadd.f32 %v3964, %v3198
        %v3966 = vadd.f32 %v3965, %v3199
        %v3967 = vadd.f32 %v3966, %v3200
        %v3968 = vadd.f32 %v3967, %v3201
        %v3969 = vadd.f32 %v3968, %v3202
        %v3970 = vadd.f32 %v3969, %v3203
        %v3971 = vadd.f32 %v3970, %v3204
        %v3972 = vadd.f32 %v3971, %v3205
        %v3973 = vadd.f32 %v3972, %v3206
        %v3974 = vadd.f32 %v3973, %v3207
        %v3975 = vadd.f32 %v3974, %v3208
        %v3976 = vadd.f32 %v3975, %v3209
        %v3977 = vadd.f32 %v3976, %v3210
        %v3978 = vadd.f32 %v3977, %v3211
        %v3979 = vadd.f32 %v3978, %v3212
        %v3980 = vadd.f32 %v3979, %v3213
        %v3981 = vadd.f32 %v3980, %v3214
        %v3982 = vadd.f32 %v3981, %v3215
        %v3983 = vadd.f32 %v3982, %v3216
        %v3984 = vadd.f32 %v3983, %v3217
        %v3985 = vadd.f32 %v3984, %v3218
        %v3986 = vadd.f32 %v3985, %v3219
        %v3987 = vadd.f32 %v3986, %v3220
        %v3988 = vadd.f32 %v3987, %v3221
        %v3989 = vadd.f32 %v3988, %v3222
        %v3990 = vadd.f32 %v3989, %v3223
        %v3991 = vadd.f32 %v3990, %v3224
        %v3992 = vadd.f32 %v3991, %v3225
        %v3993 = vadd.f32 %v3992, %v3226
        %v3994 = vadd.f32 %v3993, %v3227
        %v3995 = vadd.f32 %v3994, %v3228
        %v3996 = vadd.f32 %v3995, %v3229
        %v3997 = vadd.f32 %v3996, %v3230
        %v3998 = vadd.f32 %v3997, %v3231
        %v3999 = vadd.f32 %v3998, %v3232
        %v4000 = vadd.f32 %v3999, %v3233
        %v4001 = vadd.f32 %v4000, %v3234
        %v4002 = vadd.f32 %v4001, %v3235
        %v4003 = vadd.f32 %v4002, %v3236
        %v4004 = vadd.f32 %v4003, %v3237
        %v4005 = vadd.f32 %v4004, %v3238
        %v4006 = vadd.f32 %v4005, %v3239
        %v4007 = vadd.f32 %v4006, %v3240
        %v4008 = vadd.f32 %v4007, %v3241
        %v4009 = vadd.f32 %v4008, %v3242
        %v4010 = vadd.f32 %v4009, %v3243
        %v4011 = vadd.f32 %v4010, %v3244
        %v4012 = vadd.f32 %v4011, %v3245
        %v4013 = vadd.f32 %v4012, %v3246
        %v4014 = vadd.f32 %v4013, %v3247
        %v4015 = vadd.f32 %v4014, %v3248
        %v4016 = vadd.f32 %v4015, %v3249
        %v4017 = vadd.f32 %v4016, %v3250
        %v4018 = vadd.f32 %v4017, %v3251
        %v4019 = vadd.f32 %v4018, %v3252
        %v4020 = vadd.f32 %v4019, %v3253
        %v4021 = vadd.f32 %v4020, %v3254
        %v4022 = vadd.f32 %v4021, %v3255
        %v4023 = vadd.f32 %v4022, %v3256
        %v4024 = vadd.f32 %v4023, %v3257
        %v4025 = vadd.f32 %v4024, %v3258
        %v4026 = vadd.f32 %v4025, %v3259
        %v4027 = vadd.f32 %v4026, %v3260
        %v4028 = vadd.f32 %v4027, %v3261
        %v4029 = vadd.f32 %v4028, %v3262
        %v4030 = vadd.f32 %v4029, %v3263
        %v4031 = vadd.f32 %v4030, %v3264
        %v4032 = vadd.f32 %v4031, %v3265
        %v4033 = vadd.f32 %v4032, %v3266
        %v4034 = vadd.f32 %v4033, %v3267
        %v4035 = vadd.f32 %v4034, %v3268
        %v4036 = vadd.f32 %v4035, %v3269
        %v4037 = vadd.f32 %v4036, %v3270
        %v4038 = vadd.f32 %v4037, %v3271
        %v4039 = vadd.f32 %v4038, %v3272
        %v4040 = vadd.f32 %v4039, %v3273
        %v4041 = vadd.f32 %v4040, %v3274
        %v4042 = vadd.f32 %v4041, %v3275
        %v4043 = vadd.f32 %v4042, %v3276
        %v4044 = vadd.f32 %v4043, %v3277
        %v4045 = vadd.f32 %v4044, %v3278
        %v4046 = vadd.f32 %v4045, %v3279
        %v4047 = vadd.f32 %v4046, %v3280
        %v4048 = vadd.f32 %v4047, %v3281
        %v4049 = vadd.f32 %v4048, %v3282
        %v4050 = vadd.f32 %v4049, %v3283
        %v4051 = vadd.f32 %v4050, %v3284
        %v4052 = vadd.f32 %v4051, %v3285
        %v4053 = vadd.f32 %v4052, %v3286
        %v4054 = vadd.f32 %v4053, %v3287
        %v4055 = vadd.f32 %v4054, %v3288
        %v4056 = vadd.f32 %v4055, %v3289
        %v4057 = vadd.f32 %v4056, %v3290
        %v4058 = vadd.f32 %v4057, %v3291
        %v4059 = vadd.f32 %v4058, %v3292
        %v4060 = vadd.f32 %v4059, %v3293
        %v4061 = vadd.f32 %v4060, %v3294
        %v4062 = vadd.f32 %v4061, %v3295
        %v4063 = vadd.f32 %v4062, %v3296
        %v4064 = vadd.f32 %v4063, %v3297
        %v4065 = vadd.f32 %v4064, %v3298
        %v4066 = vadd.f32 %v4065, %v3299
        %v4067 = vadd.f32 %v4066, %v3300
        %v4068 = vadd.f32 %v4067, %v3301
        %v4069 = vadd.f32 %v4068, %v3302
        %v4070 = vadd.f32 %v4069, %v3303
        %v4071 = vadd.f32 %v4070, %v3304
        %v4072 = vadd.f32 %v4071, %v3305
        %v4073 = vadd.f32 %v4072, %v3306
        %v4074 = vadd.f32 %v4073, %v3307
        %v4075 = vadd.f32 %v4074, %v3308
        %v4076 = vadd.f32 %v4075, %v3309
        %v4077 = vadd.f32 %v4076, %v3310
        %v4078 = vadd.f32 %v4077, %v3311
        %v4079 = vadd.f32 %v4078, %v3312
        %v4080 = vadd.f32 %v4079, %v3313
        %v4081 = vadd.f32 %v4080, %v3314
        %v4082 = vadd.f32 %v4081, %v3315
        %v4083 = vadd.f32 %v4082, %v3316
        %v4084 = vadd.f32 %v4083, %v3317
        %v4085 = vadd.f32 %v4084, %v3318
        %v4086 = vadd.f32 %v4085, %v3319
        %v4087 = vadd.f32 %v4086, %v3320
        %v4088 = vadd.f32 %v4087, %v3321
        %v4089 = vadd.f32 %v4088, %v3322
        %v4090 = vadd.f32 %v4089, %v3323
        %v4091 = vadd.f32 %v4090, %v3324
        %v4092 = vadd.f32 %v4091, %v3325
        %v4093 = vadd.f32 %v4092, %v3326
        %v4094 = vadd.f32 %v4093, %v3327
        %v4095 = vadd.f32 %v4094, %v3328
        %v4096 = vadd.f32 %v4095, %v3329
        %v4097 = vadd.f32 %v4096, %v3330
        %v4098 = vadd.f32 %v4097, %v3331
        %v4099 = vadd.f32 %v4098, %v3332
        %v4100 = vadd.f32 %v4099, %v3333
        %v4101 = vadd.f32 %v4100, %v3334
        %v4102 = vadd.f32 %v4101, %v3335
        %v4103 = vadd.f32 %v4102, %v3336
        %v4104 = vadd.f32 %v4103, %v3337
        %v4105 = vadd.f32 %v4104, %v3338
        %v4106 = vadd.f32 %v4105, %v3339
        %v4107 = vadd.f32 %v4106, %v3340
        %v4108 = vadd.f32 %v4107, %v3341
        %v4109 = vadd.f32 %v4108, %v3342
        %v4110 = vadd.f32 %v4109, %v3343
        %v4111 = vadd.f32 %v4110, %v3344
        %v4112 = vadd.f32 %v4111, %v3345
        %v4113 = vadd.f32 %v4112, %v3346
        %v4114 = vadd.f32 %v4113, %v3347
        %v4115 = vadd.f32 %v4114, %v3348
        %v4116 = vadd.f32 %v4115, %v3349
        %v4117 = vadd.f32 %v4116, %v3350
        %v4118 = vadd.f32 %v4117, %v3351
        %v4119 = vadd.f32 %v4118, %v3352
        %v4120 = vadd.f32 %v4119, %v3353
        %v4121 = vadd.f32 %v4120, %v3354
        %v4122 = vadd.f32 %v4121, %v3355
        %v4123 = vadd.f32 %v4122, %v3356
        %v4124 = vadd.f32 %v4123, %v3357
        %v4125 = vadd.f32 %v4124, %v3358
        %v4126 = vadd.f32 %v4125, %v3359
        %v4127 = vadd.f32 %v4126, %v3360
        %v4128 = vadd.f32 %v4127, %v3361
        %v4129 = vadd.f32 %v4128, %v3362
        %v4130 = vadd.f32 %v4129, %v3363
        %v4131 = vadd.f32 %v4130, %v3364
        %v4132 = vadd.f32 %v4131, %v3365
        %v4133 = vadd.f32 %v4132, %v3366
        %v4134 = vadd.f32 %v4133, %v3367
        %v4135 = vadd.f32 %v4134, %v3368
        %v4136 = vadd.f32 %v4135, %v3369
        %v4137 = vadd.f32 %v4136, %v3370
        %v4138 = vadd.f32 %v4137, %v3371
        %v4139 = vadd.f32 %v4138, %v3372
        %v4140 = vadd.f32 %v4139, %v3373
        %v4141 = vadd.f32 %v4140, %v3374
        %v4142 = vadd.f32 %v4141, %v3375
        %v4143 = vadd.f32 %v4142, %v3376
        %v4144 = vadd.f32 %v4143, %v3377
        %v4145 = vadd.f32 %v4144, %v3378
        %v4146 = vadd.f32 %v4145, %v3379
        %v4147 = vadd.f32 %v4146, %v3380
        %v4148 = vadd.f32 %v4147, %v3381
        %v4149 = vadd.f32 %v4148, %v3382
        %v4150 = vadd.f32 %v4149, %v3383
        %v4151 = vadd.f32 %v4150, %v3384
        %v4152 = vadd.f32 %v4151, %v3385
        %v4153 = vadd.f32 %v4152, %v3386
        %v4154 = vadd.f32 %v4153, %v3387
        %v4155 = vadd.f32 %v4154, %v3388
        %v4156 = vadd.f32 %v4155, %v3389
        %v4157 = vadd.f32 %v4156, %v3390
        %v4158 = vadd.f32 %v4157, %v3391
        %v4159 = vadd.f32 %v4158, %v3392
        %v4160 = vadd.f32 %v4159, %v3393
        %v4161 = vadd.f32 %v4160, %v3394
        %v4162 = vadd.f32 %v4161, %v3395
        %v4163 = vadd.f32 %v4162, %v3396
        %v4164 = vadd.f32 %v4163, %v3397
        %v4165 = vadd.f32 %v4164, %v3398
        %v4166 = vadd.f32 %v4165, %v3399
        %v4167 = vadd.f32 %v4166, %v3400
        %v4168 = vadd.f32 %v4167, %v3401
        %v4169 = vadd.f32 %v4168, %v3402
        %v4170 = vadd.f32 %v4169, %v3403
        %v4171 = vadd.f32 %v4170, %v3404
        %v4172 = vadd.f32 %v4171, %v3405
        %v4173 = vadd.f32 %v4172, %v3406
        %v4174 = vadd.f32 %v4173, %v3407
        %v4175 = vadd.f32 %v4174, %v3408
        %v4176 = vadd.f32 %v4175, %v3409
        %v4177 = vadd.f32 %v4176, %v3410
        %v4178 = vadd.f32 %v4177, %v3411
        %v4179 = vadd.f32 %v4178, %v3412
        %v4180 = vadd.f32 %v4179, %v3413
        %v4181 = vadd.f32 %v4180, %v3414
        %v4182 = vadd.f32 %v4181, %v3415
        %v4183 = vadd.f32 %v4182, %v3416
        %v4184 = vadd.f32 %v4183, %v3417
        %v4185 = vadd.f32 %v4184, %v3418
        %v4186 = vadd.f32 %v4185, %v3419
        %v4187 = vadd.f32 %v4186, %v3420
        %v4188 = vadd.f32 %v4187, %v3421
        %v4189 = vadd.f32 %v4188, %v3422
        %v4190 = vadd.f32 %v4189, %v3423
        %v4191 = vadd.f32 %v4190, %v3424
        %v4192 = vadd.f32 %v4191, %v3425
        %v4193 = vadd.f32 %v4192, %v3426
        %v4194 = vadd.f32 %v4193, %v3427
        %v4195 = vadd.f32 %v4194, %v3428
        %v4196 = vadd.f32 %v4195, %v3429
        %v4197 = vadd.f32 %v4196, %v3430
        %v4198 = vadd.f32 %v4197, %v3431
        %v4199 = vadd.f32 %v4198, %v3432
        %v4200 = vadd.f32 %v4199, %v3433
        %v4201 = vadd.f32 %v4200, %v3434
        %v4202 = vadd.f32 %v4201, %v3435
        %v4203 = vadd.f32 %v4202, %v3436
        %v4204 = vadd.f32 %v4203, %v3437
        %v4205 = vadd.f32 %v4204, %v3438
        %v4206 = vadd.f32 %v4205, %v3439
        %v4207 = vadd.f32 %v4206, %v3440
        %v4208 = vadd.f32 %v4207, %v3441
        %v4209 = vadd.f32 %v4208, %v3442
        %v4210 = vadd.f32 %v4209, %v3443
        %v4211 = vadd.f32 %v4210, %v3444
        %v4212 = vadd.f32 %v4211, %v3445
        %v4213 = vadd.f32 %v4212, %v3446
        %v4214 = vadd.f32 %v4213, %v3447
        %v4215 = vadd.f32 %v4214, %v3448
        %v4216 = vadd.f32 %v4215, %v3449
        %v4217 = vadd.f32 %v4216, %v3450
        %v4218 = vadd.f32 %v4217, %v3451
        %v4219 = vadd.f32 %v4218, %v3452
        %v4220 = vadd.f32 %v4219, %v3453
        %v4221 = vadd.f32 %v4220, %v3454
        %v4222 = vadd.f32 %v4221, %v3455
        %v4223 = vadd.f32 %v4222, %v3456
        %4224 = vadd.xlane.f32.xlu0 %v4223
        %v4225 = vpop.xlane.xlu0 %4224
        %vm4226 = vcmask 1041408
        %v4227 = vsel %vm4226, %v3457, 0.0
        %v4228 = vsel %vm4226, %v3458, 0.0
        %v4229 = vadd.f32 %v4227, %v4228
        %v4230 = vsel %vm4226, %v3459, 0.0
        %v4231 = vadd.f32 %v4229, %v4230
        %v4232 = vsel %vm4226, %v3460, 0.0
        %v4233 = vadd.f32 %v4231, %v4232
        %v4234 = vsel %vm4226, %v3461, 0.0
        %v4235 = vadd.f32 %v4233, %v4234
        %v4236 = vsel %vm4226, %v3462, 0.0
        %v4237 = vadd.f32 %v4235, %v4236
        %v4238 = vsel %vm4226, %v3463, 0.0
        %v4239 = vadd.f32 %v4237, %v4238
        %v4240 = vsel %vm4226, %v3464, 0.0
        %v4241 = vadd.f32 %v4239, %v4240
        %v4242 = vsel %vm4226, %v3465, 0.0
        %v4243 = vadd.f32 %v4241, %v4242
        %v4244 = vsel %vm4226, %v3466, 0.0
        %v4245 = vadd.f32 %v4243, %v4244
        %v4246 = vsel %vm4226, %v3467, 0.0
        %v4247 = vadd.f32 %v4245, %v4246
        %v4248 = vsel %vm4226, %v3468, 0.0
        %v4249 = vadd.f32 %v4247, %v4248
        %v4250 = vsel %vm4226, %v3469, 0.0
        %v4251 = vadd.f32 %v4249, %v4250
        %v4252 = vsel %vm4226, %v3470, 0.0
        %v4253 = vadd.f32 %v4251, %v4252
        %v4254 = vsel %vm4226, %v3471, 0.0
        %v4255 = vadd.f32 %v4253, %v4254
        %v4256 = vsel %vm4226, %v3472, 0.0
        %v4257 = vadd.f32 %v4255, %v4256
        %v4258 = vsel %vm4226, %v3473, 0.0
        %v4259 = vadd.f32 %v4257, %v4258
        %v4260 = vsel %vm4226, %v3474, 0.0
        %v4261 = vadd.f32 %v4259, %v4260
        %v4262 = vsel %vm4226, %v3475, 0.0
        %v4263 = vadd.f32 %v4261, %v4262
        %v4264 = vsel %vm4226, %v3476, 0.0
        %v4265 = vadd.f32 %v4263, %v4264
        %v4266 = vsel %vm4226, %v3477, 0.0
        %v4267 = vadd.f32 %v4265, %v4266
        %v4268 = vsel %vm4226, %v3478, 0.0
        %v4269 = vadd.f32 %v4267, %v4268
        %v4270 = vsel %vm4226, %v3479, 0.0
        %v4271 = vadd.f32 %v4269, %v4270
        %v4272 = vsel %vm4226, %v3480, 0.0
        %v4273 = vadd.f32 %v4271, %v4272
        %v4274 = vsel %vm4226, %v3481, 0.0
        %v4275 = vadd.f32 %v4273, %v4274
        %v4276 = vsel %vm4226, %v3482, 0.0
        %v4277 = vadd.f32 %v4275, %v4276
        %v4278 = vsel %vm4226, %v3483, 0.0
        %v4279 = vadd.f32 %v4277, %v4278
        %v4280 = vsel %vm4226, %v3484, 0.0
        %v4281 = vadd.f32 %v4279, %v4280
        %v4282 = vsel %vm4226, %v3485, 0.0
        %v4283 = vadd.f32 %v4281, %v4282
        %v4284 = vsel %vm4226, %v3486, 0.0
        %v4285 = vadd.f32 %v4283, %v4284
        %v4286 = vsel %vm4226, %v3487, 0.0
        %v4287 = vadd.f32 %v4285, %v4286
        %v4288 = vsel %vm4226, %v3488, 0.0
        %v4289 = vadd.f32 %v4287, %v4288
        %v4290 = vsel %vm4226, %v3489, 0.0
        %v4291 = vadd.f32 %v4289, %v4290
        %v4292 = vsel %vm4226, %v3490, 0.0
        %v4293 = vadd.f32 %v4291, %v4292
        %v4294 = vsel %vm4226, %v3491, 0.0
        %v4295 = vadd.f32 %v4293, %v4294
        %v4296 = vsel %vm4226, %v3492, 0.0
        %v4297 = vadd.f32 %v4295, %v4296
        %v4298 = vsel %vm4226, %v3493, 0.0
        %v4299 = vadd.f32 %v4297, %v4298
        %v4300 = vsel %vm4226, %v3494, 0.0
        %v4301 = vadd.f32 %v4299, %v4300
        %v4302 = vsel %vm4226, %v3495, 0.0
        %v4303 = vadd.f32 %v4301, %v4302
        %v4304 = vsel %vm4226, %v3496, 0.0
        %v4305 = vadd.f32 %v4303, %v4304
        %v4306 = vsel %vm4226, %v3497, 0.0
        %v4307 = vadd.f32 %v4305, %v4306
        %v4308 = vsel %vm4226, %v3498, 0.0
        %v4309 = vadd.f32 %v4307, %v4308
        %v4310 = vsel %vm4226, %v3499, 0.0
        %v4311 = vadd.f32 %v4309, %v4310
        %v4312 = vsel %vm4226, %v3500, 0.0
        %v4313 = vadd.f32 %v4311, %v4312
        %v4314 = vsel %vm4226, %v3501, 0.0
        %v4315 = vadd.f32 %v4313, %v4314
        %v4316 = vsel %vm4226, %v3502, 0.0
        %v4317 = vadd.f32 %v4315, %v4316
        %v4318 = vsel %vm4226, %v3503, 0.0
        %v4319 = vadd.f32 %v4317, %v4318
        %v4320 = vsel %vm4226, %v3504, 0.0
        %v4321 = vadd.f32 %v4319, %v4320
        %v4322 = vsel %vm4226, %v3505, 0.0
        %v4323 = vadd.f32 %v4321, %v4322
        %v4324 = vsel %vm4226, %v3506, 0.0
        %v4325 = vadd.f32 %v4323, %v4324
        %v4326 = vsel %vm4226, %v3507, 0.0
        %v4327 = vadd.f32 %v4325, %v4326
        %v4328 = vsel %vm4226, %v3508, 0.0
        %v4329 = vadd.f32 %v4327, %v4328
        %v4330 = vsel %vm4226, %v3509, 0.0
        %v4331 = vadd.f32 %v4329, %v4330
        %v4332 = vsel %vm4226, %v3510, 0.0
        %v4333 = vadd.f32 %v4331, %v4332
        %v4334 = vsel %vm4226, %v3511, 0.0
        %v4335 = vadd.f32 %v4333, %v4334
        %v4336 = vsel %vm4226, %v3512, 0.0
        %v4337 = vadd.f32 %v4335, %v4336
        %v4338 = vsel %vm4226, %v3513, 0.0
        %v4339 = vadd.f32 %v4337, %v4338
        %v4340 = vsel %vm4226, %v3514, 0.0
        %v4341 = vadd.f32 %v4339, %v4340
        %v4342 = vsel %vm4226, %v3515, 0.0
        %v4343 = vadd.f32 %v4341, %v4342
        %v4344 = vsel %vm4226, %v3516, 0.0
        %v4345 = vadd.f32 %v4343, %v4344
        %v4346 = vsel %vm4226, %v3517, 0.0
        %v4347 = vadd.f32 %v4345, %v4346
        %v4348 = vsel %vm4226, %v3518, 0.0
        %v4349 = vadd.f32 %v4347, %v4348
        %v4350 = vsel %vm4226, %v3519, 0.0
        %v4351 = vadd.f32 %v4349, %v4350
        %v4352 = vsel %vm4226, %v3520, 0.0
        %v4353 = vadd.f32 %v4351, %v4352
        %v4354 = vsel %vm4226, %v3521, 0.0
        %v4355 = vadd.f32 %v4353, %v4354
        %v4356 = vsel %vm4226, %v3522, 0.0
        %v4357 = vadd.f32 %v4355, %v4356
        %v4358 = vsel %vm4226, %v3523, 0.0
        %v4359 = vadd.f32 %v4357, %v4358
        %v4360 = vsel %vm4226, %v3524, 0.0
        %v4361 = vadd.f32 %v4359, %v4360
        %v4362 = vsel %vm4226, %v3525, 0.0
        %v4363 = vadd.f32 %v4361, %v4362
        %v4364 = vsel %vm4226, %v3526, 0.0
        %v4365 = vadd.f32 %v4363, %v4364
        %v4366 = vsel %vm4226, %v3527, 0.0
        %v4367 = vadd.f32 %v4365, %v4366
        %v4368 = vsel %vm4226, %v3528, 0.0
        %v4369 = vadd.f32 %v4367, %v4368
        %v4370 = vsel %vm4226, %v3529, 0.0
        %v4371 = vadd.f32 %v4369, %v4370
        %v4372 = vsel %vm4226, %v3530, 0.0
        %v4373 = vadd.f32 %v4371, %v4372
        %v4374 = vsel %vm4226, %v3531, 0.0
        %v4375 = vadd.f32 %v4373, %v4374
        %v4376 = vsel %vm4226, %v3532, 0.0
        %v4377 = vadd.f32 %v4375, %v4376
        %v4378 = vsel %vm4226, %v3533, 0.0
        %v4379 = vadd.f32 %v4377, %v4378
        %v4380 = vsel %vm4226, %v3534, 0.0
        %v4381 = vadd.f32 %v4379, %v4380
        %v4382 = vsel %vm4226, %v3535, 0.0
        %v4383 = vadd.f32 %v4381, %v4382
        %v4384 = vsel %vm4226, %v3536, 0.0
        %v4385 = vadd.f32 %v4383, %v4384
        %v4386 = vsel %vm4226, %v3537, 0.0
        %v4387 = vadd.f32 %v4385, %v4386
        %v4388 = vsel %vm4226, %v3538, 0.0
        %v4389 = vadd.f32 %v4387, %v4388
        %v4390 = vsel %vm4226, %v3539, 0.0
        %v4391 = vadd.f32 %v4389, %v4390
        %v4392 = vsel %vm4226, %v3540, 0.0
        %v4393 = vadd.f32 %v4391, %v4392
        %v4394 = vsel %vm4226, %v3541, 0.0
        %v4395 = vadd.f32 %v4393, %v4394
        %v4396 = vsel %vm4226, %v3542, 0.0
        %v4397 = vadd.f32 %v4395, %v4396
        %v4398 = vsel %vm4226, %v3543, 0.0
        %v4399 = vadd.f32 %v4397, %v4398
        %v4400 = vsel %vm4226, %v3544, 0.0
        %v4401 = vadd.f32 %v4399, %v4400
        %v4402 = vsel %vm4226, %v3545, 0.0
        %v4403 = vadd.f32 %v4401, %v4402
        %v4404 = vsel %vm4226, %v3546, 0.0
        %v4405 = vadd.f32 %v4403, %v4404
        %v4406 = vsel %vm4226, %v3547, 0.0
        %v4407 = vadd.f32 %v4405, %v4406
        %v4408 = vsel %vm4226, %v3548, 0.0
        %v4409 = vadd.f32 %v4407, %v4408
        %v4410 = vsel %vm4226, %v3549, 0.0
        %v4411 = vadd.f32 %v4409, %v4410
        %v4412 = vsel %vm4226, %v3550, 0.0
        %v4413 = vadd.f32 %v4411, %v4412
        %v4414 = vsel %vm4226, %v3551, 0.0
        %v4415 = vadd.f32 %v4413, %v4414
        %v4416 = vsel %vm4226, %v3552, 0.0
        %v4417 = vadd.f32 %v4415, %v4416
        %v4418 = vsel %vm4226, %v3553, 0.0
        %v4419 = vadd.f32 %v4417, %v4418
        %v4420 = vsel %vm4226, %v3554, 0.0
        %v4421 = vadd.f32 %v4419, %v4420
        %v4422 = vsel %vm4226, %v3555, 0.0
        %v4423 = vadd.f32 %v4421, %v4422
        %v4424 = vsel %vm4226, %v3556, 0.0
        %v4425 = vadd.f32 %v4423, %v4424
        %v4426 = vsel %vm4226, %v3557, 0.0
        %v4427 = vadd.f32 %v4425, %v4426
        %v4428 = vsel %vm4226, %v3558, 0.0
        %v4429 = vadd.f32 %v4427, %v4428
        %v4430 = vsel %vm4226, %v3559, 0.0
        %v4431 = vadd.f32 %v4429, %v4430
        %v4432 = vsel %vm4226, %v3560, 0.0
        %v4433 = vadd.f32 %v4431, %v4432
        %v4434 = vsel %vm4226, %v3561, 0.0
        %v4435 = vadd.f32 %v4433, %v4434
        %v4436 = vsel %vm4226, %v3562, 0.0
        %v4437 = vadd.f32 %v4435, %v4436
        %v4438 = vsel %vm4226, %v3563, 0.0
        %v4439 = vadd.f32 %v4437, %v4438
        %v4440 = vsel %vm4226, %v3564, 0.0
        %v4441 = vadd.f32 %v4439, %v4440
        %v4442 = vsel %vm4226, %v3565, 0.0
        %v4443 = vadd.f32 %v4441, %v4442
        %v4444 = vsel %vm4226, %v3566, 0.0
        %v4445 = vadd.f32 %v4443, %v4444
        %v4446 = vsel %vm4226, %v3567, 0.0
        %v4447 = vadd.f32 %v4445, %v4446
        %v4448 = vsel %vm4226, %v3568, 0.0
        %v4449 = vadd.f32 %v4447, %v4448
        %v4450 = vsel %vm4226, %v3569, 0.0
        %v4451 = vadd.f32 %v4449, %v4450
        %v4452 = vsel %vm4226, %v3570, 0.0
        %v4453 = vadd.f32 %v4451, %v4452
        %v4454 = vsel %vm4226, %v3571, 0.0
        %v4455 = vadd.f32 %v4453, %v4454
        %v4456 = vsel %vm4226, %v3572, 0.0
        %v4457 = vadd.f32 %v4455, %v4456
        %v4458 = vsel %vm4226, %v3573, 0.0
        %v4459 = vadd.f32 %v4457, %v4458
        %v4460 = vsel %vm4226, %v3574, 0.0
        %v4461 = vadd.f32 %v4459, %v4460
        %v4462 = vsel %vm4226, %v3575, 0.0
        %v4463 = vadd.f32 %v4461, %v4462
        %v4464 = vsel %vm4226, %v3576, 0.0
        %v4465 = vadd.f32 %v4463, %v4464
        %v4466 = vsel %vm4226, %v3577, 0.0
        %v4467 = vadd.f32 %v4465, %v4466
        %v4468 = vsel %vm4226, %v3578, 0.0
        %v4469 = vadd.f32 %v4467, %v4468
        %v4470 = vsel %vm4226, %v3579, 0.0
        %v4471 = vadd.f32 %v4469, %v4470
        %v4472 = vsel %vm4226, %v3580, 0.0
        %v4473 = vadd.f32 %v4471, %v4472
        %v4474 = vsel %vm4226, %v3581, 0.0
        %v4475 = vadd.f32 %v4473, %v4474
        %v4476 = vsel %vm4226, %v3582, 0.0
        %v4477 = vadd.f32 %v4475, %v4476
        %v4478 = vsel %vm4226, %v3583, 0.0
        %v4479 = vadd.f32 %v4477, %v4478
        %v4480 = vsel %vm4226, %v3584, 0.0
        %v4481 = vadd.f32 %v4479, %v4480
        %v4482 = vsel %vm4226, %v3585, 0.0
        %v4483 = vadd.f32 %v4481, %v4482
        %v4484 = vsel %vm4226, %v3586, 0.0
        %v4485 = vadd.f32 %v4483, %v4484
        %v4486 = vsel %vm4226, %v3587, 0.0
        %v4487 = vadd.f32 %v4485, %v4486
        %v4488 = vsel %vm4226, %v3588, 0.0
        %v4489 = vadd.f32 %v4487, %v4488
        %v4490 = vsel %vm4226, %v3589, 0.0
        %v4491 = vadd.f32 %v4489, %v4490
        %v4492 = vsel %vm4226, %v3590, 0.0
        %v4493 = vadd.f32 %v4491, %v4492
        %v4494 = vsel %vm4226, %v3591, 0.0
        %v4495 = vadd.f32 %v4493, %v4494
        %v4496 = vsel %vm4226, %v3592, 0.0
        %v4497 = vadd.f32 %v4495, %v4496
        %v4498 = vsel %vm4226, %v3593, 0.0
        %v4499 = vadd.f32 %v4497, %v4498
        %v4500 = vsel %vm4226, %v3594, 0.0
        %v4501 = vadd.f32 %v4499, %v4500
        %v4502 = vsel %vm4226, %v3595, 0.0
        %v4503 = vadd.f32 %v4501, %v4502
        %v4504 = vsel %vm4226, %v3596, 0.0
        %v4505 = vadd.f32 %v4503, %v4504
        %v4506 = vsel %vm4226, %v3597, 0.0
        %v4507 = vadd.f32 %v4505, %v4506
        %v4508 = vsel %vm4226, %v3598, 0.0
        %v4509 = vadd.f32 %v4507, %v4508
        %v4510 = vsel %vm4226, %v3599, 0.0
        %v4511 = vadd.f32 %v4509, %v4510
        %v4512 = vsel %vm4226, %v3600, 0.0
        %v4513 = vadd.f32 %v4511, %v4512
        %v4514 = vsel %vm4226, %v3601, 0.0
        %v4515 = vadd.f32 %v4513, %v4514
        %v4516 = vsel %vm4226, %v3602, 0.0
        %v4517 = vadd.f32 %v4515, %v4516
        %v4518 = vsel %vm4226, %v3603, 0.0
        %v4519 = vadd.f32 %v4517, %v4518
        %v4520 = vsel %vm4226, %v3604, 0.0
        %v4521 = vadd.f32 %v4519, %v4520
        %v4522 = vsel %vm4226, %v3605, 0.0
        %v4523 = vadd.f32 %v4521, %v4522
        %v4524 = vsel %vm4226, %v3606, 0.0
        %v4525 = vadd.f32 %v4523, %v4524
        %v4526 = vsel %vm4226, %v3607, 0.0
        %v4527 = vadd.f32 %v4525, %v4526
        %v4528 = vsel %vm4226, %v3608, 0.0
        %v4529 = vadd.f32 %v4527, %v4528
        %v4530 = vsel %vm4226, %v3609, 0.0
        %v4531 = vadd.f32 %v4529, %v4530
        %v4532 = vsel %vm4226, %v3610, 0.0
        %v4533 = vadd.f32 %v4531, %v4532
        %v4534 = vsel %vm4226, %v3611, 0.0
        %v4535 = vadd.f32 %v4533, %v4534
        %v4536 = vsel %vm4226, %v3612, 0.0
        %v4537 = vadd.f32 %v4535, %v4536
        %v4538 = vsel %vm4226, %v3613, 0.0
        %v4539 = vadd.f32 %v4537, %v4538
        %v4540 = vsel %vm4226, %v3614, 0.0
        %v4541 = vadd.f32 %v4539, %v4540
        %v4542 = vsel %vm4226, %v3615, 0.0
        %v4543 = vadd.f32 %v4541, %v4542
        %v4544 = vsel %vm4226, %v3616, 0.0
        %v4545 = vadd.f32 %v4543, %v4544
        %v4546 = vsel %vm4226, %v3617, 0.0
        %v4547 = vadd.f32 %v4545, %v4546
        %v4548 = vsel %vm4226, %v3618, 0.0
        %v4549 = vadd.f32 %v4547, %v4548
        %v4550 = vsel %vm4226, %v3619, 0.0
        %v4551 = vadd.f32 %v4549, %v4550
        %v4552 = vsel %vm4226, %v3620, 0.0
        %v4553 = vadd.f32 %v4551, %v4552
        %v4554 = vsel %vm4226, %v3621, 0.0
        %v4555 = vadd.f32 %v4553, %v4554
        %v4556 = vsel %vm4226, %v3622, 0.0
        %v4557 = vadd.f32 %v4555, %v4556
        %v4558 = vsel %vm4226, %v3623, 0.0
        %v4559 = vadd.f32 %v4557, %v4558
        %v4560 = vsel %vm4226, %v3624, 0.0
        %v4561 = vadd.f32 %v4559, %v4560
        %v4562 = vsel %vm4226, %v3625, 0.0
        %v4563 = vadd.f32 %v4561, %v4562
        %v4564 = vsel %vm4226, %v3626, 0.0
        %v4565 = vadd.f32 %v4563, %v4564
        %v4566 = vsel %vm4226, %v3627, 0.0
        %v4567 = vadd.f32 %v4565, %v4566
        %v4568 = vsel %vm4226, %v3628, 0.0
        %v4569 = vadd.f32 %v4567, %v4568
        %v4570 = vsel %vm4226, %v3629, 0.0
        %v4571 = vadd.f32 %v4569, %v4570
        %v4572 = vsel %vm4226, %v3630, 0.0
        %v4573 = vadd.f32 %v4571, %v4572
        %v4574 = vsel %vm4226, %v3631, 0.0
        %v4575 = vadd.f32 %v4573, %v4574
        %v4576 = vsel %vm4226, %v3632, 0.0
        %v4577 = vadd.f32 %v4575, %v4576
        %v4578 = vsel %vm4226, %v3633, 0.0
        %v4579 = vadd.f32 %v4577, %v4578
        %v4580 = vsel %vm4226, %v3634, 0.0
        %v4581 = vadd.f32 %v4579, %v4580
        %v4582 = vsel %vm4226, %v3635, 0.0
        %v4583 = vadd.f32 %v4581, %v4582
        %v4584 = vsel %vm4226, %v3636, 0.0
        %v4585 = vadd.f32 %v4583, %v4584
        %v4586 = vsel %vm4226, %v3637, 0.0
        %v4587 = vadd.f32 %v4585, %v4586
        %v4588 = vsel %vm4226, %v3638, 0.0
        %v4589 = vadd.f32 %v4587, %v4588
        %v4590 = vsel %vm4226, %v3639, 0.0
        %v4591 = vadd.f32 %v4589, %v4590
        %v4592 = vsel %vm4226, %v3640, 0.0
        %v4593 = vadd.f32 %v4591, %v4592
        %v4594 = vsel %vm4226, %v3641, 0.0
        %v4595 = vadd.f32 %v4593, %v4594
        %v4596 = vsel %vm4226, %v3642, 0.0
        %v4597 = vadd.f32 %v4595, %v4596
        %v4598 = vsel %vm4226, %v3643, 0.0
        %v4599 = vadd.f32 %v4597, %v4598
        %v4600 = vsel %vm4226, %v3644, 0.0
        %v4601 = vadd.f32 %v4599, %v4600
        %v4602 = vsel %vm4226, %v3645, 0.0
        %v4603 = vadd.f32 %v4601, %v4602
        %v4604 = vsel %vm4226, %v3646, 0.0
        %v4605 = vadd.f32 %v4603, %v4604
        %v4606 = vsel %vm4226, %v3647, 0.0
        %v4607 = vadd.f32 %v4605, %v4606
        %v4608 = vsel %vm4226, %v3648, 0.0
        %v4609 = vadd.f32 %v4607, %v4608
        %v4610 = vsel %vm4226, %v3649, 0.0
        %v4611 = vadd.f32 %v4609, %v4610
        %v4612 = vsel %vm4226, %v3650, 0.0
        %v4613 = vadd.f32 %v4611, %v4612
        %v4614 = vsel %vm4226, %v3651, 0.0
        %v4615 = vadd.f32 %v4613, %v4614
        %v4616 = vsel %vm4226, %v3652, 0.0
        %v4617 = vadd.f32 %v4615, %v4616
        %v4618 = vsel %vm4226, %v3653, 0.0
        %v4619 = vadd.f32 %v4617, %v4618
        %v4620 = vsel %vm4226, %v3654, 0.0
        %v4621 = vadd.f32 %v4619, %v4620
        %v4622 = vsel %vm4226, %v3655, 0.0
        %v4623 = vadd.f32 %v4621, %v4622
        %v4624 = vsel %vm4226, %v3656, 0.0
        %v4625 = vadd.f32 %v4623, %v4624
        %v4626 = vsel %vm4226, %v3657, 0.0
        %v4627 = vadd.f32 %v4625, %v4626
        %v4628 = vsel %vm4226, %v3658, 0.0
        %v4629 = vadd.f32 %v4627, %v4628
        %v4630 = vsel %vm4226, %v3659, 0.0
        %v4631 = vadd.f32 %v4629, %v4630
        %v4632 = vsel %vm4226, %v3660, 0.0
        %v4633 = vadd.f32 %v4631, %v4632
        %v4634 = vsel %vm4226, %v3661, 0.0
        %v4635 = vadd.f32 %v4633, %v4634
        %v4636 = vsel %vm4226, %v3662, 0.0
        %v4637 = vadd.f32 %v4635, %v4636
        %v4638 = vsel %vm4226, %v3663, 0.0
        %v4639 = vadd.f32 %v4637, %v4638
        %v4640 = vsel %vm4226, %v3664, 0.0
        %v4641 = vadd.f32 %v4639, %v4640
        %v4642 = vsel %vm4226, %v3665, 0.0
        %v4643 = vadd.f32 %v4641, %v4642
        %v4644 = vsel %vm4226, %v3666, 0.0
        %v4645 = vadd.f32 %v4643, %v4644
        %v4646 = vsel %vm4226, %v3667, 0.0
        %v4647 = vadd.f32 %v4645, %v4646
        %v4648 = vsel %vm4226, %v3668, 0.0
        %v4649 = vadd.f32 %v4647, %v4648
        %v4650 = vsel %vm4226, %v3669, 0.0
        %v4651 = vadd.f32 %v4649, %v4650
        %v4652 = vsel %vm4226, %v3670, 0.0
        %v4653 = vadd.f32 %v4651, %v4652
        %v4654 = vsel %vm4226, %v3671, 0.0
        %v4655 = vadd.f32 %v4653, %v4654
        %v4656 = vsel %vm4226, %v3672, 0.0
        %v4657 = vadd.f32 %v4655, %v4656
        %v4658 = vsel %vm4226, %v3673, 0.0
        %v4659 = vadd.f32 %v4657, %v4658
        %v4660 = vsel %vm4226, %v3674, 0.0
        %v4661 = vadd.f32 %v4659, %v4660
        %v4662 = vsel %vm4226, %v3675, 0.0
        %v4663 = vadd.f32 %v4661, %v4662
        %v4664 = vsel %vm4226, %v3676, 0.0
        %v4665 = vadd.f32 %v4663, %v4664
        %v4666 = vsel %vm4226, %v3677, 0.0
        %v4667 = vadd.f32 %v4665, %v4666
        %v4668 = vsel %vm4226, %v3678, 0.0
        %v4669 = vadd.f32 %v4667, %v4668
        %v4670 = vsel %vm4226, %v3679, 0.0
        %v4671 = vadd.f32 %v4669, %v4670
        %v4672 = vsel %vm4226, %v3680, 0.0
        %v4673 = vadd.f32 %v4671, %v4672
        %v4674 = vsel %vm4226, %v3681, 0.0
        %v4675 = vadd.f32 %v4673, %v4674
        %v4676 = vsel %vm4226, %v3682, 0.0
        %v4677 = vadd.f32 %v4675, %v4676
        %v4678 = vsel %vm4226, %v3683, 0.0
        %v4679 = vadd.f32 %v4677, %v4678
        %v4680 = vsel %vm4226, %v3684, 0.0
        %v4681 = vadd.f32 %v4679, %v4680
        %v4682 = vsel %vm4226, %v3685, 0.0
        %v4683 = vadd.f32 %v4681, %v4682
        %v4684 = vsel %vm4226, %v3686, 0.0
        %v4685 = vadd.f32 %v4683, %v4684
        %v4686 = vsel %vm4226, %v3687, 0.0
        %v4687 = vadd.f32 %v4685, %v4686
        %v4688 = vsel %vm4226, %v3688, 0.0
        %v4689 = vadd.f32 %v4687, %v4688
        %v4690 = vsel %vm4226, %v3689, 0.0
        %v4691 = vadd.f32 %v4689, %v4690
        %v4692 = vsel %vm4226, %v3690, 0.0
        %v4693 = vadd.f32 %v4691, %v4692
        %v4694 = vsel %vm4226, %v3691, 0.0
        %v4695 = vadd.f32 %v4693, %v4694
        %v4696 = vsel %vm4226, %v3692, 0.0
        %v4697 = vadd.f32 %v4695, %v4696
        %v4698 = vsel %vm4226, %v3693, 0.0
        %v4699 = vadd.f32 %v4697, %v4698
        %v4700 = vsel %vm4226, %v3694, 0.0
        %v4701 = vadd.f32 %v4699, %v4700
        %v4702 = vsel %vm4226, %v3695, 0.0
        %v4703 = vadd.f32 %v4701, %v4702
        %v4704 = vsel %vm4226, %v3696, 0.0
        %v4705 = vadd.f32 %v4703, %v4704
        %v4706 = vsel %vm4226, %v3697, 0.0
        %v4707 = vadd.f32 %v4705, %v4706
        %v4708 = vsel %vm4226, %v3698, 0.0
        %v4709 = vadd.f32 %v4707, %v4708
        %v4710 = vsel %vm4226, %v3699, 0.0
        %v4711 = vadd.f32 %v4709, %v4710
        %v4712 = vsel %vm4226, %v3700, 0.0
        %v4713 = vadd.f32 %v4711, %v4712
        %v4714 = vsel %vm4226, %v3701, 0.0
        %v4715 = vadd.f32 %v4713, %v4714
        %v4716 = vsel %vm4226, %v3702, 0.0
        %v4717 = vadd.f32 %v4715, %v4716
        %v4718 = vsel %vm4226, %v3703, 0.0
        %v4719 = vadd.f32 %v4717, %v4718
        %v4720 = vsel %vm4226, %v3704, 0.0
        %v4721 = vadd.f32 %v4719, %v4720
        %v4722 = vsel %vm4226, %v3705, 0.0
        %v4723 = vadd.f32 %v4721, %v4722
        %v4724 = vsel %vm4226, %v3706, 0.0
        %v4725 = vadd.f32 %v4723, %v4724
        %v4726 = vsel %vm4226, %v3707, 0.0
        %v4727 = vadd.f32 %v4725, %v4726
        %v4728 = vsel %vm4226, %v3708, 0.0
        %v4729 = vadd.f32 %v4727, %v4728
        %v4730 = vsel %vm4226, %v3709, 0.0
        %v4731 = vadd.f32 %v4729, %v4730
        %v4732 = vsel %vm4226, %v3710, 0.0
        %v4733 = vadd.f32 %v4731, %v4732
        %v4734 = vsel %vm4226, %v3711, 0.0
        %v4735 = vadd.f32 %v4733, %v4734
        %v4736 = vsel %vm4226, %v3712, 0.0
        %v4737 = vadd.f32 %v4735, %v4736
        %v4738 = vsel %vm4226, %v3713, 0.0
        %v4739 = vadd.f32 %v4737, %v4738
        %v4740 = vsel %vm4226, %v3714, 0.0
        %v4741 = vadd.f32 %v4739, %v4740
        %v4742 = vsel %vm4226, %v3715, 0.0
        %v4743 = vadd.f32 %v4741, %v4742
        %v4744 = vsel %vm4226, %v3716, 0.0
        %v4745 = vadd.f32 %v4743, %v4744
        %v4746 = vsel %vm4226, %v3717, 0.0
        %v4747 = vadd.f32 %v4745, %v4746
        %v4748 = vsel %vm4226, %v3718, 0.0
        %v4749 = vadd.f32 %v4747, %v4748
        %v4750 = vsel %vm4226, %v3719, 0.0
        %v4751 = vadd.f32 %v4749, %v4750
        %v4752 = vsel %vm4226, %v3720, 0.0
        %v4753 = vadd.f32 %v4751, %v4752
        %v4754 = vsel %vm4226, %v3721, 0.0
        %v4755 = vadd.f32 %v4753, %v4754
        %v4756 = vsel %vm4226, %v3722, 0.0
        %v4757 = vadd.f32 %v4755, %v4756
        %v4758 = vsel %vm4226, %v3723, 0.0
        %v4759 = vadd.f32 %v4757, %v4758
        %v4760 = vsel %vm4226, %v3724, 0.0
        %v4761 = vadd.f32 %v4759, %v4760
        %v4762 = vsel %vm4226, %v3725, 0.0
        %v4763 = vadd.f32 %v4761, %v4762
        %v4764 = vsel %vm4226, %v3726, 0.0
        %v4765 = vadd.f32 %v4763, %v4764
        %v4766 = vsel %vm4226, %v3727, 0.0
        %v4767 = vadd.f32 %v4765, %v4766
        %v4768 = vsel %vm4226, %v3728, 0.0
        %v4769 = vadd.f32 %v4767, %v4768
        %v4770 = vsel %vm4226, %v3729, 0.0
        %v4771 = vadd.f32 %v4769, %v4770
        %v4772 = vsel %vm4226, %v3730, 0.0
        %v4773 = vadd.f32 %v4771, %v4772
        %v4774 = vsel %vm4226, %v3731, 0.0
        %v4775 = vadd.f32 %v4773, %v4774
        %v4776 = vsel %vm4226, %v3732, 0.0
        %v4777 = vadd.f32 %v4775, %v4776
        %v4778 = vsel %vm4226, %v3733, 0.0
        %v4779 = vadd.f32 %v4777, %v4778
        %v4780 = vsel %vm4226, %v3734, 0.0
        %v4781 = vadd.f32 %v4779, %v4780
        %v4782 = vsel %vm4226, %v3735, 0.0
        %v4783 = vadd.f32 %v4781, %v4782
        %v4784 = vsel %vm4226, %v3736, 0.0
        %v4785 = vadd.f32 %v4783, %v4784
        %v4786 = vsel %vm4226, %v3737, 0.0
        %v4787 = vadd.f32 %v4785, %v4786
        %v4788 = vsel %vm4226, %v3738, 0.0
        %v4789 = vadd.f32 %v4787, %v4788
        %v4790 = vsel %vm4226, %v3739, 0.0
        %v4791 = vadd.f32 %v4789, %v4790
        %v4792 = vsel %vm4226, %v3740, 0.0
        %v4793 = vadd.f32 %v4791, %v4792
        %v4794 = vsel %vm4226, %v3741, 0.0
        %v4795 = vadd.f32 %v4793, %v4794
        %v4796 = vsel %vm4226, %v3742, 0.0
        %v4797 = vadd.f32 %v4795, %v4796
        %v4798 = vsel %vm4226, %v3743, 0.0
        %v4799 = vadd.f32 %v4797, %v4798
        %v4800 = vsel %vm4226, %v3744, 0.0
        %v4801 = vadd.f32 %v4799, %v4800
        %v4802 = vsel %vm4226, %v3745, 0.0
        %v4803 = vadd.f32 %v4801, %v4802
        %v4804 = vsel %vm4226, %v3746, 0.0
        %v4805 = vadd.f32 %v4803, %v4804
        %v4806 = vsel %vm4226, %v3747, 0.0
        %v4807 = vadd.f32 %v4805, %v4806
        %v4808 = vsel %vm4226, %v3748, 0.0
        %v4809 = vadd.f32 %v4807, %v4808
        %v4810 = vsel %vm4226, %v3749, 0.0
        %v4811 = vadd.f32 %v4809, %v4810
        %v4812 = vsel %vm4226, %v3750, 0.0
        %v4813 = vadd.f32 %v4811, %v4812
        %v4814 = vsel %vm4226, %v3751, 0.0
        %v4815 = vadd.f32 %v4813, %v4814
        %v4816 = vsel %vm4226, %v3752, 0.0
        %v4817 = vadd.f32 %v4815, %v4816
        %v4818 = vsel %vm4226, %v3753, 0.0
        %v4819 = vadd.f32 %v4817, %v4818
        %v4820 = vsel %vm4226, %v3754, 0.0
        %v4821 = vadd.f32 %v4819, %v4820
        %v4822 = vsel %vm4226, %v3755, 0.0
        %v4823 = vadd.f32 %v4821, %v4822
        %v4824 = vsel %vm4226, %v3756, 0.0
        %v4825 = vadd.f32 %v4823, %v4824
        %v4826 = vsel %vm4226, %v3757, 0.0
        %v4827 = vadd.f32 %v4825, %v4826
        %v4828 = vsel %vm4226, %v3758, 0.0
        %v4829 = vadd.f32 %v4827, %v4828
        %v4830 = vsel %vm4226, %v3759, 0.0
        %v4831 = vadd.f32 %v4829, %v4830
        %v4832 = vsel %vm4226, %v3760, 0.0
        %v4833 = vadd.f32 %v4831, %v4832
        %v4834 = vsel %vm4226, %v3761, 0.0
        %v4835 = vadd.f32 %v4833, %v4834
        %v4836 = vsel %vm4226, %v3762, 0.0
        %v4837 = vadd.f32 %v4835, %v4836
        %v4838 = vsel %vm4226, %v3763, 0.0
        %v4839 = vadd.f32 %v4837, %v4838
        %v4840 = vsel %vm4226, %v3764, 0.0
        %v4841 = vadd.f32 %v4839, %v4840
        %v4842 = vsel %vm4226, %v3765, 0.0
        %v4843 = vadd.f32 %v4841, %v4842
        %v4844 = vsel %vm4226, %v3766, 0.0
        %v4845 = vadd.f32 %v4843, %v4844
        %v4846 = vsel %vm4226, %v3767, 0.0
        %v4847 = vadd.f32 %v4845, %v4846
        %v4848 = vsel %vm4226, %v3768, 0.0
        %v4849 = vadd.f32 %v4847, %v4848
        %v4850 = vsel %vm4226, %v3769, 0.0
        %v4851 = vadd.f32 %v4849, %v4850
        %v4852 = vsel %vm4226, %v3770, 0.0
        %v4853 = vadd.f32 %v4851, %v4852
        %v4854 = vsel %vm4226, %v3771, 0.0
        %v4855 = vadd.f32 %v4853, %v4854
        %v4856 = vsel %vm4226, %v3772, 0.0
        %v4857 = vadd.f32 %v4855, %v4856
        %v4858 = vsel %vm4226, %v3773, 0.0
        %v4859 = vadd.f32 %v4857, %v4858
        %v4860 = vsel %vm4226, %v3774, 0.0
        %v4861 = vadd.f32 %v4859, %v4860
        %v4862 = vsel %vm4226, %v3775, 0.0
        %v4863 = vadd.f32 %v4861, %v4862
        %v4864 = vsel %vm4226, %v3776, 0.0
        %v4865 = vadd.f32 %v4863, %v4864
        %v4866 = vsel %vm4226, %v3777, 0.0
        %v4867 = vadd.f32 %v4865, %v4866
        %v4868 = vsel %vm4226, %v3778, 0.0
        %v4869 = vadd.f32 %v4867, %v4868
        %v4870 = vsel %vm4226, %v3779, 0.0
        %v4871 = vadd.f32 %v4869, %v4870
        %v4872 = vsel %vm4226, %v3780, 0.0
        %v4873 = vadd.f32 %v4871, %v4872
        %v4874 = vsel %vm4226, %v3781, 0.0
        %v4875 = vadd.f32 %v4873, %v4874
        %v4876 = vsel %vm4226, %v3782, 0.0
        %v4877 = vadd.f32 %v4875, %v4876
        %v4878 = vsel %vm4226, %v3783, 0.0
        %v4879 = vadd.f32 %v4877, %v4878
        %v4880 = vsel %vm4226, %v3784, 0.0
        %v4881 = vadd.f32 %v4879, %v4880
        %v4882 = vsel %vm4226, %v3785, 0.0
        %v4883 = vadd.f32 %v4881, %v4882
        %v4884 = vsel %vm4226, %v3786, 0.0
        %v4885 = vadd.f32 %v4883, %v4884
        %v4886 = vsel %vm4226, %v3787, 0.0
        %v4887 = vadd.f32 %v4885, %v4886
        %v4888 = vsel %vm4226, %v3788, 0.0
        %v4889 = vadd.f32 %v4887, %v4888
        %v4890 = vsel %vm4226, %v3789, 0.0
        %v4891 = vadd.f32 %v4889, %v4890
        %v4892 = vsel %vm4226, %v3790, 0.0
        %v4893 = vadd.f32 %v4891, %v4892
        %v4894 = vsel %vm4226, %v3791, 0.0
        %v4895 = vadd.f32 %v4893, %v4894
        %v4896 = vsel %vm4226, %v3792, 0.0
        %v4897 = vadd.f32 %v4895, %v4896
        %v4898 = vsel %vm4226, %v3793, 0.0
        %v4899 = vadd.f32 %v4897, %v4898
        %v4900 = vsel %vm4226, %v3794, 0.0
        %v4901 = vadd.f32 %v4899, %v4900
        %v4902 = vsel %vm4226, %v3795, 0.0
        %v4903 = vadd.f32 %v4901, %v4902
        %v4904 = vsel %vm4226, %v3796, 0.0
        %v4905 = vadd.f32 %v4903, %v4904
        %v4906 = vsel %vm4226, %v3797, 0.0
        %v4907 = vadd.f32 %v4905, %v4906
        %v4908 = vsel %vm4226, %v3798, 0.0
        %v4909 = vadd.f32 %v4907, %v4908
        %v4910 = vsel %vm4226, %v3799, 0.0
        %v4911 = vadd.f32 %v4909, %v4910
        %v4912 = vsel %vm4226, %v3800, 0.0
        %v4913 = vadd.f32 %v4911, %v4912
        %v4914 = vsel %vm4226, %v3801, 0.0
        %v4915 = vadd.f32 %v4913, %v4914
        %v4916 = vsel %vm4226, %v3802, 0.0
        %v4917 = vadd.f32 %v4915, %v4916
        %v4918 = vsel %vm4226, %v3803, 0.0
        %v4919 = vadd.f32 %v4917, %v4918
        %v4920 = vsel %vm4226, %v3804, 0.0
        %v4921 = vadd.f32 %v4919, %v4920
        %v4922 = vsel %vm4226, %v3805, 0.0
        %v4923 = vadd.f32 %v4921, %v4922
        %v4924 = vsel %vm4226, %v3806, 0.0
        %v4925 = vadd.f32 %v4923, %v4924
        %v4926 = vsel %vm4226, %v3807, 0.0
        %v4927 = vadd.f32 %v4925, %v4926
        %v4928 = vsel %vm4226, %v3808, 0.0
        %v4929 = vadd.f32 %v4927, %v4928
        %v4930 = vsel %vm4226, %v3809, 0.0
        %v4931 = vadd.f32 %v4929, %v4930
        %v4932 = vsel %vm4226, %v3810, 0.0
        %v4933 = vadd.f32 %v4931, %v4932
        %v4934 = vsel %vm4226, %v3811, 0.0
        %v4935 = vadd.f32 %v4933, %v4934
        %v4936 = vsel %vm4226, %v3812, 0.0
        %v4937 = vadd.f32 %v4935, %v4936
        %v4938 = vsel %vm4226, %v3813, 0.0
        %v4939 = vadd.f32 %v4937, %v4938
        %v4940 = vsel %vm4226, %v3814, 0.0
        %v4941 = vadd.f32 %v4939, %v4940
        %v4942 = vsel %vm4226, %v3815, 0.0
        %v4943 = vadd.f32 %v4941, %v4942
        %v4944 = vsel %vm4226, %v3816, 0.0
        %v4945 = vadd.f32 %v4943, %v4944
        %v4946 = vsel %vm4226, %v3817, 0.0
        %v4947 = vadd.f32 %v4945, %v4946
        %v4948 = vsel %vm4226, %v3818, 0.0
        %v4949 = vadd.f32 %v4947, %v4948
        %v4950 = vsel %vm4226, %v3819, 0.0
        %v4951 = vadd.f32 %v4949, %v4950
        %v4952 = vsel %vm4226, %v3820, 0.0
        %v4953 = vadd.f32 %v4951, %v4952
        %v4954 = vsel %vm4226, %v3821, 0.0
        %v4955 = vadd.f32 %v4953, %v4954
        %v4956 = vsel %vm4226, %v3822, 0.0
        %v4957 = vadd.f32 %v4955, %v4956
        %v4958 = vsel %vm4226, %v3823, 0.0
        %v4959 = vadd.f32 %v4957, %v4958
        %v4960 = vsel %vm4226, %v3824, 0.0
        %v4961 = vadd.f32 %v4959, %v4960
        %v4962 = vsel %vm4226, %v3825, 0.0
        %v4963 = vadd.f32 %v4961, %v4962
        %v4964 = vsel %vm4226, %v3826, 0.0
        %v4965 = vadd.f32 %v4963, %v4964
        %v4966 = vsel %vm4226, %v3827, 0.0
        %v4967 = vadd.f32 %v4965, %v4966
        %v4968 = vsel %vm4226, %v3828, 0.0
        %v4969 = vadd.f32 %v4967, %v4968
        %v4970 = vsel %vm4226, %v3829, 0.0
        %v4971 = vadd.f32 %v4969, %v4970
        %v4972 = vsel %vm4226, %v3830, 0.0
        %v4973 = vadd.f32 %v4971, %v4972
        %v4974 = vsel %vm4226, %v3831, 0.0
        %v4975 = vadd.f32 %v4973, %v4974
        %v4976 = vsel %vm4226, %v3832, 0.0
        %v4977 = vadd.f32 %v4975, %v4976
        %v4978 = vsel %vm4226, %v3833, 0.0
        %v4979 = vadd.f32 %v4977, %v4978
        %v4980 = vsel %vm4226, %v3834, 0.0
        %v4981 = vadd.f32 %v4979, %v4980
        %v4982 = vsel %vm4226, %v3835, 0.0
        %v4983 = vadd.f32 %v4981, %v4982
        %v4984 = vsel %vm4226, %v3836, 0.0
        %v4985 = vadd.f32 %v4983, %v4984
        %v4986 = vsel %vm4226, %v3837, 0.0
        %v4987 = vadd.f32 %v4985, %v4986
        %v4988 = vsel %vm4226, %v3838, 0.0
        %v4989 = vadd.f32 %v4987, %v4988
        %v4990 = vsel %vm4226, %v3839, 0.0
        %v4991 = vadd.f32 %v4989, %v4990
        %v4992 = vsel %vm4226, %v3840, 0.0
        %v4993 = vadd.f32 %v4991, %v4992
        %4994 = vadd.xlane.f32.xlu0 %v4993
        %v4995 = vpop.xlane.xlu0 %4994
        %v4996 = vld [vmem:[#allocation2] sm:$0xff]
        %v4997 = vld [vmem:[#allocation2 + $0x8] sm:$0x3]
        %v4998 = vadd.f32 %v4996, %v4225
        %v4999 = vadd.f32 %v4997, %v4995
        %vm5000 = vcmask 7168
        %5001 = vst.msk [vmem:[#allocation2] sm:$0xff] %vm5000, %v4998
        %vm5002 = vcmask 1024
        %5003 = vst.msk [vmem:[#allocation2 + $0x8] sm:$0x3] %vm5002, %v4999
        %s5004 = scalar_lea.vmem %s186, 1 [#allocation3]
        %v5005 = vld [vmem:[%s5004] ss:$2 sm:$0xff]
        %s5006 = scalar_lea.vmem %s186, 17 [#allocation3]
        %v5007 = vld [vmem:[%s5006] ss:$2 sm:$0xff]
        %s5008 = scalar_lea.vmem %s186, 33 [#allocation3]
        %v5009 = vld [vmem:[%s5008] ss:$2 sm:$0xff]
        %s5010 = scalar_lea.vmem %s186, 49 [#allocation3]
        %v5011 = vld [vmem:[%s5010] ss:$2 sm:$0xff]
        %s5012 = scalar_lea.vmem %s186, 65 [#allocation3]
        %v5013 = vld [vmem:[%s5012] ss:$2 sm:$0xff]
        %s5014 = scalar_lea.vmem %s186, 81 [#allocation3]
        %v5015 = vld [vmem:[%s5014] ss:$2 sm:$0xff]
        %s5016 = scalar_lea.vmem %s186, 97 [#allocation3]
        %v5017 = vld [vmem:[%s5016] ss:$2 sm:$0xff]
        %s5018 = scalar_lea.vmem %s186, 113 [#allocation3]
        %v5019 = vld [vmem:[%s5018] ss:$2 sm:$0xff]
        %s5020 = scalar_lea.vmem %s186, 129 [#allocation3]
        %v5021 = vld [vmem:[%s5020] ss:$2 sm:$0xff]
        %s5022 = scalar_lea.vmem %s186, 145 [#allocation3]
        %v5023 = vld [vmem:[%s5022] ss:$2 sm:$0xff]
        %s5024 = scalar_lea.vmem %s186, 161 [#allocation3]
        %v5025 = vld [vmem:[%s5024] ss:$2 sm:$0xff]
        %s5026 = scalar_lea.vmem %s186, 177 [#allocation3]
        %v5027 = vld [vmem:[%s5026] ss:$2 sm:$0xff]
        %s5028 = scalar_lea.vmem %s186, 193 [#allocation3]
        %v5029 = vld [vmem:[%s5028] ss:$2 sm:$0xff]
        %s5030 = scalar_lea.vmem %s186, 209 [#allocation3]
        %v5031 = vld [vmem:[%s5030] ss:$2 sm:$0xff]
        %s5032 = scalar_lea.vmem %s186, 225 [#allocation3]
        %v5033 = vld [vmem:[%s5032] ss:$2 sm:$0xff]
        %s5034 = scalar_lea.vmem %s186, 241 [#allocation3]
        %v5035 = vld [vmem:[%s5034] ss:$2 sm:$0xff]
        %s5036 = scalar_lea.vmem %s186, 257 [#allocation3]
        %v5037 = vld [vmem:[%s5036] ss:$2 sm:$0xff]
        %s5038 = scalar_lea.vmem %s186, 273 [#allocation3]
        %v5039 = vld [vmem:[%s5038] ss:$2 sm:$0xff]
        %s5040 = scalar_lea.vmem %s186, 289 [#allocation3]
        %v5041 = vld [vmem:[%s5040] ss:$2 sm:$0xff]
        %s5042 = scalar_lea.vmem %s186, 305 [#allocation3]
        %v5043 = vld [vmem:[%s5042] ss:$2 sm:$0xff]
        %s5044 = scalar_lea.vmem %s186, 321 [#allocation3]
        %v5045 = vld [vmem:[%s5044] ss:$2 sm:$0xff]
        %s5046 = scalar_lea.vmem %s186, 337 [#allocation3]
        %v5047 = vld [vmem:[%s5046] ss:$2 sm:$0xff]
        %s5048 = scalar_lea.vmem %s186, 353 [#allocation3]
        %v5049 = vld [vmem:[%s5048] ss:$2 sm:$0xff]
        %s5050 = scalar_lea.vmem %s186, 369 [#allocation3]
        %v5051 = vld [vmem:[%s5050] ss:$2 sm:$0xff]
        %s5052 = scalar_lea.vmem %s186, 385 [#allocation3]
        %v5053 = vld [vmem:[%s5052] ss:$2 sm:$0xff]
        %s5054 = scalar_lea.vmem %s186, 401 [#allocation3]
        %v5055 = vld [vmem:[%s5054] ss:$2 sm:$0xff]
        %s5056 = scalar_lea.vmem %s186, 417 [#allocation3]
        %v5057 = vld [vmem:[%s5056] ss:$2 sm:$0xff]
        %s5058 = scalar_lea.vmem %s186, 433 [#allocation3]
        %v5059 = vld [vmem:[%s5058] ss:$2 sm:$0xff]
        %s5060 = scalar_lea.vmem %s186, 449 [#allocation3]
        %v5061 = vld [vmem:[%s5060] ss:$2 sm:$0xff]
        %s5062 = scalar_lea.vmem %s186, 465 [#allocation3]
        %v5063 = vld [vmem:[%s5062] ss:$2 sm:$0xff]
        %s5064 = scalar_lea.vmem %s186, 481 [#allocation3]
        %v5065 = vld [vmem:[%s5064] ss:$2 sm:$0xff]
        %s5066 = scalar_lea.vmem %s186, 497 [#allocation3]
        %v5067 = vld [vmem:[%s5066] ss:$2 sm:$0xff]
        %s5068 = scalar_lea.vmem %s186, 513 [#allocation3]
        %v5069 = vld [vmem:[%s5068] ss:$2 sm:$0xff]
        %s5070 = scalar_lea.vmem %s186, 529 [#allocation3]
        %v5071 = vld [vmem:[%s5070] ss:$2 sm:$0xff]
        %s5072 = scalar_lea.vmem %s186, 545 [#allocation3]
        %v5073 = vld [vmem:[%s5072] ss:$2 sm:$0xff]
        %s5074 = scalar_lea.vmem %s186, 561 [#allocation3]
        %v5075 = vld [vmem:[%s5074] ss:$2 sm:$0xff]
        %s5076 = scalar_lea.vmem %s186, 577 [#allocation3]
        %v5077 = vld [vmem:[%s5076] ss:$2 sm:$0xff]
        %s5078 = scalar_lea.vmem %s186, 593 [#allocation3]
        %v5079 = vld [vmem:[%s5078] ss:$2 sm:$0xff]
        %s5080 = scalar_lea.vmem %s186, 609 [#allocation3]
        %v5081 = vld [vmem:[%s5080] ss:$2 sm:$0xff]
        %s5082 = scalar_lea.vmem %s186, 625 [#allocation3]
        %v5083 = vld [vmem:[%s5082] ss:$2 sm:$0xff]
        %s5084 = scalar_lea.vmem %s186, 641 [#allocation3]
        %v5085 = vld [vmem:[%s5084] ss:$2 sm:$0xff]
        %s5086 = scalar_lea.vmem %s186, 657 [#allocation3]
        %v5087 = vld [vmem:[%s5086] ss:$2 sm:$0xff]
        %s5088 = scalar_lea.vmem %s186, 673 [#allocation3]
        %v5089 = vld [vmem:[%s5088] ss:$2 sm:$0xff]
        %s5090 = scalar_lea.vmem %s186, 689 [#allocation3]
        %v5091 = vld [vmem:[%s5090] ss:$2 sm:$0xff]
        %s5092 = scalar_lea.vmem %s186, 705 [#allocation3]
        %v5093 = vld [vmem:[%s5092] ss:$2 sm:$0xff]
        %s5094 = scalar_lea.vmem %s186, 721 [#allocation3]
        %v5095 = vld [vmem:[%s5094] ss:$2 sm:$0xff]
        %s5096 = scalar_lea.vmem %s186, 737 [#allocation3]
        %v5097 = vld [vmem:[%s5096] ss:$2 sm:$0xff]
        %s5098 = scalar_lea.vmem %s186, 753 [#allocation3]
        %v5099 = vld [vmem:[%s5098] ss:$2 sm:$0xff]
        %v5148 = vlaneseq
        %v5149 = vshrl.u32 %v5148, 7
        %v5150 = vsub.s32 0, %v5149
        %v5151 = vrot.slane %v5005, %v5150
        %v5152 = vlaneseq
        %v5153 = vshrl.u32 %v5152, 7
        %v5154 = vsub.s32 1, %v5153
        %v5155 = vrot.slane %v5005, %v5154
        %v5156 = vlaneseq
        %v5157 = vshrl.u32 %v5156, 7
        %v5158 = vsub.s32 2, %v5157
        %v5159 = vrot.slane %v5005, %v5158
        %v5160 = vlaneseq
        %v5161 = vshrl.u32 %v5160, 7
        %v5162 = vsub.s32 3, %v5161
        %v5163 = vrot.slane %v5005, %v5162
        %v5164 = vlaneseq
        %v5165 = vshrl.u32 %v5164, 7
        %v5166 = vsub.s32 4, %v5165
        %v5167 = vrot.slane %v5005, %v5166
        %v5168 = vlaneseq
        %v5169 = vshrl.u32 %v5168, 7
        %v5170 = vsub.s32 5, %v5169
        %v5171 = vrot.slane %v5005, %v5170
        %v5172 = vlaneseq
        %v5173 = vshrl.u32 %v5172, 7
        %v5174 = vsub.s32 6, %v5173
        %v5175 = vrot.slane %v5005, %v5174
        %v5176 = vlaneseq
        %v5177 = vshrl.u32 %v5176, 7
        %v5178 = vsub.s32 7, %v5177
        %v5179 = vrot.slane %v5005, %v5178
        %v5180 = vlaneseq
        %v5181 = vshrl.u32 %v5180, 7
        %v5182 = vsub.s32 0, %v5181
        %v5183 = vrot.slane %v5007, %v5182
        %v5184 = vlaneseq
        %v5185 = vshrl.u32 %v5184, 7
        %v5186 = vsub.s32 1, %v5185
        %v5187 = vrot.slane %v5007, %v5186
        %v5188 = vlaneseq
        %v5189 = vshrl.u32 %v5188, 7
        %v5190 = vsub.s32 2, %v5189
        %v5191 = vrot.slane %v5007, %v5190
        %v5192 = vlaneseq
        %v5193 = vshrl.u32 %v5192, 7
        %v5194 = vsub.s32 3, %v5193
        %v5195 = vrot.slane %v5007, %v5194
        %v5196 = vlaneseq
        %v5197 = vshrl.u32 %v5196, 7
        %v5198 = vsub.s32 4, %v5197
        %v5199 = vrot.slane %v5007, %v5198
        %v5200 = vlaneseq
        %v5201 = vshrl.u32 %v5200, 7
        %v5202 = vsub.s32 5, %v5201
        %v5203 = vrot.slane %v5007, %v5202
        %v5204 = vlaneseq
        %v5205 = vshrl.u32 %v5204, 7
        %v5206 = vsub.s32 6, %v5205
        %v5207 = vrot.slane %v5007, %v5206
        %v5208 = vlaneseq
        %v5209 = vshrl.u32 %v5208, 7
        %v5210 = vsub.s32 7, %v5209
        %v5211 = vrot.slane %v5007, %v5210
        %v5212 = vlaneseq
        %v5213 = vshrl.u32 %v5212, 7
        %v5214 = vsub.s32 0, %v5213
        %v5215 = vrot.slane %v5009, %v5214
        %v5216 = vlaneseq
        %v5217 = vshrl.u32 %v5216, 7
        %v5218 = vsub.s32 1, %v5217
        %v5219 = vrot.slane %v5009, %v5218
        %v5220 = vlaneseq
        %v5221 = vshrl.u32 %v5220, 7
        %v5222 = vsub.s32 2, %v5221
        %v5223 = vrot.slane %v5009, %v5222
        %v5224 = vlaneseq
        %v5225 = vshrl.u32 %v5224, 7
        %v5226 = vsub.s32 3, %v5225
        %v5227 = vrot.slane %v5009, %v5226
        %v5228 = vlaneseq
        %v5229 = vshrl.u32 %v5228, 7
        %v5230 = vsub.s32 4, %v5229
        %v5231 = vrot.slane %v5009, %v5230
        %v5232 = vlaneseq
        %v5233 = vshrl.u32 %v5232, 7
        %v5234 = vsub.s32 5, %v5233
        %v5235 = vrot.slane %v5009, %v5234
        %v5236 = vlaneseq
        %v5237 = vshrl.u32 %v5236, 7
        %v5238 = vsub.s32 6, %v5237
        %v5239 = vrot.slane %v5009, %v5238
        %v5240 = vlaneseq
        %v5241 = vshrl.u32 %v5240, 7
        %v5242 = vsub.s32 7, %v5241
        %v5243 = vrot.slane %v5009, %v5242
        %v5244 = vlaneseq
        %v5245 = vshrl.u32 %v5244, 7
        %v5246 = vsub.s32 0, %v5245
        %v5247 = vrot.slane %v5011, %v5246
        %v5248 = vlaneseq
        %v5249 = vshrl.u32 %v5248, 7
        %v5250 = vsub.s32 1, %v5249
        %v5251 = vrot.slane %v5011, %v5250
        %v5252 = vlaneseq
        %v5253 = vshrl.u32 %v5252, 7
        %v5254 = vsub.s32 2, %v5253
        %v5255 = vrot.slane %v5011, %v5254
        %v5256 = vlaneseq
        %v5257 = vshrl.u32 %v5256, 7
        %v5258 = vsub.s32 3, %v5257
        %v5259 = vrot.slane %v5011, %v5258
        %v5260 = vlaneseq
        %v5261 = vshrl.u32 %v5260, 7
        %v5262 = vsub.s32 4, %v5261
        %v5263 = vrot.slane %v5011, %v5262
        %v5264 = vlaneseq
        %v5265 = vshrl.u32 %v5264, 7
        %v5266 = vsub.s32 5, %v5265
        %v5267 = vrot.slane %v5011, %v5266
        %v5268 = vlaneseq
        %v5269 = vshrl.u32 %v5268, 7
        %v5270 = vsub.s32 6, %v5269
        %v5271 = vrot.slane %v5011, %v5270
        %v5272 = vlaneseq
        %v5273 = vshrl.u32 %v5272, 7
        %v5274 = vsub.s32 7, %v5273
        %v5275 = vrot.slane %v5011, %v5274
        %v5276 = vlaneseq
        %v5277 = vshrl.u32 %v5276, 7
        %v5278 = vsub.s32 0, %v5277
        %v5279 = vrot.slane %v5013, %v5278
        %v5280 = vlaneseq
        %v5281 = vshrl.u32 %v5280, 7
        %v5282 = vsub.s32 1, %v5281
        %v5283 = vrot.slane %v5013, %v5282
        %v5284 = vlaneseq
        %v5285 = vshrl.u32 %v5284, 7
        %v5286 = vsub.s32 2, %v5285
        %v5287 = vrot.slane %v5013, %v5286
        %v5288 = vlaneseq
        %v5289 = vshrl.u32 %v5288, 7
        %v5290 = vsub.s32 3, %v5289
        %v5291 = vrot.slane %v5013, %v5290
        %v5292 = vlaneseq
        %v5293 = vshrl.u32 %v5292, 7
        %v5294 = vsub.s32 4, %v5293
        %v5295 = vrot.slane %v5013, %v5294
        %v5296 = vlaneseq
        %v5297 = vshrl.u32 %v5296, 7
        %v5298 = vsub.s32 5, %v5297
        %v5299 = vrot.slane %v5013, %v5298
        %v5300 = vlaneseq
        %v5301 = vshrl.u32 %v5300, 7
        %v5302 = vsub.s32 6, %v5301
        %v5303 = vrot.slane %v5013, %v5302
        %v5304 = vlaneseq
        %v5305 = vshrl.u32 %v5304, 7
        %v5306 = vsub.s32 7, %v5305
        %v5307 = vrot.slane %v5013, %v5306
        %v5308 = vlaneseq
        %v5309 = vshrl.u32 %v5308, 7
        %v5310 = vsub.s32 0, %v5309
        %v5311 = vrot.slane %v5015, %v5310
        %v5312 = vlaneseq
        %v5313 = vshrl.u32 %v5312, 7
        %v5314 = vsub.s32 1, %v5313
        %v5315 = vrot.slane %v5015, %v5314
        %v5316 = vlaneseq
        %v5317 = vshrl.u32 %v5316, 7
        %v5318 = vsub.s32 2, %v5317
        %v5319 = vrot.slane %v5015, %v5318
        %v5320 = vlaneseq
        %v5321 = vshrl.u32 %v5320, 7
        %v5322 = vsub.s32 3, %v5321
        %v5323 = vrot.slane %v5015, %v5322
        %v5324 = vlaneseq
        %v5325 = vshrl.u32 %v5324, 7
        %v5326 = vsub.s32 4, %v5325
        %v5327 = vrot.slane %v5015, %v5326
        %v5328 = vlaneseq
        %v5329 = vshrl.u32 %v5328, 7
        %v5330 = vsub.s32 5, %v5329
        %v5331 = vrot.slane %v5015, %v5330
        %v5332 = vlaneseq
        %v5333 = vshrl.u32 %v5332, 7
        %v5334 = vsub.s32 6, %v5333
        %v5335 = vrot.slane %v5015, %v5334
        %v5336 = vlaneseq
        %v5337 = vshrl.u32 %v5336, 7
        %v5338 = vsub.s32 7, %v5337
        %v5339 = vrot.slane %v5015, %v5338
        %v5340 = vlaneseq
        %v5341 = vshrl.u32 %v5340, 7
        %v5342 = vsub.s32 0, %v5341
        %v5343 = vrot.slane %v5017, %v5342
        %v5344 = vlaneseq
        %v5345 = vshrl.u32 %v5344, 7
        %v5346 = vsub.s32 1, %v5345
        %v5347 = vrot.slane %v5017, %v5346
        %v5348 = vlaneseq
        %v5349 = vshrl.u32 %v5348, 7
        %v5350 = vsub.s32 2, %v5349
        %v5351 = vrot.slane %v5017, %v5350
        %v5352 = vlaneseq
        %v5353 = vshrl.u32 %v5352, 7
        %v5354 = vsub.s32 3, %v5353
        %v5355 = vrot.slane %v5017, %v5354
        %v5356 = vlaneseq
        %v5357 = vshrl.u32 %v5356, 7
        %v5358 = vsub.s32 4, %v5357
        %v5359 = vrot.slane %v5017, %v5358
        %v5360 = vlaneseq
        %v5361 = vshrl.u32 %v5360, 7
        %v5362 = vsub.s32 5, %v5361
        %v5363 = vrot.slane %v5017, %v5362
        %v5364 = vlaneseq
        %v5365 = vshrl.u32 %v5364, 7
        %v5366 = vsub.s32 6, %v5365
        %v5367 = vrot.slane %v5017, %v5366
        %v5368 = vlaneseq
        %v5369 = vshrl.u32 %v5368, 7
        %v5370 = vsub.s32 7, %v5369
        %v5371 = vrot.slane %v5017, %v5370
        %v5372 = vlaneseq
        %v5373 = vshrl.u32 %v5372, 7
        %v5374 = vsub.s32 0, %v5373
        %v5375 = vrot.slane %v5019, %v5374
        %v5376 = vlaneseq
        %v5377 = vshrl.u32 %v5376, 7
        %v5378 = vsub.s32 1, %v5377
        %v5379 = vrot.slane %v5019, %v5378
        %v5380 = vlaneseq
        %v5381 = vshrl.u32 %v5380, 7
        %v5382 = vsub.s32 2, %v5381
        %v5383 = vrot.slane %v5019, %v5382
        %v5384 = vlaneseq
        %v5385 = vshrl.u32 %v5384, 7
        %v5386 = vsub.s32 3, %v5385
        %v5387 = vrot.slane %v5019, %v5386
        %v5388 = vlaneseq
        %v5389 = vshrl.u32 %v5388, 7
        %v5390 = vsub.s32 4, %v5389
        %v5391 = vrot.slane %v5019, %v5390
        %v5392 = vlaneseq
        %v5393 = vshrl.u32 %v5392, 7
        %v5394 = vsub.s32 5, %v5393
        %v5395 = vrot.slane %v5019, %v5394
        %v5396 = vlaneseq
        %v5397 = vshrl.u32 %v5396, 7
        %v5398 = vsub.s32 6, %v5397
        %v5399 = vrot.slane %v5019, %v5398
        %v5400 = vlaneseq
        %v5401 = vshrl.u32 %v5400, 7
        %v5402 = vsub.s32 7, %v5401
        %v5403 = vrot.slane %v5019, %v5402
        %v5404 = vlaneseq
        %v5405 = vshrl.u32 %v5404, 7
        %v5406 = vsub.s32 0, %v5405
        %v5407 = vrot.slane %v5021, %v5406
        %v5408 = vlaneseq
        %v5409 = vshrl.u32 %v5408, 7
        %v5410 = vsub.s32 1, %v5409
        %v5411 = vrot.slane %v5021, %v5410
        %v5412 = vlaneseq
        %v5413 = vshrl.u32 %v5412, 7
        %v5414 = vsub.s32 2, %v5413
        %v5415 = vrot.slane %v5021, %v5414
        %v5416 = vlaneseq
        %v5417 = vshrl.u32 %v5416, 7
        %v5418 = vsub.s32 3, %v5417
        %v5419 = vrot.slane %v5021, %v5418
        %v5420 = vlaneseq
        %v5421 = vshrl.u32 %v5420, 7
        %v5422 = vsub.s32 4, %v5421
        %v5423 = vrot.slane %v5021, %v5422
        %v5424 = vlaneseq
        %v5425 = vshrl.u32 %v5424, 7
        %v5426 = vsub.s32 5, %v5425
        %v5427 = vrot.slane %v5021, %v5426
        %v5428 = vlaneseq
        %v5429 = vshrl.u32 %v5428, 7
        %v5430 = vsub.s32 6, %v5429
        %v5431 = vrot.slane %v5021, %v5430
        %v5432 = vlaneseq
        %v5433 = vshrl.u32 %v5432, 7
        %v5434 = vsub.s32 7, %v5433
        %v5435 = vrot.slane %v5021, %v5434
        %v5436 = vlaneseq
        %v5437 = vshrl.u32 %v5436, 7
        %v5438 = vsub.s32 0, %v5437
        %v5439 = vrot.slane %v5023, %v5438
        %v5440 = vlaneseq
        %v5441 = vshrl.u32 %v5440, 7
        %v5442 = vsub.s32 1, %v5441
        %v5443 = vrot.slane %v5023, %v5442
        %v5444 = vlaneseq
        %v5445 = vshrl.u32 %v5444, 7
        %v5446 = vsub.s32 2, %v5445
        %v5447 = vrot.slane %v5023, %v5446
        %v5448 = vlaneseq
        %v5449 = vshrl.u32 %v5448, 7
        %v5450 = vsub.s32 3, %v5449
        %v5451 = vrot.slane %v5023, %v5450
        %v5452 = vlaneseq
        %v5453 = vshrl.u32 %v5452, 7
        %v5454 = vsub.s32 4, %v5453
        %v5455 = vrot.slane %v5023, %v5454
        %v5456 = vlaneseq
        %v5457 = vshrl.u32 %v5456, 7
        %v5458 = vsub.s32 5, %v5457
        %v5459 = vrot.slane %v5023, %v5458
        %v5460 = vlaneseq
        %v5461 = vshrl.u32 %v5460, 7
        %v5462 = vsub.s32 6, %v5461
        %v5463 = vrot.slane %v5023, %v5462
        %v5464 = vlaneseq
        %v5465 = vshrl.u32 %v5464, 7
        %v5466 = vsub.s32 7, %v5465
        %v5467 = vrot.slane %v5023, %v5466
        %v5468 = vlaneseq
        %v5469 = vshrl.u32 %v5468, 7
        %v5470 = vsub.s32 0, %v5469
        %v5471 = vrot.slane %v5025, %v5470
        %v5472 = vlaneseq
        %v5473 = vshrl.u32 %v5472, 7
        %v5474 = vsub.s32 1, %v5473
        %v5475 = vrot.slane %v5025, %v5474
        %v5476 = vlaneseq
        %v5477 = vshrl.u32 %v5476, 7
        %v5478 = vsub.s32 2, %v5477
        %v5479 = vrot.slane %v5025, %v5478
        %v5480 = vlaneseq
        %v5481 = vshrl.u32 %v5480, 7
        %v5482 = vsub.s32 3, %v5481
        %v5483 = vrot.slane %v5025, %v5482
        %v5484 = vlaneseq
        %v5485 = vshrl.u32 %v5484, 7
        %v5486 = vsub.s32 4, %v5485
        %v5487 = vrot.slane %v5025, %v5486
        %v5488 = vlaneseq
        %v5489 = vshrl.u32 %v5488, 7
        %v5490 = vsub.s32 5, %v5489
        %v5491 = vrot.slane %v5025, %v5490
        %v5492 = vlaneseq
        %v5493 = vshrl.u32 %v5492, 7
        %v5494 = vsub.s32 6, %v5493
        %v5495 = vrot.slane %v5025, %v5494
        %v5496 = vlaneseq
        %v5497 = vshrl.u32 %v5496, 7
        %v5498 = vsub.s32 7, %v5497
        %v5499 = vrot.slane %v5025, %v5498
        %v5500 = vlaneseq
        %v5501 = vshrl.u32 %v5500, 7
        %v5502 = vsub.s32 0, %v5501
        %v5503 = vrot.slane %v5027, %v5502
        %v5504 = vlaneseq
        %v5505 = vshrl.u32 %v5504, 7
        %v5506 = vsub.s32 1, %v5505
        %v5507 = vrot.slane %v5027, %v5506
        %v5508 = vlaneseq
        %v5509 = vshrl.u32 %v5508, 7
        %v5510 = vsub.s32 2, %v5509
        %v5511 = vrot.slane %v5027, %v5510
        %v5512 = vlaneseq
        %v5513 = vshrl.u32 %v5512, 7
        %v5514 = vsub.s32 3, %v5513
        %v5515 = vrot.slane %v5027, %v5514
        %v5516 = vlaneseq
        %v5517 = vshrl.u32 %v5516, 7
        %v5518 = vsub.s32 4, %v5517
        %v5519 = vrot.slane %v5027, %v5518
        %v5520 = vlaneseq
        %v5521 = vshrl.u32 %v5520, 7
        %v5522 = vsub.s32 5, %v5521
        %v5523 = vrot.slane %v5027, %v5522
        %v5524 = vlaneseq
        %v5525 = vshrl.u32 %v5524, 7
        %v5526 = vsub.s32 6, %v5525
        %v5527 = vrot.slane %v5027, %v5526
        %v5528 = vlaneseq
        %v5529 = vshrl.u32 %v5528, 7
        %v5530 = vsub.s32 7, %v5529
        %v5531 = vrot.slane %v5027, %v5530
        %v5532 = vlaneseq
        %v5533 = vshrl.u32 %v5532, 7
        %v5534 = vsub.s32 0, %v5533
        %v5535 = vrot.slane %v5029, %v5534
        %v5536 = vlaneseq
        %v5537 = vshrl.u32 %v5536, 7
        %v5538 = vsub.s32 1, %v5537
        %v5539 = vrot.slane %v5029, %v5538
        %v5540 = vlaneseq
        %v5541 = vshrl.u32 %v5540, 7
        %v5542 = vsub.s32 2, %v5541
        %v5543 = vrot.slane %v5029, %v5542
        %v5544 = vlaneseq
        %v5545 = vshrl.u32 %v5544, 7
        %v5546 = vsub.s32 3, %v5545
        %v5547 = vrot.slane %v5029, %v5546
        %v5548 = vlaneseq
        %v5549 = vshrl.u32 %v5548, 7
        %v5550 = vsub.s32 4, %v5549
        %v5551 = vrot.slane %v5029, %v5550
        %v5552 = vlaneseq
        %v5553 = vshrl.u32 %v5552, 7
        %v5554 = vsub.s32 5, %v5553
        %v5555 = vrot.slane %v5029, %v5554
        %v5556 = vlaneseq
        %v5557 = vshrl.u32 %v5556, 7
        %v5558 = vsub.s32 6, %v5557
        %v5559 = vrot.slane %v5029, %v5558
        %v5560 = vlaneseq
        %v5561 = vshrl.u32 %v5560, 7
        %v5562 = vsub.s32 7, %v5561
        %v5563 = vrot.slane %v5029, %v5562
        %v5564 = vlaneseq
        %v5565 = vshrl.u32 %v5564, 7
        %v5566 = vsub.s32 0, %v5565
        %v5567 = vrot.slane %v5031, %v5566
        %v5568 = vlaneseq
        %v5569 = vshrl.u32 %v5568, 7
        %v5570 = vsub.s32 1, %v5569
        %v5571 = vrot.slane %v5031, %v5570
        %v5572 = vlaneseq
        %v5573 = vshrl.u32 %v5572, 7
        %v5574 = vsub.s32 2, %v5573
        %v5575 = vrot.slane %v5031, %v5574
        %v5576 = vlaneseq
        %v5577 = vshrl.u32 %v5576, 7
        %v5578 = vsub.s32 3, %v5577
        %v5579 = vrot.slane %v5031, %v5578
        %v5580 = vlaneseq
        %v5581 = vshrl.u32 %v5580, 7
        %v5582 = vsub.s32 4, %v5581
        %v5583 = vrot.slane %v5031, %v5582
        %v5584 = vlaneseq
        %v5585 = vshrl.u32 %v5584, 7
        %v5586 = vsub.s32 5, %v5585
        %v5587 = vrot.slane %v5031, %v5586
        %v5588 = vlaneseq
        %v5589 = vshrl.u32 %v5588, 7
        %v5590 = vsub.s32 6, %v5589
        %v5591 = vrot.slane %v5031, %v5590
        %v5592 = vlaneseq
        %v5593 = vshrl.u32 %v5592, 7
        %v5594 = vsub.s32 7, %v5593
        %v5595 = vrot.slane %v5031, %v5594
        %v5596 = vlaneseq
        %v5597 = vshrl.u32 %v5596, 7
        %v5598 = vsub.s32 0, %v5597
        %v5599 = vrot.slane %v5033, %v5598
        %v5600 = vlaneseq
        %v5601 = vshrl.u32 %v5600, 7
        %v5602 = vsub.s32 1, %v5601
        %v5603 = vrot.slane %v5033, %v5602
        %v5604 = vlaneseq
        %v5605 = vshrl.u32 %v5604, 7
        %v5606 = vsub.s32 2, %v5605
        %v5607 = vrot.slane %v5033, %v5606
        %v5608 = vlaneseq
        %v5609 = vshrl.u32 %v5608, 7
        %v5610 = vsub.s32 3, %v5609
        %v5611 = vrot.slane %v5033, %v5610
        %v5612 = vlaneseq
        %v5613 = vshrl.u32 %v5612, 7
        %v5614 = vsub.s32 4, %v5613
        %v5615 = vrot.slane %v5033, %v5614
        %v5616 = vlaneseq
        %v5617 = vshrl.u32 %v5616, 7
        %v5618 = vsub.s32 5, %v5617
        %v5619 = vrot.slane %v5033, %v5618
        %v5620 = vlaneseq
        %v5621 = vshrl.u32 %v5620, 7
        %v5622 = vsub.s32 6, %v5621
        %v5623 = vrot.slane %v5033, %v5622
        %v5624 = vlaneseq
        %v5625 = vshrl.u32 %v5624, 7
        %v5626 = vsub.s32 7, %v5625
        %v5627 = vrot.slane %v5033, %v5626
        %v5628 = vlaneseq
        %v5629 = vshrl.u32 %v5628, 7
        %v5630 = vsub.s32 0, %v5629
        %v5631 = vrot.slane %v5035, %v5630
        %v5632 = vlaneseq
        %v5633 = vshrl.u32 %v5632, 7
        %v5634 = vsub.s32 1, %v5633
        %v5635 = vrot.slane %v5035, %v5634
        %v5636 = vlaneseq
        %v5637 = vshrl.u32 %v5636, 7
        %v5638 = vsub.s32 2, %v5637
        %v5639 = vrot.slane %v5035, %v5638
        %v5640 = vlaneseq
        %v5641 = vshrl.u32 %v5640, 7
        %v5642 = vsub.s32 3, %v5641
        %v5643 = vrot.slane %v5035, %v5642
        %v5644 = vlaneseq
        %v5645 = vshrl.u32 %v5644, 7
        %v5646 = vsub.s32 4, %v5645
        %v5647 = vrot.slane %v5035, %v5646
        %v5648 = vlaneseq
        %v5649 = vshrl.u32 %v5648, 7
        %v5650 = vsub.s32 5, %v5649
        %v5651 = vrot.slane %v5035, %v5650
        %v5652 = vlaneseq
        %v5653 = vshrl.u32 %v5652, 7
        %v5654 = vsub.s32 6, %v5653
        %v5655 = vrot.slane %v5035, %v5654
        %v5656 = vlaneseq
        %v5657 = vshrl.u32 %v5656, 7
        %v5658 = vsub.s32 7, %v5657
        %v5659 = vrot.slane %v5035, %v5658
        %v5660 = vlaneseq
        %v5661 = vshrl.u32 %v5660, 7
        %v5662 = vsub.s32 0, %v5661
        %v5663 = vrot.slane %v5037, %v5662
        %v5664 = vlaneseq
        %v5665 = vshrl.u32 %v5664, 7
        %v5666 = vsub.s32 1, %v5665
        %v5667 = vrot.slane %v5037, %v5666
        %v5668 = vlaneseq
        %v5669 = vshrl.u32 %v5668, 7
        %v5670 = vsub.s32 2, %v5669
        %v5671 = vrot.slane %v5037, %v5670
        %v5672 = vlaneseq
        %v5673 = vshrl.u32 %v5672, 7
        %v5674 = vsub.s32 3, %v5673
        %v5675 = vrot.slane %v5037, %v5674
        %v5676 = vlaneseq
        %v5677 = vshrl.u32 %v5676, 7
        %v5678 = vsub.s32 4, %v5677
        %v5679 = vrot.slane %v5037, %v5678
        %v5680 = vlaneseq
        %v5681 = vshrl.u32 %v5680, 7
        %v5682 = vsub.s32 5, %v5681
        %v5683 = vrot.slane %v5037, %v5682
        %v5684 = vlaneseq
        %v5685 = vshrl.u32 %v5684, 7
        %v5686 = vsub.s32 6, %v5685
        %v5687 = vrot.slane %v5037, %v5686
        %v5688 = vlaneseq
        %v5689 = vshrl.u32 %v5688, 7
        %v5690 = vsub.s32 7, %v5689
        %v5691 = vrot.slane %v5037, %v5690
        %v5692 = vlaneseq
        %v5693 = vshrl.u32 %v5692, 7
        %v5694 = vsub.s32 0, %v5693
        %v5695 = vrot.slane %v5039, %v5694
        %v5696 = vlaneseq
        %v5697 = vshrl.u32 %v5696, 7
        %v5698 = vsub.s32 1, %v5697
        %v5699 = vrot.slane %v5039, %v5698
        %v5700 = vlaneseq
        %v5701 = vshrl.u32 %v5700, 7
        %v5702 = vsub.s32 2, %v5701
        %v5703 = vrot.slane %v5039, %v5702
        %v5704 = vlaneseq
        %v5705 = vshrl.u32 %v5704, 7
        %v5706 = vsub.s32 3, %v5705
        %v5707 = vrot.slane %v5039, %v5706
        %v5708 = vlaneseq
        %v5709 = vshrl.u32 %v5708, 7
        %v5710 = vsub.s32 4, %v5709
        %v5711 = vrot.slane %v5039, %v5710
        %v5712 = vlaneseq
        %v5713 = vshrl.u32 %v5712, 7
        %v5714 = vsub.s32 5, %v5713
        %v5715 = vrot.slane %v5039, %v5714
        %v5716 = vlaneseq
        %v5717 = vshrl.u32 %v5716, 7
        %v5718 = vsub.s32 6, %v5717
        %v5719 = vrot.slane %v5039, %v5718
        %v5720 = vlaneseq
        %v5721 = vshrl.u32 %v5720, 7
        %v5722 = vsub.s32 7, %v5721
        %v5723 = vrot.slane %v5039, %v5722
        %v5724 = vlaneseq
        %v5725 = vshrl.u32 %v5724, 7
        %v5726 = vsub.s32 0, %v5725
        %v5727 = vrot.slane %v5041, %v5726
        %v5728 = vlaneseq
        %v5729 = vshrl.u32 %v5728, 7
        %v5730 = vsub.s32 1, %v5729
        %v5731 = vrot.slane %v5041, %v5730
        %v5732 = vlaneseq
        %v5733 = vshrl.u32 %v5732, 7
        %v5734 = vsub.s32 2, %v5733
        %v5735 = vrot.slane %v5041, %v5734
        %v5736 = vlaneseq
        %v5737 = vshrl.u32 %v5736, 7
        %v5738 = vsub.s32 3, %v5737
        %v5739 = vrot.slane %v5041, %v5738
        %v5740 = vlaneseq
        %v5741 = vshrl.u32 %v5740, 7
        %v5742 = vsub.s32 4, %v5741
        %v5743 = vrot.slane %v5041, %v5742
        %v5744 = vlaneseq
        %v5745 = vshrl.u32 %v5744, 7
        %v5746 = vsub.s32 5, %v5745
        %v5747 = vrot.slane %v5041, %v5746
        %v5748 = vlaneseq
        %v5749 = vshrl.u32 %v5748, 7
        %v5750 = vsub.s32 6, %v5749
        %v5751 = vrot.slane %v5041, %v5750
        %v5752 = vlaneseq
        %v5753 = vshrl.u32 %v5752, 7
        %v5754 = vsub.s32 7, %v5753
        %v5755 = vrot.slane %v5041, %v5754
        %v5756 = vlaneseq
        %v5757 = vshrl.u32 %v5756, 7
        %v5758 = vsub.s32 0, %v5757
        %v5759 = vrot.slane %v5043, %v5758
        %v5760 = vlaneseq
        %v5761 = vshrl.u32 %v5760, 7
        %v5762 = vsub.s32 1, %v5761
        %v5763 = vrot.slane %v5043, %v5762
        %v5764 = vlaneseq
        %v5765 = vshrl.u32 %v5764, 7
        %v5766 = vsub.s32 2, %v5765
        %v5767 = vrot.slane %v5043, %v5766
        %v5768 = vlaneseq
        %v5769 = vshrl.u32 %v5768, 7
        %v5770 = vsub.s32 3, %v5769
        %v5771 = vrot.slane %v5043, %v5770
        %v5772 = vlaneseq
        %v5773 = vshrl.u32 %v5772, 7
        %v5774 = vsub.s32 4, %v5773
        %v5775 = vrot.slane %v5043, %v5774
        %v5776 = vlaneseq
        %v5777 = vshrl.u32 %v5776, 7
        %v5778 = vsub.s32 5, %v5777
        %v5779 = vrot.slane %v5043, %v5778
        %v5780 = vlaneseq
        %v5781 = vshrl.u32 %v5780, 7
        %v5782 = vsub.s32 6, %v5781
        %v5783 = vrot.slane %v5043, %v5782
        %v5784 = vlaneseq
        %v5785 = vshrl.u32 %v5784, 7
        %v5786 = vsub.s32 7, %v5785
        %v5787 = vrot.slane %v5043, %v5786
        %v5788 = vlaneseq
        %v5789 = vshrl.u32 %v5788, 7
        %v5790 = vsub.s32 0, %v5789
        %v5791 = vrot.slane %v5045, %v5790
        %v5792 = vlaneseq
        %v5793 = vshrl.u32 %v5792, 7
        %v5794 = vsub.s32 1, %v5793
        %v5795 = vrot.slane %v5045, %v5794
        %v5796 = vlaneseq
        %v5797 = vshrl.u32 %v5796, 7
        %v5798 = vsub.s32 2, %v5797
        %v5799 = vrot.slane %v5045, %v5798
        %v5800 = vlaneseq
        %v5801 = vshrl.u32 %v5800, 7
        %v5802 = vsub.s32 3, %v5801
        %v5803 = vrot.slane %v5045, %v5802
        %v5804 = vlaneseq
        %v5805 = vshrl.u32 %v5804, 7
        %v5806 = vsub.s32 4, %v5805
        %v5807 = vrot.slane %v5045, %v5806
        %v5808 = vlaneseq
        %v5809 = vshrl.u32 %v5808, 7
        %v5810 = vsub.s32 5, %v5809
        %v5811 = vrot.slane %v5045, %v5810
        %v5812 = vlaneseq
        %v5813 = vshrl.u32 %v5812, 7
        %v5814 = vsub.s32 6, %v5813
        %v5815 = vrot.slane %v5045, %v5814
        %v5816 = vlaneseq
        %v5817 = vshrl.u32 %v5816, 7
        %v5818 = vsub.s32 7, %v5817
        %v5819 = vrot.slane %v5045, %v5818
        %v5820 = vlaneseq
        %v5821 = vshrl.u32 %v5820, 7
        %v5822 = vsub.s32 0, %v5821
        %v5823 = vrot.slane %v5047, %v5822
        %v5824 = vlaneseq
        %v5825 = vshrl.u32 %v5824, 7
        %v5826 = vsub.s32 1, %v5825
        %v5827 = vrot.slane %v5047, %v5826
        %v5828 = vlaneseq
        %v5829 = vshrl.u32 %v5828, 7
        %v5830 = vsub.s32 2, %v5829
        %v5831 = vrot.slane %v5047, %v5830
        %v5832 = vlaneseq
        %v5833 = vshrl.u32 %v5832, 7
        %v5834 = vsub.s32 3, %v5833
        %v5835 = vrot.slane %v5047, %v5834
        %v5836 = vlaneseq
        %v5837 = vshrl.u32 %v5836, 7
        %v5838 = vsub.s32 4, %v5837
        %v5839 = vrot.slane %v5047, %v5838
        %v5840 = vlaneseq
        %v5841 = vshrl.u32 %v5840, 7
        %v5842 = vsub.s32 5, %v5841
        %v5843 = vrot.slane %v5047, %v5842
        %v5844 = vlaneseq
        %v5845 = vshrl.u32 %v5844, 7
        %v5846 = vsub.s32 6, %v5845
        %v5847 = vrot.slane %v5047, %v5846
        %v5848 = vlaneseq
        %v5849 = vshrl.u32 %v5848, 7
        %v5850 = vsub.s32 7, %v5849
        %v5851 = vrot.slane %v5047, %v5850
        %v5852 = vlaneseq
        %v5853 = vshrl.u32 %v5852, 7
        %v5854 = vsub.s32 0, %v5853
        %v5855 = vrot.slane %v5049, %v5854
        %v5856 = vlaneseq
        %v5857 = vshrl.u32 %v5856, 7
        %v5858 = vsub.s32 1, %v5857
        %v5859 = vrot.slane %v5049, %v5858
        %v5860 = vlaneseq
        %v5861 = vshrl.u32 %v5860, 7
        %v5862 = vsub.s32 2, %v5861
        %v5863 = vrot.slane %v5049, %v5862
        %v5864 = vlaneseq
        %v5865 = vshrl.u32 %v5864, 7
        %v5866 = vsub.s32 3, %v5865
        %v5867 = vrot.slane %v5049, %v5866
        %v5868 = vlaneseq
        %v5869 = vshrl.u32 %v5868, 7
        %v5870 = vsub.s32 4, %v5869
        %v5871 = vrot.slane %v5049, %v5870
        %v5872 = vlaneseq
        %v5873 = vshrl.u32 %v5872, 7
        %v5874 = vsub.s32 5, %v5873
        %v5875 = vrot.slane %v5049, %v5874
        %v5876 = vlaneseq
        %v5877 = vshrl.u32 %v5876, 7
        %v5878 = vsub.s32 6, %v5877
        %v5879 = vrot.slane %v5049, %v5878
        %v5880 = vlaneseq
        %v5881 = vshrl.u32 %v5880, 7
        %v5882 = vsub.s32 7, %v5881
        %v5883 = vrot.slane %v5049, %v5882
        %v5884 = vlaneseq
        %v5885 = vshrl.u32 %v5884, 7
        %v5886 = vsub.s32 0, %v5885
        %v5887 = vrot.slane %v5051, %v5886
        %v5888 = vlaneseq
        %v5889 = vshrl.u32 %v5888, 7
        %v5890 = vsub.s32 1, %v5889
        %v5891 = vrot.slane %v5051, %v5890
        %v5892 = vlaneseq
        %v5893 = vshrl.u32 %v5892, 7
        %v5894 = vsub.s32 2, %v5893
        %v5895 = vrot.slane %v5051, %v5894
        %v5896 = vlaneseq
        %v5897 = vshrl.u32 %v5896, 7
        %v5898 = vsub.s32 3, %v5897
        %v5899 = vrot.slane %v5051, %v5898
        %v5900 = vlaneseq
        %v5901 = vshrl.u32 %v5900, 7
        %v5902 = vsub.s32 4, %v5901
        %v5903 = vrot.slane %v5051, %v5902
        %v5904 = vlaneseq
        %v5905 = vshrl.u32 %v5904, 7
        %v5906 = vsub.s32 5, %v5905
        %v5907 = vrot.slane %v5051, %v5906
        %v5908 = vlaneseq
        %v5909 = vshrl.u32 %v5908, 7
        %v5910 = vsub.s32 6, %v5909
        %v5911 = vrot.slane %v5051, %v5910
        %v5912 = vlaneseq
        %v5913 = vshrl.u32 %v5912, 7
        %v5914 = vsub.s32 7, %v5913
        %v5915 = vrot.slane %v5051, %v5914
        %v5916 = vlaneseq
        %v5917 = vshrl.u32 %v5916, 7
        %v5918 = vsub.s32 0, %v5917
        %v5919 = vrot.slane %v5053, %v5918
        %v5920 = vlaneseq
        %v5921 = vshrl.u32 %v5920, 7
        %v5922 = vsub.s32 1, %v5921
        %v5923 = vrot.slane %v5053, %v5922
        %v5924 = vlaneseq
        %v5925 = vshrl.u32 %v5924, 7
        %v5926 = vsub.s32 2, %v5925
        %v5927 = vrot.slane %v5053, %v5926
        %v5928 = vlaneseq
        %v5929 = vshrl.u32 %v5928, 7
        %v5930 = vsub.s32 3, %v5929
        %v5931 = vrot.slane %v5053, %v5930
        %v5932 = vlaneseq
        %v5933 = vshrl.u32 %v5932, 7
        %v5934 = vsub.s32 4, %v5933
        %v5935 = vrot.slane %v5053, %v5934
        %v5936 = vlaneseq
        %v5937 = vshrl.u32 %v5936, 7
        %v5938 = vsub.s32 5, %v5937
        %v5939 = vrot.slane %v5053, %v5938
        %v5940 = vlaneseq
        %v5941 = vshrl.u32 %v5940, 7
        %v5942 = vsub.s32 6, %v5941
        %v5943 = vrot.slane %v5053, %v5942
        %v5944 = vlaneseq
        %v5945 = vshrl.u32 %v5944, 7
        %v5946 = vsub.s32 7, %v5945
        %v5947 = vrot.slane %v5053, %v5946
        %v5948 = vlaneseq
        %v5949 = vshrl.u32 %v5948, 7
        %v5950 = vsub.s32 0, %v5949
        %v5951 = vrot.slane %v5055, %v5950
        %v5952 = vlaneseq
        %v5953 = vshrl.u32 %v5952, 7
        %v5954 = vsub.s32 1, %v5953
        %v5955 = vrot.slane %v5055, %v5954
        %v5956 = vlaneseq
        %v5957 = vshrl.u32 %v5956, 7
        %v5958 = vsub.s32 2, %v5957
        %v5959 = vrot.slane %v5055, %v5958
        %v5960 = vlaneseq
        %v5961 = vshrl.u32 %v5960, 7
        %v5962 = vsub.s32 3, %v5961
        %v5963 = vrot.slane %v5055, %v5962
        %v5964 = vlaneseq
        %v5965 = vshrl.u32 %v5964, 7
        %v5966 = vsub.s32 4, %v5965
        %v5967 = vrot.slane %v5055, %v5966
        %v5968 = vlaneseq
        %v5969 = vshrl.u32 %v5968, 7
        %v5970 = vsub.s32 5, %v5969
        %v5971 = vrot.slane %v5055, %v5970
        %v5972 = vlaneseq
        %v5973 = vshrl.u32 %v5972, 7
        %v5974 = vsub.s32 6, %v5973
        %v5975 = vrot.slane %v5055, %v5974
        %v5976 = vlaneseq
        %v5977 = vshrl.u32 %v5976, 7
        %v5978 = vsub.s32 7, %v5977
        %v5979 = vrot.slane %v5055, %v5978
        %v5980 = vlaneseq
        %v5981 = vshrl.u32 %v5980, 7
        %v5982 = vsub.s32 0, %v5981
        %v5983 = vrot.slane %v5057, %v5982
        %v5984 = vlaneseq
        %v5985 = vshrl.u32 %v5984, 7
        %v5986 = vsub.s32 1, %v5985
        %v5987 = vrot.slane %v5057, %v5986
        %v5988 = vlaneseq
        %v5989 = vshrl.u32 %v5988, 7
        %v5990 = vsub.s32 2, %v5989
        %v5991 = vrot.slane %v5057, %v5990
        %v5992 = vlaneseq
        %v5993 = vshrl.u32 %v5992, 7
        %v5994 = vsub.s32 3, %v5993
        %v5995 = vrot.slane %v5057, %v5994
        %v5996 = vlaneseq
        %v5997 = vshrl.u32 %v5996, 7
        %v5998 = vsub.s32 4, %v5997
        %v5999 = vrot.slane %v5057, %v5998
        %v6000 = vlaneseq
        %v6001 = vshrl.u32 %v6000, 7
        %v6002 = vsub.s32 5, %v6001
        %v6003 = vrot.slane %v5057, %v6002
        %v6004 = vlaneseq
        %v6005 = vshrl.u32 %v6004, 7
        %v6006 = vsub.s32 6, %v6005
        %v6007 = vrot.slane %v5057, %v6006
        %v6008 = vlaneseq
        %v6009 = vshrl.u32 %v6008, 7
        %v6010 = vsub.s32 7, %v6009
        %v6011 = vrot.slane %v5057, %v6010
        %v6012 = vlaneseq
        %v6013 = vshrl.u32 %v6012, 7
        %v6014 = vsub.s32 0, %v6013
        %v6015 = vrot.slane %v5059, %v6014
        %v6016 = vlaneseq
        %v6017 = vshrl.u32 %v6016, 7
        %v6018 = vsub.s32 1, %v6017
        %v6019 = vrot.slane %v5059, %v6018
        %v6020 = vlaneseq
        %v6021 = vshrl.u32 %v6020, 7
        %v6022 = vsub.s32 2, %v6021
        %v6023 = vrot.slane %v5059, %v6022
        %v6024 = vlaneseq
        %v6025 = vshrl.u32 %v6024, 7
        %v6026 = vsub.s32 3, %v6025
        %v6027 = vrot.slane %v5059, %v6026
        %v6028 = vlaneseq
        %v6029 = vshrl.u32 %v6028, 7
        %v6030 = vsub.s32 4, %v6029
        %v6031 = vrot.slane %v5059, %v6030
        %v6032 = vlaneseq
        %v6033 = vshrl.u32 %v6032, 7
        %v6034 = vsub.s32 5, %v6033
        %v6035 = vrot.slane %v5059, %v6034
        %v6036 = vlaneseq
        %v6037 = vshrl.u32 %v6036, 7
        %v6038 = vsub.s32 6, %v6037
        %v6039 = vrot.slane %v5059, %v6038
        %v6040 = vlaneseq
        %v6041 = vshrl.u32 %v6040, 7
        %v6042 = vsub.s32 7, %v6041
        %v6043 = vrot.slane %v5059, %v6042
        %v6044 = vlaneseq
        %v6045 = vshrl.u32 %v6044, 7
        %v6046 = vsub.s32 0, %v6045
        %v6047 = vrot.slane %v5061, %v6046
        %v6048 = vlaneseq
        %v6049 = vshrl.u32 %v6048, 7
        %v6050 = vsub.s32 1, %v6049
        %v6051 = vrot.slane %v5061, %v6050
        %v6052 = vlaneseq
        %v6053 = vshrl.u32 %v6052, 7
        %v6054 = vsub.s32 2, %v6053
        %v6055 = vrot.slane %v5061, %v6054
        %v6056 = vlaneseq
        %v6057 = vshrl.u32 %v6056, 7
        %v6058 = vsub.s32 3, %v6057
        %v6059 = vrot.slane %v5061, %v6058
        %v6060 = vlaneseq
        %v6061 = vshrl.u32 %v6060, 7
        %v6062 = vsub.s32 4, %v6061
        %v6063 = vrot.slane %v5061, %v6062
        %v6064 = vlaneseq
        %v6065 = vshrl.u32 %v6064, 7
        %v6066 = vsub.s32 5, %v6065
        %v6067 = vrot.slane %v5061, %v6066
        %v6068 = vlaneseq
        %v6069 = vshrl.u32 %v6068, 7
        %v6070 = vsub.s32 6, %v6069
        %v6071 = vrot.slane %v5061, %v6070
        %v6072 = vlaneseq
        %v6073 = vshrl.u32 %v6072, 7
        %v6074 = vsub.s32 7, %v6073
        %v6075 = vrot.slane %v5061, %v6074
        %v6076 = vlaneseq
        %v6077 = vshrl.u32 %v6076, 7
        %v6078 = vsub.s32 0, %v6077
        %v6079 = vrot.slane %v5063, %v6078
        %v6080 = vlaneseq
        %v6081 = vshrl.u32 %v6080, 7
        %v6082 = vsub.s32 1, %v6081
        %v6083 = vrot.slane %v5063, %v6082
        %v6084 = vlaneseq
        %v6085 = vshrl.u32 %v6084, 7
        %v6086 = vsub.s32 2, %v6085
        %v6087 = vrot.slane %v5063, %v6086
        %v6088 = vlaneseq
        %v6089 = vshrl.u32 %v6088, 7
        %v6090 = vsub.s32 3, %v6089
        %v6091 = vrot.slane %v5063, %v6090
        %v6092 = vlaneseq
        %v6093 = vshrl.u32 %v6092, 7
        %v6094 = vsub.s32 4, %v6093
        %v6095 = vrot.slane %v5063, %v6094
        %v6096 = vlaneseq
        %v6097 = vshrl.u32 %v6096, 7
        %v6098 = vsub.s32 5, %v6097
        %v6099 = vrot.slane %v5063, %v6098
        %v6100 = vlaneseq
        %v6101 = vshrl.u32 %v6100, 7
        %v6102 = vsub.s32 6, %v6101
        %v6103 = vrot.slane %v5063, %v6102
        %v6104 = vlaneseq
        %v6105 = vshrl.u32 %v6104, 7
        %v6106 = vsub.s32 7, %v6105
        %v6107 = vrot.slane %v5063, %v6106
        %v6108 = vlaneseq
        %v6109 = vshrl.u32 %v6108, 7
        %v6110 = vsub.s32 0, %v6109
        %v6111 = vrot.slane %v5065, %v6110
        %v6112 = vlaneseq
        %v6113 = vshrl.u32 %v6112, 7
        %v6114 = vsub.s32 1, %v6113
        %v6115 = vrot.slane %v5065, %v6114
        %v6116 = vlaneseq
        %v6117 = vshrl.u32 %v6116, 7
        %v6118 = vsub.s32 2, %v6117
        %v6119 = vrot.slane %v5065, %v6118
        %v6120 = vlaneseq
        %v6121 = vshrl.u32 %v6120, 7
        %v6122 = vsub.s32 3, %v6121
        %v6123 = vrot.slane %v5065, %v6122
        %v6124 = vlaneseq
        %v6125 = vshrl.u32 %v6124, 7
        %v6126 = vsub.s32 4, %v6125
        %v6127 = vrot.slane %v5065, %v6126
        %v6128 = vlaneseq
        %v6129 = vshrl.u32 %v6128, 7
        %v6130 = vsub.s32 5, %v6129
        %v6131 = vrot.slane %v5065, %v6130
        %v6132 = vlaneseq
        %v6133 = vshrl.u32 %v6132, 7
        %v6134 = vsub.s32 6, %v6133
        %v6135 = vrot.slane %v5065, %v6134
        %v6136 = vlaneseq
        %v6137 = vshrl.u32 %v6136, 7
        %v6138 = vsub.s32 7, %v6137
        %v6139 = vrot.slane %v5065, %v6138
        %v6140 = vlaneseq
        %v6141 = vshrl.u32 %v6140, 7
        %v6142 = vsub.s32 0, %v6141
        %v6143 = vrot.slane %v5067, %v6142
        %v6144 = vlaneseq
        %v6145 = vshrl.u32 %v6144, 7
        %v6146 = vsub.s32 1, %v6145
        %v6147 = vrot.slane %v5067, %v6146
        %v6148 = vlaneseq
        %v6149 = vshrl.u32 %v6148, 7
        %v6150 = vsub.s32 2, %v6149
        %v6151 = vrot.slane %v5067, %v6150
        %v6152 = vlaneseq
        %v6153 = vshrl.u32 %v6152, 7
        %v6154 = vsub.s32 3, %v6153
        %v6155 = vrot.slane %v5067, %v6154
        %v6156 = vlaneseq
        %v6157 = vshrl.u32 %v6156, 7
        %v6158 = vsub.s32 4, %v6157
        %v6159 = vrot.slane %v5067, %v6158
        %v6160 = vlaneseq
        %v6161 = vshrl.u32 %v6160, 7
        %v6162 = vsub.s32 5, %v6161
        %v6163 = vrot.slane %v5067, %v6162
        %v6164 = vlaneseq
        %v6165 = vshrl.u32 %v6164, 7
        %v6166 = vsub.s32 6, %v6165
        %v6167 = vrot.slane %v5067, %v6166
        %v6168 = vlaneseq
        %v6169 = vshrl.u32 %v6168, 7
        %v6170 = vsub.s32 7, %v6169
        %v6171 = vrot.slane %v5067, %v6170
        %v6172 = vlaneseq
        %v6173 = vshrl.u32 %v6172, 7
        %v6174 = vsub.s32 0, %v6173
        %v6175 = vrot.slane %v5069, %v6174
        %v6176 = vlaneseq
        %v6177 = vshrl.u32 %v6176, 7
        %v6178 = vsub.s32 1, %v6177
        %v6179 = vrot.slane %v5069, %v6178
        %v6180 = vlaneseq
        %v6181 = vshrl.u32 %v6180, 7
        %v6182 = vsub.s32 2, %v6181
        %v6183 = vrot.slane %v5069, %v6182
        %v6184 = vlaneseq
        %v6185 = vshrl.u32 %v6184, 7
        %v6186 = vsub.s32 3, %v6185
        %v6187 = vrot.slane %v5069, %v6186
        %v6188 = vlaneseq
        %v6189 = vshrl.u32 %v6188, 7
        %v6190 = vsub.s32 4, %v6189
        %v6191 = vrot.slane %v5069, %v6190
        %v6192 = vlaneseq
        %v6193 = vshrl.u32 %v6192, 7
        %v6194 = vsub.s32 5, %v6193
        %v6195 = vrot.slane %v5069, %v6194
        %v6196 = vlaneseq
        %v6197 = vshrl.u32 %v6196, 7
        %v6198 = vsub.s32 6, %v6197
        %v6199 = vrot.slane %v5069, %v6198
        %v6200 = vlaneseq
        %v6201 = vshrl.u32 %v6200, 7
        %v6202 = vsub.s32 7, %v6201
        %v6203 = vrot.slane %v5069, %v6202
        %v6204 = vlaneseq
        %v6205 = vshrl.u32 %v6204, 7
        %v6206 = vsub.s32 0, %v6205
        %v6207 = vrot.slane %v5071, %v6206
        %v6208 = vlaneseq
        %v6209 = vshrl.u32 %v6208, 7
        %v6210 = vsub.s32 1, %v6209
        %v6211 = vrot.slane %v5071, %v6210
        %v6212 = vlaneseq
        %v6213 = vshrl.u32 %v6212, 7
        %v6214 = vsub.s32 2, %v6213
        %v6215 = vrot.slane %v5071, %v6214
        %v6216 = vlaneseq
        %v6217 = vshrl.u32 %v6216, 7
        %v6218 = vsub.s32 3, %v6217
        %v6219 = vrot.slane %v5071, %v6218
        %v6220 = vlaneseq
        %v6221 = vshrl.u32 %v6220, 7
        %v6222 = vsub.s32 4, %v6221
        %v6223 = vrot.slane %v5071, %v6222
        %v6224 = vlaneseq
        %v6225 = vshrl.u32 %v6224, 7
        %v6226 = vsub.s32 5, %v6225
        %v6227 = vrot.slane %v5071, %v6226
        %v6228 = vlaneseq
        %v6229 = vshrl.u32 %v6228, 7
        %v6230 = vsub.s32 6, %v6229
        %v6231 = vrot.slane %v5071, %v6230
        %v6232 = vlaneseq
        %v6233 = vshrl.u32 %v6232, 7
        %v6234 = vsub.s32 7, %v6233
        %v6235 = vrot.slane %v5071, %v6234
        %v6236 = vlaneseq
        %v6237 = vshrl.u32 %v6236, 7
        %v6238 = vsub.s32 0, %v6237
        %v6239 = vrot.slane %v5073, %v6238
        %v6240 = vlaneseq
        %v6241 = vshrl.u32 %v6240, 7
        %v6242 = vsub.s32 1, %v6241
        %v6243 = vrot.slane %v5073, %v6242
        %v6244 = vlaneseq
        %v6245 = vshrl.u32 %v6244, 7
        %v6246 = vsub.s32 2, %v6245
        %v6247 = vrot.slane %v5073, %v6246
        %v6248 = vlaneseq
        %v6249 = vshrl.u32 %v6248, 7
        %v6250 = vsub.s32 3, %v6249
        %v6251 = vrot.slane %v5073, %v6250
        %v6252 = vlaneseq
        %v6253 = vshrl.u32 %v6252, 7
        %v6254 = vsub.s32 4, %v6253
        %v6255 = vrot.slane %v5073, %v6254
        %v6256 = vlaneseq
        %v6257 = vshrl.u32 %v6256, 7
        %v6258 = vsub.s32 5, %v6257
        %v6259 = vrot.slane %v5073, %v6258
        %v6260 = vlaneseq
        %v6261 = vshrl.u32 %v6260, 7
        %v6262 = vsub.s32 6, %v6261
        %v6263 = vrot.slane %v5073, %v6262
        %v6264 = vlaneseq
        %v6265 = vshrl.u32 %v6264, 7
        %v6266 = vsub.s32 7, %v6265
        %v6267 = vrot.slane %v5073, %v6266
        %v6268 = vlaneseq
        %v6269 = vshrl.u32 %v6268, 7
        %v6270 = vsub.s32 0, %v6269
        %v6271 = vrot.slane %v5075, %v6270
        %v6272 = vlaneseq
        %v6273 = vshrl.u32 %v6272, 7
        %v6274 = vsub.s32 1, %v6273
        %v6275 = vrot.slane %v5075, %v6274
        %v6276 = vlaneseq
        %v6277 = vshrl.u32 %v6276, 7
        %v6278 = vsub.s32 2, %v6277
        %v6279 = vrot.slane %v5075, %v6278
        %v6280 = vlaneseq
        %v6281 = vshrl.u32 %v6280, 7
        %v6282 = vsub.s32 3, %v6281
        %v6283 = vrot.slane %v5075, %v6282
        %v6284 = vlaneseq
        %v6285 = vshrl.u32 %v6284, 7
        %v6286 = vsub.s32 4, %v6285
        %v6287 = vrot.slane %v5075, %v6286
        %v6288 = vlaneseq
        %v6289 = vshrl.u32 %v6288, 7
        %v6290 = vsub.s32 5, %v6289
        %v6291 = vrot.slane %v5075, %v6290
        %v6292 = vlaneseq
        %v6293 = vshrl.u32 %v6292, 7
        %v6294 = vsub.s32 6, %v6293
        %v6295 = vrot.slane %v5075, %v6294
        %v6296 = vlaneseq
        %v6297 = vshrl.u32 %v6296, 7
        %v6298 = vsub.s32 7, %v6297
        %v6299 = vrot.slane %v5075, %v6298
        %v6300 = vlaneseq
        %v6301 = vshrl.u32 %v6300, 7
        %v6302 = vsub.s32 0, %v6301
        %v6303 = vrot.slane %v5077, %v6302
        %v6304 = vlaneseq
        %v6305 = vshrl.u32 %v6304, 7
        %v6306 = vsub.s32 1, %v6305
        %v6307 = vrot.slane %v5077, %v6306
        %v6308 = vlaneseq
        %v6309 = vshrl.u32 %v6308, 7
        %v6310 = vsub.s32 2, %v6309
        %v6311 = vrot.slane %v5077, %v6310
        %v6312 = vlaneseq
        %v6313 = vshrl.u32 %v6312, 7
        %v6314 = vsub.s32 3, %v6313
        %v6315 = vrot.slane %v5077, %v6314
        %v6316 = vlaneseq
        %v6317 = vshrl.u32 %v6316, 7
        %v6318 = vsub.s32 4, %v6317
        %v6319 = vrot.slane %v5077, %v6318
        %v6320 = vlaneseq
        %v6321 = vshrl.u32 %v6320, 7
        %v6322 = vsub.s32 5, %v6321
        %v6323 = vrot.slane %v5077, %v6322
        %v6324 = vlaneseq
        %v6325 = vshrl.u32 %v6324, 7
        %v6326 = vsub.s32 6, %v6325
        %v6327 = vrot.slane %v5077, %v6326
        %v6328 = vlaneseq
        %v6329 = vshrl.u32 %v6328, 7
        %v6330 = vsub.s32 7, %v6329
        %v6331 = vrot.slane %v5077, %v6330
        %v6332 = vlaneseq
        %v6333 = vshrl.u32 %v6332, 7
        %v6334 = vsub.s32 0, %v6333
        %v6335 = vrot.slane %v5079, %v6334
        %v6336 = vlaneseq
        %v6337 = vshrl.u32 %v6336, 7
        %v6338 = vsub.s32 1, %v6337
        %v6339 = vrot.slane %v5079, %v6338
        %v6340 = vlaneseq
        %v6341 = vshrl.u32 %v6340, 7
        %v6342 = vsub.s32 2, %v6341
        %v6343 = vrot.slane %v5079, %v6342
        %v6344 = vlaneseq
        %v6345 = vshrl.u32 %v6344, 7
        %v6346 = vsub.s32 3, %v6345
        %v6347 = vrot.slane %v5079, %v6346
        %v6348 = vlaneseq
        %v6349 = vshrl.u32 %v6348, 7
        %v6350 = vsub.s32 4, %v6349
        %v6351 = vrot.slane %v5079, %v6350
        %v6352 = vlaneseq
        %v6353 = vshrl.u32 %v6352, 7
        %v6354 = vsub.s32 5, %v6353
        %v6355 = vrot.slane %v5079, %v6354
        %v6356 = vlaneseq
        %v6357 = vshrl.u32 %v6356, 7
        %v6358 = vsub.s32 6, %v6357
        %v6359 = vrot.slane %v5079, %v6358
        %v6360 = vlaneseq
        %v6361 = vshrl.u32 %v6360, 7
        %v6362 = vsub.s32 7, %v6361
        %v6363 = vrot.slane %v5079, %v6362
        %v6364 = vlaneseq
        %v6365 = vshrl.u32 %v6364, 7
        %v6366 = vsub.s32 0, %v6365
        %v6367 = vrot.slane %v5081, %v6366
        %v6368 = vlaneseq
        %v6369 = vshrl.u32 %v6368, 7
        %v6370 = vsub.s32 1, %v6369
        %v6371 = vrot.slane %v5081, %v6370
        %v6372 = vlaneseq
        %v6373 = vshrl.u32 %v6372, 7
        %v6374 = vsub.s32 2, %v6373
        %v6375 = vrot.slane %v5081, %v6374
        %v6376 = vlaneseq
        %v6377 = vshrl.u32 %v6376, 7
        %v6378 = vsub.s32 3, %v6377
        %v6379 = vrot.slane %v5081, %v6378
        %v6380 = vlaneseq
        %v6381 = vshrl.u32 %v6380, 7
        %v6382 = vsub.s32 4, %v6381
        %v6383 = vrot.slane %v5081, %v6382
        %v6384 = vlaneseq
        %v6385 = vshrl.u32 %v6384, 7
        %v6386 = vsub.s32 5, %v6385
        %v6387 = vrot.slane %v5081, %v6386
        %v6388 = vlaneseq
        %v6389 = vshrl.u32 %v6388, 7
        %v6390 = vsub.s32 6, %v6389
        %v6391 = vrot.slane %v5081, %v6390
        %v6392 = vlaneseq
        %v6393 = vshrl.u32 %v6392, 7
        %v6394 = vsub.s32 7, %v6393
        %v6395 = vrot.slane %v5081, %v6394
        %v6396 = vlaneseq
        %v6397 = vshrl.u32 %v6396, 7
        %v6398 = vsub.s32 0, %v6397
        %v6399 = vrot.slane %v5083, %v6398
        %v6400 = vlaneseq
        %v6401 = vshrl.u32 %v6400, 7
        %v6402 = vsub.s32 1, %v6401
        %v6403 = vrot.slane %v5083, %v6402
        %v6404 = vlaneseq
        %v6405 = vshrl.u32 %v6404, 7
        %v6406 = vsub.s32 2, %v6405
        %v6407 = vrot.slane %v5083, %v6406
        %v6408 = vlaneseq
        %v6409 = vshrl.u32 %v6408, 7
        %v6410 = vsub.s32 3, %v6409
        %v6411 = vrot.slane %v5083, %v6410
        %v6412 = vlaneseq
        %v6413 = vshrl.u32 %v6412, 7
        %v6414 = vsub.s32 4, %v6413
        %v6415 = vrot.slane %v5083, %v6414
        %v6416 = vlaneseq
        %v6417 = vshrl.u32 %v6416, 7
        %v6418 = vsub.s32 5, %v6417
        %v6419 = vrot.slane %v5083, %v6418
        %v6420 = vlaneseq
        %v6421 = vshrl.u32 %v6420, 7
        %v6422 = vsub.s32 6, %v6421
        %v6423 = vrot.slane %v5083, %v6422
        %v6424 = vlaneseq
        %v6425 = vshrl.u32 %v6424, 7
        %v6426 = vsub.s32 7, %v6425
        %v6427 = vrot.slane %v5083, %v6426
        %v6428 = vlaneseq
        %v6429 = vshrl.u32 %v6428, 7
        %v6430 = vsub.s32 0, %v6429
        %v6431 = vrot.slane %v5085, %v6430
        %v6432 = vlaneseq
        %v6433 = vshrl.u32 %v6432, 7
        %v6434 = vsub.s32 1, %v6433
        %v6435 = vrot.slane %v5085, %v6434
        %v6436 = vlaneseq
        %v6437 = vshrl.u32 %v6436, 7
        %v6438 = vsub.s32 2, %v6437
        %v6439 = vrot.slane %v5085, %v6438
        %v6440 = vlaneseq
        %v6441 = vshrl.u32 %v6440, 7
        %v6442 = vsub.s32 3, %v6441
        %v6443 = vrot.slane %v5085, %v6442
        %v6444 = vlaneseq
        %v6445 = vshrl.u32 %v6444, 7
        %v6446 = vsub.s32 4, %v6445
        %v6447 = vrot.slane %v5085, %v6446
        %v6448 = vlaneseq
        %v6449 = vshrl.u32 %v6448, 7
        %v6450 = vsub.s32 5, %v6449
        %v6451 = vrot.slane %v5085, %v6450
        %v6452 = vlaneseq
        %v6453 = vshrl.u32 %v6452, 7
        %v6454 = vsub.s32 6, %v6453
        %v6455 = vrot.slane %v5085, %v6454
        %v6456 = vlaneseq
        %v6457 = vshrl.u32 %v6456, 7
        %v6458 = vsub.s32 7, %v6457
        %v6459 = vrot.slane %v5085, %v6458
        %v6460 = vlaneseq
        %v6461 = vshrl.u32 %v6460, 7
        %v6462 = vsub.s32 0, %v6461
        %v6463 = vrot.slane %v5087, %v6462
        %v6464 = vlaneseq
        %v6465 = vshrl.u32 %v6464, 7
        %v6466 = vsub.s32 1, %v6465
        %v6467 = vrot.slane %v5087, %v6466
        %v6468 = vlaneseq
        %v6469 = vshrl.u32 %v6468, 7
        %v6470 = vsub.s32 2, %v6469
        %v6471 = vrot.slane %v5087, %v6470
        %v6472 = vlaneseq
        %v6473 = vshrl.u32 %v6472, 7
        %v6474 = vsub.s32 3, %v6473
        %v6475 = vrot.slane %v5087, %v6474
        %v6476 = vlaneseq
        %v6477 = vshrl.u32 %v6476, 7
        %v6478 = vsub.s32 4, %v6477
        %v6479 = vrot.slane %v5087, %v6478
        %v6480 = vlaneseq
        %v6481 = vshrl.u32 %v6480, 7
        %v6482 = vsub.s32 5, %v6481
        %v6483 = vrot.slane %v5087, %v6482
        %v6484 = vlaneseq
        %v6485 = vshrl.u32 %v6484, 7
        %v6486 = vsub.s32 6, %v6485
        %v6487 = vrot.slane %v5087, %v6486
        %v6488 = vlaneseq
        %v6489 = vshrl.u32 %v6488, 7
        %v6490 = vsub.s32 7, %v6489
        %v6491 = vrot.slane %v5087, %v6490
        %v6492 = vlaneseq
        %v6493 = vshrl.u32 %v6492, 7
        %v6494 = vsub.s32 0, %v6493
        %v6495 = vrot.slane %v5089, %v6494
        %v6496 = vlaneseq
        %v6497 = vshrl.u32 %v6496, 7
        %v6498 = vsub.s32 1, %v6497
        %v6499 = vrot.slane %v5089, %v6498
        %v6500 = vlaneseq
        %v6501 = vshrl.u32 %v6500, 7
        %v6502 = vsub.s32 2, %v6501
        %v6503 = vrot.slane %v5089, %v6502
        %v6504 = vlaneseq
        %v6505 = vshrl.u32 %v6504, 7
        %v6506 = vsub.s32 3, %v6505
        %v6507 = vrot.slane %v5089, %v6506
        %v6508 = vlaneseq
        %v6509 = vshrl.u32 %v6508, 7
        %v6510 = vsub.s32 4, %v6509
        %v6511 = vrot.slane %v5089, %v6510
        %v6512 = vlaneseq
        %v6513 = vshrl.u32 %v6512, 7
        %v6514 = vsub.s32 5, %v6513
        %v6515 = vrot.slane %v5089, %v6514
        %v6516 = vlaneseq
        %v6517 = vshrl.u32 %v6516, 7
        %v6518 = vsub.s32 6, %v6517
        %v6519 = vrot.slane %v5089, %v6518
        %v6520 = vlaneseq
        %v6521 = vshrl.u32 %v6520, 7
        %v6522 = vsub.s32 7, %v6521
        %v6523 = vrot.slane %v5089, %v6522
        %v6524 = vlaneseq
        %v6525 = vshrl.u32 %v6524, 7
        %v6526 = vsub.s32 0, %v6525
        %v6527 = vrot.slane %v5091, %v6526
        %v6528 = vlaneseq
        %v6529 = vshrl.u32 %v6528, 7
        %v6530 = vsub.s32 1, %v6529
        %v6531 = vrot.slane %v5091, %v6530
        %v6532 = vlaneseq
        %v6533 = vshrl.u32 %v6532, 7
        %v6534 = vsub.s32 2, %v6533
        %v6535 = vrot.slane %v5091, %v6534
        %v6536 = vlaneseq
        %v6537 = vshrl.u32 %v6536, 7
        %v6538 = vsub.s32 3, %v6537
        %v6539 = vrot.slane %v5091, %v6538
        %v6540 = vlaneseq
        %v6541 = vshrl.u32 %v6540, 7
        %v6542 = vsub.s32 4, %v6541
        %v6543 = vrot.slane %v5091, %v6542
        %v6544 = vlaneseq
        %v6545 = vshrl.u32 %v6544, 7
        %v6546 = vsub.s32 5, %v6545
        %v6547 = vrot.slane %v5091, %v6546
        %v6548 = vlaneseq
        %v6549 = vshrl.u32 %v6548, 7
        %v6550 = vsub.s32 6, %v6549
        %v6551 = vrot.slane %v5091, %v6550
        %v6552 = vlaneseq
        %v6553 = vshrl.u32 %v6552, 7
        %v6554 = vsub.s32 7, %v6553
        %v6555 = vrot.slane %v5091, %v6554
        %v6556 = vlaneseq
        %v6557 = vshrl.u32 %v6556, 7
        %v6558 = vsub.s32 0, %v6557
        %v6559 = vrot.slane %v5093, %v6558
        %v6560 = vlaneseq
        %v6561 = vshrl.u32 %v6560, 7
        %v6562 = vsub.s32 1, %v6561
        %v6563 = vrot.slane %v5093, %v6562
        %v6564 = vlaneseq
        %v6565 = vshrl.u32 %v6564, 7
        %v6566 = vsub.s32 2, %v6565
        %v6567 = vrot.slane %v5093, %v6566
        %v6568 = vlaneseq
        %v6569 = vshrl.u32 %v6568, 7
        %v6570 = vsub.s32 3, %v6569
        %v6571 = vrot.slane %v5093, %v6570
        %v6572 = vlaneseq
        %v6573 = vshrl.u32 %v6572, 7
        %v6574 = vsub.s32 4, %v6573
        %v6575 = vrot.slane %v5093, %v6574
        %v6576 = vlaneseq
        %v6577 = vshrl.u32 %v6576, 7
        %v6578 = vsub.s32 5, %v6577
        %v6579 = vrot.slane %v5093, %v6578
        %v6580 = vlaneseq
        %v6581 = vshrl.u32 %v6580, 7
        %v6582 = vsub.s32 6, %v6581
        %v6583 = vrot.slane %v5093, %v6582
        %v6584 = vlaneseq
        %v6585 = vshrl.u32 %v6584, 7
        %v6586 = vsub.s32 7, %v6585
        %v6587 = vrot.slane %v5093, %v6586
        %v6588 = vlaneseq
        %v6589 = vshrl.u32 %v6588, 7
        %v6590 = vsub.s32 0, %v6589
        %v6591 = vrot.slane %v5095, %v6590
        %v6592 = vlaneseq
        %v6593 = vshrl.u32 %v6592, 7
        %v6594 = vsub.s32 1, %v6593
        %v6595 = vrot.slane %v5095, %v6594
        %v6596 = vlaneseq
        %v6597 = vshrl.u32 %v6596, 7
        %v6598 = vsub.s32 2, %v6597
        %v6599 = vrot.slane %v5095, %v6598
        %v6600 = vlaneseq
        %v6601 = vshrl.u32 %v6600, 7
        %v6602 = vsub.s32 3, %v6601
        %v6603 = vrot.slane %v5095, %v6602
        %v6604 = vlaneseq
        %v6605 = vshrl.u32 %v6604, 7
        %v6606 = vsub.s32 4, %v6605
        %v6607 = vrot.slane %v5095, %v6606
        %v6608 = vlaneseq
        %v6609 = vshrl.u32 %v6608, 7
        %v6610 = vsub.s32 5, %v6609
        %v6611 = vrot.slane %v5095, %v6610
        %v6612 = vlaneseq
        %v6613 = vshrl.u32 %v6612, 7
        %v6614 = vsub.s32 6, %v6613
        %v6615 = vrot.slane %v5095, %v6614
        %v6616 = vlaneseq
        %v6617 = vshrl.u32 %v6616, 7
        %v6618 = vsub.s32 7, %v6617
        %v6619 = vrot.slane %v5095, %v6618
        %v6620 = vlaneseq
        %v6621 = vshrl.u32 %v6620, 7
        %v6622 = vsub.s32 0, %v6621
        %v6623 = vrot.slane %v5097, %v6622
        %v6624 = vlaneseq
        %v6625 = vshrl.u32 %v6624, 7
        %v6626 = vsub.s32 1, %v6625
        %v6627 = vrot.slane %v5097, %v6626
        %v6628 = vlaneseq
        %v6629 = vshrl.u32 %v6628, 7
        %v6630 = vsub.s32 2, %v6629
        %v6631 = vrot.slane %v5097, %v6630
        %v6632 = vlaneseq
        %v6633 = vshrl.u32 %v6632, 7
        %v6634 = vsub.s32 3, %v6633
        %v6635 = vrot.slane %v5097, %v6634
        %v6636 = vlaneseq
        %v6637 = vshrl.u32 %v6636, 7
        %v6638 = vsub.s32 4, %v6637
        %v6639 = vrot.slane %v5097, %v6638
        %v6640 = vlaneseq
        %v6641 = vshrl.u32 %v6640, 7
        %v6642 = vsub.s32 5, %v6641
        %v6643 = vrot.slane %v5097, %v6642
        %v6644 = vlaneseq
        %v6645 = vshrl.u32 %v6644, 7
        %v6646 = vsub.s32 6, %v6645
        %v6647 = vrot.slane %v5097, %v6646
        %v6648 = vlaneseq
        %v6649 = vshrl.u32 %v6648, 7
        %v6650 = vsub.s32 7, %v6649
        %v6651 = vrot.slane %v5097, %v6650
        %v6652 = vlaneseq
        %v6653 = vshrl.u32 %v6652, 7
        %v6654 = vsub.s32 0, %v6653
        %v6655 = vrot.slane %v5099, %v6654
        %v6656 = vlaneseq
        %v6657 = vshrl.u32 %v6656, 7
        %v6658 = vsub.s32 1, %v6657
        %v6659 = vrot.slane %v5099, %v6658
        %v6660 = vlaneseq
        %v6661 = vshrl.u32 %v6660, 7
        %v6662 = vsub.s32 2, %v6661
        %v6663 = vrot.slane %v5099, %v6662
        %v6664 = vlaneseq
        %v6665 = vshrl.u32 %v6664, 7
        %v6666 = vsub.s32 3, %v6665
        %v6667 = vrot.slane %v5099, %v6666
        %v6668 = vlaneseq
        %v6669 = vshrl.u32 %v6668, 7
        %v6670 = vsub.s32 4, %v6669
        %v6671 = vrot.slane %v5099, %v6670
        %v6672 = vlaneseq
        %v6673 = vshrl.u32 %v6672, 7
        %v6674 = vsub.s32 5, %v6673
        %v6675 = vrot.slane %v5099, %v6674
        %v6676 = vlaneseq
        %v6677 = vshrl.u32 %v6676, 7
        %v6678 = vsub.s32 6, %v6677
        %v6679 = vrot.slane %v5099, %v6678
        %v6680 = vlaneseq
        %v6681 = vshrl.u32 %v6680, 7
        %v6682 = vsub.s32 7, %v6681
        %v6683 = vrot.slane %v5099, %v6682
        %v7068 = vmul.f32 %v5151, %v242
        %v7069 = vmul.f32 %v5155, %v243
        %v7070 = vmul.f32 %v5159, %v244
        %v7071 = vmul.f32 %v5163, %v245
        %v7072 = vmul.f32 %v5167, %v246
        %v7073 = vmul.f32 %v5171, %v247
        %v7074 = vmul.f32 %v5175, %v248
        %v7075 = vmul.f32 %v5179, %v249
        %v7076 = vmul.f32 %v5183, %v250
        %v7077 = vmul.f32 %v5187, %v251
        %v7078 = vmul.f32 %v5191, %v252
        %v7079 = vmul.f32 %v5195, %v253
        %v7080 = vmul.f32 %v5199, %v254
        %v7081 = vmul.f32 %v5203, %v255
        %v7082 = vmul.f32 %v5207, %v256
        %v7083 = vmul.f32 %v5211, %v257
        %v7084 = vmul.f32 %v5215, %v258
        %v7085 = vmul.f32 %v5219, %v259
        %v7086 = vmul.f32 %v5223, %v260
        %v7087 = vmul.f32 %v5227, %v261
        %v7088 = vmul.f32 %v5231, %v262
        %v7089 = vmul.f32 %v5235, %v263
        %v7090 = vmul.f32 %v5239, %v264
        %v7091 = vmul.f32 %v5243, %v265
        %v7092 = vmul.f32 %v5247, %v266
        %v7093 = vmul.f32 %v5251, %v267
        %v7094 = vmul.f32 %v5255, %v268
        %v7095 = vmul.f32 %v5259, %v269
        %v7096 = vmul.f32 %v5263, %v270
        %v7097 = vmul.f32 %v5267, %v271
        %v7098 = vmul.f32 %v5271, %v272
        %v7099 = vmul.f32 %v5275, %v273
        %v7100 = vmul.f32 %v5279, %v274
        %v7101 = vmul.f32 %v5283, %v275
        %v7102 = vmul.f32 %v5287, %v276
        %v7103 = vmul.f32 %v5291, %v277
        %v7104 = vmul.f32 %v5295, %v278
        %v7105 = vmul.f32 %v5299, %v279
        %v7106 = vmul.f32 %v5303, %v280
        %v7107 = vmul.f32 %v5307, %v281
        %v7108 = vmul.f32 %v5311, %v282
        %v7109 = vmul.f32 %v5315, %v283
        %v7110 = vmul.f32 %v5319, %v284
        %v7111 = vmul.f32 %v5323, %v285
        %v7112 = vmul.f32 %v5327, %v286
        %v7113 = vmul.f32 %v5331, %v287
        %v7114 = vmul.f32 %v5335, %v288
        %v7115 = vmul.f32 %v5339, %v289
        %v7116 = vmul.f32 %v5343, %v290
        %v7117 = vmul.f32 %v5347, %v291
        %v7118 = vmul.f32 %v5351, %v292
        %v7119 = vmul.f32 %v5355, %v293
        %v7120 = vmul.f32 %v5359, %v294
        %v7121 = vmul.f32 %v5363, %v295
        %v7122 = vmul.f32 %v5367, %v296
        %v7123 = vmul.f32 %v5371, %v297
        %v7124 = vmul.f32 %v5375, %v298
        %v7125 = vmul.f32 %v5379, %v299
        %v7126 = vmul.f32 %v5383, %v300
        %v7127 = vmul.f32 %v5387, %v301
        %v7128 = vmul.f32 %v5391, %v302
        %v7129 = vmul.f32 %v5395, %v303
        %v7130 = vmul.f32 %v5399, %v304
        %v7131 = vmul.f32 %v5403, %v305
        %v7132 = vmul.f32 %v5407, %v306
        %v7133 = vmul.f32 %v5411, %v307
        %v7134 = vmul.f32 %v5415, %v308
        %v7135 = vmul.f32 %v5419, %v309
        %v7136 = vmul.f32 %v5423, %v310
        %v7137 = vmul.f32 %v5427, %v311
        %v7138 = vmul.f32 %v5431, %v312
        %v7139 = vmul.f32 %v5435, %v313
        %v7140 = vmul.f32 %v5439, %v314
        %v7141 = vmul.f32 %v5443, %v315
        %v7142 = vmul.f32 %v5447, %v316
        %v7143 = vmul.f32 %v5451, %v317
        %v7144 = vmul.f32 %v5455, %v318
        %v7145 = vmul.f32 %v5459, %v319
        %v7146 = vmul.f32 %v5463, %v320
        %v7147 = vmul.f32 %v5467, %v321
        %v7148 = vmul.f32 %v5471, %v322
        %v7149 = vmul.f32 %v5475, %v323
        %v7150 = vmul.f32 %v5479, %v324
        %v7151 = vmul.f32 %v5483, %v325
        %v7152 = vmul.f32 %v5487, %v326
        %v7153 = vmul.f32 %v5491, %v327
        %v7154 = vmul.f32 %v5495, %v328
        %v7155 = vmul.f32 %v5499, %v329
        %v7156 = vmul.f32 %v5503, %v330
        %v7157 = vmul.f32 %v5507, %v331
        %v7158 = vmul.f32 %v5511, %v332
        %v7159 = vmul.f32 %v5515, %v333
        %v7160 = vmul.f32 %v5519, %v334
        %v7161 = vmul.f32 %v5523, %v335
        %v7162 = vmul.f32 %v5527, %v336
        %v7163 = vmul.f32 %v5531, %v337
        %v7164 = vmul.f32 %v5535, %v338
        %v7165 = vmul.f32 %v5539, %v339
        %v7166 = vmul.f32 %v5543, %v340
        %v7167 = vmul.f32 %v5547, %v341
        %v7168 = vmul.f32 %v5551, %v342
        %v7169 = vmul.f32 %v5555, %v343
        %v7170 = vmul.f32 %v5559, %v344
        %v7171 = vmul.f32 %v5563, %v345
        %v7172 = vmul.f32 %v5567, %v346
        %v7173 = vmul.f32 %v5571, %v347
        %v7174 = vmul.f32 %v5575, %v348
        %v7175 = vmul.f32 %v5579, %v349
        %v7176 = vmul.f32 %v5583, %v350
        %v7177 = vmul.f32 %v5587, %v351
        %v7178 = vmul.f32 %v5591, %v352
        %v7179 = vmul.f32 %v5595, %v353
        %v7180 = vmul.f32 %v5599, %v354
        %v7181 = vmul.f32 %v5603, %v355
        %v7182 = vmul.f32 %v5607, %v356
        %v7183 = vmul.f32 %v5611, %v357
        %v7184 = vmul.f32 %v5615, %v358
        %v7185 = vmul.f32 %v5619, %v359
        %v7186 = vmul.f32 %v5623, %v360
        %v7187 = vmul.f32 %v5627, %v361
        %v7188 = vmul.f32 %v5631, %v362
        %v7189 = vmul.f32 %v5635, %v363
        %v7190 = vmul.f32 %v5639, %v364
        %v7191 = vmul.f32 %v5643, %v365
        %v7192 = vmul.f32 %v5647, %v366
        %v7193 = vmul.f32 %v5651, %v367
        %v7194 = vmul.f32 %v5655, %v368
        %v7195 = vmul.f32 %v5659, %v369
        %v7196 = vmul.f32 %v5663, %v370
        %v7197 = vmul.f32 %v5667, %v371
        %v7198 = vmul.f32 %v5671, %v372
        %v7199 = vmul.f32 %v5675, %v373
        %v7200 = vmul.f32 %v5679, %v374
        %v7201 = vmul.f32 %v5683, %v375
        %v7202 = vmul.f32 %v5687, %v376
        %v7203 = vmul.f32 %v5691, %v377
        %v7204 = vmul.f32 %v5695, %v378
        %v7205 = vmul.f32 %v5699, %v379
        %v7206 = vmul.f32 %v5703, %v380
        %v7207 = vmul.f32 %v5707, %v381
        %v7208 = vmul.f32 %v5711, %v382
        %v7209 = vmul.f32 %v5715, %v383
        %v7210 = vmul.f32 %v5719, %v384
        %v7211 = vmul.f32 %v5723, %v385
        %v7212 = vmul.f32 %v5727, %v386
        %v7213 = vmul.f32 %v5731, %v387
        %v7214 = vmul.f32 %v5735, %v388
        %v7215 = vmul.f32 %v5739, %v389
        %v7216 = vmul.f32 %v5743, %v390
        %v7217 = vmul.f32 %v5747, %v391
        %v7218 = vmul.f32 %v5751, %v392
        %v7219 = vmul.f32 %v5755, %v393
        %v7220 = vmul.f32 %v5759, %v394
        %v7221 = vmul.f32 %v5763, %v395
        %v7222 = vmul.f32 %v5767, %v396
        %v7223 = vmul.f32 %v5771, %v397
        %v7224 = vmul.f32 %v5775, %v398
        %v7225 = vmul.f32 %v5779, %v399
        %v7226 = vmul.f32 %v5783, %v400
        %v7227 = vmul.f32 %v5787, %v401
        %v7228 = vmul.f32 %v5791, %v402
        %v7229 = vmul.f32 %v5795, %v403
        %v7230 = vmul.f32 %v5799, %v404
        %v7231 = vmul.f32 %v5803, %v405
        %v7232 = vmul.f32 %v5807, %v406
        %v7233 = vmul.f32 %v5811, %v407
        %v7234 = vmul.f32 %v5815, %v408
        %v7235 = vmul.f32 %v5819, %v409
        %v7236 = vmul.f32 %v5823, %v410
        %v7237 = vmul.f32 %v5827, %v411
        %v7238 = vmul.f32 %v5831, %v412
        %v7239 = vmul.f32 %v5835, %v413
        %v7240 = vmul.f32 %v5839, %v414
        %v7241 = vmul.f32 %v5843, %v415
        %v7242 = vmul.f32 %v5847, %v416
        %v7243 = vmul.f32 %v5851, %v417
        %v7244 = vmul.f32 %v5855, %v418
        %v7245 = vmul.f32 %v5859, %v419
        %v7246 = vmul.f32 %v5863, %v420
        %v7247 = vmul.f32 %v5867, %v421
        %v7248 = vmul.f32 %v5871, %v422
        %v7249 = vmul.f32 %v5875, %v423
        %v7250 = vmul.f32 %v5879, %v424
        %v7251 = vmul.f32 %v5883, %v425
        %v7252 = vmul.f32 %v5887, %v426
        %v7253 = vmul.f32 %v5891, %v427
        %v7254 = vmul.f32 %v5895, %v428
        %v7255 = vmul.f32 %v5899, %v429
        %v7256 = vmul.f32 %v5903, %v430
        %v7257 = vmul.f32 %v5907, %v431
        %v7258 = vmul.f32 %v5911, %v432
        %v7259 = vmul.f32 %v5915, %v433
        %v7260 = vmul.f32 %v5919, %v434
        %v7261 = vmul.f32 %v5923, %v435
        %v7262 = vmul.f32 %v5927, %v436
        %v7263 = vmul.f32 %v5931, %v437
        %v7264 = vmul.f32 %v5935, %v438
        %v7265 = vmul.f32 %v5939, %v439
        %v7266 = vmul.f32 %v5943, %v440
        %v7267 = vmul.f32 %v5947, %v441
        %v7268 = vmul.f32 %v5951, %v442
        %v7269 = vmul.f32 %v5955, %v443
        %v7270 = vmul.f32 %v5959, %v444
        %v7271 = vmul.f32 %v5963, %v445
        %v7272 = vmul.f32 %v5967, %v446
        %v7273 = vmul.f32 %v5971, %v447
        %v7274 = vmul.f32 %v5975, %v448
        %v7275 = vmul.f32 %v5979, %v449
        %v7276 = vmul.f32 %v5983, %v450
        %v7277 = vmul.f32 %v5987, %v451
        %v7278 = vmul.f32 %v5991, %v452
        %v7279 = vmul.f32 %v5995, %v453
        %v7280 = vmul.f32 %v5999, %v454
        %v7281 = vmul.f32 %v6003, %v455
        %v7282 = vmul.f32 %v6007, %v456
        %v7283 = vmul.f32 %v6011, %v457
        %v7284 = vmul.f32 %v6015, %v458
        %v7285 = vmul.f32 %v6019, %v459
        %v7286 = vmul.f32 %v6023, %v460
        %v7287 = vmul.f32 %v6027, %v461
        %v7288 = vmul.f32 %v6031, %v462
        %v7289 = vmul.f32 %v6035, %v463
        %v7290 = vmul.f32 %v6039, %v464
        %v7291 = vmul.f32 %v6043, %v465
        %v7292 = vmul.f32 %v6047, %v466
        %v7293 = vmul.f32 %v6051, %v467
        %v7294 = vmul.f32 %v6055, %v468
        %v7295 = vmul.f32 %v6059, %v469
        %v7296 = vmul.f32 %v6063, %v470
        %v7297 = vmul.f32 %v6067, %v471
        %v7298 = vmul.f32 %v6071, %v472
        %v7299 = vmul.f32 %v6075, %v473
        %v7300 = vmul.f32 %v6079, %v474
        %v7301 = vmul.f32 %v6083, %v475
        %v7302 = vmul.f32 %v6087, %v476
        %v7303 = vmul.f32 %v6091, %v477
        %v7304 = vmul.f32 %v6095, %v478
        %v7305 = vmul.f32 %v6099, %v479
        %v7306 = vmul.f32 %v6103, %v480
        %v7307 = vmul.f32 %v6107, %v481
        %v7308 = vmul.f32 %v6111, %v482
        %v7309 = vmul.f32 %v6115, %v483
        %v7310 = vmul.f32 %v6119, %v484
        %v7311 = vmul.f32 %v6123, %v485
        %v7312 = vmul.f32 %v6127, %v486
        %v7313 = vmul.f32 %v6131, %v487
        %v7314 = vmul.f32 %v6135, %v488
        %v7315 = vmul.f32 %v6139, %v489
        %v7316 = vmul.f32 %v6143, %v490
        %v7317 = vmul.f32 %v6147, %v491
        %v7318 = vmul.f32 %v6151, %v492
        %v7319 = vmul.f32 %v6155, %v493
        %v7320 = vmul.f32 %v6159, %v494
        %v7321 = vmul.f32 %v6163, %v495
        %v7322 = vmul.f32 %v6167, %v496
        %v7323 = vmul.f32 %v6171, %v497
        %v7324 = vmul.f32 %v6175, %v498
        %v7325 = vmul.f32 %v6179, %v499
        %v7326 = vmul.f32 %v6183, %v500
        %v7327 = vmul.f32 %v6187, %v501
        %v7328 = vmul.f32 %v6191, %v502
        %v7329 = vmul.f32 %v6195, %v503
        %v7330 = vmul.f32 %v6199, %v504
        %v7331 = vmul.f32 %v6203, %v505
        %v7332 = vmul.f32 %v6207, %v506
        %v7333 = vmul.f32 %v6211, %v507
        %v7334 = vmul.f32 %v6215, %v508
        %v7335 = vmul.f32 %v6219, %v509
        %v7336 = vmul.f32 %v6223, %v510
        %v7337 = vmul.f32 %v6227, %v511
        %v7338 = vmul.f32 %v6231, %v512
        %v7339 = vmul.f32 %v6235, %v513
        %v7340 = vmul.f32 %v6239, %v514
        %v7341 = vmul.f32 %v6243, %v515
        %v7342 = vmul.f32 %v6247, %v516
        %v7343 = vmul.f32 %v6251, %v517
        %v7344 = vmul.f32 %v6255, %v518
        %v7345 = vmul.f32 %v6259, %v519
        %v7346 = vmul.f32 %v6263, %v520
        %v7347 = vmul.f32 %v6267, %v521
        %v7348 = vmul.f32 %v6271, %v522
        %v7349 = vmul.f32 %v6275, %v523
        %v7350 = vmul.f32 %v6279, %v524
        %v7351 = vmul.f32 %v6283, %v525
        %v7352 = vmul.f32 %v6287, %v526
        %v7353 = vmul.f32 %v6291, %v527
        %v7354 = vmul.f32 %v6295, %v528
        %v7355 = vmul.f32 %v6299, %v529
        %v7356 = vmul.f32 %v6303, %v530
        %v7357 = vmul.f32 %v6307, %v531
        %v7358 = vmul.f32 %v6311, %v532
        %v7359 = vmul.f32 %v6315, %v533
        %v7360 = vmul.f32 %v6319, %v534
        %v7361 = vmul.f32 %v6323, %v535
        %v7362 = vmul.f32 %v6327, %v536
        %v7363 = vmul.f32 %v6331, %v537
        %v7364 = vmul.f32 %v6335, %v538
        %v7365 = vmul.f32 %v6339, %v539
        %v7366 = vmul.f32 %v6343, %v540
        %v7367 = vmul.f32 %v6347, %v541
        %v7368 = vmul.f32 %v6351, %v542
        %v7369 = vmul.f32 %v6355, %v543
        %v7370 = vmul.f32 %v6359, %v544
        %v7371 = vmul.f32 %v6363, %v545
        %v7372 = vmul.f32 %v6367, %v546
        %v7373 = vmul.f32 %v6371, %v547
        %v7374 = vmul.f32 %v6375, %v548
        %v7375 = vmul.f32 %v6379, %v549
        %v7376 = vmul.f32 %v6383, %v550
        %v7377 = vmul.f32 %v6387, %v551
        %v7378 = vmul.f32 %v6391, %v552
        %v7379 = vmul.f32 %v6395, %v553
        %v7380 = vmul.f32 %v6399, %v554
        %v7381 = vmul.f32 %v6403, %v555
        %v7382 = vmul.f32 %v6407, %v556
        %v7383 = vmul.f32 %v6411, %v557
        %v7384 = vmul.f32 %v6415, %v558
        %v7385 = vmul.f32 %v6419, %v559
        %v7386 = vmul.f32 %v6423, %v560
        %v7387 = vmul.f32 %v6427, %v561
        %v7388 = vmul.f32 %v6431, %v562
        %v7389 = vmul.f32 %v6435, %v563
        %v7390 = vmul.f32 %v6439, %v564
        %v7391 = vmul.f32 %v6443, %v565
        %v7392 = vmul.f32 %v6447, %v566
        %v7393 = vmul.f32 %v6451, %v567
        %v7394 = vmul.f32 %v6455, %v568
        %v7395 = vmul.f32 %v6459, %v569
        %v7396 = vmul.f32 %v6463, %v570
        %v7397 = vmul.f32 %v6467, %v571
        %v7398 = vmul.f32 %v6471, %v572
        %v7399 = vmul.f32 %v6475, %v573
        %v7400 = vmul.f32 %v6479, %v574
        %v7401 = vmul.f32 %v6483, %v575
        %v7402 = vmul.f32 %v6487, %v576
        %v7403 = vmul.f32 %v6491, %v577
        %v7404 = vmul.f32 %v6495, %v578
        %v7405 = vmul.f32 %v6499, %v579
        %v7406 = vmul.f32 %v6503, %v580
        %v7407 = vmul.f32 %v6507, %v581
        %v7408 = vmul.f32 %v6511, %v582
        %v7409 = vmul.f32 %v6515, %v583
        %v7410 = vmul.f32 %v6519, %v584
        %v7411 = vmul.f32 %v6523, %v585
        %v7412 = vmul.f32 %v6527, %v586
        %v7413 = vmul.f32 %v6531, %v587
        %v7414 = vmul.f32 %v6535, %v588
        %v7415 = vmul.f32 %v6539, %v589
        %v7416 = vmul.f32 %v6543, %v590
        %v7417 = vmul.f32 %v6547, %v591
        %v7418 = vmul.f32 %v6551, %v592
        %v7419 = vmul.f32 %v6555, %v593
        %v7420 = vmul.f32 %v6559, %v594
        %v7421 = vmul.f32 %v6563, %v595
        %v7422 = vmul.f32 %v6567, %v596
        %v7423 = vmul.f32 %v6571, %v597
        %v7424 = vmul.f32 %v6575, %v598
        %v7425 = vmul.f32 %v6579, %v599
        %v7426 = vmul.f32 %v6583, %v600
        %v7427 = vmul.f32 %v6587, %v601
        %v7428 = vmul.f32 %v6591, %v602
        %v7429 = vmul.f32 %v6595, %v603
        %v7430 = vmul.f32 %v6599, %v604
        %v7431 = vmul.f32 %v6603, %v605
        %v7432 = vmul.f32 %v6607, %v606
        %v7433 = vmul.f32 %v6611, %v607
        %v7434 = vmul.f32 %v6615, %v608
        %v7435 = vmul.f32 %v6619, %v609
        %v7436 = vmul.f32 %v6623, %v610
        %v7437 = vmul.f32 %v6627, %v611
        %v7438 = vmul.f32 %v6631, %v612
        %v7439 = vmul.f32 %v6635, %v613
        %v7440 = vmul.f32 %v6639, %v614
        %v7441 = vmul.f32 %v6643, %v615
        %v7442 = vmul.f32 %v6647, %v616
        %v7443 = vmul.f32 %v6651, %v617
        %v7444 = vmul.f32 %v6655, %v618
        %v7445 = vmul.f32 %v6659, %v619
        %v7446 = vmul.f32 %v6663, %v620
        %v7447 = vmul.f32 %v6667, %v621
        %v7448 = vmul.f32 %v6671, %v622
        %v7449 = vmul.f32 %v6675, %v623
        %v7450 = vmul.f32 %v6679, %v624
        %v7451 = vmul.f32 %v6683, %v625
        %v7452 = vmul.f32 %v5151, %v626
        %v7453 = vmul.f32 %v5155, %v627
        %v7454 = vmul.f32 %v5159, %v628
        %v7455 = vmul.f32 %v5163, %v629
        %v7456 = vmul.f32 %v5167, %v630
        %v7457 = vmul.f32 %v5171, %v631
        %v7458 = vmul.f32 %v5175, %v632
        %v7459 = vmul.f32 %v5179, %v633
        %v7460 = vmul.f32 %v5183, %v634
        %v7461 = vmul.f32 %v5187, %v635
        %v7462 = vmul.f32 %v5191, %v636
        %v7463 = vmul.f32 %v5195, %v637
        %v7464 = vmul.f32 %v5199, %v638
        %v7465 = vmul.f32 %v5203, %v639
        %v7466 = vmul.f32 %v5207, %v640
        %v7467 = vmul.f32 %v5211, %v641
        %v7468 = vmul.f32 %v5215, %v642
        %v7469 = vmul.f32 %v5219, %v643
        %v7470 = vmul.f32 %v5223, %v644
        %v7471 = vmul.f32 %v5227, %v645
        %v7472 = vmul.f32 %v5231, %v646
        %v7473 = vmul.f32 %v5235, %v647
        %v7474 = vmul.f32 %v5239, %v648
        %v7475 = vmul.f32 %v5243, %v649
        %v7476 = vmul.f32 %v5247, %v650
        %v7477 = vmul.f32 %v5251, %v651
        %v7478 = vmul.f32 %v5255, %v652
        %v7479 = vmul.f32 %v5259, %v653
        %v7480 = vmul.f32 %v5263, %v654
        %v7481 = vmul.f32 %v5267, %v655
        %v7482 = vmul.f32 %v5271, %v656
        %v7483 = vmul.f32 %v5275, %v657
        %v7484 = vmul.f32 %v5279, %v658
        %v7485 = vmul.f32 %v5283, %v659
        %v7486 = vmul.f32 %v5287, %v660
        %v7487 = vmul.f32 %v5291, %v661
        %v7488 = vmul.f32 %v5295, %v662
        %v7489 = vmul.f32 %v5299, %v663
        %v7490 = vmul.f32 %v5303, %v664
        %v7491 = vmul.f32 %v5307, %v665
        %v7492 = vmul.f32 %v5311, %v666
        %v7493 = vmul.f32 %v5315, %v667
        %v7494 = vmul.f32 %v5319, %v668
        %v7495 = vmul.f32 %v5323, %v669
        %v7496 = vmul.f32 %v5327, %v670
        %v7497 = vmul.f32 %v5331, %v671
        %v7498 = vmul.f32 %v5335, %v672
        %v7499 = vmul.f32 %v5339, %v673
        %v7500 = vmul.f32 %v5343, %v674
        %v7501 = vmul.f32 %v5347, %v675
        %v7502 = vmul.f32 %v5351, %v676
        %v7503 = vmul.f32 %v5355, %v677
        %v7504 = vmul.f32 %v5359, %v678
        %v7505 = vmul.f32 %v5363, %v679
        %v7506 = vmul.f32 %v5367, %v680
        %v7507 = vmul.f32 %v5371, %v681
        %v7508 = vmul.f32 %v5375, %v682
        %v7509 = vmul.f32 %v5379, %v683
        %v7510 = vmul.f32 %v5383, %v684
        %v7511 = vmul.f32 %v5387, %v685
        %v7512 = vmul.f32 %v5391, %v686
        %v7513 = vmul.f32 %v5395, %v687
        %v7514 = vmul.f32 %v5399, %v688
        %v7515 = vmul.f32 %v5403, %v689
        %v7516 = vmul.f32 %v5407, %v690
        %v7517 = vmul.f32 %v5411, %v691
        %v7518 = vmul.f32 %v5415, %v692
        %v7519 = vmul.f32 %v5419, %v693
        %v7520 = vmul.f32 %v5423, %v694
        %v7521 = vmul.f32 %v5427, %v695
        %v7522 = vmul.f32 %v5431, %v696
        %v7523 = vmul.f32 %v5435, %v697
        %v7524 = vmul.f32 %v5439, %v698
        %v7525 = vmul.f32 %v5443, %v699
        %v7526 = vmul.f32 %v5447, %v700
        %v7527 = vmul.f32 %v5451, %v701
        %v7528 = vmul.f32 %v5455, %v702
        %v7529 = vmul.f32 %v5459, %v703
        %v7530 = vmul.f32 %v5463, %v704
        %v7531 = vmul.f32 %v5467, %v705
        %v7532 = vmul.f32 %v5471, %v706
        %v7533 = vmul.f32 %v5475, %v707
        %v7534 = vmul.f32 %v5479, %v708
        %v7535 = vmul.f32 %v5483, %v709
        %v7536 = vmul.f32 %v5487, %v710
        %v7537 = vmul.f32 %v5491, %v711
        %v7538 = vmul.f32 %v5495, %v712
        %v7539 = vmul.f32 %v5499, %v713
        %v7540 = vmul.f32 %v5503, %v714
        %v7541 = vmul.f32 %v5507, %v715
        %v7542 = vmul.f32 %v5511, %v716
        %v7543 = vmul.f32 %v5515, %v717
        %v7544 = vmul.f32 %v5519, %v718
        %v7545 = vmul.f32 %v5523, %v719
        %v7546 = vmul.f32 %v5527, %v720
        %v7547 = vmul.f32 %v5531, %v721
        %v7548 = vmul.f32 %v5535, %v722
        %v7549 = vmul.f32 %v5539, %v723
        %v7550 = vmul.f32 %v5543, %v724
        %v7551 = vmul.f32 %v5547, %v725
        %v7552 = vmul.f32 %v5551, %v726
        %v7553 = vmul.f32 %v5555, %v727
        %v7554 = vmul.f32 %v5559, %v728
        %v7555 = vmul.f32 %v5563, %v729
        %v7556 = vmul.f32 %v5567, %v730
        %v7557 = vmul.f32 %v5571, %v731
        %v7558 = vmul.f32 %v5575, %v732
        %v7559 = vmul.f32 %v5579, %v733
        %v7560 = vmul.f32 %v5583, %v734
        %v7561 = vmul.f32 %v5587, %v735
        %v7562 = vmul.f32 %v5591, %v736
        %v7563 = vmul.f32 %v5595, %v737
        %v7564 = vmul.f32 %v5599, %v738
        %v7565 = vmul.f32 %v5603, %v739
        %v7566 = vmul.f32 %v5607, %v740
        %v7567 = vmul.f32 %v5611, %v741
        %v7568 = vmul.f32 %v5615, %v742
        %v7569 = vmul.f32 %v5619, %v743
        %v7570 = vmul.f32 %v5623, %v744
        %v7571 = vmul.f32 %v5627, %v745
        %v7572 = vmul.f32 %v5631, %v746
        %v7573 = vmul.f32 %v5635, %v747
        %v7574 = vmul.f32 %v5639, %v748
        %v7575 = vmul.f32 %v5643, %v749
        %v7576 = vmul.f32 %v5647, %v750
        %v7577 = vmul.f32 %v5651, %v751
        %v7578 = vmul.f32 %v5655, %v752
        %v7579 = vmul.f32 %v5659, %v753
        %v7580 = vmul.f32 %v5663, %v754
        %v7581 = vmul.f32 %v5667, %v755
        %v7582 = vmul.f32 %v5671, %v756
        %v7583 = vmul.f32 %v5675, %v757
        %v7584 = vmul.f32 %v5679, %v758
        %v7585 = vmul.f32 %v5683, %v759
        %v7586 = vmul.f32 %v5687, %v760
        %v7587 = vmul.f32 %v5691, %v761
        %v7588 = vmul.f32 %v5695, %v762
        %v7589 = vmul.f32 %v5699, %v763
        %v7590 = vmul.f32 %v5703, %v764
        %v7591 = vmul.f32 %v5707, %v765
        %v7592 = vmul.f32 %v5711, %v766
        %v7593 = vmul.f32 %v5715, %v767
        %v7594 = vmul.f32 %v5719, %v768
        %v7595 = vmul.f32 %v5723, %v769
        %v7596 = vmul.f32 %v5727, %v770
        %v7597 = vmul.f32 %v5731, %v771
        %v7598 = vmul.f32 %v5735, %v772
        %v7599 = vmul.f32 %v5739, %v773
        %v7600 = vmul.f32 %v5743, %v774
        %v7601 = vmul.f32 %v5747, %v775
        %v7602 = vmul.f32 %v5751, %v776
        %v7603 = vmul.f32 %v5755, %v777
        %v7604 = vmul.f32 %v5759, %v778
        %v7605 = vmul.f32 %v5763, %v779
        %v7606 = vmul.f32 %v5767, %v780
        %v7607 = vmul.f32 %v5771, %v781
        %v7608 = vmul.f32 %v5775, %v782
        %v7609 = vmul.f32 %v5779, %v783
        %v7610 = vmul.f32 %v5783, %v784
        %v7611 = vmul.f32 %v5787, %v785
        %v7612 = vmul.f32 %v5791, %v786
        %v7613 = vmul.f32 %v5795, %v787
        %v7614 = vmul.f32 %v5799, %v788
        %v7615 = vmul.f32 %v5803, %v789
        %v7616 = vmul.f32 %v5807, %v790
        %v7617 = vmul.f32 %v5811, %v791
        %v7618 = vmul.f32 %v5815, %v792
        %v7619 = vmul.f32 %v5819, %v793
        %v7620 = vmul.f32 %v5823, %v794
        %v7621 = vmul.f32 %v5827, %v795
        %v7622 = vmul.f32 %v5831, %v796
        %v7623 = vmul.f32 %v5835, %v797
        %v7624 = vmul.f32 %v5839, %v798
        %v7625 = vmul.f32 %v5843, %v799
        %v7626 = vmul.f32 %v5847, %v800
        %v7627 = vmul.f32 %v5851, %v801
        %v7628 = vmul.f32 %v5855, %v802
        %v7629 = vmul.f32 %v5859, %v803
        %v7630 = vmul.f32 %v5863, %v804
        %v7631 = vmul.f32 %v5867, %v805
        %v7632 = vmul.f32 %v5871, %v806
        %v7633 = vmul.f32 %v5875, %v807
        %v7634 = vmul.f32 %v5879, %v808
        %v7635 = vmul.f32 %v5883, %v809
        %v7636 = vmul.f32 %v5887, %v810
        %v7637 = vmul.f32 %v5891, %v811
        %v7638 = vmul.f32 %v5895, %v812
        %v7639 = vmul.f32 %v5899, %v813
        %v7640 = vmul.f32 %v5903, %v814
        %v7641 = vmul.f32 %v5907, %v815
        %v7642 = vmul.f32 %v5911, %v816
        %v7643 = vmul.f32 %v5915, %v817
        %v7644 = vmul.f32 %v5919, %v818
        %v7645 = vmul.f32 %v5923, %v819
        %v7646 = vmul.f32 %v5927, %v820
        %v7647 = vmul.f32 %v5931, %v821
        %v7648 = vmul.f32 %v5935, %v822
        %v7649 = vmul.f32 %v5939, %v823
        %v7650 = vmul.f32 %v5943, %v824
        %v7651 = vmul.f32 %v5947, %v825
        %v7652 = vmul.f32 %v5951, %v826
        %v7653 = vmul.f32 %v5955, %v827
        %v7654 = vmul.f32 %v5959, %v828
        %v7655 = vmul.f32 %v5963, %v829
        %v7656 = vmul.f32 %v5967, %v830
        %v7657 = vmul.f32 %v5971, %v831
        %v7658 = vmul.f32 %v5975, %v832
        %v7659 = vmul.f32 %v5979, %v833
        %v7660 = vmul.f32 %v5983, %v834
        %v7661 = vmul.f32 %v5987, %v835
        %v7662 = vmul.f32 %v5991, %v836
        %v7663 = vmul.f32 %v5995, %v837
        %v7664 = vmul.f32 %v5999, %v838
        %v7665 = vmul.f32 %v6003, %v839
        %v7666 = vmul.f32 %v6007, %v840
        %v7667 = vmul.f32 %v6011, %v841
        %v7668 = vmul.f32 %v6015, %v842
        %v7669 = vmul.f32 %v6019, %v843
        %v7670 = vmul.f32 %v6023, %v844
        %v7671 = vmul.f32 %v6027, %v845
        %v7672 = vmul.f32 %v6031, %v846
        %v7673 = vmul.f32 %v6035, %v847
        %v7674 = vmul.f32 %v6039, %v848
        %v7675 = vmul.f32 %v6043, %v849
        %v7676 = vmul.f32 %v6047, %v850
        %v7677 = vmul.f32 %v6051, %v851
        %v7678 = vmul.f32 %v6055, %v852
        %v7679 = vmul.f32 %v6059, %v853
        %v7680 = vmul.f32 %v6063, %v854
        %v7681 = vmul.f32 %v6067, %v855
        %v7682 = vmul.f32 %v6071, %v856
        %v7683 = vmul.f32 %v6075, %v857
        %v7684 = vmul.f32 %v6079, %v858
        %v7685 = vmul.f32 %v6083, %v859
        %v7686 = vmul.f32 %v6087, %v860
        %v7687 = vmul.f32 %v6091, %v861
        %v7688 = vmul.f32 %v6095, %v862
        %v7689 = vmul.f32 %v6099, %v863
        %v7690 = vmul.f32 %v6103, %v864
        %v7691 = vmul.f32 %v6107, %v865
        %v7692 = vmul.f32 %v6111, %v866
        %v7693 = vmul.f32 %v6115, %v867
        %v7694 = vmul.f32 %v6119, %v868
        %v7695 = vmul.f32 %v6123, %v869
        %v7696 = vmul.f32 %v6127, %v870
        %v7697 = vmul.f32 %v6131, %v871
        %v7698 = vmul.f32 %v6135, %v872
        %v7699 = vmul.f32 %v6139, %v873
        %v7700 = vmul.f32 %v6143, %v874
        %v7701 = vmul.f32 %v6147, %v875
        %v7702 = vmul.f32 %v6151, %v876
        %v7703 = vmul.f32 %v6155, %v877
        %v7704 = vmul.f32 %v6159, %v878
        %v7705 = vmul.f32 %v6163, %v879
        %v7706 = vmul.f32 %v6167, %v880
        %v7707 = vmul.f32 %v6171, %v881
        %v7708 = vmul.f32 %v6175, %v882
        %v7709 = vmul.f32 %v6179, %v883
        %v7710 = vmul.f32 %v6183, %v884
        %v7711 = vmul.f32 %v6187, %v885
        %v7712 = vmul.f32 %v6191, %v886
        %v7713 = vmul.f32 %v6195, %v887
        %v7714 = vmul.f32 %v6199, %v888
        %v7715 = vmul.f32 %v6203, %v889
        %v7716 = vmul.f32 %v6207, %v890
        %v7717 = vmul.f32 %v6211, %v891
        %v7718 = vmul.f32 %v6215, %v892
        %v7719 = vmul.f32 %v6219, %v893
        %v7720 = vmul.f32 %v6223, %v894
        %v7721 = vmul.f32 %v6227, %v895
        %v7722 = vmul.f32 %v6231, %v896
        %v7723 = vmul.f32 %v6235, %v897
        %v7724 = vmul.f32 %v6239, %v898
        %v7725 = vmul.f32 %v6243, %v899
        %v7726 = vmul.f32 %v6247, %v900
        %v7727 = vmul.f32 %v6251, %v901
        %v7728 = vmul.f32 %v6255, %v902
        %v7729 = vmul.f32 %v6259, %v903
        %v7730 = vmul.f32 %v6263, %v904
        %v7731 = vmul.f32 %v6267, %v905
        %v7732 = vmul.f32 %v6271, %v906
        %v7733 = vmul.f32 %v6275, %v907
        %v7734 = vmul.f32 %v6279, %v908
        %v7735 = vmul.f32 %v6283, %v909
        %v7736 = vmul.f32 %v6287, %v910
        %v7737 = vmul.f32 %v6291, %v911
        %v7738 = vmul.f32 %v6295, %v912
        %v7739 = vmul.f32 %v6299, %v913
        %v7740 = vmul.f32 %v6303, %v914
        %v7741 = vmul.f32 %v6307, %v915
        %v7742 = vmul.f32 %v6311, %v916
        %v7743 = vmul.f32 %v6315, %v917
        %v7744 = vmul.f32 %v6319, %v918
        %v7745 = vmul.f32 %v6323, %v919
        %v7746 = vmul.f32 %v6327, %v920
        %v7747 = vmul.f32 %v6331, %v921
        %v7748 = vmul.f32 %v6335, %v922
        %v7749 = vmul.f32 %v6339, %v923
        %v7750 = vmul.f32 %v6343, %v924
        %v7751 = vmul.f32 %v6347, %v925
        %v7752 = vmul.f32 %v6351, %v926
        %v7753 = vmul.f32 %v6355, %v927
        %v7754 = vmul.f32 %v6359, %v928
        %v7755 = vmul.f32 %v6363, %v929
        %v7756 = vmul.f32 %v6367, %v930
        %v7757 = vmul.f32 %v6371, %v931
        %v7758 = vmul.f32 %v6375, %v932
        %v7759 = vmul.f32 %v6379, %v933
        %v7760 = vmul.f32 %v6383, %v934
        %v7761 = vmul.f32 %v6387, %v935
        %v7762 = vmul.f32 %v6391, %v936
        %v7763 = vmul.f32 %v6395, %v937
        %v7764 = vmul.f32 %v6399, %v938
        %v7765 = vmul.f32 %v6403, %v939
        %v7766 = vmul.f32 %v6407, %v940
        %v7767 = vmul.f32 %v6411, %v941
        %v7768 = vmul.f32 %v6415, %v942
        %v7769 = vmul.f32 %v6419, %v943
        %v7770 = vmul.f32 %v6423, %v944
        %v7771 = vmul.f32 %v6427, %v945
        %v7772 = vmul.f32 %v6431, %v946
        %v7773 = vmul.f32 %v6435, %v947
        %v7774 = vmul.f32 %v6439, %v948
        %v7775 = vmul.f32 %v6443, %v949
        %v7776 = vmul.f32 %v6447, %v950
        %v7777 = vmul.f32 %v6451, %v951
        %v7778 = vmul.f32 %v6455, %v952
        %v7779 = vmul.f32 %v6459, %v953
        %v7780 = vmul.f32 %v6463, %v954
        %v7781 = vmul.f32 %v6467, %v955
        %v7782 = vmul.f32 %v6471, %v956
        %v7783 = vmul.f32 %v6475, %v957
        %v7784 = vmul.f32 %v6479, %v958
        %v7785 = vmul.f32 %v6483, %v959
        %v7786 = vmul.f32 %v6487, %v960
        %v7787 = vmul.f32 %v6491, %v961
        %v7788 = vmul.f32 %v6495, %v962
        %v7789 = vmul.f32 %v6499, %v963
        %v7790 = vmul.f32 %v6503, %v964
        %v7791 = vmul.f32 %v6507, %v965
        %v7792 = vmul.f32 %v6511, %v966
        %v7793 = vmul.f32 %v6515, %v967
        %v7794 = vmul.f32 %v6519, %v968
        %v7795 = vmul.f32 %v6523, %v969
        %v7796 = vmul.f32 %v6527, %v970
        %v7797 = vmul.f32 %v6531, %v971
        %v7798 = vmul.f32 %v6535, %v972
        %v7799 = vmul.f32 %v6539, %v973
        %v7800 = vmul.f32 %v6543, %v974
        %v7801 = vmul.f32 %v6547, %v975
        %v7802 = vmul.f32 %v6551, %v976
        %v7803 = vmul.f32 %v6555, %v977
        %v7804 = vmul.f32 %v6559, %v978
        %v7805 = vmul.f32 %v6563, %v979
        %v7806 = vmul.f32 %v6567, %v980
        %v7807 = vmul.f32 %v6571, %v981
        %v7808 = vmul.f32 %v6575, %v982
        %v7809 = vmul.f32 %v6579, %v983
        %v7810 = vmul.f32 %v6583, %v984
        %v7811 = vmul.f32 %v6587, %v985
        %v7812 = vmul.f32 %v6591, %v986
        %v7813 = vmul.f32 %v6595, %v987
        %v7814 = vmul.f32 %v6599, %v988
        %v7815 = vmul.f32 %v6603, %v989
        %v7816 = vmul.f32 %v6607, %v990
        %v7817 = vmul.f32 %v6611, %v991
        %v7818 = vmul.f32 %v6615, %v992
        %v7819 = vmul.f32 %v6619, %v993
        %v7820 = vmul.f32 %v6623, %v994
        %v7821 = vmul.f32 %v6627, %v995
        %v7822 = vmul.f32 %v6631, %v996
        %v7823 = vmul.f32 %v6635, %v997
        %v7824 = vmul.f32 %v6639, %v998
        %v7825 = vmul.f32 %v6643, %v999
        %v7826 = vmul.f32 %v6647, %v1000
        %v7827 = vmul.f32 %v6651, %v1001
        %v7828 = vmul.f32 %v6655, %v1002
        %v7829 = vmul.f32 %v6659, %v1003
        %v7830 = vmul.f32 %v6663, %v1004
        %v7831 = vmul.f32 %v6667, %v1005
        %v7832 = vmul.f32 %v6671, %v1006
        %v7833 = vmul.f32 %v6675, %v1007
        %v7834 = vmul.f32 %v6679, %v1008
        %v7835 = vmul.f32 %v6683, %v1009
        %v7836 = vadd.f32 %v7068, %v7069
        %v7837 = vadd.f32 %v7836, %v7070
        %v7838 = vadd.f32 %v7837, %v7071
        %v7839 = vadd.f32 %v7838, %v7072
        %v7840 = vadd.f32 %v7839, %v7073
        %v7841 = vadd.f32 %v7840, %v7074
        %v7842 = vadd.f32 %v7841, %v7075
        %v7843 = vadd.f32 %v7842, %v7076
        %v7844 = vadd.f32 %v7843, %v7077
        %v7845 = vadd.f32 %v7844, %v7078
        %v7846 = vadd.f32 %v7845, %v7079
        %v7847 = vadd.f32 %v7846, %v7080
        %v7848 = vadd.f32 %v7847, %v7081
        %v7849 = vadd.f32 %v7848, %v7082
        %v7850 = vadd.f32 %v7849, %v7083
        %v7851 = vadd.f32 %v7850, %v7084
        %v7852 = vadd.f32 %v7851, %v7085
        %v7853 = vadd.f32 %v7852, %v7086
        %v7854 = vadd.f32 %v7853, %v7087
        %v7855 = vadd.f32 %v7854, %v7088
        %v7856 = vadd.f32 %v7855, %v7089
        %v7857 = vadd.f32 %v7856, %v7090
        %v7858 = vadd.f32 %v7857, %v7091
        %v7859 = vadd.f32 %v7858, %v7092
        %v7860 = vadd.f32 %v7859, %v7093
        %v7861 = vadd.f32 %v7860, %v7094
        %v7862 = vadd.f32 %v7861, %v7095
        %v7863 = vadd.f32 %v7862, %v7096
        %v7864 = vadd.f32 %v7863, %v7097
        %v7865 = vadd.f32 %v7864, %v7098
        %v7866 = vadd.f32 %v7865, %v7099
        %v7867 = vadd.f32 %v7866, %v7100
        %v7868 = vadd.f32 %v7867, %v7101
        %v7869 = vadd.f32 %v7868, %v7102
        %v7870 = vadd.f32 %v7869, %v7103
        %v7871 = vadd.f32 %v7870, %v7104
        %v7872 = vadd.f32 %v7871, %v7105
        %v7873 = vadd.f32 %v7872, %v7106
        %v7874 = vadd.f32 %v7873, %v7107
        %v7875 = vadd.f32 %v7874, %v7108
        %v7876 = vadd.f32 %v7875, %v7109
        %v7877 = vadd.f32 %v7876, %v7110
        %v7878 = vadd.f32 %v7877, %v7111
        %v7879 = vadd.f32 %v7878, %v7112
        %v7880 = vadd.f32 %v7879, %v7113
        %v7881 = vadd.f32 %v7880, %v7114
        %v7882 = vadd.f32 %v7881, %v7115
        %v7883 = vadd.f32 %v7882, %v7116
        %v7884 = vadd.f32 %v7883, %v7117
        %v7885 = vadd.f32 %v7884, %v7118
        %v7886 = vadd.f32 %v7885, %v7119
        %v7887 = vadd.f32 %v7886, %v7120
        %v7888 = vadd.f32 %v7887, %v7121
        %v7889 = vadd.f32 %v7888, %v7122
        %v7890 = vadd.f32 %v7889, %v7123
        %v7891 = vadd.f32 %v7890, %v7124
        %v7892 = vadd.f32 %v7891, %v7125
        %v7893 = vadd.f32 %v7892, %v7126
        %v7894 = vadd.f32 %v7893, %v7127
        %v7895 = vadd.f32 %v7894, %v7128
        %v7896 = vadd.f32 %v7895, %v7129
        %v7897 = vadd.f32 %v7896, %v7130
        %v7898 = vadd.f32 %v7897, %v7131
        %v7899 = vadd.f32 %v7898, %v7132
        %v7900 = vadd.f32 %v7899, %v7133
        %v7901 = vadd.f32 %v7900, %v7134
        %v7902 = vadd.f32 %v7901, %v7135
        %v7903 = vadd.f32 %v7902, %v7136
        %v7904 = vadd.f32 %v7903, %v7137
        %v7905 = vadd.f32 %v7904, %v7138
        %v7906 = vadd.f32 %v7905, %v7139
        %v7907 = vadd.f32 %v7906, %v7140
        %v7908 = vadd.f32 %v7907, %v7141
        %v7909 = vadd.f32 %v7908, %v7142
        %v7910 = vadd.f32 %v7909, %v7143
        %v7911 = vadd.f32 %v7910, %v7144
        %v7912 = vadd.f32 %v7911, %v7145
        %v7913 = vadd.f32 %v7912, %v7146
        %v7914 = vadd.f32 %v7913, %v7147
        %v7915 = vadd.f32 %v7914, %v7148
        %v7916 = vadd.f32 %v7915, %v7149
        %v7917 = vadd.f32 %v7916, %v7150
        %v7918 = vadd.f32 %v7917, %v7151
        %v7919 = vadd.f32 %v7918, %v7152
        %v7920 = vadd.f32 %v7919, %v7153
        %v7921 = vadd.f32 %v7920, %v7154
        %v7922 = vadd.f32 %v7921, %v7155
        %v7923 = vadd.f32 %v7922, %v7156
        %v7924 = vadd.f32 %v7923, %v7157
        %v7925 = vadd.f32 %v7924, %v7158
        %v7926 = vadd.f32 %v7925, %v7159
        %v7927 = vadd.f32 %v7926, %v7160
        %v7928 = vadd.f32 %v7927, %v7161
        %v7929 = vadd.f32 %v7928, %v7162
        %v7930 = vadd.f32 %v7929, %v7163
        %v7931 = vadd.f32 %v7930, %v7164
        %v7932 = vadd.f32 %v7931, %v7165
        %v7933 = vadd.f32 %v7932, %v7166
        %v7934 = vadd.f32 %v7933, %v7167
        %v7935 = vadd.f32 %v7934, %v7168
        %v7936 = vadd.f32 %v7935, %v7169
        %v7937 = vadd.f32 %v7936, %v7170
        %v7938 = vadd.f32 %v7937, %v7171
        %v7939 = vadd.f32 %v7938, %v7172
        %v7940 = vadd.f32 %v7939, %v7173
        %v7941 = vadd.f32 %v7940, %v7174
        %v7942 = vadd.f32 %v7941, %v7175
        %v7943 = vadd.f32 %v7942, %v7176
        %v7944 = vadd.f32 %v7943, %v7177
        %v7945 = vadd.f32 %v7944, %v7178
        %v7946 = vadd.f32 %v7945, %v7179
        %v7947 = vadd.f32 %v7946, %v7180
        %v7948 = vadd.f32 %v7947, %v7181
        %v7949 = vadd.f32 %v7948, %v7182
        %v7950 = vadd.f32 %v7949, %v7183
        %v7951 = vadd.f32 %v7950, %v7184
        %v7952 = vadd.f32 %v7951, %v7185
        %v7953 = vadd.f32 %v7952, %v7186
        %v7954 = vadd.f32 %v7953, %v7187
        %v7955 = vadd.f32 %v7954, %v7188
        %v7956 = vadd.f32 %v7955, %v7189
        %v7957 = vadd.f32 %v7956, %v7190
        %v7958 = vadd.f32 %v7957, %v7191
        %v7959 = vadd.f32 %v7958, %v7192
        %v7960 = vadd.f32 %v7959, %v7193
        %v7961 = vadd.f32 %v7960, %v7194
        %v7962 = vadd.f32 %v7961, %v7195
        %v7963 = vadd.f32 %v7962, %v7196
        %v7964 = vadd.f32 %v7963, %v7197
        %v7965 = vadd.f32 %v7964, %v7198
        %v7966 = vadd.f32 %v7965, %v7199
        %v7967 = vadd.f32 %v7966, %v7200
        %v7968 = vadd.f32 %v7967, %v7201
        %v7969 = vadd.f32 %v7968, %v7202
        %v7970 = vadd.f32 %v7969, %v7203
        %v7971 = vadd.f32 %v7970, %v7204
        %v7972 = vadd.f32 %v7971, %v7205
        %v7973 = vadd.f32 %v7972, %v7206
        %v7974 = vadd.f32 %v7973, %v7207
        %v7975 = vadd.f32 %v7974, %v7208
        %v7976 = vadd.f32 %v7975, %v7209
        %v7977 = vadd.f32 %v7976, %v7210
        %v7978 = vadd.f32 %v7977, %v7211
        %v7979 = vadd.f32 %v7978, %v7212
        %v7980 = vadd.f32 %v7979, %v7213
        %v7981 = vadd.f32 %v7980, %v7214
        %v7982 = vadd.f32 %v7981, %v7215
        %v7983 = vadd.f32 %v7982, %v7216
        %v7984 = vadd.f32 %v7983, %v7217
        %v7985 = vadd.f32 %v7984, %v7218
        %v7986 = vadd.f32 %v7985, %v7219
        %v7987 = vadd.f32 %v7986, %v7220
        %v7988 = vadd.f32 %v7987, %v7221
        %v7989 = vadd.f32 %v7988, %v7222
        %v7990 = vadd.f32 %v7989, %v7223
        %v7991 = vadd.f32 %v7990, %v7224
        %v7992 = vadd.f32 %v7991, %v7225
        %v7993 = vadd.f32 %v7992, %v7226
        %v7994 = vadd.f32 %v7993, %v7227
        %v7995 = vadd.f32 %v7994, %v7228
        %v7996 = vadd.f32 %v7995, %v7229
        %v7997 = vadd.f32 %v7996, %v7230
        %v7998 = vadd.f32 %v7997, %v7231
        %v7999 = vadd.f32 %v7998, %v7232
        %v8000 = vadd.f32 %v7999, %v7233
        %v8001 = vadd.f32 %v8000, %v7234
        %v8002 = vadd.f32 %v8001, %v7235
        %v8003 = vadd.f32 %v8002, %v7236
        %v8004 = vadd.f32 %v8003, %v7237
        %v8005 = vadd.f32 %v8004, %v7238
        %v8006 = vadd.f32 %v8005, %v7239
        %v8007 = vadd.f32 %v8006, %v7240
        %v8008 = vadd.f32 %v8007, %v7241
        %v8009 = vadd.f32 %v8008, %v7242
        %v8010 = vadd.f32 %v8009, %v7243
        %v8011 = vadd.f32 %v8010, %v7244
        %v8012 = vadd.f32 %v8011, %v7245
        %v8013 = vadd.f32 %v8012, %v7246
        %v8014 = vadd.f32 %v8013, %v7247
        %v8015 = vadd.f32 %v8014, %v7248
        %v8016 = vadd.f32 %v8015, %v7249
        %v8017 = vadd.f32 %v8016, %v7250
        %v8018 = vadd.f32 %v8017, %v7251
        %v8019 = vadd.f32 %v8018, %v7252
        %v8020 = vadd.f32 %v8019, %v7253
        %v8021 = vadd.f32 %v8020, %v7254
        %v8022 = vadd.f32 %v8021, %v7255
        %v8023 = vadd.f32 %v8022, %v7256
        %v8024 = vadd.f32 %v8023, %v7257
        %v8025 = vadd.f32 %v8024, %v7258
        %v8026 = vadd.f32 %v8025, %v7259
        %v8027 = vadd.f32 %v8026, %v7260
        %v8028 = vadd.f32 %v8027, %v7261
        %v8029 = vadd.f32 %v8028, %v7262
        %v8030 = vadd.f32 %v8029, %v7263
        %v8031 = vadd.f32 %v8030, %v7264
        %v8032 = vadd.f32 %v8031, %v7265
        %v8033 = vadd.f32 %v8032, %v7266
        %v8034 = vadd.f32 %v8033, %v7267
        %v8035 = vadd.f32 %v8034, %v7268
        %v8036 = vadd.f32 %v8035, %v7269
        %v8037 = vadd.f32 %v8036, %v7270
        %v8038 = vadd.f32 %v8037, %v7271
        %v8039 = vadd.f32 %v8038, %v7272
        %v8040 = vadd.f32 %v8039, %v7273
        %v8041 = vadd.f32 %v8040, %v7274
        %v8042 = vadd.f32 %v8041, %v7275
        %v8043 = vadd.f32 %v8042, %v7276
        %v8044 = vadd.f32 %v8043, %v7277
        %v8045 = vadd.f32 %v8044, %v7278
        %v8046 = vadd.f32 %v8045, %v7279
        %v8047 = vadd.f32 %v8046, %v7280
        %v8048 = vadd.f32 %v8047, %v7281
        %v8049 = vadd.f32 %v8048, %v7282
        %v8050 = vadd.f32 %v8049, %v7283
        %v8051 = vadd.f32 %v8050, %v7284
        %v8052 = vadd.f32 %v8051, %v7285
        %v8053 = vadd.f32 %v8052, %v7286
        %v8054 = vadd.f32 %v8053, %v7287
        %v8055 = vadd.f32 %v8054, %v7288
        %v8056 = vadd.f32 %v8055, %v7289
        %v8057 = vadd.f32 %v8056, %v7290
        %v8058 = vadd.f32 %v8057, %v7291
        %v8059 = vadd.f32 %v8058, %v7292
        %v8060 = vadd.f32 %v8059, %v7293
        %v8061 = vadd.f32 %v8060, %v7294
        %v8062 = vadd.f32 %v8061, %v7295
        %v8063 = vadd.f32 %v8062, %v7296
        %v8064 = vadd.f32 %v8063, %v7297
        %v8065 = vadd.f32 %v8064, %v7298
        %v8066 = vadd.f32 %v8065, %v7299
        %v8067 = vadd.f32 %v8066, %v7300
        %v8068 = vadd.f32 %v8067, %v7301
        %v8069 = vadd.f32 %v8068, %v7302
        %v8070 = vadd.f32 %v8069, %v7303
        %v8071 = vadd.f32 %v8070, %v7304
        %v8072 = vadd.f32 %v8071, %v7305
        %v8073 = vadd.f32 %v8072, %v7306
        %v8074 = vadd.f32 %v8073, %v7307
        %v8075 = vadd.f32 %v8074, %v7308
        %v8076 = vadd.f32 %v8075, %v7309
        %v8077 = vadd.f32 %v8076, %v7310
        %v8078 = vadd.f32 %v8077, %v7311
        %v8079 = vadd.f32 %v8078, %v7312
        %v8080 = vadd.f32 %v8079, %v7313
        %v8081 = vadd.f32 %v8080, %v7314
        %v8082 = vadd.f32 %v8081, %v7315
        %v8083 = vadd.f32 %v8082, %v7316
        %v8084 = vadd.f32 %v8083, %v7317
        %v8085 = vadd.f32 %v8084, %v7318
        %v8086 = vadd.f32 %v8085, %v7319
        %v8087 = vadd.f32 %v8086, %v7320
        %v8088 = vadd.f32 %v8087, %v7321
        %v8089 = vadd.f32 %v8088, %v7322
        %v8090 = vadd.f32 %v8089, %v7323
        %v8091 = vadd.f32 %v8090, %v7324
        %v8092 = vadd.f32 %v8091, %v7325
        %v8093 = vadd.f32 %v8092, %v7326
        %v8094 = vadd.f32 %v8093, %v7327
        %v8095 = vadd.f32 %v8094, %v7328
        %v8096 = vadd.f32 %v8095, %v7329
        %v8097 = vadd.f32 %v8096, %v7330
        %v8098 = vadd.f32 %v8097, %v7331
        %v8099 = vadd.f32 %v8098, %v7332
        %v8100 = vadd.f32 %v8099, %v7333
        %v8101 = vadd.f32 %v8100, %v7334
        %v8102 = vadd.f32 %v8101, %v7335
        %v8103 = vadd.f32 %v8102, %v7336
        %v8104 = vadd.f32 %v8103, %v7337
        %v8105 = vadd.f32 %v8104, %v7338
        %v8106 = vadd.f32 %v8105, %v7339
        %v8107 = vadd.f32 %v8106, %v7340
        %v8108 = vadd.f32 %v8107, %v7341
        %v8109 = vadd.f32 %v8108, %v7342
        %v8110 = vadd.f32 %v8109, %v7343
        %v8111 = vadd.f32 %v8110, %v7344
        %v8112 = vadd.f32 %v8111, %v7345
        %v8113 = vadd.f32 %v8112, %v7346
        %v8114 = vadd.f32 %v8113, %v7347
        %v8115 = vadd.f32 %v8114, %v7348
        %v8116 = vadd.f32 %v8115, %v7349
        %v8117 = vadd.f32 %v8116, %v7350
        %v8118 = vadd.f32 %v8117, %v7351
        %v8119 = vadd.f32 %v8118, %v7352
        %v8120 = vadd.f32 %v8119, %v7353
        %v8121 = vadd.f32 %v8120, %v7354
        %v8122 = vadd.f32 %v8121, %v7355
        %v8123 = vadd.f32 %v8122, %v7356
        %v8124 = vadd.f32 %v8123, %v7357
        %v8125 = vadd.f32 %v8124, %v7358
        %v8126 = vadd.f32 %v8125, %v7359
        %v8127 = vadd.f32 %v8126, %v7360
        %v8128 = vadd.f32 %v8127, %v7361
        %v8129 = vadd.f32 %v8128, %v7362
        %v8130 = vadd.f32 %v8129, %v7363
        %v8131 = vadd.f32 %v8130, %v7364
        %v8132 = vadd.f32 %v8131, %v7365
        %v8133 = vadd.f32 %v8132, %v7366
        %v8134 = vadd.f32 %v8133, %v7367
        %v8135 = vadd.f32 %v8134, %v7368
        %v8136 = vadd.f32 %v8135, %v7369
        %v8137 = vadd.f32 %v8136, %v7370
        %v8138 = vadd.f32 %v8137, %v7371
        %v8139 = vadd.f32 %v8138, %v7372
        %v8140 = vadd.f32 %v8139, %v7373
        %v8141 = vadd.f32 %v8140, %v7374
        %v8142 = vadd.f32 %v8141, %v7375
        %v8143 = vadd.f32 %v8142, %v7376
        %v8144 = vadd.f32 %v8143, %v7377
        %v8145 = vadd.f32 %v8144, %v7378
        %v8146 = vadd.f32 %v8145, %v7379
        %v8147 = vadd.f32 %v8146, %v7380
        %v8148 = vadd.f32 %v8147, %v7381
        %v8149 = vadd.f32 %v8148, %v7382
        %v8150 = vadd.f32 %v8149, %v7383
        %v8151 = vadd.f32 %v8150, %v7384
        %v8152 = vadd.f32 %v8151, %v7385
        %v8153 = vadd.f32 %v8152, %v7386
        %v8154 = vadd.f32 %v8153, %v7387
        %v8155 = vadd.f32 %v8154, %v7388
        %v8156 = vadd.f32 %v8155, %v7389
        %v8157 = vadd.f32 %v8156, %v7390
        %v8158 = vadd.f32 %v8157, %v7391
        %v8159 = vadd.f32 %v8158, %v7392
        %v8160 = vadd.f32 %v8159, %v7393
        %v8161 = vadd.f32 %v8160, %v7394
        %v8162 = vadd.f32 %v8161, %v7395
        %v8163 = vadd.f32 %v8162, %v7396
        %v8164 = vadd.f32 %v8163, %v7397
        %v8165 = vadd.f32 %v8164, %v7398
        %v8166 = vadd.f32 %v8165, %v7399
        %v8167 = vadd.f32 %v8166, %v7400
        %v8168 = vadd.f32 %v8167, %v7401
        %v8169 = vadd.f32 %v8168, %v7402
        %v8170 = vadd.f32 %v8169, %v7403
        %v8171 = vadd.f32 %v8170, %v7404
        %v8172 = vadd.f32 %v8171, %v7405
        %v8173 = vadd.f32 %v8172, %v7406
        %v8174 = vadd.f32 %v8173, %v7407
        %v8175 = vadd.f32 %v8174, %v7408
        %v8176 = vadd.f32 %v8175, %v7409
        %v8177 = vadd.f32 %v8176, %v7410
        %v8178 = vadd.f32 %v8177, %v7411
        %v8179 = vadd.f32 %v8178, %v7412
        %v8180 = vadd.f32 %v8179, %v7413
        %v8181 = vadd.f32 %v8180, %v7414
        %v8182 = vadd.f32 %v8181, %v7415
        %v8183 = vadd.f32 %v8182, %v7416
        %v8184 = vadd.f32 %v8183, %v7417
        %v8185 = vadd.f32 %v8184, %v7418
        %v8186 = vadd.f32 %v8185, %v7419
        %v8187 = vadd.f32 %v8186, %v7420
        %v8188 = vadd.f32 %v8187, %v7421
        %v8189 = vadd.f32 %v8188, %v7422
        %v8190 = vadd.f32 %v8189, %v7423
        %v8191 = vadd.f32 %v8190, %v7424
        %v8192 = vadd.f32 %v8191, %v7425
        %v8193 = vadd.f32 %v8192, %v7426
        %v8194 = vadd.f32 %v8193, %v7427
        %v8195 = vadd.f32 %v8194, %v7428
        %v8196 = vadd.f32 %v8195, %v7429
        %v8197 = vadd.f32 %v8196, %v7430
        %v8198 = vadd.f32 %v8197, %v7431
        %v8199 = vadd.f32 %v8198, %v7432
        %v8200 = vadd.f32 %v8199, %v7433
        %v8201 = vadd.f32 %v8200, %v7434
        %v8202 = vadd.f32 %v8201, %v7435
        %v8203 = vadd.f32 %v8202, %v7436
        %v8204 = vadd.f32 %v8203, %v7437
        %v8205 = vadd.f32 %v8204, %v7438
        %v8206 = vadd.f32 %v8205, %v7439
        %v8207 = vadd.f32 %v8206, %v7440
        %v8208 = vadd.f32 %v8207, %v7441
        %v8209 = vadd.f32 %v8208, %v7442
        %v8210 = vadd.f32 %v8209, %v7443
        %v8211 = vadd.f32 %v8210, %v7444
        %v8212 = vadd.f32 %v8211, %v7445
        %v8213 = vadd.f32 %v8212, %v7446
        %v8214 = vadd.f32 %v8213, %v7447
        %v8215 = vadd.f32 %v8214, %v7448
        %v8216 = vadd.f32 %v8215, %v7449
        %v8217 = vadd.f32 %v8216, %v7450
        %v8218 = vadd.f32 %v8217, %v7451
        %8219 = vadd.xlane.f32.xlu0 %v8218
        %v8220 = vpop.xlane.xlu0 %8219
        %v8221 = vsel %vm4226, %v7452, 0.0
        %v8222 = vsel %vm4226, %v7453, 0.0
        %v8223 = vadd.f32 %v8221, %v8222
        %v8224 = vsel %vm4226, %v7454, 0.0
        %v8225 = vadd.f32 %v8223, %v8224
        %v8226 = vsel %vm4226, %v7455, 0.0
        %v8227 = vadd.f32 %v8225, %v8226
        %v8228 = vsel %vm4226, %v7456, 0.0
        %v8229 = vadd.f32 %v8227, %v8228
        %v8230 = vsel %vm4226, %v7457, 0.0
        %v8231 = vadd.f32 %v8229, %v8230
        %v8232 = vsel %vm4226, %v7458, 0.0
        %v8233 = vadd.f32 %v8231, %v8232
        %v8234 = vsel %vm4226, %v7459, 0.0
        %v8235 = vadd.f32 %v8233, %v8234
        %v8236 = vsel %vm4226, %v7460, 0.0
        %v8237 = vadd.f32 %v8235, %v8236
        %v8238 = vsel %vm4226, %v7461, 0.0
        %v8239 = vadd.f32 %v8237, %v8238
        %v8240 = vsel %vm4226, %v7462, 0.0
        %v8241 = vadd.f32 %v8239, %v8240
        %v8242 = vsel %vm4226, %v7463, 0.0
        %v8243 = vadd.f32 %v8241, %v8242
        %v8244 = vsel %vm4226, %v7464, 0.0
        %v8245 = vadd.f32 %v8243, %v8244
        %v8246 = vsel %vm4226, %v7465, 0.0
        %v8247 = vadd.f32 %v8245, %v8246
        %v8248 = vsel %vm4226, %v7466, 0.0
        %v8249 = vadd.f32 %v8247, %v8248
        %v8250 = vsel %vm4226, %v7467, 0.0
        %v8251 = vadd.f32 %v8249, %v8250
        %v8252 = vsel %vm4226, %v7468, 0.0
        %v8253 = vadd.f32 %v8251, %v8252
        %v8254 = vsel %vm4226, %v7469, 0.0
        %v8255 = vadd.f32 %v8253, %v8254
        %v8256 = vsel %vm4226, %v7470, 0.0
        %v8257 = vadd.f32 %v8255, %v8256
        %v8258 = vsel %vm4226, %v7471, 0.0
        %v8259 = vadd.f32 %v8257, %v8258
        %v8260 = vsel %vm4226, %v7472, 0.0
        %v8261 = vadd.f32 %v8259, %v8260
        %v8262 = vsel %vm4226, %v7473, 0.0
        %v8263 = vadd.f32 %v8261, %v8262
        %v8264 = vsel %vm4226, %v7474, 0.0
        %v8265 = vadd.f32 %v8263, %v8264
        %v8266 = vsel %vm4226, %v7475, 0.0
        %v8267 = vadd.f32 %v8265, %v8266
        %v8268 = vsel %vm4226, %v7476, 0.0
        %v8269 = vadd.f32 %v8267, %v8268
        %v8270 = vsel %vm4226, %v7477, 0.0
        %v8271 = vadd.f32 %v8269, %v8270
        %v8272 = vsel %vm4226, %v7478, 0.0
        %v8273 = vadd.f32 %v8271, %v8272
        %v8274 = vsel %vm4226, %v7479, 0.0
        %v8275 = vadd.f32 %v8273, %v8274
        %v8276 = vsel %vm4226, %v7480, 0.0
        %v8277 = vadd.f32 %v8275, %v8276
        %v8278 = vsel %vm4226, %v7481, 0.0
        %v8279 = vadd.f32 %v8277, %v8278
        %v8280 = vsel %vm4226, %v7482, 0.0
        %v8281 = vadd.f32 %v8279, %v8280
        %v8282 = vsel %vm4226, %v7483, 0.0
        %v8283 = vadd.f32 %v8281, %v8282
        %v8284 = vsel %vm4226, %v7484, 0.0
        %v8285 = vadd.f32 %v8283, %v8284
        %v8286 = vsel %vm4226, %v7485, 0.0
        %v8287 = vadd.f32 %v8285, %v8286
        %v8288 = vsel %vm4226, %v7486, 0.0
        %v8289 = vadd.f32 %v8287, %v8288
        %v8290 = vsel %vm4226, %v7487, 0.0
        %v8291 = vadd.f32 %v8289, %v8290
        %v8292 = vsel %vm4226, %v7488, 0.0
        %v8293 = vadd.f32 %v8291, %v8292
        %v8294 = vsel %vm4226, %v7489, 0.0
        %v8295 = vadd.f32 %v8293, %v8294
        %v8296 = vsel %vm4226, %v7490, 0.0
        %v8297 = vadd.f32 %v8295, %v8296
        %v8298 = vsel %vm4226, %v7491, 0.0
        %v8299 = vadd.f32 %v8297, %v8298
        %v8300 = vsel %vm4226, %v7492, 0.0
        %v8301 = vadd.f32 %v8299, %v8300
        %v8302 = vsel %vm4226, %v7493, 0.0
        %v8303 = vadd.f32 %v8301, %v8302
        %v8304 = vsel %vm4226, %v7494, 0.0
        %v8305 = vadd.f32 %v8303, %v8304
        %v8306 = vsel %vm4226, %v7495, 0.0
        %v8307 = vadd.f32 %v8305, %v8306
        %v8308 = vsel %vm4226, %v7496, 0.0
        %v8309 = vadd.f32 %v8307, %v8308
        %v8310 = vsel %vm4226, %v7497, 0.0
        %v8311 = vadd.f32 %v8309, %v8310
        %v8312 = vsel %vm4226, %v7498, 0.0
        %v8313 = vadd.f32 %v8311, %v8312
        %v8314 = vsel %vm4226, %v7499, 0.0
        %v8315 = vadd.f32 %v8313, %v8314
        %v8316 = vsel %vm4226, %v7500, 0.0
        %v8317 = vadd.f32 %v8315, %v8316
        %v8318 = vsel %vm4226, %v7501, 0.0
        %v8319 = vadd.f32 %v8317, %v8318
        %v8320 = vsel %vm4226, %v7502, 0.0
        %v8321 = vadd.f32 %v8319, %v8320
        %v8322 = vsel %vm4226, %v7503, 0.0
        %v8323 = vadd.f32 %v8321, %v8322
        %v8324 = vsel %vm4226, %v7504, 0.0
        %v8325 = vadd.f32 %v8323, %v8324
        %v8326 = vsel %vm4226, %v7505, 0.0
        %v8327 = vadd.f32 %v8325, %v8326
        %v8328 = vsel %vm4226, %v7506, 0.0
        %v8329 = vadd.f32 %v8327, %v8328
        %v8330 = vsel %vm4226, %v7507, 0.0
        %v8331 = vadd.f32 %v8329, %v8330
        %v8332 = vsel %vm4226, %v7508, 0.0
        %v8333 = vadd.f32 %v8331, %v8332
        %v8334 = vsel %vm4226, %v7509, 0.0
        %v8335 = vadd.f32 %v8333, %v8334
        %v8336 = vsel %vm4226, %v7510, 0.0
        %v8337 = vadd.f32 %v8335, %v8336
        %v8338 = vsel %vm4226, %v7511, 0.0
        %v8339 = vadd.f32 %v8337, %v8338
        %v8340 = vsel %vm4226, %v7512, 0.0
        %v8341 = vadd.f32 %v8339, %v8340
        %v8342 = vsel %vm4226, %v7513, 0.0
        %v8343 = vadd.f32 %v8341, %v8342
        %v8344 = vsel %vm4226, %v7514, 0.0
        %v8345 = vadd.f32 %v8343, %v8344
        %v8346 = vsel %vm4226, %v7515, 0.0
        %v8347 = vadd.f32 %v8345, %v8346
        %v8348 = vsel %vm4226, %v7516, 0.0
        %v8349 = vadd.f32 %v8347, %v8348
        %v8350 = vsel %vm4226, %v7517, 0.0
        %v8351 = vadd.f32 %v8349, %v8350
        %v8352 = vsel %vm4226, %v7518, 0.0
        %v8353 = vadd.f32 %v8351, %v8352
        %v8354 = vsel %vm4226, %v7519, 0.0
        %v8355 = vadd.f32 %v8353, %v8354
        %v8356 = vsel %vm4226, %v7520, 0.0
        %v8357 = vadd.f32 %v8355, %v8356
        %v8358 = vsel %vm4226, %v7521, 0.0
        %v8359 = vadd.f32 %v8357, %v8358
        %v8360 = vsel %vm4226, %v7522, 0.0
        %v8361 = vadd.f32 %v8359, %v8360
        %v8362 = vsel %vm4226, %v7523, 0.0
        %v8363 = vadd.f32 %v8361, %v8362
        %v8364 = vsel %vm4226, %v7524, 0.0
        %v8365 = vadd.f32 %v8363, %v8364
        %v8366 = vsel %vm4226, %v7525, 0.0
        %v8367 = vadd.f32 %v8365, %v8366
        %v8368 = vsel %vm4226, %v7526, 0.0
        %v8369 = vadd.f32 %v8367, %v8368
        %v8370 = vsel %vm4226, %v7527, 0.0
        %v8371 = vadd.f32 %v8369, %v8370
        %v8372 = vsel %vm4226, %v7528, 0.0
        %v8373 = vadd.f32 %v8371, %v8372
        %v8374 = vsel %vm4226, %v7529, 0.0
        %v8375 = vadd.f32 %v8373, %v8374
        %v8376 = vsel %vm4226, %v7530, 0.0
        %v8377 = vadd.f32 %v8375, %v8376
        %v8378 = vsel %vm4226, %v7531, 0.0
        %v8379 = vadd.f32 %v8377, %v8378
        %v8380 = vsel %vm4226, %v7532, 0.0
        %v8381 = vadd.f32 %v8379, %v8380
        %v8382 = vsel %vm4226, %v7533, 0.0
        %v8383 = vadd.f32 %v8381, %v8382
        %v8384 = vsel %vm4226, %v7534, 0.0
        %v8385 = vadd.f32 %v8383, %v8384
        %v8386 = vsel %vm4226, %v7535, 0.0
        %v8387 = vadd.f32 %v8385, %v8386
        %v8388 = vsel %vm4226, %v7536, 0.0
        %v8389 = vadd.f32 %v8387, %v8388
        %v8390 = vsel %vm4226, %v7537, 0.0
        %v8391 = vadd.f32 %v8389, %v8390
        %v8392 = vsel %vm4226, %v7538, 0.0
        %v8393 = vadd.f32 %v8391, %v8392
        %v8394 = vsel %vm4226, %v7539, 0.0
        %v8395 = vadd.f32 %v8393, %v8394
        %v8396 = vsel %vm4226, %v7540, 0.0
        %v8397 = vadd.f32 %v8395, %v8396
        %v8398 = vsel %vm4226, %v7541, 0.0
        %v8399 = vadd.f32 %v8397, %v8398
        %v8400 = vsel %vm4226, %v7542, 0.0
        %v8401 = vadd.f32 %v8399, %v8400
        %v8402 = vsel %vm4226, %v7543, 0.0
        %v8403 = vadd.f32 %v8401, %v8402
        %v8404 = vsel %vm4226, %v7544, 0.0
        %v8405 = vadd.f32 %v8403, %v8404
        %v8406 = vsel %vm4226, %v7545, 0.0
        %v8407 = vadd.f32 %v8405, %v8406
        %v8408 = vsel %vm4226, %v7546, 0.0
        %v8409 = vadd.f32 %v8407, %v8408
        %v8410 = vsel %vm4226, %v7547, 0.0
        %v8411 = vadd.f32 %v8409, %v8410
        %v8412 = vsel %vm4226, %v7548, 0.0
        %v8413 = vadd.f32 %v8411, %v8412
        %v8414 = vsel %vm4226, %v7549, 0.0
        %v8415 = vadd.f32 %v8413, %v8414
        %v8416 = vsel %vm4226, %v7550, 0.0
        %v8417 = vadd.f32 %v8415, %v8416
        %v8418 = vsel %vm4226, %v7551, 0.0
        %v8419 = vadd.f32 %v8417, %v8418
        %v8420 = vsel %vm4226, %v7552, 0.0
        %v8421 = vadd.f32 %v8419, %v8420
        %v8422 = vsel %vm4226, %v7553, 0.0
        %v8423 = vadd.f32 %v8421, %v8422
        %v8424 = vsel %vm4226, %v7554, 0.0
        %v8425 = vadd.f32 %v8423, %v8424
        %v8426 = vsel %vm4226, %v7555, 0.0
        %v8427 = vadd.f32 %v8425, %v8426
        %v8428 = vsel %vm4226, %v7556, 0.0
        %v8429 = vadd.f32 %v8427, %v8428
        %v8430 = vsel %vm4226, %v7557, 0.0
        %v8431 = vadd.f32 %v8429, %v8430
        %v8432 = vsel %vm4226, %v7558, 0.0
        %v8433 = vadd.f32 %v8431, %v8432
        %v8434 = vsel %vm4226, %v7559, 0.0
        %v8435 = vadd.f32 %v8433, %v8434
        %v8436 = vsel %vm4226, %v7560, 0.0
        %v8437 = vadd.f32 %v8435, %v8436
        %v8438 = vsel %vm4226, %v7561, 0.0
        %v8439 = vadd.f32 %v8437, %v8438
        %v8440 = vsel %vm4226, %v7562, 0.0
        %v8441 = vadd.f32 %v8439, %v8440
        %v8442 = vsel %vm4226, %v7563, 0.0
        %v8443 = vadd.f32 %v8441, %v8442
        %v8444 = vsel %vm4226, %v7564, 0.0
        %v8445 = vadd.f32 %v8443, %v8444
        %v8446 = vsel %vm4226, %v7565, 0.0
        %v8447 = vadd.f32 %v8445, %v8446
        %v8448 = vsel %vm4226, %v7566, 0.0
        %v8449 = vadd.f32 %v8447, %v8448
        %v8450 = vsel %vm4226, %v7567, 0.0
        %v8451 = vadd.f32 %v8449, %v8450
        %v8452 = vsel %vm4226, %v7568, 0.0
        %v8453 = vadd.f32 %v8451, %v8452
        %v8454 = vsel %vm4226, %v7569, 0.0
        %v8455 = vadd.f32 %v8453, %v8454
        %v8456 = vsel %vm4226, %v7570, 0.0
        %v8457 = vadd.f32 %v8455, %v8456
        %v8458 = vsel %vm4226, %v7571, 0.0
        %v8459 = vadd.f32 %v8457, %v8458
        %v8460 = vsel %vm4226, %v7572, 0.0
        %v8461 = vadd.f32 %v8459, %v8460
        %v8462 = vsel %vm4226, %v7573, 0.0
        %v8463 = vadd.f32 %v8461, %v8462
        %v8464 = vsel %vm4226, %v7574, 0.0
        %v8465 = vadd.f32 %v8463, %v8464
        %v8466 = vsel %vm4226, %v7575, 0.0
        %v8467 = vadd.f32 %v8465, %v8466
        %v8468 = vsel %vm4226, %v7576, 0.0
        %v8469 = vadd.f32 %v8467, %v8468
        %v8470 = vsel %vm4226, %v7577, 0.0
        %v8471 = vadd.f32 %v8469, %v8470
        %v8472 = vsel %vm4226, %v7578, 0.0
        %v8473 = vadd.f32 %v8471, %v8472
        %v8474 = vsel %vm4226, %v7579, 0.0
        %v8475 = vadd.f32 %v8473, %v8474
        %v8476 = vsel %vm4226, %v7580, 0.0
        %v8477 = vadd.f32 %v8475, %v8476
        %v8478 = vsel %vm4226, %v7581, 0.0
        %v8479 = vadd.f32 %v8477, %v8478
        %v8480 = vsel %vm4226, %v7582, 0.0
        %v8481 = vadd.f32 %v8479, %v8480
        %v8482 = vsel %vm4226, %v7583, 0.0
        %v8483 = vadd.f32 %v8481, %v8482
        %v8484 = vsel %vm4226, %v7584, 0.0
        %v8485 = vadd.f32 %v8483, %v8484
        %v8486 = vsel %vm4226, %v7585, 0.0
        %v8487 = vadd.f32 %v8485, %v8486
        %v8488 = vsel %vm4226, %v7586, 0.0
        %v8489 = vadd.f32 %v8487, %v8488
        %v8490 = vsel %vm4226, %v7587, 0.0
        %v8491 = vadd.f32 %v8489, %v8490
        %v8492 = vsel %vm4226, %v7588, 0.0
        %v8493 = vadd.f32 %v8491, %v8492
        %v8494 = vsel %vm4226, %v7589, 0.0
        %v8495 = vadd.f32 %v8493, %v8494
        %v8496 = vsel %vm4226, %v7590, 0.0
        %v8497 = vadd.f32 %v8495, %v8496
        %v8498 = vsel %vm4226, %v7591, 0.0
        %v8499 = vadd.f32 %v8497, %v8498
        %v8500 = vsel %vm4226, %v7592, 0.0
        %v8501 = vadd.f32 %v8499, %v8500
        %v8502 = vsel %vm4226, %v7593, 0.0
        %v8503 = vadd.f32 %v8501, %v8502
        %v8504 = vsel %vm4226, %v7594, 0.0
        %v8505 = vadd.f32 %v8503, %v8504
        %v8506 = vsel %vm4226, %v7595, 0.0
        %v8507 = vadd.f32 %v8505, %v8506
        %v8508 = vsel %vm4226, %v7596, 0.0
        %v8509 = vadd.f32 %v8507, %v8508
        %v8510 = vsel %vm4226, %v7597, 0.0
        %v8511 = vadd.f32 %v8509, %v8510
        %v8512 = vsel %vm4226, %v7598, 0.0
        %v8513 = vadd.f32 %v8511, %v8512
        %v8514 = vsel %vm4226, %v7599, 0.0
        %v8515 = vadd.f32 %v8513, %v8514
        %v8516 = vsel %vm4226, %v7600, 0.0
        %v8517 = vadd.f32 %v8515, %v8516
        %v8518 = vsel %vm4226, %v7601, 0.0
        %v8519 = vadd.f32 %v8517, %v8518
        %v8520 = vsel %vm4226, %v7602, 0.0
        %v8521 = vadd.f32 %v8519, %v8520
        %v8522 = vsel %vm4226, %v7603, 0.0
        %v8523 = vadd.f32 %v8521, %v8522
        %v8524 = vsel %vm4226, %v7604, 0.0
        %v8525 = vadd.f32 %v8523, %v8524
        %v8526 = vsel %vm4226, %v7605, 0.0
        %v8527 = vadd.f32 %v8525, %v8526
        %v8528 = vsel %vm4226, %v7606, 0.0
        %v8529 = vadd.f32 %v8527, %v8528
        %v8530 = vsel %vm4226, %v7607, 0.0
        %v8531 = vadd.f32 %v8529, %v8530
        %v8532 = vsel %vm4226, %v7608, 0.0
        %v8533 = vadd.f32 %v8531, %v8532
        %v8534 = vsel %vm4226, %v7609, 0.0
        %v8535 = vadd.f32 %v8533, %v8534
        %v8536 = vsel %vm4226, %v7610, 0.0
        %v8537 = vadd.f32 %v8535, %v8536
        %v8538 = vsel %vm4226, %v7611, 0.0
        %v8539 = vadd.f32 %v8537, %v8538
        %v8540 = vsel %vm4226, %v7612, 0.0
        %v8541 = vadd.f32 %v8539, %v8540
        %v8542 = vsel %vm4226, %v7613, 0.0
        %v8543 = vadd.f32 %v8541, %v8542
        %v8544 = vsel %vm4226, %v7614, 0.0
        %v8545 = vadd.f32 %v8543, %v8544
        %v8546 = vsel %vm4226, %v7615, 0.0
        %v8547 = vadd.f32 %v8545, %v8546
        %v8548 = vsel %vm4226, %v7616, 0.0
        %v8549 = vadd.f32 %v8547, %v8548
        %v8550 = vsel %vm4226, %v7617, 0.0
        %v8551 = vadd.f32 %v8549, %v8550
        %v8552 = vsel %vm4226, %v7618, 0.0
        %v8553 = vadd.f32 %v8551, %v8552
        %v8554 = vsel %vm4226, %v7619, 0.0
        %v8555 = vadd.f32 %v8553, %v8554
        %v8556 = vsel %vm4226, %v7620, 0.0
        %v8557 = vadd.f32 %v8555, %v8556
        %v8558 = vsel %vm4226, %v7621, 0.0
        %v8559 = vadd.f32 %v8557, %v8558
        %v8560 = vsel %vm4226, %v7622, 0.0
        %v8561 = vadd.f32 %v8559, %v8560
        %v8562 = vsel %vm4226, %v7623, 0.0
        %v8563 = vadd.f32 %v8561, %v8562
        %v8564 = vsel %vm4226, %v7624, 0.0
        %v8565 = vadd.f32 %v8563, %v8564
        %v8566 = vsel %vm4226, %v7625, 0.0
        %v8567 = vadd.f32 %v8565, %v8566
        %v8568 = vsel %vm4226, %v7626, 0.0
        %v8569 = vadd.f32 %v8567, %v8568
        %v8570 = vsel %vm4226, %v7627, 0.0
        %v8571 = vadd.f32 %v8569, %v8570
        %v8572 = vsel %vm4226, %v7628, 0.0
        %v8573 = vadd.f32 %v8571, %v8572
        %v8574 = vsel %vm4226, %v7629, 0.0
        %v8575 = vadd.f32 %v8573, %v8574
        %v8576 = vsel %vm4226, %v7630, 0.0
        %v8577 = vadd.f32 %v8575, %v8576
        %v8578 = vsel %vm4226, %v7631, 0.0
        %v8579 = vadd.f32 %v8577, %v8578
        %v8580 = vsel %vm4226, %v7632, 0.0
        %v8581 = vadd.f32 %v8579, %v8580
        %v8582 = vsel %vm4226, %v7633, 0.0
        %v8583 = vadd.f32 %v8581, %v8582
        %v8584 = vsel %vm4226, %v7634, 0.0
        %v8585 = vadd.f32 %v8583, %v8584
        %v8586 = vsel %vm4226, %v7635, 0.0
        %v8587 = vadd.f32 %v8585, %v8586
        %v8588 = vsel %vm4226, %v7636, 0.0
        %v8589 = vadd.f32 %v8587, %v8588
        %v8590 = vsel %vm4226, %v7637, 0.0
        %v8591 = vadd.f32 %v8589, %v8590
        %v8592 = vsel %vm4226, %v7638, 0.0
        %v8593 = vadd.f32 %v8591, %v8592
        %v8594 = vsel %vm4226, %v7639, 0.0
        %v8595 = vadd.f32 %v8593, %v8594
        %v8596 = vsel %vm4226, %v7640, 0.0
        %v8597 = vadd.f32 %v8595, %v8596
        %v8598 = vsel %vm4226, %v7641, 0.0
        %v8599 = vadd.f32 %v8597, %v8598
        %v8600 = vsel %vm4226, %v7642, 0.0
        %v8601 = vadd.f32 %v8599, %v8600
        %v8602 = vsel %vm4226, %v7643, 0.0
        %v8603 = vadd.f32 %v8601, %v8602
        %v8604 = vsel %vm4226, %v7644, 0.0
        %v8605 = vadd.f32 %v8603, %v8604
        %v8606 = vsel %vm4226, %v7645, 0.0
        %v8607 = vadd.f32 %v8605, %v8606
        %v8608 = vsel %vm4226, %v7646, 0.0
        %v8609 = vadd.f32 %v8607, %v8608
        %v8610 = vsel %vm4226, %v7647, 0.0
        %v8611 = vadd.f32 %v8609, %v8610
        %v8612 = vsel %vm4226, %v7648, 0.0
        %v8613 = vadd.f32 %v8611, %v8612
        %v8614 = vsel %vm4226, %v7649, 0.0
        %v8615 = vadd.f32 %v8613, %v8614
        %v8616 = vsel %vm4226, %v7650, 0.0
        %v8617 = vadd.f32 %v8615, %v8616
        %v8618 = vsel %vm4226, %v7651, 0.0
        %v8619 = vadd.f32 %v8617, %v8618
        %v8620 = vsel %vm4226, %v7652, 0.0
        %v8621 = vadd.f32 %v8619, %v8620
        %v8622 = vsel %vm4226, %v7653, 0.0
        %v8623 = vadd.f32 %v8621, %v8622
        %v8624 = vsel %vm4226, %v7654, 0.0
        %v8625 = vadd.f32 %v8623, %v8624
        %v8626 = vsel %vm4226, %v7655, 0.0
        %v8627 = vadd.f32 %v8625, %v8626
        %v8628 = vsel %vm4226, %v7656, 0.0
        %v8629 = vadd.f32 %v8627, %v8628
        %v8630 = vsel %vm4226, %v7657, 0.0
        %v8631 = vadd.f32 %v8629, %v8630
        %v8632 = vsel %vm4226, %v7658, 0.0
        %v8633 = vadd.f32 %v8631, %v8632
        %v8634 = vsel %vm4226, %v7659, 0.0
        %v8635 = vadd.f32 %v8633, %v8634
        %v8636 = vsel %vm4226, %v7660, 0.0
        %v8637 = vadd.f32 %v8635, %v8636
        %v8638 = vsel %vm4226, %v7661, 0.0
        %v8639 = vadd.f32 %v8637, %v8638
        %v8640 = vsel %vm4226, %v7662, 0.0
        %v8641 = vadd.f32 %v8639, %v8640
        %v8642 = vsel %vm4226, %v7663, 0.0
        %v8643 = vadd.f32 %v8641, %v8642
        %v8644 = vsel %vm4226, %v7664, 0.0
        %v8645 = vadd.f32 %v8643, %v8644
        %v8646 = vsel %vm4226, %v7665, 0.0
        %v8647 = vadd.f32 %v8645, %v8646
        %v8648 = vsel %vm4226, %v7666, 0.0
        %v8649 = vadd.f32 %v8647, %v8648
        %v8650 = vsel %vm4226, %v7667, 0.0
        %v8651 = vadd.f32 %v8649, %v8650
        %v8652 = vsel %vm4226, %v7668, 0.0
        %v8653 = vadd.f32 %v8651, %v8652
        %v8654 = vsel %vm4226, %v7669, 0.0
        %v8655 = vadd.f32 %v8653, %v8654
        %v8656 = vsel %vm4226, %v7670, 0.0
        %v8657 = vadd.f32 %v8655, %v8656
        %v8658 = vsel %vm4226, %v7671, 0.0
        %v8659 = vadd.f32 %v8657, %v8658
        %v8660 = vsel %vm4226, %v7672, 0.0
        %v8661 = vadd.f32 %v8659, %v8660
        %v8662 = vsel %vm4226, %v7673, 0.0
        %v8663 = vadd.f32 %v8661, %v8662
        %v8664 = vsel %vm4226, %v7674, 0.0
        %v8665 = vadd.f32 %v8663, %v8664
        %v8666 = vsel %vm4226, %v7675, 0.0
        %v8667 = vadd.f32 %v8665, %v8666
        %v8668 = vsel %vm4226, %v7676, 0.0
        %v8669 = vadd.f32 %v8667, %v8668
        %v8670 = vsel %vm4226, %v7677, 0.0
        %v8671 = vadd.f32 %v8669, %v8670
        %v8672 = vsel %vm4226, %v7678, 0.0
        %v8673 = vadd.f32 %v8671, %v8672
        %v8674 = vsel %vm4226, %v7679, 0.0
        %v8675 = vadd.f32 %v8673, %v8674
        %v8676 = vsel %vm4226, %v7680, 0.0
        %v8677 = vadd.f32 %v8675, %v8676
        %v8678 = vsel %vm4226, %v7681, 0.0
        %v8679 = vadd.f32 %v8677, %v8678
        %v8680 = vsel %vm4226, %v7682, 0.0
        %v8681 = vadd.f32 %v8679, %v8680
        %v8682 = vsel %vm4226, %v7683, 0.0
        %v8683 = vadd.f32 %v8681, %v8682
        %v8684 = vsel %vm4226, %v7684, 0.0
        %v8685 = vadd.f32 %v8683, %v8684
        %v8686 = vsel %vm4226, %v7685, 0.0
        %v8687 = vadd.f32 %v8685, %v8686
        %v8688 = vsel %vm4226, %v7686, 0.0
        %v8689 = vadd.f32 %v8687, %v8688
        %v8690 = vsel %vm4226, %v7687, 0.0
        %v8691 = vadd.f32 %v8689, %v8690
        %v8692 = vsel %vm4226, %v7688, 0.0
        %v8693 = vadd.f32 %v8691, %v8692
        %v8694 = vsel %vm4226, %v7689, 0.0
        %v8695 = vadd.f32 %v8693, %v8694
        %v8696 = vsel %vm4226, %v7690, 0.0
        %v8697 = vadd.f32 %v8695, %v8696
        %v8698 = vsel %vm4226, %v7691, 0.0
        %v8699 = vadd.f32 %v8697, %v8698
        %v8700 = vsel %vm4226, %v7692, 0.0
        %v8701 = vadd.f32 %v8699, %v8700
        %v8702 = vsel %vm4226, %v7693, 0.0
        %v8703 = vadd.f32 %v8701, %v8702
        %v8704 = vsel %vm4226, %v7694, 0.0
        %v8705 = vadd.f32 %v8703, %v8704
        %v8706 = vsel %vm4226, %v7695, 0.0
        %v8707 = vadd.f32 %v8705, %v8706
        %v8708 = vsel %vm4226, %v7696, 0.0
        %v8709 = vadd.f32 %v8707, %v8708
        %v8710 = vsel %vm4226, %v7697, 0.0
        %v8711 = vadd.f32 %v8709, %v8710
        %v8712 = vsel %vm4226, %v7698, 0.0
        %v8713 = vadd.f32 %v8711, %v8712
        %v8714 = vsel %vm4226, %v7699, 0.0
        %v8715 = vadd.f32 %v8713, %v8714
        %v8716 = vsel %vm4226, %v7700, 0.0
        %v8717 = vadd.f32 %v8715, %v8716
        %v8718 = vsel %vm4226, %v7701, 0.0
        %v8719 = vadd.f32 %v8717, %v8718
        %v8720 = vsel %vm4226, %v7702, 0.0
        %v8721 = vadd.f32 %v8719, %v8720
        %v8722 = vsel %vm4226, %v7703, 0.0
        %v8723 = vadd.f32 %v8721, %v8722
        %v8724 = vsel %vm4226, %v7704, 0.0
        %v8725 = vadd.f32 %v8723, %v8724
        %v8726 = vsel %vm4226, %v7705, 0.0
        %v8727 = vadd.f32 %v8725, %v8726
        %v8728 = vsel %vm4226, %v7706, 0.0
        %v8729 = vadd.f32 %v8727, %v8728
        %v8730 = vsel %vm4226, %v7707, 0.0
        %v8731 = vadd.f32 %v8729, %v8730
        %v8732 = vsel %vm4226, %v7708, 0.0
        %v8733 = vadd.f32 %v8731, %v8732
        %v8734 = vsel %vm4226, %v7709, 0.0
        %v8735 = vadd.f32 %v8733, %v8734
        %v8736 = vsel %vm4226, %v7710, 0.0
        %v8737 = vadd.f32 %v8735, %v8736
        %v8738 = vsel %vm4226, %v7711, 0.0
        %v8739 = vadd.f32 %v8737, %v8738
        %v8740 = vsel %vm4226, %v7712, 0.0
        %v8741 = vadd.f32 %v8739, %v8740
        %v8742 = vsel %vm4226, %v7713, 0.0
        %v8743 = vadd.f32 %v8741, %v8742
        %v8744 = vsel %vm4226, %v7714, 0.0
        %v8745 = vadd.f32 %v8743, %v8744
        %v8746 = vsel %vm4226, %v7715, 0.0
        %v8747 = vadd.f32 %v8745, %v8746
        %v8748 = vsel %vm4226, %v7716, 0.0
        %v8749 = vadd.f32 %v8747, %v8748
        %v8750 = vsel %vm4226, %v7717, 0.0
        %v8751 = vadd.f32 %v8749, %v8750
        %v8752 = vsel %vm4226, %v7718, 0.0
        %v8753 = vadd.f32 %v8751, %v8752
        %v8754 = vsel %vm4226, %v7719, 0.0
        %v8755 = vadd.f32 %v8753, %v8754
        %v8756 = vsel %vm4226, %v7720, 0.0
        %v8757 = vadd.f32 %v8755, %v8756
        %v8758 = vsel %vm4226, %v7721, 0.0
        %v8759 = vadd.f32 %v8757, %v8758
        %v8760 = vsel %vm4226, %v7722, 0.0
        %v8761 = vadd.f32 %v8759, %v8760
        %v8762 = vsel %vm4226, %v7723, 0.0
        %v8763 = vadd.f32 %v8761, %v8762
        %v8764 = vsel %vm4226, %v7724, 0.0
        %v8765 = vadd.f32 %v8763, %v8764
        %v8766 = vsel %vm4226, %v7725, 0.0
        %v8767 = vadd.f32 %v8765, %v8766
        %v8768 = vsel %vm4226, %v7726, 0.0
        %v8769 = vadd.f32 %v8767, %v8768
        %v8770 = vsel %vm4226, %v7727, 0.0
        %v8771 = vadd.f32 %v8769, %v8770
        %v8772 = vsel %vm4226, %v7728, 0.0
        %v8773 = vadd.f32 %v8771, %v8772
        %v8774 = vsel %vm4226, %v7729, 0.0
        %v8775 = vadd.f32 %v8773, %v8774
        %v8776 = vsel %vm4226, %v7730, 0.0
        %v8777 = vadd.f32 %v8775, %v8776
        %v8778 = vsel %vm4226, %v7731, 0.0
        %v8779 = vadd.f32 %v8777, %v8778
        %v8780 = vsel %vm4226, %v7732, 0.0
        %v8781 = vadd.f32 %v8779, %v8780
        %v8782 = vsel %vm4226, %v7733, 0.0
        %v8783 = vadd.f32 %v8781, %v8782
        %v8784 = vsel %vm4226, %v7734, 0.0
        %v8785 = vadd.f32 %v8783, %v8784
        %v8786 = vsel %vm4226, %v7735, 0.0
        %v8787 = vadd.f32 %v8785, %v8786
        %v8788 = vsel %vm4226, %v7736, 0.0
        %v8789 = vadd.f32 %v8787, %v8788
        %v8790 = vsel %vm4226, %v7737, 0.0
        %v8791 = vadd.f32 %v8789, %v8790
        %v8792 = vsel %vm4226, %v7738, 0.0
        %v8793 = vadd.f32 %v8791, %v8792
        %v8794 = vsel %vm4226, %v7739, 0.0
        %v8795 = vadd.f32 %v8793, %v8794
        %v8796 = vsel %vm4226, %v7740, 0.0
        %v8797 = vadd.f32 %v8795, %v8796
        %v8798 = vsel %vm4226, %v7741, 0.0
        %v8799 = vadd.f32 %v8797, %v8798
        %v8800 = vsel %vm4226, %v7742, 0.0
        %v8801 = vadd.f32 %v8799, %v8800
        %v8802 = vsel %vm4226, %v7743, 0.0
        %v8803 = vadd.f32 %v8801, %v8802
        %v8804 = vsel %vm4226, %v7744, 0.0
        %v8805 = vadd.f32 %v8803, %v8804
        %v8806 = vsel %vm4226, %v7745, 0.0
        %v8807 = vadd.f32 %v8805, %v8806
        %v8808 = vsel %vm4226, %v7746, 0.0
        %v8809 = vadd.f32 %v8807, %v8808
        %v8810 = vsel %vm4226, %v7747, 0.0
        %v8811 = vadd.f32 %v8809, %v8810
        %v8812 = vsel %vm4226, %v7748, 0.0
        %v8813 = vadd.f32 %v8811, %v8812
        %v8814 = vsel %vm4226, %v7749, 0.0
        %v8815 = vadd.f32 %v8813, %v8814
        %v8816 = vsel %vm4226, %v7750, 0.0
        %v8817 = vadd.f32 %v8815, %v8816
        %v8818 = vsel %vm4226, %v7751, 0.0
        %v8819 = vadd.f32 %v8817, %v8818
        %v8820 = vsel %vm4226, %v7752, 0.0
        %v8821 = vadd.f32 %v8819, %v8820
        %v8822 = vsel %vm4226, %v7753, 0.0
        %v8823 = vadd.f32 %v8821, %v8822
        %v8824 = vsel %vm4226, %v7754, 0.0
        %v8825 = vadd.f32 %v8823, %v8824
        %v8826 = vsel %vm4226, %v7755, 0.0
        %v8827 = vadd.f32 %v8825, %v8826
        %v8828 = vsel %vm4226, %v7756, 0.0
        %v8829 = vadd.f32 %v8827, %v8828
        %v8830 = vsel %vm4226, %v7757, 0.0
        %v8831 = vadd.f32 %v8829, %v8830
        %v8832 = vsel %vm4226, %v7758, 0.0
        %v8833 = vadd.f32 %v8831, %v8832
        %v8834 = vsel %vm4226, %v7759, 0.0
        %v8835 = vadd.f32 %v8833, %v8834
        %v8836 = vsel %vm4226, %v7760, 0.0
        %v8837 = vadd.f32 %v8835, %v8836
        %v8838 = vsel %vm4226, %v7761, 0.0
        %v8839 = vadd.f32 %v8837, %v8838
        %v8840 = vsel %vm4226, %v7762, 0.0
        %v8841 = vadd.f32 %v8839, %v8840
        %v8842 = vsel %vm4226, %v7763, 0.0
        %v8843 = vadd.f32 %v8841, %v8842
        %v8844 = vsel %vm4226, %v7764, 0.0
        %v8845 = vadd.f32 %v8843, %v8844
        %v8846 = vsel %vm4226, %v7765, 0.0
        %v8847 = vadd.f32 %v8845, %v8846
        %v8848 = vsel %vm4226, %v7766, 0.0
        %v8849 = vadd.f32 %v8847, %v8848
        %v8850 = vsel %vm4226, %v7767, 0.0
        %v8851 = vadd.f32 %v8849, %v8850
        %v8852 = vsel %vm4226, %v7768, 0.0
        %v8853 = vadd.f32 %v8851, %v8852
        %v8854 = vsel %vm4226, %v7769, 0.0
        %v8855 = vadd.f32 %v8853, %v8854
        %v8856 = vsel %vm4226, %v7770, 0.0
        %v8857 = vadd.f32 %v8855, %v8856
        %v8858 = vsel %vm4226, %v7771, 0.0
        %v8859 = vadd.f32 %v8857, %v8858
        %v8860 = vsel %vm4226, %v7772, 0.0
        %v8861 = vadd.f32 %v8859, %v8860
        %v8862 = vsel %vm4226, %v7773, 0.0
        %v8863 = vadd.f32 %v8861, %v8862
        %v8864 = vsel %vm4226, %v7774, 0.0
        %v8865 = vadd.f32 %v8863, %v8864
        %v8866 = vsel %vm4226, %v7775, 0.0
        %v8867 = vadd.f32 %v8865, %v8866
        %v8868 = vsel %vm4226, %v7776, 0.0
        %v8869 = vadd.f32 %v8867, %v8868
        %v8870 = vsel %vm4226, %v7777, 0.0
        %v8871 = vadd.f32 %v8869, %v8870
        %v8872 = vsel %vm4226, %v7778, 0.0
        %v8873 = vadd.f32 %v8871, %v8872
        %v8874 = vsel %vm4226, %v7779, 0.0
        %v8875 = vadd.f32 %v8873, %v8874
        %v8876 = vsel %vm4226, %v7780, 0.0
        %v8877 = vadd.f32 %v8875, %v8876
        %v8878 = vsel %vm4226, %v7781, 0.0
        %v8879 = vadd.f32 %v8877, %v8878
        %v8880 = vsel %vm4226, %v7782, 0.0
        %v8881 = vadd.f32 %v8879, %v8880
        %v8882 = vsel %vm4226, %v7783, 0.0
        %v8883 = vadd.f32 %v8881, %v8882
        %v8884 = vsel %vm4226, %v7784, 0.0
        %v8885 = vadd.f32 %v8883, %v8884
        %v8886 = vsel %vm4226, %v7785, 0.0
        %v8887 = vadd.f32 %v8885, %v8886
        %v8888 = vsel %vm4226, %v7786, 0.0
        %v8889 = vadd.f32 %v8887, %v8888
        %v8890 = vsel %vm4226, %v7787, 0.0
        %v8891 = vadd.f32 %v8889, %v8890
        %v8892 = vsel %vm4226, %v7788, 0.0
        %v8893 = vadd.f32 %v8891, %v8892
        %v8894 = vsel %vm4226, %v7789, 0.0
        %v8895 = vadd.f32 %v8893, %v8894
        %v8896 = vsel %vm4226, %v7790, 0.0
        %v8897 = vadd.f32 %v8895, %v8896
        %v8898 = vsel %vm4226, %v7791, 0.0
        %v8899 = vadd.f32 %v8897, %v8898
        %v8900 = vsel %vm4226, %v7792, 0.0
        %v8901 = vadd.f32 %v8899, %v8900
        %v8902 = vsel %vm4226, %v7793, 0.0
        %v8903 = vadd.f32 %v8901, %v8902
        %v8904 = vsel %vm4226, %v7794, 0.0
        %v8905 = vadd.f32 %v8903, %v8904
        %v8906 = vsel %vm4226, %v7795, 0.0
        %v8907 = vadd.f32 %v8905, %v8906
        %v8908 = vsel %vm4226, %v7796, 0.0
        %v8909 = vadd.f32 %v8907, %v8908
        %v8910 = vsel %vm4226, %v7797, 0.0
        %v8911 = vadd.f32 %v8909, %v8910
        %v8912 = vsel %vm4226, %v7798, 0.0
        %v8913 = vadd.f32 %v8911, %v8912
        %v8914 = vsel %vm4226, %v7799, 0.0
        %v8915 = vadd.f32 %v8913, %v8914
        %v8916 = vsel %vm4226, %v7800, 0.0
        %v8917 = vadd.f32 %v8915, %v8916
        %v8918 = vsel %vm4226, %v7801, 0.0
        %v8919 = vadd.f32 %v8917, %v8918
        %v8920 = vsel %vm4226, %v7802, 0.0
        %v8921 = vadd.f32 %v8919, %v8920
        %v8922 = vsel %vm4226, %v7803, 0.0
        %v8923 = vadd.f32 %v8921, %v8922
        %v8924 = vsel %vm4226, %v7804, 0.0
        %v8925 = vadd.f32 %v8923, %v8924
        %v8926 = vsel %vm4226, %v7805, 0.0
        %v8927 = vadd.f32 %v8925, %v8926
        %v8928 = vsel %vm4226, %v7806, 0.0
        %v8929 = vadd.f32 %v8927, %v8928
        %v8930 = vsel %vm4226, %v7807, 0.0
        %v8931 = vadd.f32 %v8929, %v8930
        %v8932 = vsel %vm4226, %v7808, 0.0
        %v8933 = vadd.f32 %v8931, %v8932
        %v8934 = vsel %vm4226, %v7809, 0.0
        %v8935 = vadd.f32 %v8933, %v8934
        %v8936 = vsel %vm4226, %v7810, 0.0
        %v8937 = vadd.f32 %v8935, %v8936
        %v8938 = vsel %vm4226, %v7811, 0.0
        %v8939 = vadd.f32 %v8937, %v8938
        %v8940 = vsel %vm4226, %v7812, 0.0
        %v8941 = vadd.f32 %v8939, %v8940
        %v8942 = vsel %vm4226, %v7813, 0.0
        %v8943 = vadd.f32 %v8941, %v8942
        %v8944 = vsel %vm4226, %v7814, 0.0
        %v8945 = vadd.f32 %v8943, %v8944
        %v8946 = vsel %vm4226, %v7815, 0.0
        %v8947 = vadd.f32 %v8945, %v8946
        %v8948 = vsel %vm4226, %v7816, 0.0
        %v8949 = vadd.f32 %v8947, %v8948
        %v8950 = vsel %vm4226, %v7817, 0.0
        %v8951 = vadd.f32 %v8949, %v8950
        %v8952 = vsel %vm4226, %v7818, 0.0
        %v8953 = vadd.f32 %v8951, %v8952
        %v8954 = vsel %vm4226, %v7819, 0.0
        %v8955 = vadd.f32 %v8953, %v8954
        %v8956 = vsel %vm4226, %v7820, 0.0
        %v8957 = vadd.f32 %v8955, %v8956
        %v8958 = vsel %vm4226, %v7821, 0.0
        %v8959 = vadd.f32 %v8957, %v8958
        %v8960 = vsel %vm4226, %v7822, 0.0
        %v8961 = vadd.f32 %v8959, %v8960
        %v8962 = vsel %vm4226, %v7823, 0.0
        %v8963 = vadd.f32 %v8961, %v8962
        %v8964 = vsel %vm4226, %v7824, 0.0
        %v8965 = vadd.f32 %v8963, %v8964
        %v8966 = vsel %vm4226, %v7825, 0.0
        %v8967 = vadd.f32 %v8965, %v8966
        %v8968 = vsel %vm4226, %v7826, 0.0
        %v8969 = vadd.f32 %v8967, %v8968
        %v8970 = vsel %vm4226, %v7827, 0.0
        %v8971 = vadd.f32 %v8969, %v8970
        %v8972 = vsel %vm4226, %v7828, 0.0
        %v8973 = vadd.f32 %v8971, %v8972
        %v8974 = vsel %vm4226, %v7829, 0.0
        %v8975 = vadd.f32 %v8973, %v8974
        %v8976 = vsel %vm4226, %v7830, 0.0
        %v8977 = vadd.f32 %v8975, %v8976
        %v8978 = vsel %vm4226, %v7831, 0.0
        %v8979 = vadd.f32 %v8977, %v8978
        %v8980 = vsel %vm4226, %v7832, 0.0
        %v8981 = vadd.f32 %v8979, %v8980
        %v8982 = vsel %vm4226, %v7833, 0.0
        %v8983 = vadd.f32 %v8981, %v8982
        %v8984 = vsel %vm4226, %v7834, 0.0
        %v8985 = vadd.f32 %v8983, %v8984
        %v8986 = vsel %vm4226, %v7835, 0.0
        %v8987 = vadd.f32 %v8985, %v8986
        %8988 = vadd.xlane.f32.xlu0 %v8987
        %v8989 = vpop.xlane.xlu0 %8988
        %s8990 = scalar_lea.vmem [#allocation2], 16
        %v8991 = vld [vmem:[%s8990] sm:$0xff]
        %v8992 = vld [vmem:[%s8990 + $0x8] sm:$0x3]
        %v8993 = vadd.f32 %v8991, %v8220
        %v8994 = vadd.f32 %v8992, %v8989
        %8995 = vst.msk [vmem:[%s8990] sm:$0xff] %vm5000, %v8993
        %8996 = vst.msk [vmem:[%s8990 + $0x8] sm:$0x3] %vm5002, %v8994
        %p8997 = scmp.eq.s32.totalorder %s24, 1
        // Predicated region
        $region41: #{tpu_custom_call.1} parent=27 // pred_check
          %p8998 = pneg %p8997
        $region42: #{tpu_custom_call.1} parent=27 // pred_check_branch
          %9000 = sbr.rel (%p8998) target = $region44
        $region43: #{tpu_custom_call.1} parent=27 // pred_region
          %v9001 = vld [vmem:[#allocation2] sm:$0xff]
          %v9002 = vld [vmem:[#allocation2 + $0x8] sm:$0x3]
          %v9003 = vld [vmem:[#allocation2 + $0x10] sm:$0xff]
          %v9004 = vld [vmem:[#allocation2 + $0x18] sm:$0x3]
          %9005 = vst.msk [vmem:[%s231] sm:$0xff] %vm5000, %v9001
          %9006 = vst.msk [vmem:[%s231 + $0x8] sm:$0x3] %vm5002, %v9002
          %9007 = vst.msk [vmem:[%s231 + $0x10] sm:$0xff] %vm5000, %v9003
          %9008 = vst.msk [vmem:[%s231 + $0x18] sm:$0x3] %vm5002, %v9004
        $region44: #{tpu_custom_call.1} parent=27 // pred_fallthru
          _
        %p9009 = scmp.lt.s32.totalorder %s23, 1
        %s9010 = scalar_select %p9009, %s23, 1
        %s9011 = smul.addr %s9010, 4
        %s9012 = smul.addr %s9011, 8
        %s9013 = scalar_lea.vmem %s2, %s9012
        // Predicated region
        $region45: #{tpu_custom_call.1} parent=27 // pred_check
          %p9014 = pneg %p109
        $region46: #{tpu_custom_call.1} parent=27 // pred_check_branch
          %9016 = sbr.rel (%p9014) target = $region48
        $region47: #{tpu_custom_call.1} parent=27 // pred_region
          _
        $region48: #{tpu_custom_call.1} parent=27 // pred_fallthru
          _
      $region28: #{tpu_custom_call.1} parent=5 // pred_fallthru
        _
      %p9017 = scmp.le.s32.totalorder 2, %s14
      // Predicated region
      $region49: #{tpu_custom_call.1} parent=5 // pred_check
        %p9018 = pneg %p9017
      $region50: #{tpu_custom_call.1} parent=5 // pred_check_branch
        %9020 = sbr.rel (%p9018) target = $region52
      $region51: #{tpu_custom_call.1} parent=5 // pred_region
        %s9021 = ssub.s32 %s14, 2
        // Predicated region
        $region53: #{tpu_custom_call.1} parent=51 // pred_check
          %p9022 = pneg %p115
        $region54: #{tpu_custom_call.1} parent=51 // pred_check_branch
          %9024 = sbr.rel (%p9022) target = $region56
        $region55: #{tpu_custom_call.1} parent=51 // pred_region
          %p9025 = scmp.lt.s32.totalorder %s25, 1
          %s9026 = scalar_select %p9025, %s25, 1
          %s9027 = smul.addr %s9026, 4
          %s9028 = smul.addr %s9027, 8
          %s9029 = scalar_lea.vmem %s2, %s9028
        $region56: #{tpu_custom_call.1} parent=51 // pred_fallthru
          _
      $region52: #{tpu_custom_call.1} parent=5 // pred_fallthru
        _
    $region6: #{tpu_custom_call.1} parent=1 // loop_footer
      %s18 = sadd.s32 1, %s14
    $region7: #{tpu_custom_call.1} parent=1 // loop_footer_branch
      %13 = sbr.rel target = $region3
    $region8: #{tpu_custom_call.1} parent=1 // loop_exit
      _
    %9030 = vsyncpa [#allocation4], 1
    %s9031 = scalar_lea.sflag [#allocation4], 1
    %9032 = vsyncpa %s9031, 1
    %9033 = vsyncpa [#allocation6], 1
    %s9034 = scalar_lea.sflag [#allocation6], 1
    %9035 = vsyncpa %s9034, 1

</llo_original>
